<compile_context>
chip_gen: v7x
topology: tpu7x:2x2x1
jax: 0.10.0
libtpu: 0.0.40
codegen_flags: <defaults>
</compile_context>

<pallas_src>
import jax
import jax.numpy as jnp
from jax import lax
from jax.experimental import pallas as pl
from jax.experimental.pallas import tpu as pltpu


def _round_up(v, m):
    return (v + m - 1) // m * m


# ---------------------------------------------------------------------------
# Fused Pallas kernel: 2 GRU layers over the whole (concatenated) sequence
# ---------------------------------------------------------------------------
def _dialog_gru_kernel(x_ref,      # (T*Bp, Ep) time-major: rows t*Bp:(t+1)*Bp = step t
                       h0_ref,     # (2, Bp, Ep) initial hidden state (layer 0, layer 1)
                       wih0_ref,   # (Ep, 3Ep) bf16 gate-packed [r|z|n] layer-0 input weights
                       whh0_ref,   # (Ep, 3Ep) bf16 layer-0 hidden weights
                       b0i_ref,    # (1, 3Ep) f32 folded biases [b_ir+b_hr | b_iz+b_hz | b_in]
                       b0hn_ref,   # (1, Ep)  f32 b_hn (stays inside r*(.))
                       wih1_ref,   # (Ep, 3Ep) bf16 layer-1 input weights
                       whh1_ref,   # (Ep, 3Ep) bf16 layer-1 hidden weights
                       b1i_ref,    # (1, 3Ep) f32
                       b1hn_ref,   # (1, Ep)  f32
                       hw_ref,     # (2, Bp, Ep) output (aliased onto the h0 input buffer)
                       g0_ref):    # (T*Bp, 3Ep) f32 scratch: hoisted layer-0 gate projections
    TB, Ep = x_ref.shape
    Bp = h0_ref.shape[1]
    T = TB // Bp
    f32 = jnp.float32
    bf16 = jnp.bfloat16

    # ---- hoisted layer-0 input projections: ONE gate-fused bf16 matmul over
    # all T steps (off the serial critical path) ----
    g0_ref[...] = (jnp.dot(x_ref[...].astype(bf16), wih0_ref[...],
                           preferred_element_type=f32) + b0i_ref[...])

    # Hoist all weight / bias loads out of the recurrence.
    whh0 = whh0_ref[...]
    whh1 = whh1_ref[...]
    wih1 = wih1_ref[...]
    b0_hn = b0hn_ref[...]
    b1_i = b1i_ref[...]
    b1_hn = b1hn_ref[...]

    def cell(g, h, whh, b_hn):
        # Recurrent half of the PyTorch GRU cell; the input half `g` is
        # precomputed.  ONE gate-fused (Bp,Ep)@(Ep,3Ep) bf16 dot per step; gate
        # slices are lane-aligned because Ep is a multiple of 128.  Elementwise
        # gate math stays f32.
        gh = jnp.dot(h.astype(bf16), whh, preferred_element_type=f32)   # (Bp, 3Ep)
        # r and z share one EUP sigmoid over the contiguous first 2*Ep lanes.
        # (on v7x the `g + gh` add can be absorbed into the MXU MRB drain)
        rz = jax.nn.sigmoid(g[:, :2 * Ep] + gh[:, :2 * Ep])
        r = rz[:, :Ep]
        z = rz[:, Ep:]
        n = jnp.tanh(g[:, 2 * Ep:] + r * (gh[:, 2 * Ep:] + b_hn))
        return n + z * (h - n)          # == (1 - z) * n + z * h

    def fused_step(g0_t, h0, h1):
        # Layer 0 at step t, then layer-1 input projection for step t (not on
        # the h1 serial chain), then layer 1 at step t: the two recurrent
        # dependency chains interleave so each layer's MXU latency bubbles are
        # filled by the other layer's work.
        h0 = cell(g0_t, h0, whh0, b0_hn)
        g1 = jnp.dot(h0.astype(bf16), wih1, preferred_element_type=f32) + b1_i
        h1 = cell(g1, h1, whh1, b1_hn)
        return h0, h1

    h0 = h0_ref[0]
    h1 = h0_ref[1]
    if T <= 32:
        # Small static T: full unroll.  Per-step slabs are sublane-aligned
        # (Bp % 8 == 0), so these are unmasked tile-aligned loads.
        for t in range(T):
            h0, h1 = fused_step(g0_ref[t * Bp:(t + 1) * Bp, :], h0, h1)
    else:
        # Production-sized T: bounded unroll keeps vreg pressure / code size in
        # check while still letting the scheduler overlap adjacent steps.
        def body(t, carry):
            off = pl.multiple_of(t * Bp, Bp)
            return fused_step(g0_ref[pl.ds(off, Bp), :], carry[0], carry[1])
        h0, h1 = lax.fori_loop(0, T, body, (h0, h1), unroll=4)

    hw_ref[0] = h0
    hw_ref[1] = h1


@jax.jit
def _dialog_gru_forward(x_bte, h0, wih0, whh0, b0i, b0hn, wih1, whh1, b1i, b1hn):
    """x_bte: (B, T, E) batch_first (usr ++ sys along time). h0: (2, B, E)."""
    B, T, E = x_bte.shape
    Ep = wih0.shape[0]                    # E padded to a multiple of 128 (lanes)
    Bp = _round_up(max(B, 8), 8)          # B padded to a multiple of 8 (sublanes)

    # Pad batch/features so every in-kernel access is (8,128)-tile aligned.
    # Zero padding is exact: padded lanes/rows of h remain identically zero
    # through the GRU cell and are sliced off below.
    x_tbe = jnp.transpose(x_bte, (1, 0, 2))                                  # (T, B, E)
    x_p = jnp.zeros((T, Bp, Ep), jnp.float32).at[:, :B, :E].set(x_tbe)
    x_flat = x_p.reshape(T * Bp, Ep)                                         # time-major rows
    h0_p = jnp.zeros((2, Bp, Ep), jnp.float32).at[:, :B, :E].set(h0)

    vmem = pl.BlockSpec(memory_space=pltpu.MemorySpace.VMEM)

    # Explicit VMEM budget (defaults are only 16 MiB on v5e / 32 MiB on v6e+):
    # resident state with headroom, clamped to the v7x 64 MiB/TC ceiling.
    resident = (T * Bp * Ep * 4              # x
                + T * Bp * 3 * Ep * 4        # g0 scratch
                + 2 * 2 * Bp * Ep * 4        # h0 in + hw out
                + 4 * Ep * 3 * Ep * 2        # four bf16 gate-packed weight mats
                + 2 * (3 * Ep + Ep) * 4)     # biases
    vmem_limit = int(min(max(2 * resident, 32 << 20), 64 << 20))

    # TODO(synk): for production-sized T add a T-chunked "arbitrary" grid axis
    # (h carried in VMEM scratch) so x streams/double-buffers under the
    # recurrence, and on v7x expose padded-batch groups as a "parallel" axis so
    # the two TensorCores split the batch; explicit MRB accumulation
    # (pltpu.matmul_*) could further fold the g+hW add on v7x.
    hw_p = pl.pallas_call(
        _dialog_gru_kernel,
        out_shape=jax.ShapeDtypeStruct((2, Bp, Ep), jnp.float32),
        in_specs=[vmem] * 10,
        out_specs=vmem,
        scratch_shapes=[pltpu.VMEM((T * Bp, 3 * Ep), jnp.float32)],
        input_output_aliases={1: 0},      # carried hidden state updated in place
        compiler_params=pltpu.CompilerParams(vmem_limit_bytes=vmem_limit),
    )(x_flat, h0_p, wih0, whh0, b0i, b0hn, wih1, whh1, b1i, b1hn)
    return hw_p[:, :B, :E]


# ---------------------------------------------------------------------------
# Weight packing: PyTorch layout -> gate-fused, transposed, padded, bf16
# ---------------------------------------------------------------------------
def _pack_gate_weights(w, E, Ep):
    """PyTorch (3E, E) [r;z;n] -> (Ep, 3Ep) bf16: per-gate transposed blocks."""
    out = jnp.zeros((Ep, 3 * Ep), jnp.float32)
    for g in range(3):
        out = out.at[:E, g * Ep:g * Ep + E].set(w[g * E:(g + 1) * E, :].T)
    return out.astype(jnp.bfloat16)


def _pack_gate_biases(b_ih, b_hh, E, Ep):
    """Folded biases [b_ir+b_hr | b_iz+b_hz | b_in] -> (1,3Ep); b_hn -> (1,Ep)."""
    bi = jnp.zeros((1, 3 * Ep), jnp.float32)
    bi = bi.at[0, 0 * Ep:0 * Ep + E].set(b_ih[0:E] + b_hh[0:E])
    bi = bi.at[0, 1 * Ep:1 * Ep + E].set(b_ih[E:2 * E] + b_hh[E:2 * E])
    bi = bi.at[0, 2 * Ep:2 * Ep + E].set(b_ih[2 * E:3 * E])
    bhn = jnp.zeros((1, Ep), jnp.float32).at[0, :E].set(b_hh[2 * E:3 * E])
    return bi, bhn


# ---------------------------------------------------------------------------
# DialogState module in JAX (parameters + stateful forward like the nn.Module)
# ---------------------------------------------------------------------------
class DialogState:
    NUM_LAYERS = 2

    def __init__(self, emb_size, key):
        self.emb_size = emb_size
        E = emb_size
        Ep = _round_up(E, 128)
        bound = 1.0 / float(E) ** 0.5   # torch.nn.GRU uniform(-1/sqrt(H), 1/sqrt(H))
        keys = jax.random.split(key, 4 * self.NUM_LAYERS)
        self.raw_params = []            # PyTorch-layout f32 weights (for the reference)
        packed = []
        for layer in range(self.NUM_LAYERS):
            k0, k1, k2, k3 = keys[4 * layer:4 * layer + 4]
            w_ih = jax.random.uniform(k0, (3 * E, E), jnp.float32, -bound, bound)
            w_hh = jax.random.uniform(k1, (3 * E, E), jnp.float32, -bound, bound)
            b_ih = jax.random.uniform(k2, (3 * E,), jnp.float32, -bound, bound)
            b_hh = jax.random.uniform(k3, (3 * E,), jnp.float32, -bound, bound)
            self.raw_params.append(dict(w_ih=w_ih, w_hh=w_hh, b_ih=b_ih, b_hh=b_hh))
            wih = _pack_gate_weights(w_ih, E, Ep)
            whh = _pack_gate_weights(w_hh, E, Ep)
            bi, bhn = _pack_gate_biases(b_ih, b_hh, E, Ep)
            packed.extend([wih, whh, bi, bhn])
        self.kernel_params = tuple(packed)   # (wih0, whh0, b0i, b0hn, wih1, whh1, b1i, b1hn)
        self._states = {}                    # device_id -> {'l0': hw or None}

    def _get_state(self, deviceid, reset):
        if reset or deviceid not in self._states:
            self._states[deviceid] = dict(l0=None)
        state = self._states[deviceid]
        if state["l0"] is not None:
            state["l0"] = lax.stop_gradient(state["l0"])   # .detach()
        return state

    def forward(self, usr_utter, sys_utter, reset=False):
        state = self._get_state(0, reset)
        B = usr_utter.shape[0]
        h0 = state["l0"]
        if h0 is None:
            h0 = jnp.zeros((self.NUM_LAYERS, B, self.emb_size), jnp.float32)
        # GRU(usr) -> GRU(sys) chained == one GRU pass over usr ++ sys along time
        # (for the final hidden state), so the whole forward is ONE kernel call.
        if sys_utter is not None:
            x = jnp.concatenate([usr_utter, sys_utter], axis=1)
        else:
            x = usr_utter
        hw = _dialog_gru_forward(x, h0, *self.kernel_params)
        state["l0"] = hw
        return hw

    __call__ = forward


# ---------------------------------------------------------------------------
# Pure-JAX f32 reference: the chained two-call PyTorch formulation (guards the
# usr/sys concatenation seam and the gate-fused / padded / bf16 kernel layout).
# ---------------------------------------------------------------------------
def _ref_gru_layer(x_tbe, h0, w_ih, w_hh, b_ih, b_hh):
    E = h0.shape[-1]

    def step(h, x_t):
        gi = x_t @ w_ih.T + b_ih
        gh = h @ w_hh.T + b_hh
        r = jax.nn.sigmoid(gi[:, :E] + gh[:, :E])
        z = jax.nn.sigmoid(gi[:, E:2 * E] + gh[:, E:2 * E])
        n = jnp.tanh(gi[:, 2 * E:] + r * gh[:, 2 * E:])
        h_new = (1.0 - z) * n + z * h
        return h_new, h_new

    hT, ys = lax.scan(step, h0, x_tbe)
    return ys, hT


def _ref_run(model, x_bte, h0_layers):
    x = jnp.transpose(x_bte, (1, 0, 2))
    finals = []
    for layer in range(model.NUM_LAYERS):
        p = model.raw_params[layer]
        x, hT = _ref_gru_layer(x, h0_layers[layer],
                               p["w_ih"], p["w_hh"], p["b_ih"], p["b_hh"])
        finals.append(hT)
    return jnp.stack(finals, 0)


def _ref_forward(model, usr, sys_utter, h0=None):
    B = usr.shape[0]
    if h0 is None:
        h0 = jnp.zeros((model.NUM_LAYERS, B, model.emb_size), jnp.float32)
    hw = _ref_run(model, usr, h0)
    if sys_utter is not None:
        hw = _ref_run(model, sys_utter, hw)
    return hw


if __name__ == "__main__":
    B, T, E = 2, 8, 32   # batch, seq len per utterance, emb_size

    key = jax.random.PRNGKey(0)
    k_model, k_usr, k_sys = jax.random.split(key, 3)

    model = DialogState(E, k_model)
    usr_utter = jax.random.normal(k_usr, (B, T, E), jnp.float32)
    sys_utter = jax.random.normal(k_sys, (B, T, E), jnp.float32)

    # First turn (reset): zero initial state.
    hw = jax.block_until_ready(model(usr_utter, sys_utter, reset=True))
    hw_ref = jax.block_until_ready(_ref_forward(model, usr_utter, sys_utter))
    assert hw.shape == (2, B, E)
    # bf16 MXU operands (f32 accumulate, f32 gate math) vs an all-f32 reference:
    # rounding compounds over the 2*T dependent recurrence steps -> loosened atol.
    assert jnp.allclose(hw, hw_ref, atol=5e-2), "Pallas GRU mismatch vs JAX reference"

    # Second turn (no reset): persistent hidden state is carried over.
    hw2 = jax.block_until_ready(model(usr_utter, sys_utter, reset=False))
    hw2_ref = jax.block_until_ready(_ref_forward(model, usr_utter, sys_utter, h0=hw_ref))
    assert jnp.allclose(hw2, hw2_ref, atol=5e-2), "Pallas GRU mismatch on carried state"

    print("KERNEL_OK")
</pallas_src>

<mosaic_0001>
module attributes {stable_mosaic.version = 11 : i64} {
  func.func @_dialog_gru_kernel(%arg0: memref<128x128xf32, #tpu.memory_space<vmem>>, %arg1: memref<2x8x128xf32, #tpu.memory_space<vmem>>, %arg2: memref<128x384xbf16, #tpu.memory_space<vmem>>, %arg3: memref<128x384xbf16, #tpu.memory_space<vmem>>, %arg4: memref<1x384xf32, #tpu.memory_space<vmem>>, %arg5: memref<1x128xf32, #tpu.memory_space<vmem>>, %arg6: memref<128x384xbf16, #tpu.memory_space<vmem>>, %arg7: memref<128x384xbf16, #tpu.memory_space<vmem>>, %arg8: memref<1x384xf32, #tpu.memory_space<vmem>>, %arg9: memref<1x128xf32, #tpu.memory_space<vmem>>, %arg10: memref<2x8x128xf32, #tpu.memory_space<vmem>>, %arg11: memref<128x384xf32, #tpu.memory_space<vmem>>) attributes {dimension_semantics = [], scalar_prefetch = 0 : i64, scratch_operands = 1 : i64, tpu.core_type = #tpu.core_type<tc>} {
    %c0 = arith.constant 0 : index
    %c0_0 = arith.constant 0 : index
    %0 = vector.load %arg0[%c0, %c0_0] : memref<128x128xf32, #tpu.memory_space<vmem>>, vector<128x128xf32>
    %1 = arith.truncf %0 : vector<128x128xf32> to vector<128x128xbf16>
    %c0_1 = arith.constant 0 : index
    %c0_2 = arith.constant 0 : index
    %2 = vector.load %arg2[%c0_1, %c0_2] : memref<128x384xbf16, #tpu.memory_space<vmem>>, vector<128x384xbf16>
    %cst = arith.constant dense<0.000000e+00> : vector<128x384xf32>
    %3 = tpu.matmul %1, %2, %cst {dimension_numbers = #tpu.dot_dimension_numbers<[1], [0], [0], [1], [0, 0, 1, 1], [], []>} : vector<128x128xbf16>, vector<128x384xbf16>, vector<128x384xf32> -> vector<128x384xf32>
    %c0_3 = arith.constant 0 : index
    %c0_4 = arith.constant 0 : index
    %4 = vector.load %arg4[%c0_3, %c0_4] : memref<1x384xf32, #tpu.memory_space<vmem>>, vector<1x384xf32>
    %5 = vector.broadcast %4 : vector<1x384xf32> to vector<128x384xf32>
    %6 = arith.addf %3, %5 : vector<128x384xf32>
    %c0_5 = arith.constant 0 : index
    %c0_6 = arith.constant 0 : index
    %7 = vector.load %arg11[%c0_5, %c0_6] : memref<128x384xf32, #tpu.memory_space<vmem>>, vector<128x384xf32>
    tpu.vector_store %arg11[%c0_5, %c0_6], %6 {strides = array<i32>} : memref<128x384xf32, #tpu.memory_space<vmem>>, vector<128x384xf32>,
    %c0_7 = arith.constant 0 : index
    %c0_8 = arith.constant 0 : index
    %8 = vector.load %arg3[%c0_7, %c0_8] : memref<128x384xbf16, #tpu.memory_space<vmem>>, vector<128x384xbf16>
    %c0_9 = arith.constant 0 : index
    %c0_10 = arith.constant 0 : index
    %9 = vector.load %arg7[%c0_9, %c0_10] : memref<128x384xbf16, #tpu.memory_space<vmem>>, vector<128x384xbf16>
    %c0_11 = arith.constant 0 : index
    %c0_12 = arith.constant 0 : index
    %10 = vector.load %arg6[%c0_11, %c0_12] : memref<128x384xbf16, #tpu.memory_space<vmem>>, vector<128x384xbf16>
    %c0_13 = arith.constant 0 : index
    %c0_14 = arith.constant 0 : index
    %11 = vector.load %arg5[%c0_13, %c0_14] : memref<1x128xf32, #tpu.memory_space<vmem>>, vector<1x128xf32>
    %c0_15 = arith.constant 0 : index
    %c0_16 = arith.constant 0 : index
    %12 = vector.load %arg8[%c0_15, %c0_16] : memref<1x384xf32, #tpu.memory_space<vmem>>, vector<1x384xf32>
    %c0_17 = arith.constant 0 : index
    %c0_18 = arith.constant 0 : index
    %13 = vector.load %arg9[%c0_17, %c0_18] : memref<1x128xf32, #tpu.memory_space<vmem>>, vector<1x128xf32>
    %c0_19 = arith.constant 0 : index
    %c0_20 = arith.constant 0 : index
    %c0_21 = arith.constant 0 : index
    %14 = vector.load %arg1[%c0_19, %c0_20, %c0_21] : memref<2x8x128xf32, #tpu.memory_space<vmem>>, vector<1x8x128xf32>
    %15 = vector.shape_cast %14 : vector<1x8x128xf32> to vector<8x128xf32>
    %c1 = arith.constant 1 : index
    %c0_22 = arith.constant 0 : index
    %c0_23 = arith.constant 0 : index
    %16 = vector.load %arg1[%c1, %c0_22, %c0_23] : memref<2x8x128xf32, #tpu.memory_space<vmem>>, vector<1x8x128xf32>
    %17 = vector.shape_cast %16 : vector<1x8x128xf32> to vector<8x128xf32>
    %c0_24 = arith.constant 0 : index
    %c0_25 = arith.constant 0 : index
    %18 = vector.load %arg11[%c0_24, %c0_25] : memref<128x384xf32, #tpu.memory_space<vmem>>, vector<8x384xf32>
    %19 = arith.truncf %15 : vector<8x128xf32> to vector<8x128xbf16>
    %cst_26 = arith.constant dense<0.000000e+00> : vector<8x384xf32>
    %20 = tpu.matmul %19, %8, %cst_26 {dimension_numbers = #tpu.dot_dimension_numbers<[1], [0], [0], [1], [0, 0, 1, 1], [], []>} : vector<8x128xbf16>, vector<128x384xbf16>, vector<8x384xf32> -> vector<8x384xf32>
    %21 = vector.extract_strided_slice %18 {offsets = [0, 0], sizes = [8, 256], strides = [1, 1]} : vector<8x384xf32> to vector<8x256xf32>
    %22 = vector.extract_strided_slice %20 {offsets = [0, 0], sizes = [8, 256], strides = [1, 1]} : vector<8x384xf32> to vector<8x256xf32>
    %23 = arith.addf %21, %22 : vector<8x256xf32>
    %24 = arith.negf %23 : vector<8x256xf32>
    %25 = math.exp %24 : vector<8x256xf32>
    %cst_27 = arith.constant 1.000000e+00 : f32
    %26 = vector.broadcast %cst_27 : f32 to vector<8x256xf32>
    %27 = arith.addf %26, %25 : vector<8x256xf32>
    %28 = arith.divf %26, %27 : vector<8x256xf32>
    %29 = vector.extract_strided_slice %28 {offsets = [0, 0], sizes = [8, 128], strides = [1, 1]} : vector<8x256xf32> to vector<8x128xf32>
    %30 = vector.extract_strided_slice %28 {offsets = [0, 128], sizes = [8, 128], strides = [1, 1]} : vector<8x256xf32> to vector<8x128xf32>
    %31 = vector.extract_strided_slice %18 {offsets = [0, 256], sizes = [8, 128], strides = [1, 1]} : vector<8x384xf32> to vector<8x128xf32>
    %32 = vector.extract_strided_slice %20 {offsets = [0, 256], sizes = [8, 128], strides = [1, 1]} : vector<8x384xf32> to vector<8x128xf32>
    %33 = vector.broadcast %11 : vector<1x128xf32> to vector<8x128xf32>
    %34 = arith.addf %32, %33 : vector<8x128xf32>
    %35 = arith.mulf %29, %34 : vector<8x128xf32>
    %36 = arith.addf %31, %35 : vector<8x128xf32>
    %37 = math.tanh %36 : vector<8x128xf32>
    %38 = arith.subf %15, %37 : vector<8x128xf32>
    %39 = arith.mulf %30, %38 : vector<8x128xf32>
    %40 = arith.addf %37, %39 : vector<8x128xf32>
    %41 = arith.truncf %40 : vector<8x128xf32> to vector<8x128xbf16>
    %cst_28 = arith.constant dense<0.000000e+00> : vector<8x384xf32>
    %42 = tpu.matmul %41, %10, %cst_28 {dimension_numbers = #tpu.dot_dimension_numbers<[1], [0], [0], [1], [0, 0, 1, 1], [], []>} : vector<8x128xbf16>, vector<128x384xbf16>, vector<8x384xf32> -> vector<8x384xf32>
    %43 = vector.broadcast %12 : vector<1x384xf32> to vector<8x384xf32>
    %44 = arith.addf %42, %43 : vector<8x384xf32>
    %45 = arith.truncf %17 : vector<8x128xf32> to vector<8x128xbf16>
    %cst_29 = arith.constant dense<0.000000e+00> : vector<8x384xf32>
    %46 = tpu.matmul %45, %9, %cst_29 {dimension_numbers = #tpu.dot_dimension_numbers<[1], [0], [0], [1], [0, 0, 1, 1], [], []>} : vector<8x128xbf16>, vector<128x384xbf16>, vector<8x384xf32> -> vector<8x384xf32>
    %47 = vector.extract_strided_slice %44 {offsets = [0, 0], sizes = [8, 256], strides = [1, 1]} : vector<8x384xf32> to vector<8x256xf32>
    %48 = vector.extract_strided_slice %46 {offsets = [0, 0], sizes = [8, 256], strides = [1, 1]} : vector<8x384xf32> to vector<8x256xf32>
    %49 = arith.addf %47, %48 : vector<8x256xf32>
    %50 = arith.negf %49 : vector<8x256xf32>
    %51 = math.exp %50 : vector<8x256xf32>
    %cst_30 = arith.constant 1.000000e+00 : f32
    %52 = vector.broadcast %cst_30 : f32 to vector<8x256xf32>
    %53 = arith.addf %52, %51 : vector<8x256xf32>
    %54 = arith.divf %52, %53 : vector<8x256xf32>
    %55 = vector.extract_strided_slice %54 {offsets = [0, 0], sizes = [8, 128], strides = [1, 1]} : vector<8x256xf32> to vector<8x128xf32>
    %56 = vector.extract_strided_slice %54 {offsets = [0, 128], sizes = [8, 128], strides = [1, 1]} : vector<8x256xf32> to vector<8x128xf32>
    %57 = vector.extract_strided_slice %44 {offsets = [0, 256], sizes = [8, 128], strides = [1, 1]} : vector<8x384xf32> to vector<8x128xf32>
    %58 = vector.extract_strided_slice %46 {offsets = [0, 256], sizes = [8, 128], strides = [1, 1]} : vector<8x384xf32> to vector<8x128xf32>
    %59 = vector.broadcast %13 : vector<1x128xf32> to vector<8x128xf32>
    %60 = arith.addf %58, %59 : vector<8x128xf32>
    %61 = arith.mulf %55, %60 : vector<8x128xf32>
    %62 = arith.addf %57, %61 : vector<8x128xf32>
    %63 = math.tanh %62 : vector<8x128xf32>
    %64 = arith.subf %17, %63 : vector<8x128xf32>
    %65 = arith.mulf %56, %64 : vector<8x128xf32>
    %66 = arith.addf %63, %65 : vector<8x128xf32>
    %c8 = arith.constant 8 : index
    %c0_31 = arith.constant 0 : index
    %67 = vector.load %arg11[%c8, %c0_31] : memref<128x384xf32, #tpu.memory_space<vmem>>, vector<8x384xf32>
    %68 = arith.truncf %40 : vector<8x128xf32> to vector<8x128xbf16>
    %cst_32 = arith.constant dense<0.000000e+00> : vector<8x384xf32>
    %69 = tpu.matmul %68, %8, %cst_32 {dimension_numbers = #tpu.dot_dimension_numbers<[1], [0], [0], [1], [0, 0, 1, 1], [], []>} : vector<8x128xbf16>, vector<128x384xbf16>, vector<8x384xf32> -> vector<8x384xf32>
    %70 = vector.extract_strided_slice %67 {offsets = [0, 0], sizes = [8, 256], strides = [1, 1]} : vector<8x384xf32> to vector<8x256xf32>
    %71 = vector.extract_strided_slice %69 {offsets = [0, 0], sizes = [8, 256], strides = [1, 1]} : vector<8x384xf32> to vector<8x256xf32>
    %72 = arith.addf %70, %71 : vector<8x256xf32>
    %73 = arith.negf %72 : vector<8x256xf32>
    %74 = math.exp %73 : vector<8x256xf32>
    %cst_33 = arith.constant 1.000000e+00 : f32
    %75 = vector.broadcast %cst_33 : f32 to vector<8x256xf32>
    %76 = arith.addf %75, %74 : vector<8x256xf32>
    %77 = arith.divf %75, %76 : vector<8x256xf32>
    %78 = vector.extract_strided_slice %77 {offsets = [0, 0], sizes = [8, 128], strides = [1, 1]} : vector<8x256xf32> to vector<8x128xf32>
    %79 = vector.extract_strided_slice %77 {offsets = [0, 128], sizes = [8, 128], strides = [1, 1]} : vector<8x256xf32> to vector<8x128xf32>
    %80 = vector.extract_strided_slice %67 {offsets = [0, 256], sizes = [8, 128], strides = [1, 1]} : vector<8x384xf32> to vector<8x128xf32>
    %81 = vector.extract_strided_slice %69 {offsets = [0, 256], sizes = [8, 128], strides = [1, 1]} : vector<8x384xf32> to vector<8x128xf32>
    %82 = vector.broadcast %11 : vector<1x128xf32> to vector<8x128xf32>
    %83 = arith.addf %81, %82 : vector<8x128xf32>
    %84 = arith.mulf %78, %83 : vector<8x128xf32>
    %85 = arith.addf %80, %84 : vector<8x128xf32>
    %86 = math.tanh %85 : vector<8x128xf32>
    %87 = arith.subf %40, %86 : vector<8x128xf32>
    %88 = arith.mulf %79, %87 : vector<8x128xf32>
    %89 = arith.addf %86, %88 : vector<8x128xf32>
    %90 = arith.truncf %89 : vector<8x128xf32> to vector<8x128xbf16>
    %cst_34 = arith.constant dense<0.000000e+00> : vector<8x384xf32>
    %91 = tpu.matmul %90, %10, %cst_34 {dimension_numbers = #tpu.dot_dimension_numbers<[1], [0], [0], [1], [0, 0, 1, 1], [], []>} : vector<8x128xbf16>, vector<128x384xbf16>, vector<8x384xf32> -> vector<8x384xf32>
    %92 = vector.broadcast %12 : vector<1x384xf32> to vector<8x384xf32>
    %93 = arith.addf %91, %92 : vector<8x384xf32>
    %94 = arith.truncf %66 : vector<8x128xf32> to vector<8x128xbf16>
    %cst_35 = arith.constant dense<0.000000e+00> : vector<8x384xf32>
    %95 = tpu.matmul %94, %9, %cst_35 {dimension_numbers = #tpu.dot_dimension_numbers<[1], [0], [0], [1], [0, 0, 1, 1], [], []>} : vector<8x128xbf16>, vector<128x384xbf16>, vector<8x384xf32> -> vector<8x384xf32>
    %96 = vector.extract_strided_slice %93 {offsets = [0, 0], sizes = [8, 256], strides = [1, 1]} : vector<8x384xf32> to vector<8x256xf32>
    %97 = vector.extract_strided_slice %95 {offsets = [0, 0], sizes = [8, 256], strides = [1, 1]} : vector<8x384xf32> to vector<8x256xf32>
    %98 = arith.addf %96, %97 : vector<8x256xf32>
    %99 = arith.negf %98 : vector<8x256xf32>
    %100 = math.exp %99 : vector<8x256xf32>
    %cst_36 = arith.constant 1.000000e+00 : f32
    %101 = vector.broadcast %cst_36 : f32 to vector<8x256xf32>
    %102 = arith.addf %101, %100 : vector<8x256xf32>
    %103 = arith.divf %101, %102 : vector<8x256xf32>
    %104 = vector.extract_strided_slice %103 {offsets = [0, 0], sizes = [8, 128], strides = [1, 1]} : vector<8x256xf32> to vector<8x128xf32>
    %105 = vector.extract_strided_slice %103 {offsets = [0, 128], sizes = [8, 128], strides = [1, 1]} : vector<8x256xf32> to vector<8x128xf32>
    %106 = vector.extract_strided_slice %93 {offsets = [0, 256], sizes = [8, 128], strides = [1, 1]} : vector<8x384xf32> to vector<8x128xf32>
    %107 = vector.extract_strided_slice %95 {offsets = [0, 256], sizes = [8, 128], strides = [1, 1]} : vector<8x384xf32> to vector<8x128xf32>
    %108 = vector.broadcast %13 : vector<1x128xf32> to vector<8x128xf32>
    %109 = arith.addf %107, %108 : vector<8x128xf32>
    %110 = arith.mulf %104, %109 : vector<8x128xf32>
    %111 = arith.addf %106, %110 : vector<8x128xf32>
    %112 = math.tanh %111 : vector<8x128xf32>
    %113 = arith.subf %66, %112 : vector<8x128xf32>
    %114 = arith.mulf %105, %113 : vector<8x128xf32>
    %115 = arith.addf %112, %114 : vector<8x128xf32>
    %c16 = arith.constant 16 : index
    %c0_37 = arith.constant 0 : index
    %116 = vector.load %arg11[%c16, %c0_37] : memref<128x384xf32, #tpu.memory_space<vmem>>, vector<8x384xf32>
    %117 = arith.truncf %89 : vector<8x128xf32> to vector<8x128xbf16>
    %cst_38 = arith.constant dense<0.000000e+00> : vector<8x384xf32>
    %118 = tpu.matmul %117, %8, %cst_38 {dimension_numbers = #tpu.dot_dimension_numbers<[1], [0], [0], [1], [0, 0, 1, 1], [], []>} : vector<8x128xbf16>, vector<128x384xbf16>, vector<8x384xf32> -> vector<8x384xf32>
    %119 = vector.extract_strided_slice %116 {offsets = [0, 0], sizes = [8, 256], strides = [1, 1]} : vector<8x384xf32> to vector<8x256xf32>
    %120 = vector.extract_strided_slice %118 {offsets = [0, 0], sizes = [8, 256], strides = [1, 1]} : vector<8x384xf32> to vector<8x256xf32>
    %121 = arith.addf %119, %120 : vector<8x256xf32>
    %122 = arith.negf %121 : vector<8x256xf32>
    %123 = math.exp %122 : vector<8x256xf32>
    %cst_39 = arith.constant 1.000000e+00 : f32
    %124 = vector.broadcast %cst_39 : f32 to vector<8x256xf32>
    %125 = arith.addf %124, %123 : vector<8x256xf32>
    %126 = arith.divf %124, %125 : vector<8x256xf32>
    %127 = vector.extract_strided_slice %126 {offsets = [0, 0], sizes = [8, 128], strides = [1, 1]} : vector<8x256xf32> to vector<8x128xf32>
    %128 = vector.extract_strided_slice %126 {offsets = [0, 128], sizes = [8, 128], strides = [1, 1]} : vector<8x256xf32> to vector<8x128xf32>
    %129 = vector.extract_strided_slice %116 {offsets = [0, 256], sizes = [8, 128], strides = [1, 1]} : vector<8x384xf32> to vector<8x128xf32>
    %130 = vector.extract_strided_slice %118 {offsets = [0, 256], sizes = [8, 128], strides = [1, 1]} : vector<8x384xf32> to vector<8x128xf32>
    %131 = vector.broadcast %11 : vector<1x128xf32> to vector<8x128xf32>
    %132 = arith.addf %130, %131 : vector<8x128xf32>
    %133 = arith.mulf %127, %132 : vector<8x128xf32>
    %134 = arith.addf %129, %133 : vector<8x128xf32>
    %135 = math.tanh %134 : vector<8x128xf32>
    %136 = arith.subf %89, %135 : vector<8x128xf32>
    %137 = arith.mulf %128, %136 : vector<8x128xf32>
    %138 = arith.addf %135, %137 : vector<8x128xf32>
    %139 = arith.truncf %138 : vector<8x128xf32> to vector<8x128xbf16>
    %cst_40 = arith.constant dense<0.000000e+00> : vector<8x384xf32>
    %140 = tpu.matmul %139, %10, %cst_40 {dimension_numbers = #tpu.dot_dimension_numbers<[1], [0], [0], [1], [0, 0, 1, 1], [], []>} : vector<8x128xbf16>, vector<128x384xbf16>, vector<8x384xf32> -> vector<8x384xf32>
    %141 = vector.broadcast %12 : vector<1x384xf32> to vector<8x384xf32>
    %142 = arith.addf %140, %141 : vector<8x384xf32>
    %143 = arith.truncf %115 : vector<8x128xf32> to vector<8x128xbf16>
    %cst_41 = arith.constant dense<0.000000e+00> : vector<8x384xf32>
    %144 = tpu.matmul %143, %9, %cst_41 {dimension_numbers = #tpu.dot_dimension_numbers<[1], [0], [0], [1], [0, 0, 1, 1], [], []>} : vector<8x128xbf16>, vector<128x384xbf16>, vector<8x384xf32> -> vector<8x384xf32>
    %145 = vector.extract_strided_slice %142 {offsets = [0, 0], sizes = [8, 256], strides = [1, 1]} : vector<8x384xf32> to vector<8x256xf32>
    %146 = vector.extract_strided_slice %144 {offsets = [0, 0], sizes = [8, 256], strides = [1, 1]} : vector<8x384xf32> to vector<8x256xf32>
    %147 = arith.addf %145, %146 : vector<8x256xf32>
    %148 = arith.negf %147 : vector<8x256xf32>
    %149 = math.exp %148 : vector<8x256xf32>
    %cst_42 = arith.constant 1.000000e+00 : f32
    %150 = vector.broadcast %cst_42 : f32 to vector<8x256xf32>
    %151 = arith.addf %150, %149 : vector<8x256xf32>
    %152 = arith.divf %150, %151 : vector<8x256xf32>
    %153 = vector.extract_strided_slice %152 {offsets = [0, 0], sizes = [8, 128], strides = [1, 1]} : vector<8x256xf32> to vector<8x128xf32>
    %154 = vector.extract_strided_slice %152 {offsets = [0, 128], sizes = [8, 128], strides = [1, 1]} : vector<8x256xf32> to vector<8x128xf32>
    %155 = vector.extract_strided_slice %142 {offsets = [0, 256], sizes = [8, 128], strides = [1, 1]} : vector<8x384xf32> to vector<8x128xf32>
    %156 = vector.extract_strided_slice %144 {offsets = [0, 256], sizes = [8, 128], strides = [1, 1]} : vector<8x384xf32> to vector<8x128xf32>
    %157 = vector.broadcast %13 : vector<1x128xf32> to vector<8x128xf32>
    %158 = arith.addf %156, %157 : vector<8x128xf32>
    %159 = arith.mulf %153, %158 : vector<8x128xf32>
    %160 = arith.addf %155, %159 : vector<8x128xf32>
    %161 = math.tanh %160 : vector<8x128xf32>
    %162 = arith.subf %115, %161 : vector<8x128xf32>
    %163 = arith.mulf %154, %162 : vector<8x128xf32>
    %164 = arith.addf %161, %163 : vector<8x128xf32>
    %c24 = arith.constant 24 : index
    %c0_43 = arith.constant 0 : index
    %165 = vector.load %arg11[%c24, %c0_43] : memref<128x384xf32, #tpu.memory_space<vmem>>, vector<8x384xf32>
    %166 = arith.truncf %138 : vector<8x128xf32> to vector<8x128xbf16>
    %cst_44 = arith.constant dense<0.000000e+00> : vector<8x384xf32>
    %167 = tpu.matmul %166, %8, %cst_44 {dimension_numbers = #tpu.dot_dimension_numbers<[1], [0], [0], [1], [0, 0, 1, 1], [], []>} : vector<8x128xbf16>, vector<128x384xbf16>, vector<8x384xf32> -> vector<8x384xf32>
    %168 = vector.extract_strided_slice %165 {offsets = [0, 0], sizes = [8, 256], strides = [1, 1]} : vector<8x384xf32> to vector<8x256xf32>
    %169 = vector.extract_strided_slice %167 {offsets = [0, 0], sizes = [8, 256], strides = [1, 1]} : vector<8x384xf32> to vector<8x256xf32>
    %170 = arith.addf %168, %169 : vector<8x256xf32>
    %171 = arith.negf %170 : vector<8x256xf32>
    %172 = math.exp %171 : vector<8x256xf32>
    %cst_45 = arith.constant 1.000000e+00 : f32
    %173 = vector.broadcast %cst_45 : f32 to vector<8x256xf32>
    %174 = arith.addf %173, %172 : vector<8x256xf32>
    %175 = arith.divf %173, %174 : vector<8x256xf32>
    %176 = vector.extract_strided_slice %175 {offsets = [0, 0], sizes = [8, 128], strides = [1, 1]} : vector<8x256xf32> to vector<8x128xf32>
    %177 = vector.extract_strided_slice %175 {offsets = [0, 128], sizes = [8, 128], strides = [1, 1]} : vector<8x256xf32> to vector<8x128xf32>
    %178 = vector.extract_strided_slice %165 {offsets = [0, 256], sizes = [8, 128], strides = [1, 1]} : vector<8x384xf32> to vector<8x128xf32>
    %179 = vector.extract_strided_slice %167 {offsets = [0, 256], sizes = [8, 128], strides = [1, 1]} : vector<8x384xf32> to vector<8x128xf32>
    %180 = vector.broadcast %11 : vector<1x128xf32> to vector<8x128xf32>
    %181 = arith.addf %179, %180 : vector<8x128xf32>
    %182 = arith.mulf %176, %181 : vector<8x128xf32>
    %183 = arith.addf %178, %182 : vector<8x128xf32>
    %184 = math.tanh %183 : vector<8x128xf32>
    %185 = arith.subf %138, %184 : vector<8x128xf32>
    %186 = arith.mulf %177, %185 : vector<8x128xf32>
    %187 = arith.addf %184, %186 : vector<8x128xf32>
    %188 = arith.truncf %187 : vector<8x128xf32> to vector<8x128xbf16>
    %cst_46 = arith.constant dense<0.000000e+00> : vector<8x384xf32>
    %189 = tpu.matmul %188, %10, %cst_46 {dimension_numbers = #tpu.dot_dimension_numbers<[1], [0], [0], [1], [0, 0, 1, 1], [], []>} : vector<8x128xbf16>, vector<128x384xbf16>, vector<8x384xf32> -> vector<8x384xf32>
    %190 = vector.broadcast %12 : vector<1x384xf32> to vector<8x384xf32>
    %191 = arith.addf %189, %190 : vector<8x384xf32>
    %192 = arith.truncf %164 : vector<8x128xf32> to vector<8x128xbf16>
    %cst_47 = arith.constant dense<0.000000e+00> : vector<8x384xf32>
    %193 = tpu.matmul %192, %9, %cst_47 {dimension_numbers = #tpu.dot_dimension_numbers<[1], [0], [0], [1], [0, 0, 1, 1], [], []>} : vector<8x128xbf16>, vector<128x384xbf16>, vector<8x384xf32> -> vector<8x384xf32>
    %194 = vector.extract_strided_slice %191 {offsets = [0, 0], sizes = [8, 256], strides = [1, 1]} : vector<8x384xf32> to vector<8x256xf32>
    %195 = vector.extract_strided_slice %193 {offsets = [0, 0], sizes = [8, 256], strides = [1, 1]} : vector<8x384xf32> to vector<8x256xf32>
    %196 = arith.addf %194, %195 : vector<8x256xf32>
    %197 = arith.negf %196 : vector<8x256xf32>
    %198 = math.exp %197 : vector<8x256xf32>
    %cst_48 = arith.constant 1.000000e+00 : f32
    %199 = vector.broadcast %cst_48 : f32 to vector<8x256xf32>
    %200 = arith.addf %199, %198 : vector<8x256xf32>
    %201 = arith.divf %199, %200 : vector<8x256xf32>
    %202 = vector.extract_strided_slice %201 {offsets = [0, 0], sizes = [8, 128], strides = [1, 1]} : vector<8x256xf32> to vector<8x128xf32>
    %203 = vector.extract_strided_slice %201 {offsets = [0, 128], sizes = [8, 128], strides = [1, 1]} : vector<8x256xf32> to vector<8x128xf32>
    %204 = vector.extract_strided_slice %191 {offsets = [0, 256], sizes = [8, 128], strides = [1, 1]} : vector<8x384xf32> to vector<8x128xf32>
    %205 = vector.extract_strided_slice %193 {offsets = [0, 256], sizes = [8, 128], strides = [1, 1]} : vector<8x384xf32> to vector<8x128xf32>
    %206 = vector.broadcast %13 : vector<1x128xf32> to vector<8x128xf32>
    %207 = arith.addf %205, %206 : vector<8x128xf32>
    %208 = arith.mulf %202, %207 : vector<8x128xf32>
    %209 = arith.addf %204, %208 : vector<8x128xf32>
    %210 = math.tanh %209 : vector<8x128xf32>
    %211 = arith.subf %164, %210 : vector<8x128xf32>
    %212 = arith.mulf %203, %211 : vector<8x128xf32>
    %213 = arith.addf %210, %212 : vector<8x128xf32>
    %c32 = arith.constant 32 : index
    %c0_49 = arith.constant 0 : index
    %214 = vector.load %arg11[%c32, %c0_49] : memref<128x384xf32, #tpu.memory_space<vmem>>, vector<8x384xf32>
    %215 = arith.truncf %187 : vector<8x128xf32> to vector<8x128xbf16>
    %cst_50 = arith.constant dense<0.000000e+00> : vector<8x384xf32>
    %216 = tpu.matmul %215, %8, %cst_50 {dimension_numbers = #tpu.dot_dimension_numbers<[1], [0], [0], [1], [0, 0, 1, 1], [], []>} : vector<8x128xbf16>, vector<128x384xbf16>, vector<8x384xf32> -> vector<8x384xf32>
    %217 = vector.extract_strided_slice %214 {offsets = [0, 0], sizes = [8, 256], strides = [1, 1]} : vector<8x384xf32> to vector<8x256xf32>
    %218 = vector.extract_strided_slice %216 {offsets = [0, 0], sizes = [8, 256], strides = [1, 1]} : vector<8x384xf32> to vector<8x256xf32>
    %219 = arith.addf %217, %218 : vector<8x256xf32>
    %220 = arith.negf %219 : vector<8x256xf32>
    %221 = math.exp %220 : vector<8x256xf32>
    %cst_51 = arith.constant 1.000000e+00 : f32
    %222 = vector.broadcast %cst_51 : f32 to vector<8x256xf32>
    %223 = arith.addf %222, %221 : vector<8x256xf32>
    %224 = arith.divf %222, %223 : vector<8x256xf32>
    %225 = vector.extract_strided_slice %224 {offsets = [0, 0], sizes = [8, 128], strides = [1, 1]} : vector<8x256xf32> to vector<8x128xf32>
    %226 = vector.extract_strided_slice %224 {offsets = [0, 128], sizes = [8, 128], strides = [1, 1]} : vector<8x256xf32> to vector<8x128xf32>
    %227 = vector.extract_strided_slice %214 {offsets = [0, 256], sizes = [8, 128], strides = [1, 1]} : vector<8x384xf32> to vector<8x128xf32>
    %228 = vector.extract_strided_slice %216 {offsets = [0, 256], sizes = [8, 128], strides = [1, 1]} : vector<8x384xf32> to vector<8x128xf32>
    %229 = vector.broadcast %11 : vector<1x128xf32> to vector<8x128xf32>
    %230 = arith.addf %228, %229 : vector<8x128xf32>
    %231 = arith.mulf %225, %230 : vector<8x128xf32>
    %232 = arith.addf %227, %231 : vector<8x128xf32>
    %233 = math.tanh %232 : vector<8x128xf32>
    %234 = arith.subf %187, %233 : vector<8x128xf32>
    %235 = arith.mulf %226, %234 : vector<8x128xf32>
    %236 = arith.addf %233, %235 : vector<8x128xf32>
    %237 = arith.truncf %236 : vector<8x128xf32> to vector<8x128xbf16>
    %cst_52 = arith.constant dense<0.000000e+00> : vector<8x384xf32>
    %238 = tpu.matmul %237, %10, %cst_52 {dimension_numbers = #tpu.dot_dimension_numbers<[1], [0], [0], [1], [0, 0, 1, 1], [], []>} : vector<8x128xbf16>, vector<128x384xbf16>, vector<8x384xf32> -> vector<8x384xf32>
    %239 = vector.broadcast %12 : vector<1x384xf32> to vector<8x384xf32>
    %240 = arith.addf %238, %239 : vector<8x384xf32>
    %241 = arith.truncf %213 : vector<8x128xf32> to vector<8x128xbf16>
    %cst_53 = arith.constant dense<0.000000e+00> : vector<8x384xf32>
    %242 = tpu.matmul %241, %9, %cst_53 {dimension_numbers = #tpu.dot_dimension_numbers<[1], [0], [0], [1], [0, 0, 1, 1], [], []>} : vector<8x128xbf16>, vector<128x384xbf16>, vector<8x384xf32> -> vector<8x384xf32>
    %243 = vector.extract_strided_slice %240 {offsets = [0, 0], sizes = [8, 256], strides = [1, 1]} : vector<8x384xf32> to vector<8x256xf32>
    %244 = vector.extract_strided_slice %242 {offsets = [0, 0], sizes = [8, 256], strides = [1, 1]} : vector<8x384xf32> to vector<8x256xf32>
    %245 = arith.addf %243, %244 : vector<8x256xf32>
    %246 = arith.negf %245 : vector<8x256xf32>
    %247 = math.exp %246 : vector<8x256xf32>
    %cst_54 = arith.constant 1.000000e+00 : f32
    %248 = vector.broadcast %cst_54 : f32 to vector<8x256xf32>
    %249 = arith.addf %248, %247 : vector<8x256xf32>
    %250 = arith.divf %248, %249 : vector<8x256xf32>
    %251 = vector.extract_strided_slice %250 {offsets = [0, 0], sizes = [8, 128], strides = [1, 1]} : vector<8x256xf32> to vector<8x128xf32>
    %252 = vector.extract_strided_slice %250 {offsets = [0, 128], sizes = [8, 128], strides = [1, 1]} : vector<8x256xf32> to vector<8x128xf32>
    %253 = vector.extract_strided_slice %240 {offsets = [0, 256], sizes = [8, 128], strides = [1, 1]} : vector<8x384xf32> to vector<8x128xf32>
    %254 = vector.extract_strided_slice %242 {offsets = [0, 256], sizes = [8, 128], strides = [1, 1]} : vector<8x384xf32> to vector<8x128xf32>
    %255 = vector.broadcast %13 : vector<1x128xf32> to vector<8x128xf32>
    %256 = arith.addf %254, %255 : vector<8x128xf32>
    %257 = arith.mulf %251, %256 : vector<8x128xf32>
    %258 = arith.addf %253, %257 : vector<8x128xf32>
    %259 = math.tanh %258 : vector<8x128xf32>
    %260 = arith.subf %213, %259 : vector<8x128xf32>
    %261 = arith.mulf %252, %260 : vector<8x128xf32>
    %262 = arith.addf %259, %261 : vector<8x128xf32>
    %c40 = arith.constant 40 : index
    %c0_55 = arith.constant 0 : index
    %263 = vector.load %arg11[%c40, %c0_55] : memref<128x384xf32, #tpu.memory_space<vmem>>, vector<8x384xf32>
    %264 = arith.truncf %236 : vector<8x128xf32> to vector<8x128xbf16>
    %cst_56 = arith.constant dense<0.000000e+00> : vector<8x384xf32>
    %265 = tpu.matmul %264, %8, %cst_56 {dimension_numbers = #tpu.dot_dimension_numbers<[1], [0], [0], [1], [0, 0, 1, 1], [], []>} : vector<8x128xbf16>, vector<128x384xbf16>, vector<8x384xf32> -> vector<8x384xf32>
    %266 = vector.extract_strided_slice %263 {offsets = [0, 0], sizes = [8, 256], strides = [1, 1]} : vector<8x384xf32> to vector<8x256xf32>
    %267 = vector.extract_strided_slice %265 {offsets = [0, 0], sizes = [8, 256], strides = [1, 1]} : vector<8x384xf32> to vector<8x256xf32>
    %268 = arith.addf %266, %267 : vector<8x256xf32>
    %269 = arith.negf %268 : vector<8x256xf32>
    %270 = math.exp %269 : vector<8x256xf32>
    %cst_57 = arith.constant 1.000000e+00 : f32
    %271 = vector.broadcast %cst_57 : f32 to vector<8x256xf32>
    %272 = arith.addf %271, %270 : vector<8x256xf32>
    %273 = arith.divf %271, %272 : vector<8x256xf32>
    %274 = vector.extract_strided_slice %273 {offsets = [0, 0], sizes = [8, 128], strides = [1, 1]} : vector<8x256xf32> to vector<8x128xf32>
    %275 = vector.extract_strided_slice %273 {offsets = [0, 128], sizes = [8, 128], strides = [1, 1]} : vector<8x256xf32> to vector<8x128xf32>
    %276 = vector.extract_strided_slice %263 {offsets = [0, 256], sizes = [8, 128], strides = [1, 1]} : vector<8x384xf32> to vector<8x128xf32>
    %277 = vector.extract_strided_slice %265 {offsets = [0, 256], sizes = [8, 128], strides = [1, 1]} : vector<8x384xf32> to vector<8x128xf32>
    %278 = vector.broadcast %11 : vector<1x128xf32> to vector<8x128xf32>
    %279 = arith.addf %277, %278 : vector<8x128xf32>
    %280 = arith.mulf %274, %279 : vector<8x128xf32>
    %281 = arith.addf %276, %280 : vector<8x128xf32>
    %282 = math.tanh %281 : vector<8x128xf32>
    %283 = arith.subf %236, %282 : vector<8x128xf32>
    %284 = arith.mulf %275, %283 : vector<8x128xf32>
    %285 = arith.addf %282, %284 : vector<8x128xf32>
    %286 = arith.truncf %285 : vector<8x128xf32> to vector<8x128xbf16>
    %cst_58 = arith.constant dense<0.000000e+00> : vector<8x384xf32>
    %287 = tpu.matmul %286, %10, %cst_58 {dimension_numbers = #tpu.dot_dimension_numbers<[1], [0], [0], [1], [0, 0, 1, 1], [], []>} : vector<8x128xbf16>, vector<128x384xbf16>, vector<8x384xf32> -> vector<8x384xf32>
    %288 = vector.broadcast %12 : vector<1x384xf32> to vector<8x384xf32>
    %289 = arith.addf %287, %288 : vector<8x384xf32>
    %290 = arith.truncf %262 : vector<8x128xf32> to vector<8x128xbf16>
    %cst_59 = arith.constant dense<0.000000e+00> : vector<8x384xf32>
    %291 = tpu.matmul %290, %9, %cst_59 {dimension_numbers = #tpu.dot_dimension_numbers<[1], [0], [0], [1], [0, 0, 1, 1], [], []>} : vector<8x128xbf16>, vector<128x384xbf16>, vector<8x384xf32> -> vector<8x384xf32>
    %292 = vector.extract_strided_slice %289 {offsets = [0, 0], sizes = [8, 256], strides = [1, 1]} : vector<8x384xf32> to vector<8x256xf32>
    %293 = vector.extract_strided_slice %291 {offsets = [0, 0], sizes = [8, 256], strides = [1, 1]} : vector<8x384xf32> to vector<8x256xf32>
    %294 = arith.addf %292, %293 : vector<8x256xf32>
    %295 = arith.negf %294 : vector<8x256xf32>
    %296 = math.exp %295 : vector<8x256xf32>
    %cst_60 = arith.constant 1.000000e+00 : f32
    %297 = vector.broadcast %cst_60 : f32 to vector<8x256xf32>
    %298 = arith.addf %297, %296 : vector<8x256xf32>
    %299 = arith.divf %297, %298 : vector<8x256xf32>
    %300 = vector.extract_strided_slice %299 {offsets = [0, 0], sizes = [8, 128], strides = [1, 1]} : vector<8x256xf32> to vector<8x128xf32>
    %301 = vector.extract_strided_slice %299 {offsets = [0, 128], sizes = [8, 128], strides = [1, 1]} : vector<8x256xf32> to vector<8x128xf32>
    %302 = vector.extract_strided_slice %289 {offsets = [0, 256], sizes = [8, 128], strides = [1, 1]} : vector<8x384xf32> to vector<8x128xf32>
    %303 = vector.extract_strided_slice %291 {offsets = [0, 256], sizes = [8, 128], strides = [1, 1]} : vector<8x384xf32> to vector<8x128xf32>
    %304 = vector.broadcast %13 : vector<1x128xf32> to vector<8x128xf32>
    %305 = arith.addf %303, %304 : vector<8x128xf32>
    %306 = arith.mulf %300, %305 : vector<8x128xf32>
    %307 = arith.addf %302, %306 : vector<8x128xf32>
    %308 = math.tanh %307 : vector<8x128xf32>
    %309 = arith.subf %262, %308 : vector<8x128xf32>
    %310 = arith.mulf %301, %309 : vector<8x128xf32>
    %311 = arith.addf %308, %310 : vector<8x128xf32>
    %c48 = arith.constant 48 : index
    %c0_61 = arith.constant 0 : index
    %312 = vector.load %arg11[%c48, %c0_61] : memref<128x384xf32, #tpu.memory_space<vmem>>, vector<8x384xf32>
    %313 = arith.truncf %285 : vector<8x128xf32> to vector<8x128xbf16>
    %cst_62 = arith.constant dense<0.000000e+00> : vector<8x384xf32>
    %314 = tpu.matmul %313, %8, %cst_62 {dimension_numbers = #tpu.dot_dimension_numbers<[1], [0], [0], [1], [0, 0, 1, 1], [], []>} : vector<8x128xbf16>, vector<128x384xbf16>, vector<8x384xf32> -> vector<8x384xf32>
    %315 = vector.extract_strided_slice %312 {offsets = [0, 0], sizes = [8, 256], strides = [1, 1]} : vector<8x384xf32> to vector<8x256xf32>
    %316 = vector.extract_strided_slice %314 {offsets = [0, 0], sizes = [8, 256], strides = [1, 1]} : vector<8x384xf32> to vector<8x256xf32>
    %317 = arith.addf %315, %316 : vector<8x256xf32>
    %318 = arith.negf %317 : vector<8x256xf32>
    %319 = math.exp %318 : vector<8x256xf32>
    %cst_63 = arith.constant 1.000000e+00 : f32
    %320 = vector.broadcast %cst_63 : f32 to vector<8x256xf32>
    %321 = arith.addf %320, %319 : vector<8x256xf32>
    %322 = arith.divf %320, %321 : vector<8x256xf32>
    %323 = vector.extract_strided_slice %322 {offsets = [0, 0], sizes = [8, 128], strides = [1, 1]} : vector<8x256xf32> to vector<8x128xf32>
    %324 = vector.extract_strided_slice %322 {offsets = [0, 128], sizes = [8, 128], strides = [1, 1]} : vector<8x256xf32> to vector<8x128xf32>
    %325 = vector.extract_strided_slice %312 {offsets = [0, 256], sizes = [8, 128], strides = [1, 1]} : vector<8x384xf32> to vector<8x128xf32>
    %326 = vector.extract_strided_slice %314 {offsets = [0, 256], sizes = [8, 128], strides = [1, 1]} : vector<8x384xf32> to vector<8x128xf32>
    %327 = vector.broadcast %11 : vector<1x128xf32> to vector<8x128xf32>
    %328 = arith.addf %326, %327 : vector<8x128xf32>
    %329 = arith.mulf %323, %328 : vector<8x128xf32>
    %330 = arith.addf %325, %329 : vector<8x128xf32>
    %331 = math.tanh %330 : vector<8x128xf32>
    %332 = arith.subf %285, %331 : vector<8x128xf32>
    %333 = arith.mulf %324, %332 : vector<8x128xf32>
    %334 = arith.addf %331, %333 : vector<8x128xf32>
    %335 = arith.truncf %334 : vector<8x128xf32> to vector<8x128xbf16>
    %cst_64 = arith.constant dense<0.000000e+00> : vector<8x384xf32>
    %336 = tpu.matmul %335, %10, %cst_64 {dimension_numbers = #tpu.dot_dimension_numbers<[1], [0], [0], [1], [0, 0, 1, 1], [], []>} : vector<8x128xbf16>, vector<128x384xbf16>, vector<8x384xf32> -> vector<8x384xf32>
    %337 = vector.broadcast %12 : vector<1x384xf32> to vector<8x384xf32>
    %338 = arith.addf %336, %337 : vector<8x384xf32>
    %339 = arith.truncf %311 : vector<8x128xf32> to vector<8x128xbf16>
    %cst_65 = arith.constant dense<0.000000e+00> : vector<8x384xf32>
    %340 = tpu.matmul %339, %9, %cst_65 {dimension_numbers = #tpu.dot_dimension_numbers<[1], [0], [0], [1], [0, 0, 1, 1], [], []>} : vector<8x128xbf16>, vector<128x384xbf16>, vector<8x384xf32> -> vector<8x384xf32>
    %341 = vector.extract_strided_slice %338 {offsets = [0, 0], sizes = [8, 256], strides = [1, 1]} : vector<8x384xf32> to vector<8x256xf32>
    %342 = vector.extract_strided_slice %340 {offsets = [0, 0], sizes = [8, 256], strides = [1, 1]} : vector<8x384xf32> to vector<8x256xf32>
    %343 = arith.addf %341, %342 : vector<8x256xf32>
    %344 = arith.negf %343 : vector<8x256xf32>
    %345 = math.exp %344 : vector<8x256xf32>
    %cst_66 = arith.constant 1.000000e+00 : f32
    %346 = vector.broadcast %cst_66 : f32 to vector<8x256xf32>
    %347 = arith.addf %346, %345 : vector<8x256xf32>
    %348 = arith.divf %346, %347 : vector<8x256xf32>
    %349 = vector.extract_strided_slice %348 {offsets = [0, 0], sizes = [8, 128], strides = [1, 1]} : vector<8x256xf32> to vector<8x128xf32>
    %350 = vector.extract_strided_slice %348 {offsets = [0, 128], sizes = [8, 128], strides = [1, 1]} : vector<8x256xf32> to vector<8x128xf32>
    %351 = vector.extract_strided_slice %338 {offsets = [0, 256], sizes = [8, 128], strides = [1, 1]} : vector<8x384xf32> to vector<8x128xf32>
    %352 = vector.extract_strided_slice %340 {offsets = [0, 256], sizes = [8, 128], strides = [1, 1]} : vector<8x384xf32> to vector<8x128xf32>
    %353 = vector.broadcast %13 : vector<1x128xf32> to vector<8x128xf32>
    %354 = arith.addf %352, %353 : vector<8x128xf32>
    %355 = arith.mulf %349, %354 : vector<8x128xf32>
    %356 = arith.addf %351, %355 : vector<8x128xf32>
    %357 = math.tanh %356 : vector<8x128xf32>
    %358 = arith.subf %311, %357 : vector<8x128xf32>
    %359 = arith.mulf %350, %358 : vector<8x128xf32>
    %360 = arith.addf %357, %359 : vector<8x128xf32>
    %c56 = arith.constant 56 : index
    %c0_67 = arith.constant 0 : index
    %361 = vector.load %arg11[%c56, %c0_67] : memref<128x384xf32, #tpu.memory_space<vmem>>, vector<8x384xf32>
    %362 = arith.truncf %334 : vector<8x128xf32> to vector<8x128xbf16>
    %cst_68 = arith.constant dense<0.000000e+00> : vector<8x384xf32>
    %363 = tpu.matmul %362, %8, %cst_68 {dimension_numbers = #tpu.dot_dimension_numbers<[1], [0], [0], [1], [0, 0, 1, 1], [], []>} : vector<8x128xbf16>, vector<128x384xbf16>, vector<8x384xf32> -> vector<8x384xf32>
    %364 = vector.extract_strided_slice %361 {offsets = [0, 0], sizes = [8, 256], strides = [1, 1]} : vector<8x384xf32> to vector<8x256xf32>
    %365 = vector.extract_strided_slice %363 {offsets = [0, 0], sizes = [8, 256], strides = [1, 1]} : vector<8x384xf32> to vector<8x256xf32>
    %366 = arith.addf %364, %365 : vector<8x256xf32>
    %367 = arith.negf %366 : vector<8x256xf32>
    %368 = math.exp %367 : vector<8x256xf32>
    %cst_69 = arith.constant 1.000000e+00 : f32
    %369 = vector.broadcast %cst_69 : f32 to vector<8x256xf32>
    %370 = arith.addf %369, %368 : vector<8x256xf32>
    %371 = arith.divf %369, %370 : vector<8x256xf32>
    %372 = vector.extract_strided_slice %371 {offsets = [0, 0], sizes = [8, 128], strides = [1, 1]} : vector<8x256xf32> to vector<8x128xf32>
    %373 = vector.extract_strided_slice %371 {offsets = [0, 128], sizes = [8, 128], strides = [1, 1]} : vector<8x256xf32> to vector<8x128xf32>
    %374 = vector.extract_strided_slice %361 {offsets = [0, 256], sizes = [8, 128], strides = [1, 1]} : vector<8x384xf32> to vector<8x128xf32>
    %375 = vector.extract_strided_slice %363 {offsets = [0, 256], sizes = [8, 128], strides = [1, 1]} : vector<8x384xf32> to vector<8x128xf32>
    %376 = vector.broadcast %11 : vector<1x128xf32> to vector<8x128xf32>
    %377 = arith.addf %375, %376 : vector<8x128xf32>
    %378 = arith.mulf %372, %377 : vector<8x128xf32>
    %379 = arith.addf %374, %378 : vector<8x128xf32>
    %380 = math.tanh %379 : vector<8x128xf32>
    %381 = arith.subf %334, %380 : vector<8x128xf32>
    %382 = arith.mulf %373, %381 : vector<8x128xf32>
    %383 = arith.addf %380, %382 : vector<8x128xf32>
    %384 = arith.truncf %383 : vector<8x128xf32> to vector<8x128xbf16>
    %cst_70 = arith.constant dense<0.000000e+00> : vector<8x384xf32>
    %385 = tpu.matmul %384, %10, %cst_70 {dimension_numbers = #tpu.dot_dimension_numbers<[1], [0], [0], [1], [0, 0, 1, 1], [], []>} : vector<8x128xbf16>, vector<128x384xbf16>, vector<8x384xf32> -> vector<8x384xf32>
    %386 = vector.broadcast %12 : vector<1x384xf32> to vector<8x384xf32>
    %387 = arith.addf %385, %386 : vector<8x384xf32>
    %388 = arith.truncf %360 : vector<8x128xf32> to vector<8x128xbf16>
    %cst_71 = arith.constant dense<0.000000e+00> : vector<8x384xf32>
    %389 = tpu.matmul %388, %9, %cst_71 {dimension_numbers = #tpu.dot_dimension_numbers<[1], [0], [0], [1], [0, 0, 1, 1], [], []>} : vector<8x128xbf16>, vector<128x384xbf16>, vector<8x384xf32> -> vector<8x384xf32>
    %390 = vector.extract_strided_slice %387 {offsets = [0, 0], sizes = [8, 256], strides = [1, 1]} : vector<8x384xf32> to vector<8x256xf32>
    %391 = vector.extract_strided_slice %389 {offsets = [0, 0], sizes = [8, 256], strides = [1, 1]} : vector<8x384xf32> to vector<8x256xf32>
    %392 = arith.addf %390, %391 : vector<8x256xf32>
    %393 = arith.negf %392 : vector<8x256xf32>
    %394 = math.exp %393 : vector<8x256xf32>
    %cst_72 = arith.constant 1.000000e+00 : f32
    %395 = vector.broadcast %cst_72 : f32 to vector<8x256xf32>
    %396 = arith.addf %395, %394 : vector<8x256xf32>
    %397 = arith.divf %395, %396 : vector<8x256xf32>
    %398 = vector.extract_strided_slice %397 {offsets = [0, 0], sizes = [8, 128], strides = [1, 1]} : vector<8x256xf32> to vector<8x128xf32>
    %399 = vector.extract_strided_slice %397 {offsets = [0, 128], sizes = [8, 128], strides = [1, 1]} : vector<8x256xf32> to vector<8x128xf32>
    %400 = vector.extract_strided_slice %387 {offsets = [0, 256], sizes = [8, 128], strides = [1, 1]} : vector<8x384xf32> to vector<8x128xf32>
    %401 = vector.extract_strided_slice %389 {offsets = [0, 256], sizes = [8, 128], strides = [1, 1]} : vector<8x384xf32> to vector<8x128xf32>
    %402 = vector.broadcast %13 : vector<1x128xf32> to vector<8x128xf32>
    %403 = arith.addf %401, %402 : vector<8x128xf32>
    %404 = arith.mulf %398, %403 : vector<8x128xf32>
    %405 = arith.addf %400, %404 : vector<8x128xf32>
    %406 = math.tanh %405 : vector<8x128xf32>
    %407 = arith.subf %360, %406 : vector<8x128xf32>
    %408 = arith.mulf %399, %407 : vector<8x128xf32>
    %409 = arith.addf %406, %408 : vector<8x128xf32>
    %c64 = arith.constant 64 : index
    %c0_73 = arith.constant 0 : index
    %410 = vector.load %arg11[%c64, %c0_73] : memref<128x384xf32, #tpu.memory_space<vmem>>, vector<8x384xf32>
    %411 = arith.truncf %383 : vector<8x128xf32> to vector<8x128xbf16>
    %cst_74 = arith.constant dense<0.000000e+00> : vector<8x384xf32>
    %412 = tpu.matmul %411, %8, %cst_74 {dimension_numbers = #tpu.dot_dimension_numbers<[1], [0], [0], [1], [0, 0, 1, 1], [], []>} : vector<8x128xbf16>, vector<128x384xbf16>, vector<8x384xf32> -> vector<8x384xf32>
    %413 = vector.extract_strided_slice %410 {offsets = [0, 0], sizes = [8, 256], strides = [1, 1]} : vector<8x384xf32> to vector<8x256xf32>
    %414 = vector.extract_strided_slice %412 {offsets = [0, 0], sizes = [8, 256], strides = [1, 1]} : vector<8x384xf32> to vector<8x256xf32>
    %415 = arith.addf %413, %414 : vector<8x256xf32>
    %416 = arith.negf %415 : vector<8x256xf32>
    %417 = math.exp %416 : vector<8x256xf32>
    %cst_75 = arith.constant 1.000000e+00 : f32
    %418 = vector.broadcast %cst_75 : f32 to vector<8x256xf32>
    %419 = arith.addf %418, %417 : vector<8x256xf32>
    %420 = arith.divf %418, %419 : vector<8x256xf32>
    %421 = vector.extract_strided_slice %420 {offsets = [0, 0], sizes = [8, 128], strides = [1, 1]} : vector<8x256xf32> to vector<8x128xf32>
    %422 = vector.extract_strided_slice %420 {offsets = [0, 128], sizes = [8, 128], strides = [1, 1]} : vector<8x256xf32> to vector<8x128xf32>
    %423 = vector.extract_strided_slice %410 {offsets = [0, 256], sizes = [8, 128], strides = [1, 1]} : vector<8x384xf32> to vector<8x128xf32>
    %424 = vector.extract_strided_slice %412 {offsets = [0, 256], sizes = [8, 128], strides = [1, 1]} : vector<8x384xf32> to vector<8x128xf32>
    %425 = vector.broadcast %11 : vector<1x128xf32> to vector<8x128xf32>
    %426 = arith.addf %424, %425 : vector<8x128xf32>
    %427 = arith.mulf %421, %426 : vector<8x128xf32>
    %428 = arith.addf %423, %427 : vector<8x128xf32>
    %429 = math.tanh %428 : vector<8x128xf32>
    %430 = arith.subf %383, %429 : vector<8x128xf32>
    %431 = arith.mulf %422, %430 : vector<8x128xf32>
    %432 = arith.addf %429, %431 : vector<8x128xf32>
    %433 = arith.truncf %432 : vector<8x128xf32> to vector<8x128xbf16>
    %cst_76 = arith.constant dense<0.000000e+00> : vector<8x384xf32>
    %434 = tpu.matmul %433, %10, %cst_76 {dimension_numbers = #tpu.dot_dimension_numbers<[1], [0], [0], [1], [0, 0, 1, 1], [], []>} : vector<8x128xbf16>, vector<128x384xbf16>, vector<8x384xf32> -> vector<8x384xf32>
    %435 = vector.broadcast %12 : vector<1x384xf32> to vector<8x384xf32>
    %436 = arith.addf %434, %435 : vector<8x384xf32>
    %437 = arith.truncf %409 : vector<8x128xf32> to vector<8x128xbf16>
    %cst_77 = arith.constant dense<0.000000e+00> : vector<8x384xf32>
    %438 = tpu.matmul %437, %9, %cst_77 {dimension_numbers = #tpu.dot_dimension_numbers<[1], [0], [0], [1], [0, 0, 1, 1], [], []>} : vector<8x128xbf16>, vector<128x384xbf16>, vector<8x384xf32> -> vector<8x384xf32>
    %439 = vector.extract_strided_slice %436 {offsets = [0, 0], sizes = [8, 256], strides = [1, 1]} : vector<8x384xf32> to vector<8x256xf32>
    %440 = vector.extract_strided_slice %438 {offsets = [0, 0], sizes = [8, 256], strides = [1, 1]} : vector<8x384xf32> to vector<8x256xf32>
    %441 = arith.addf %439, %440 : vector<8x256xf32>
    %442 = arith.negf %441 : vector<8x256xf32>
    %443 = math.exp %442 : vector<8x256xf32>
    %cst_78 = arith.constant 1.000000e+00 : f32
    %444 = vector.broadcast %cst_78 : f32 to vector<8x256xf32>
    %445 = arith.addf %444, %443 : vector<8x256xf32>
    %446 = arith.divf %444, %445 : vector<8x256xf32>
    %447 = vector.extract_strided_slice %446 {offsets = [0, 0], sizes = [8, 128], strides = [1, 1]} : vector<8x256xf32> to vector<8x128xf32>
    %448 = vector.extract_strided_slice %446 {offsets = [0, 128], sizes = [8, 128], strides = [1, 1]} : vector<8x256xf32> to vector<8x128xf32>
    %449 = vector.extract_strided_slice %436 {offsets = [0, 256], sizes = [8, 128], strides = [1, 1]} : vector<8x384xf32> to vector<8x128xf32>
    %450 = vector.extract_strided_slice %438 {offsets = [0, 256], sizes = [8, 128], strides = [1, 1]} : vector<8x384xf32> to vector<8x128xf32>
    %451 = vector.broadcast %13 : vector<1x128xf32> to vector<8x128xf32>
    %452 = arith.addf %450, %451 : vector<8x128xf32>
    %453 = arith.mulf %447, %452 : vector<8x128xf32>
    %454 = arith.addf %449, %453 : vector<8x128xf32>
    %455 = math.tanh %454 : vector<8x128xf32>
    %456 = arith.subf %409, %455 : vector<8x128xf32>
    %457 = arith.mulf %448, %456 : vector<8x128xf32>
    %458 = arith.addf %455, %457 : vector<8x128xf32>
    %c72 = arith.constant 72 : index
    %c0_79 = arith.constant 0 : index
    %459 = vector.load %arg11[%c72, %c0_79] : memref<128x384xf32, #tpu.memory_space<vmem>>, vector<8x384xf32>
    %460 = arith.truncf %432 : vector<8x128xf32> to vector<8x128xbf16>
    %cst_80 = arith.constant dense<0.000000e+00> : vector<8x384xf32>
    %461 = tpu.matmul %460, %8, %cst_80 {dimension_numbers = #tpu.dot_dimension_numbers<[1], [0], [0], [1], [0, 0, 1, 1], [], []>} : vector<8x128xbf16>, vector<128x384xbf16>, vector<8x384xf32> -> vector<8x384xf32>
    %462 = vector.extract_strided_slice %459 {offsets = [0, 0], sizes = [8, 256], strides = [1, 1]} : vector<8x384xf32> to vector<8x256xf32>
    %463 = vector.extract_strided_slice %461 {offsets = [0, 0], sizes = [8, 256], strides = [1, 1]} : vector<8x384xf32> to vector<8x256xf32>
    %464 = arith.addf %462, %463 : vector<8x256xf32>
    %465 = arith.negf %464 : vector<8x256xf32>
    %466 = math.exp %465 : vector<8x256xf32>
    %cst_81 = arith.constant 1.000000e+00 : f32
    %467 = vector.broadcast %cst_81 : f32 to vector<8x256xf32>
    %468 = arith.addf %467, %466 : vector<8x256xf32>
    %469 = arith.divf %467, %468 : vector<8x256xf32>
    %470 = vector.extract_strided_slice %469 {offsets = [0, 0], sizes = [8, 128], strides = [1, 1]} : vector<8x256xf32> to vector<8x128xf32>
    %471 = vector.extract_strided_slice %469 {offsets = [0, 128], sizes = [8, 128], strides = [1, 1]} : vector<8x256xf32> to vector<8x128xf32>
    %472 = vector.extract_strided_slice %459 {offsets = [0, 256], sizes = [8, 128], strides = [1, 1]} : vector<8x384xf32> to vector<8x128xf32>
    %473 = vector.extract_strided_slice %461 {offsets = [0, 256], sizes = [8, 128], strides = [1, 1]} : vector<8x384xf32> to vector<8x128xf32>
    %474 = vector.broadcast %11 : vector<1x128xf32> to vector<8x128xf32>
    %475 = arith.addf %473, %474 : vector<8x128xf32>
    %476 = arith.mulf %470, %475 : vector<8x128xf32>
    %477 = arith.addf %472, %476 : vector<8x128xf32>
    %478 = math.tanh %477 : vector<8x128xf32>
    %479 = arith.subf %432, %478 : vector<8x128xf32>
    %480 = arith.mulf %471, %479 : vector<8x128xf32>
    %481 = arith.addf %478, %480 : vector<8x128xf32>
    %482 = arith.truncf %481 : vector<8x128xf32> to vector<8x128xbf16>
    %cst_82 = arith.constant dense<0.000000e+00> : vector<8x384xf32>
    %483 = tpu.matmul %482, %10, %cst_82 {dimension_numbers = #tpu.dot_dimension_numbers<[1], [0], [0], [1], [0, 0, 1, 1], [], []>} : vector<8x128xbf16>, vector<128x384xbf16>, vector<8x384xf32> -> vector<8x384xf32>
    %484 = vector.broadcast %12 : vector<1x384xf32> to vector<8x384xf32>
    %485 = arith.addf %483, %484 : vector<8x384xf32>
    %486 = arith.truncf %458 : vector<8x128xf32> to vector<8x128xbf16>
    %cst_83 = arith.constant dense<0.000000e+00> : vector<8x384xf32>
    %487 = tpu.matmul %486, %9, %cst_83 {dimension_numbers = #tpu.dot_dimension_numbers<[1], [0], [0], [1], [0, 0, 1, 1], [], []>} : vector<8x128xbf16>, vector<128x384xbf16>, vector<8x384xf32> -> vector<8x384xf32>
    %488 = vector.extract_strided_slice %485 {offsets = [0, 0], sizes = [8, 256], strides = [1, 1]} : vector<8x384xf32> to vector<8x256xf32>
    %489 = vector.extract_strided_slice %487 {offsets = [0, 0], sizes = [8, 256], strides = [1, 1]} : vector<8x384xf32> to vector<8x256xf32>
    %490 = arith.addf %488, %489 : vector<8x256xf32>
    %491 = arith.negf %490 : vector<8x256xf32>
    %492 = math.exp %491 : vector<8x256xf32>
    %cst_84 = arith.constant 1.000000e+00 : f32
    %493 = vector.broadcast %cst_84 : f32 to vector<8x256xf32>
    %494 = arith.addf %493, %492 : vector<8x256xf32>
    %495 = arith.divf %493, %494 : vector<8x256xf32>
    %496 = vector.extract_strided_slice %495 {offsets = [0, 0], sizes = [8, 128], strides = [1, 1]} : vector<8x256xf32> to vector<8x128xf32>
    %497 = vector.extract_strided_slice %495 {offsets = [0, 128], sizes = [8, 128], strides = [1, 1]} : vector<8x256xf32> to vector<8x128xf32>
    %498 = vector.extract_strided_slice %485 {offsets = [0, 256], sizes = [8, 128], strides = [1, 1]} : vector<8x384xf32> to vector<8x128xf32>
    %499 = vector.extract_strided_slice %487 {offsets = [0, 256], sizes = [8, 128], strides = [1, 1]} : vector<8x384xf32> to vector<8x128xf32>
    %500 = vector.broadcast %13 : vector<1x128xf32> to vector<8x128xf32>
    %501 = arith.addf %499, %500 : vector<8x128xf32>
    %502 = arith.mulf %496, %501 : vector<8x128xf32>
    %503 = arith.addf %498, %502 : vector<8x128xf32>
    %504 = math.tanh %503 : vector<8x128xf32>
    %505 = arith.subf %458, %504 : vector<8x128xf32>
    %506 = arith.mulf %497, %505 : vector<8x128xf32>
    %507 = arith.addf %504, %506 : vector<8x128xf32>
    %c80 = arith.constant 80 : index
    %c0_85 = arith.constant 0 : index
    %508 = vector.load %arg11[%c80, %c0_85] : memref<128x384xf32, #tpu.memory_space<vmem>>, vector<8x384xf32>
    %509 = arith.truncf %481 : vector<8x128xf32> to vector<8x128xbf16>
    %cst_86 = arith.constant dense<0.000000e+00> : vector<8x384xf32>
    %510 = tpu.matmul %509, %8, %cst_86 {dimension_numbers = #tpu.dot_dimension_numbers<[1], [0], [0], [1], [0, 0, 1, 1], [], []>} : vector<8x128xbf16>, vector<128x384xbf16>, vector<8x384xf32> -> vector<8x384xf32>
    %511 = vector.extract_strided_slice %508 {offsets = [0, 0], sizes = [8, 256], strides = [1, 1]} : vector<8x384xf32> to vector<8x256xf32>
    %512 = vector.extract_strided_slice %510 {offsets = [0, 0], sizes = [8, 256], strides = [1, 1]} : vector<8x384xf32> to vector<8x256xf32>
    %513 = arith.addf %511, %512 : vector<8x256xf32>
    %514 = arith.negf %513 : vector<8x256xf32>
    %515 = math.exp %514 : vector<8x256xf32>
    %cst_87 = arith.constant 1.000000e+00 : f32
    %516 = vector.broadcast %cst_87 : f32 to vector<8x256xf32>
    %517 = arith.addf %516, %515 : vector<8x256xf32>
    %518 = arith.divf %516, %517 : vector<8x256xf32>
    %519 = vector.extract_strided_slice %518 {offsets = [0, 0], sizes = [8, 128], strides = [1, 1]} : vector<8x256xf32> to vector<8x128xf32>
    %520 = vector.extract_strided_slice %518 {offsets = [0, 128], sizes = [8, 128], strides = [1, 1]} : vector<8x256xf32> to vector<8x128xf32>
    %521 = vector.extract_strided_slice %508 {offsets = [0, 256], sizes = [8, 128], strides = [1, 1]} : vector<8x384xf32> to vector<8x128xf32>
    %522 = vector.extract_strided_slice %510 {offsets = [0, 256], sizes = [8, 128], strides = [1, 1]} : vector<8x384xf32> to vector<8x128xf32>
    %523 = vector.broadcast %11 : vector<1x128xf32> to vector<8x128xf32>
    %524 = arith.addf %522, %523 : vector<8x128xf32>
    %525 = arith.mulf %519, %524 : vector<8x128xf32>
    %526 = arith.addf %521, %525 : vector<8x128xf32>
    %527 = math.tanh %526 : vector<8x128xf32>
    %528 = arith.subf %481, %527 : vector<8x128xf32>
    %529 = arith.mulf %520, %528 : vector<8x128xf32>
    %530 = arith.addf %527, %529 : vector<8x128xf32>
    %531 = arith.truncf %530 : vector<8x128xf32> to vector<8x128xbf16>
    %cst_88 = arith.constant dense<0.000000e+00> : vector<8x384xf32>
    %532 = tpu.matmul %531, %10, %cst_88 {dimension_numbers = #tpu.dot_dimension_numbers<[1], [0], [0], [1], [0, 0, 1, 1], [], []>} : vector<8x128xbf16>, vector<128x384xbf16>, vector<8x384xf32> -> vector<8x384xf32>
    %533 = vector.broadcast %12 : vector<1x384xf32> to vector<8x384xf32>
    %534 = arith.addf %532, %533 : vector<8x384xf32>
    %535 = arith.truncf %507 : vector<8x128xf32> to vector<8x128xbf16>
    %cst_89 = arith.constant dense<0.000000e+00> : vector<8x384xf32>
    %536 = tpu.matmul %535, %9, %cst_89 {dimension_numbers = #tpu.dot_dimension_numbers<[1], [0], [0], [1], [0, 0, 1, 1], [], []>} : vector<8x128xbf16>, vector<128x384xbf16>, vector<8x384xf32> -> vector<8x384xf32>
    %537 = vector.extract_strided_slice %534 {offsets = [0, 0], sizes = [8, 256], strides = [1, 1]} : vector<8x384xf32> to vector<8x256xf32>
    %538 = vector.extract_strided_slice %536 {offsets = [0, 0], sizes = [8, 256], strides = [1, 1]} : vector<8x384xf32> to vector<8x256xf32>
    %539 = arith.addf %537, %538 : vector<8x256xf32>
    %540 = arith.negf %539 : vector<8x256xf32>
    %541 = math.exp %540 : vector<8x256xf32>
    %cst_90 = arith.constant 1.000000e+00 : f32
    %542 = vector.broadcast %cst_90 : f32 to vector<8x256xf32>
    %543 = arith.addf %542, %541 : vector<8x256xf32>
    %544 = arith.divf %542, %543 : vector<8x256xf32>
    %545 = vector.extract_strided_slice %544 {offsets = [0, 0], sizes = [8, 128], strides = [1, 1]} : vector<8x256xf32> to vector<8x128xf32>
    %546 = vector.extract_strided_slice %544 {offsets = [0, 128], sizes = [8, 128], strides = [1, 1]} : vector<8x256xf32> to vector<8x128xf32>
    %547 = vector.extract_strided_slice %534 {offsets = [0, 256], sizes = [8, 128], strides = [1, 1]} : vector<8x384xf32> to vector<8x128xf32>
    %548 = vector.extract_strided_slice %536 {offsets = [0, 256], sizes = [8, 128], strides = [1, 1]} : vector<8x384xf32> to vector<8x128xf32>
    %549 = vector.broadcast %13 : vector<1x128xf32> to vector<8x128xf32>
    %550 = arith.addf %548, %549 : vector<8x128xf32>
    %551 = arith.mulf %545, %550 : vector<8x128xf32>
    %552 = arith.addf %547, %551 : vector<8x128xf32>
    %553 = math.tanh %552 : vector<8x128xf32>
    %554 = arith.subf %507, %553 : vector<8x128xf32>
    %555 = arith.mulf %546, %554 : vector<8x128xf32>
    %556 = arith.addf %553, %555 : vector<8x128xf32>
    %c88 = arith.constant 88 : index
    %c0_91 = arith.constant 0 : index
    %557 = vector.load %arg11[%c88, %c0_91] : memref<128x384xf32, #tpu.memory_space<vmem>>, vector<8x384xf32>
    %558 = arith.truncf %530 : vector<8x128xf32> to vector<8x128xbf16>
    %cst_92 = arith.constant dense<0.000000e+00> : vector<8x384xf32>
    %559 = tpu.matmul %558, %8, %cst_92 {dimension_numbers = #tpu.dot_dimension_numbers<[1], [0], [0], [1], [0, 0, 1, 1], [], []>} : vector<8x128xbf16>, vector<128x384xbf16>, vector<8x384xf32> -> vector<8x384xf32>
    %560 = vector.extract_strided_slice %557 {offsets = [0, 0], sizes = [8, 256], strides = [1, 1]} : vector<8x384xf32> to vector<8x256xf32>
    %561 = vector.extract_strided_slice %559 {offsets = [0, 0], sizes = [8, 256], strides = [1, 1]} : vector<8x384xf32> to vector<8x256xf32>
    %562 = arith.addf %560, %561 : vector<8x256xf32>
    %563 = arith.negf %562 : vector<8x256xf32>
    %564 = math.exp %563 : vector<8x256xf32>
    %cst_93 = arith.constant 1.000000e+00 : f32
    %565 = vector.broadcast %cst_93 : f32 to vector<8x256xf32>
    %566 = arith.addf %565, %564 : vector<8x256xf32>
    %567 = arith.divf %565, %566 : vector<8x256xf32>
    %568 = vector.extract_strided_slice %567 {offsets = [0, 0], sizes = [8, 128], strides = [1, 1]} : vector<8x256xf32> to vector<8x128xf32>
    %569 = vector.extract_strided_slice %567 {offsets = [0, 128], sizes = [8, 128], strides = [1, 1]} : vector<8x256xf32> to vector<8x128xf32>
    %570 = vector.extract_strided_slice %557 {offsets = [0, 256], sizes = [8, 128], strides = [1, 1]} : vector<8x384xf32> to vector<8x128xf32>
    %571 = vector.extract_strided_slice %559 {offsets = [0, 256], sizes = [8, 128], strides = [1, 1]} : vector<8x384xf32> to vector<8x128xf32>
    %572 = vector.broadcast %11 : vector<1x128xf32> to vector<8x128xf32>
    %573 = arith.addf %571, %572 : vector<8x128xf32>
    %574 = arith.mulf %568, %573 : vector<8x128xf32>
    %575 = arith.addf %570, %574 : vector<8x128xf32>
    %576 = math.tanh %575 : vector<8x128xf32>
    %577 = arith.subf %530, %576 : vector<8x128xf32>
    %578 = arith.mulf %569, %577 : vector<8x128xf32>
    %579 = arith.addf %576, %578 : vector<8x128xf32>
    %580 = arith.truncf %579 : vector<8x128xf32> to vector<8x128xbf16>
    %cst_94 = arith.constant dense<0.000000e+00> : vector<8x384xf32>
    %581 = tpu.matmul %580, %10, %cst_94 {dimension_numbers = #tpu.dot_dimension_numbers<[1], [0], [0], [1], [0, 0, 1, 1], [], []>} : vector<8x128xbf16>, vector<128x384xbf16>, vector<8x384xf32> -> vector<8x384xf32>
    %582 = vector.broadcast %12 : vector<1x384xf32> to vector<8x384xf32>
    %583 = arith.addf %581, %582 : vector<8x384xf32>
    %584 = arith.truncf %556 : vector<8x128xf32> to vector<8x128xbf16>
    %cst_95 = arith.constant dense<0.000000e+00> : vector<8x384xf32>
    %585 = tpu.matmul %584, %9, %cst_95 {dimension_numbers = #tpu.dot_dimension_numbers<[1], [0], [0], [1], [0, 0, 1, 1], [], []>} : vector<8x128xbf16>, vector<128x384xbf16>, vector<8x384xf32> -> vector<8x384xf32>
    %586 = vector.extract_strided_slice %583 {offsets = [0, 0], sizes = [8, 256], strides = [1, 1]} : vector<8x384xf32> to vector<8x256xf32>
    %587 = vector.extract_strided_slice %585 {offsets = [0, 0], sizes = [8, 256], strides = [1, 1]} : vector<8x384xf32> to vector<8x256xf32>
    %588 = arith.addf %586, %587 : vector<8x256xf32>
    %589 = arith.negf %588 : vector<8x256xf32>
    %590 = math.exp %589 : vector<8x256xf32>
    %cst_96 = arith.constant 1.000000e+00 : f32
    %591 = vector.broadcast %cst_96 : f32 to vector<8x256xf32>
    %592 = arith.addf %591, %590 : vector<8x256xf32>
    %593 = arith.divf %591, %592 : vector<8x256xf32>
    %594 = vector.extract_strided_slice %593 {offsets = [0, 0], sizes = [8, 128], strides = [1, 1]} : vector<8x256xf32> to vector<8x128xf32>
    %595 = vector.extract_strided_slice %593 {offsets = [0, 128], sizes = [8, 128], strides = [1, 1]} : vector<8x256xf32> to vector<8x128xf32>
    %596 = vector.extract_strided_slice %583 {offsets = [0, 256], sizes = [8, 128], strides = [1, 1]} : vector<8x384xf32> to vector<8x128xf32>
    %597 = vector.extract_strided_slice %585 {offsets = [0, 256], sizes = [8, 128], strides = [1, 1]} : vector<8x384xf32> to vector<8x128xf32>
    %598 = vector.broadcast %13 : vector<1x128xf32> to vector<8x128xf32>
    %599 = arith.addf %597, %598 : vector<8x128xf32>
    %600 = arith.mulf %594, %599 : vector<8x128xf32>
    %601 = arith.addf %596, %600 : vector<8x128xf32>
    %602 = math.tanh %601 : vector<8x128xf32>
    %603 = arith.subf %556, %602 : vector<8x128xf32>
    %604 = arith.mulf %595, %603 : vector<8x128xf32>
    %605 = arith.addf %602, %604 : vector<8x128xf32>
    %c96 = arith.constant 96 : index
    %c0_97 = arith.constant 0 : index
    %606 = vector.load %arg11[%c96, %c0_97] : memref<128x384xf32, #tpu.memory_space<vmem>>, vector<8x384xf32>
    %607 = arith.truncf %579 : vector<8x128xf32> to vector<8x128xbf16>
    %cst_98 = arith.constant dense<0.000000e+00> : vector<8x384xf32>
    %608 = tpu.matmul %607, %8, %cst_98 {dimension_numbers = #tpu.dot_dimension_numbers<[1], [0], [0], [1], [0, 0, 1, 1], [], []>} : vector<8x128xbf16>, vector<128x384xbf16>, vector<8x384xf32> -> vector<8x384xf32>
    %609 = vector.extract_strided_slice %606 {offsets = [0, 0], sizes = [8, 256], strides = [1, 1]} : vector<8x384xf32> to vector<8x256xf32>
    %610 = vector.extract_strided_slice %608 {offsets = [0, 0], sizes = [8, 256], strides = [1, 1]} : vector<8x384xf32> to vector<8x256xf32>
    %611 = arith.addf %609, %610 : vector<8x256xf32>
    %612 = arith.negf %611 : vector<8x256xf32>
    %613 = math.exp %612 : vector<8x256xf32>
    %cst_99 = arith.constant 1.000000e+00 : f32
    %614 = vector.broadcast %cst_99 : f32 to vector<8x256xf32>
    %615 = arith.addf %614, %613 : vector<8x256xf32>
    %616 = arith.divf %614, %615 : vector<8x256xf32>
    %617 = vector.extract_strided_slice %616 {offsets = [0, 0], sizes = [8, 128], strides = [1, 1]} : vector<8x256xf32> to vector<8x128xf32>
    %618 = vector.extract_strided_slice %616 {offsets = [0, 128], sizes = [8, 128], strides = [1, 1]} : vector<8x256xf32> to vector<8x128xf32>
    %619 = vector.extract_strided_slice %606 {offsets = [0, 256], sizes = [8, 128], strides = [1, 1]} : vector<8x384xf32> to vector<8x128xf32>
    %620 = vector.extract_strided_slice %608 {offsets = [0, 256], sizes = [8, 128], strides = [1, 1]} : vector<8x384xf32> to vector<8x128xf32>
    %621 = vector.broadcast %11 : vector<1x128xf32> to vector<8x128xf32>
    %622 = arith.addf %620, %621 : vector<8x128xf32>
    %623 = arith.mulf %617, %622 : vector<8x128xf32>
    %624 = arith.addf %619, %623 : vector<8x128xf32>
    %625 = math.tanh %624 : vector<8x128xf32>
    %626 = arith.subf %579, %625 : vector<8x128xf32>
    %627 = arith.mulf %618, %626 : vector<8x128xf32>
    %628 = arith.addf %625, %627 : vector<8x128xf32>
    %629 = arith.truncf %628 : vector<8x128xf32> to vector<8x128xbf16>
    %cst_100 = arith.constant dense<0.000000e+00> : vector<8x384xf32>
    %630 = tpu.matmul %629, %10, %cst_100 {dimension_numbers = #tpu.dot_dimension_numbers<[1], [0], [0], [1], [0, 0, 1, 1], [], []>} : vector<8x128xbf16>, vector<128x384xbf16>, vector<8x384xf32> -> vector<8x384xf32>
    %631 = vector.broadcast %12 : vector<1x384xf32> to vector<8x384xf32>
    %632 = arith.addf %630, %631 : vector<8x384xf32>
    %633 = arith.truncf %605 : vector<8x128xf32> to vector<8x128xbf16>
    %cst_101 = arith.constant dense<0.000000e+00> : vector<8x384xf32>
    %634 = tpu.matmul %633, %9, %cst_101 {dimension_numbers = #tpu.dot_dimension_numbers<[1], [0], [0], [1], [0, 0, 1, 1], [], []>} : vector<8x128xbf16>, vector<128x384xbf16>, vector<8x384xf32> -> vector<8x384xf32>
    %635 = vector.extract_strided_slice %632 {offsets = [0, 0], sizes = [8, 256], strides = [1, 1]} : vector<8x384xf32> to vector<8x256xf32>
    %636 = vector.extract_strided_slice %634 {offsets = [0, 0], sizes = [8, 256], strides = [1, 1]} : vector<8x384xf32> to vector<8x256xf32>
    %637 = arith.addf %635, %636 : vector<8x256xf32>
    %638 = arith.negf %637 : vector<8x256xf32>
    %639 = math.exp %638 : vector<8x256xf32>
    %cst_102 = arith.constant 1.000000e+00 : f32
    %640 = vector.broadcast %cst_102 : f32 to vector<8x256xf32>
    %641 = arith.addf %640, %639 : vector<8x256xf32>
    %642 = arith.divf %640, %641 : vector<8x256xf32>
    %643 = vector.extract_strided_slice %642 {offsets = [0, 0], sizes = [8, 128], strides = [1, 1]} : vector<8x256xf32> to vector<8x128xf32>
    %644 = vector.extract_strided_slice %642 {offsets = [0, 128], sizes = [8, 128], strides = [1, 1]} : vector<8x256xf32> to vector<8x128xf32>
    %645 = vector.extract_strided_slice %632 {offsets = [0, 256], sizes = [8, 128], strides = [1, 1]} : vector<8x384xf32> to vector<8x128xf32>
    %646 = vector.extract_strided_slice %634 {offsets = [0, 256], sizes = [8, 128], strides = [1, 1]} : vector<8x384xf32> to vector<8x128xf32>
    %647 = vector.broadcast %13 : vector<1x128xf32> to vector<8x128xf32>
    %648 = arith.addf %646, %647 : vector<8x128xf32>
    %649 = arith.mulf %643, %648 : vector<8x128xf32>
    %650 = arith.addf %645, %649 : vector<8x128xf32>
    %651 = math.tanh %650 : vector<8x128xf32>
    %652 = arith.subf %605, %651 : vector<8x128xf32>
    %653 = arith.mulf %644, %652 : vector<8x128xf32>
    %654 = arith.addf %651, %653 : vector<8x128xf32>
    %c104 = arith.constant 104 : index
    %c0_103 = arith.constant 0 : index
    %655 = vector.load %arg11[%c104, %c0_103] : memref<128x384xf32, #tpu.memory_space<vmem>>, vector<8x384xf32>
    %656 = arith.truncf %628 : vector<8x128xf32> to vector<8x128xbf16>
    %cst_104 = arith.constant dense<0.000000e+00> : vector<8x384xf32>
    %657 = tpu.matmul %656, %8, %cst_104 {dimension_numbers = #tpu.dot_dimension_numbers<[1], [0], [0], [1], [0, 0, 1, 1], [], []>} : vector<8x128xbf16>, vector<128x384xbf16>, vector<8x384xf32> -> vector<8x384xf32>
    %658 = vector.extract_strided_slice %655 {offsets = [0, 0], sizes = [8, 256], strides = [1, 1]} : vector<8x384xf32> to vector<8x256xf32>
    %659 = vector.extract_strided_slice %657 {offsets = [0, 0], sizes = [8, 256], strides = [1, 1]} : vector<8x384xf32> to vector<8x256xf32>
    %660 = arith.addf %658, %659 : vector<8x256xf32>
    %661 = arith.negf %660 : vector<8x256xf32>
    %662 = math.exp %661 : vector<8x256xf32>
    %cst_105 = arith.constant 1.000000e+00 : f32
    %663 = vector.broadcast %cst_105 : f32 to vector<8x256xf32>
    %664 = arith.addf %663, %662 : vector<8x256xf32>
    %665 = arith.divf %663, %664 : vector<8x256xf32>
    %666 = vector.extract_strided_slice %665 {offsets = [0, 0], sizes = [8, 128], strides = [1, 1]} : vector<8x256xf32> to vector<8x128xf32>
    %667 = vector.extract_strided_slice %665 {offsets = [0, 128], sizes = [8, 128], strides = [1, 1]} : vector<8x256xf32> to vector<8x128xf32>
    %668 = vector.extract_strided_slice %655 {offsets = [0, 256], sizes = [8, 128], strides = [1, 1]} : vector<8x384xf32> to vector<8x128xf32>
    %669 = vector.extract_strided_slice %657 {offsets = [0, 256], sizes = [8, 128], strides = [1, 1]} : vector<8x384xf32> to vector<8x128xf32>
    %670 = vector.broadcast %11 : vector<1x128xf32> to vector<8x128xf32>
    %671 = arith.addf %669, %670 : vector<8x128xf32>
    %672 = arith.mulf %666, %671 : vector<8x128xf32>
    %673 = arith.addf %668, %672 : vector<8x128xf32>
    %674 = math.tanh %673 : vector<8x128xf32>
    %675 = arith.subf %628, %674 : vector<8x128xf32>
    %676 = arith.mulf %667, %675 : vector<8x128xf32>
    %677 = arith.addf %674, %676 : vector<8x128xf32>
    %678 = arith.truncf %677 : vector<8x128xf32> to vector<8x128xbf16>
    %cst_106 = arith.constant dense<0.000000e+00> : vector<8x384xf32>
    %679 = tpu.matmul %678, %10, %cst_106 {dimension_numbers = #tpu.dot_dimension_numbers<[1], [0], [0], [1], [0, 0, 1, 1], [], []>} : vector<8x128xbf16>, vector<128x384xbf16>, vector<8x384xf32> -> vector<8x384xf32>
    %680 = vector.broadcast %12 : vector<1x384xf32> to vector<8x384xf32>
    %681 = arith.addf %679, %680 : vector<8x384xf32>
    %682 = arith.truncf %654 : vector<8x128xf32> to vector<8x128xbf16>
    %cst_107 = arith.constant dense<0.000000e+00> : vector<8x384xf32>
    %683 = tpu.matmul %682, %9, %cst_107 {dimension_numbers = #tpu.dot_dimension_numbers<[1], [0], [0], [1], [0, 0, 1, 1], [], []>} : vector<8x128xbf16>, vector<128x384xbf16>, vector<8x384xf32> -> vector<8x384xf32>
    %684 = vector.extract_strided_slice %681 {offsets = [0, 0], sizes = [8, 256], strides = [1, 1]} : vector<8x384xf32> to vector<8x256xf32>
    %685 = vector.extract_strided_slice %683 {offsets = [0, 0], sizes = [8, 256], strides = [1, 1]} : vector<8x384xf32> to vector<8x256xf32>
    %686 = arith.addf %684, %685 : vector<8x256xf32>
    %687 = arith.negf %686 : vector<8x256xf32>
    %688 = math.exp %687 : vector<8x256xf32>
    %cst_108 = arith.constant 1.000000e+00 : f32
    %689 = vector.broadcast %cst_108 : f32 to vector<8x256xf32>
    %690 = arith.addf %689, %688 : vector<8x256xf32>
    %691 = arith.divf %689, %690 : vector<8x256xf32>
    %692 = vector.extract_strided_slice %691 {offsets = [0, 0], sizes = [8, 128], strides = [1, 1]} : vector<8x256xf32> to vector<8x128xf32>
    %693 = vector.extract_strided_slice %691 {offsets = [0, 128], sizes = [8, 128], strides = [1, 1]} : vector<8x256xf32> to vector<8x128xf32>
    %694 = vector.extract_strided_slice %681 {offsets = [0, 256], sizes = [8, 128], strides = [1, 1]} : vector<8x384xf32> to vector<8x128xf32>
    %695 = vector.extract_strided_slice %683 {offsets = [0, 256], sizes = [8, 128], strides = [1, 1]} : vector<8x384xf32> to vector<8x128xf32>
    %696 = vector.broadcast %13 : vector<1x128xf32> to vector<8x128xf32>
    %697 = arith.addf %695, %696 : vector<8x128xf32>
    %698 = arith.mulf %692, %697 : vector<8x128xf32>
    %699 = arith.addf %694, %698 : vector<8x128xf32>
    %700 = math.tanh %699 : vector<8x128xf32>
    %701 = arith.subf %654, %700 : vector<8x128xf32>
    %702 = arith.mulf %693, %701 : vector<8x128xf32>
    %703 = arith.addf %700, %702 : vector<8x128xf32>
    %c112 = arith.constant 112 : index
    %c0_109 = arith.constant 0 : index
    %704 = vector.load %arg11[%c112, %c0_109] : memref<128x384xf32, #tpu.memory_space<vmem>>, vector<8x384xf32>
    %705 = arith.truncf %677 : vector<8x128xf32> to vector<8x128xbf16>
    %cst_110 = arith.constant dense<0.000000e+00> : vector<8x384xf32>
    %706 = tpu.matmul %705, %8, %cst_110 {dimension_numbers = #tpu.dot_dimension_numbers<[1], [0], [0], [1], [0, 0, 1, 1], [], []>} : vector<8x128xbf16>, vector<128x384xbf16>, vector<8x384xf32> -> vector<8x384xf32>
    %707 = vector.extract_strided_slice %704 {offsets = [0, 0], sizes = [8, 256], strides = [1, 1]} : vector<8x384xf32> to vector<8x256xf32>
    %708 = vector.extract_strided_slice %706 {offsets = [0, 0], sizes = [8, 256], strides = [1, 1]} : vector<8x384xf32> to vector<8x256xf32>
    %709 = arith.addf %707, %708 : vector<8x256xf32>
    %710 = arith.negf %709 : vector<8x256xf32>
    %711 = math.exp %710 : vector<8x256xf32>
    %cst_111 = arith.constant 1.000000e+00 : f32
    %712 = vector.broadcast %cst_111 : f32 to vector<8x256xf32>
    %713 = arith.addf %712, %711 : vector<8x256xf32>
    %714 = arith.divf %712, %713 : vector<8x256xf32>
    %715 = vector.extract_strided_slice %714 {offsets = [0, 0], sizes = [8, 128], strides = [1, 1]} : vector<8x256xf32> to vector<8x128xf32>
    %716 = vector.extract_strided_slice %714 {offsets = [0, 128], sizes = [8, 128], strides = [1, 1]} : vector<8x256xf32> to vector<8x128xf32>
    %717 = vector.extract_strided_slice %704 {offsets = [0, 256], sizes = [8, 128], strides = [1, 1]} : vector<8x384xf32> to vector<8x128xf32>
    %718 = vector.extract_strided_slice %706 {offsets = [0, 256], sizes = [8, 128], strides = [1, 1]} : vector<8x384xf32> to vector<8x128xf32>
    %719 = vector.broadcast %11 : vector<1x128xf32> to vector<8x128xf32>
    %720 = arith.addf %718, %719 : vector<8x128xf32>
    %721 = arith.mulf %715, %720 : vector<8x128xf32>
    %722 = arith.addf %717, %721 : vector<8x128xf32>
    %723 = math.tanh %722 : vector<8x128xf32>
    %724 = arith.subf %677, %723 : vector<8x128xf32>
    %725 = arith.mulf %716, %724 : vector<8x128xf32>
    %726 = arith.addf %723, %725 : vector<8x128xf32>
    %727 = arith.truncf %726 : vector<8x128xf32> to vector<8x128xbf16>
    %cst_112 = arith.constant dense<0.000000e+00> : vector<8x384xf32>
    %728 = tpu.matmul %727, %10, %cst_112 {dimension_numbers = #tpu.dot_dimension_numbers<[1], [0], [0], [1], [0, 0, 1, 1], [], []>} : vector<8x128xbf16>, vector<128x384xbf16>, vector<8x384xf32> -> vector<8x384xf32>
    %729 = vector.broadcast %12 : vector<1x384xf32> to vector<8x384xf32>
    %730 = arith.addf %728, %729 : vector<8x384xf32>
    %731 = arith.truncf %703 : vector<8x128xf32> to vector<8x128xbf16>
    %cst_113 = arith.constant dense<0.000000e+00> : vector<8x384xf32>
    %732 = tpu.matmul %731, %9, %cst_113 {dimension_numbers = #tpu.dot_dimension_numbers<[1], [0], [0], [1], [0, 0, 1, 1], [], []>} : vector<8x128xbf16>, vector<128x384xbf16>, vector<8x384xf32> -> vector<8x384xf32>
    %733 = vector.extract_strided_slice %730 {offsets = [0, 0], sizes = [8, 256], strides = [1, 1]} : vector<8x384xf32> to vector<8x256xf32>
    %734 = vector.extract_strided_slice %732 {offsets = [0, 0], sizes = [8, 256], strides = [1, 1]} : vector<8x384xf32> to vector<8x256xf32>
    %735 = arith.addf %733, %734 : vector<8x256xf32>
    %736 = arith.negf %735 : vector<8x256xf32>
    %737 = math.exp %736 : vector<8x256xf32>
    %cst_114 = arith.constant 1.000000e+00 : f32
    %738 = vector.broadcast %cst_114 : f32 to vector<8x256xf32>
    %739 = arith.addf %738, %737 : vector<8x256xf32>
    %740 = arith.divf %738, %739 : vector<8x256xf32>
    %741 = vector.extract_strided_slice %740 {offsets = [0, 0], sizes = [8, 128], strides = [1, 1]} : vector<8x256xf32> to vector<8x128xf32>
    %742 = vector.extract_strided_slice %740 {offsets = [0, 128], sizes = [8, 128], strides = [1, 1]} : vector<8x256xf32> to vector<8x128xf32>
    %743 = vector.extract_strided_slice %730 {offsets = [0, 256], sizes = [8, 128], strides = [1, 1]} : vector<8x384xf32> to vector<8x128xf32>
    %744 = vector.extract_strided_slice %732 {offsets = [0, 256], sizes = [8, 128], strides = [1, 1]} : vector<8x384xf32> to vector<8x128xf32>
    %745 = vector.broadcast %13 : vector<1x128xf32> to vector<8x128xf32>
    %746 = arith.addf %744, %745 : vector<8x128xf32>
    %747 = arith.mulf %741, %746 : vector<8x128xf32>
    %748 = arith.addf %743, %747 : vector<8x128xf32>
    %749 = math.tanh %748 : vector<8x128xf32>
    %750 = arith.subf %703, %749 : vector<8x128xf32>
    %751 = arith.mulf %742, %750 : vector<8x128xf32>
    %752 = arith.addf %749, %751 : vector<8x128xf32>
    %c120 = arith.constant 120 : index
    %c0_115 = arith.constant 0 : index
    %753 = vector.load %arg11[%c120, %c0_115] : memref<128x384xf32, #tpu.memory_space<vmem>>, vector<8x384xf32>
    %754 = arith.truncf %726 : vector<8x128xf32> to vector<8x128xbf16>
    %cst_116 = arith.constant dense<0.000000e+00> : vector<8x384xf32>
    %755 = tpu.matmul %754, %8, %cst_116 {dimension_numbers = #tpu.dot_dimension_numbers<[1], [0], [0], [1], [0, 0, 1, 1], [], []>} : vector<8x128xbf16>, vector<128x384xbf16>, vector<8x384xf32> -> vector<8x384xf32>
    %756 = vector.extract_strided_slice %753 {offsets = [0, 0], sizes = [8, 256], strides = [1, 1]} : vector<8x384xf32> to vector<8x256xf32>
    %757 = vector.extract_strided_slice %755 {offsets = [0, 0], sizes = [8, 256], strides = [1, 1]} : vector<8x384xf32> to vector<8x256xf32>
    %758 = arith.addf %756, %757 : vector<8x256xf32>
    %759 = arith.negf %758 : vector<8x256xf32>
    %760 = math.exp %759 : vector<8x256xf32>
    %cst_117 = arith.constant 1.000000e+00 : f32
    %761 = vector.broadcast %cst_117 : f32 to vector<8x256xf32>
    %762 = arith.addf %761, %760 : vector<8x256xf32>
    %763 = arith.divf %761, %762 : vector<8x256xf32>
    %764 = vector.extract_strided_slice %763 {offsets = [0, 0], sizes = [8, 128], strides = [1, 1]} : vector<8x256xf32> to vector<8x128xf32>
    %765 = vector.extract_strided_slice %763 {offsets = [0, 128], sizes = [8, 128], strides = [1, 1]} : vector<8x256xf32> to vector<8x128xf32>
    %766 = vector.extract_strided_slice %753 {offsets = [0, 256], sizes = [8, 128], strides = [1, 1]} : vector<8x384xf32> to vector<8x128xf32>
    %767 = vector.extract_strided_slice %755 {offsets = [0, 256], sizes = [8, 128], strides = [1, 1]} : vector<8x384xf32> to vector<8x128xf32>
    %768 = vector.broadcast %11 : vector<1x128xf32> to vector<8x128xf32>
    %769 = arith.addf %767, %768 : vector<8x128xf32>
    %770 = arith.mulf %764, %769 : vector<8x128xf32>
    %771 = arith.addf %766, %770 : vector<8x128xf32>
    %772 = math.tanh %771 : vector<8x128xf32>
    %773 = arith.subf %726, %772 : vector<8x128xf32>
    %774 = arith.mulf %765, %773 : vector<8x128xf32>
    %775 = arith.addf %772, %774 : vector<8x128xf32>
    %776 = arith.truncf %775 : vector<8x128xf32> to vector<8x128xbf16>
    %cst_118 = arith.constant dense<0.000000e+00> : vector<8x384xf32>
    %777 = tpu.matmul %776, %10, %cst_118 {dimension_numbers = #tpu.dot_dimension_numbers<[1], [0], [0], [1], [0, 0, 1, 1], [], []>} : vector<8x128xbf16>, vector<128x384xbf16>, vector<8x384xf32> -> vector<8x384xf32>
    %778 = vector.broadcast %12 : vector<1x384xf32> to vector<8x384xf32>
    %779 = arith.addf %777, %778 : vector<8x384xf32>
    %780 = arith.truncf %752 : vector<8x128xf32> to vector<8x128xbf16>
    %cst_119 = arith.constant dense<0.000000e+00> : vector<8x384xf32>
    %781 = tpu.matmul %780, %9, %cst_119 {dimension_numbers = #tpu.dot_dimension_numbers<[1], [0], [0], [1], [0, 0, 1, 1], [], []>} : vector<8x128xbf16>, vector<128x384xbf16>, vector<8x384xf32> -> vector<8x384xf32>
    %782 = vector.extract_strided_slice %779 {offsets = [0, 0], sizes = [8, 256], strides = [1, 1]} : vector<8x384xf32> to vector<8x256xf32>
    %783 = vector.extract_strided_slice %781 {offsets = [0, 0], sizes = [8, 256], strides = [1, 1]} : vector<8x384xf32> to vector<8x256xf32>
    %784 = arith.addf %782, %783 : vector<8x256xf32>
    %785 = arith.negf %784 : vector<8x256xf32>
    %786 = math.exp %785 : vector<8x256xf32>
    %cst_120 = arith.constant 1.000000e+00 : f32
    %787 = vector.broadcast %cst_120 : f32 to vector<8x256xf32>
    %788 = arith.addf %787, %786 : vector<8x256xf32>
    %789 = arith.divf %787, %788 : vector<8x256xf32>
    %790 = vector.extract_strided_slice %789 {offsets = [0, 0], sizes = [8, 128], strides = [1, 1]} : vector<8x256xf32> to vector<8x128xf32>
    %791 = vector.extract_strided_slice %789 {offsets = [0, 128], sizes = [8, 128], strides = [1, 1]} : vector<8x256xf32> to vector<8x128xf32>
    %792 = vector.extract_strided_slice %779 {offsets = [0, 256], sizes = [8, 128], strides = [1, 1]} : vector<8x384xf32> to vector<8x128xf32>
    %793 = vector.extract_strided_slice %781 {offsets = [0, 256], sizes = [8, 128], strides = [1, 1]} : vector<8x384xf32> to vector<8x128xf32>
    %794 = vector.broadcast %13 : vector<1x128xf32> to vector<8x128xf32>
    %795 = arith.addf %793, %794 : vector<8x128xf32>
    %796 = arith.mulf %790, %795 : vector<8x128xf32>
    %797 = arith.addf %792, %796 : vector<8x128xf32>
    %798 = math.tanh %797 : vector<8x128xf32>
    %799 = arith.subf %752, %798 : vector<8x128xf32>
    %800 = arith.mulf %791, %799 : vector<8x128xf32>
    %801 = arith.addf %798, %800 : vector<8x128xf32>
    %c0_121 = arith.constant 0 : index
    %c0_122 = arith.constant 0 : index
    %c0_123 = arith.constant 0 : index
    %802 = vector.load %arg10[%c0_121, %c0_122, %c0_123] : memref<2x8x128xf32, #tpu.memory_space<vmem>>, vector<1x8x128xf32>
    %803 = vector.shape_cast %802 : vector<1x8x128xf32> to vector<8x128xf32>
    %804 = vector.shape_cast %775 : vector<8x128xf32> to vector<1x8x128xf32>
    tpu.vector_store %arg10[%c0_121, %c0_122, %c0_123], %804 {strides = array<i32>} : memref<2x8x128xf32, #tpu.memory_space<vmem>>, vector<1x8x128xf32>,
    %c1_124 = arith.constant 1 : index
    %c0_125 = arith.constant 0 : index
    %c0_126 = arith.constant 0 : index
    %805 = vector.load %arg10[%c1_124, %c0_125, %c0_126] : memref<2x8x128xf32, #tpu.memory_space<vmem>>, vector<1x8x128xf32>
    %806 = vector.shape_cast %805 : vector<1x8x128xf32> to vector<8x128xf32>
    %807 = vector.shape_cast %801 : vector<8x128xf32> to vector<1x8x128xf32>
    tpu.vector_store %arg10[%c1_124, %c0_125, %c0_126], %807 {strides = array<i32>} : memref<2x8x128xf32, #tpu.memory_space<vmem>>, vector<1x8x128xf32>,
    return
  }
}

</mosaic_0001>

<llo_original>
// kernel: _dialog_gru_forward.1
$region0: #{_dialog_gru_forward.1}
  #allocation0 [shape = 'u32[]', space=smem, size = 0x4, offset = 0x4, fixed_abs, tag = 'smem constant byte address 0x4 - core index']
  #allocation1 [shape = 'u32[144,128]{1,0:T(1,128)}', space=vmem, size = 0x12000, scoped, tag = 'internal scratch']
  #allocation2 [shape = 'f32[128,384]{1,0:T(8,128)}', space=vmem, size = 0x30000, scoped, tag = 'scratch operand']
  %s0 = inlined_call_operand.vmem [shape: f32[128,128], index: 0, kind: input, shape index: {}]
  %s1 = inlined_call_operand.vmem [shape: f32[2,8,128], index: 1, kind: input, shape index: {}, may-alias: {1,10}]
  %s2 = inlined_call_operand.vmem [shape: bf16[128,384], index: 2, kind: input, shape index: {}]
  %s3 = inlined_call_operand.hbm [shape: bf16[128,384], index: 3, kind: input, shape index: {}]
  %s4 = inlined_call_operand.vmem [shape: f32[1,384], index: 4, kind: input, shape index: {}]
  %s5 = inlined_call_operand.vmem [shape: f32[1,128], index: 5, kind: input, shape index: {}]
  %s6 = inlined_call_operand.hbm [shape: bf16[128,384], index: 6, kind: input, shape index: {}]
  %s7 = inlined_call_operand.hbm [shape: bf16[128,384], index: 7, kind: input, shape index: {}]
  %s8 = inlined_call_operand.vmem [shape: f32[1,384], index: 8, kind: input, shape index: {}]
  %s9 = inlined_call_operand.vmem [shape: f32[1,128], index: 9, kind: input, shape index: {}]
  %s10 = inlined_call_operand.vmem [shape: f32[2,8,128], index: 10, kind: output, shape index: {}, may-alias: {1,10}]
  %s11 = sld [smem:[#allocation0]]
  $region62: #{_dialog_gru_forward.1} parent=0
    _
  %s13 = ssub.s32 1, %s11
  %s14 = scalar_select 0, %s13, %s11
  $region1: #{_dialog_gru_forward.1} parent=0
    #allocation3 [shape = 'u8[98304]{0}', space=vmem, size = 0x18000, scoped, tag = 'input window, operand 3, single buffered']
    #allocation4 [shape = 's32[1]{0}', space=sflag, size = 0x4, scoped, tag = 'scoped memory for _dialog_gru_forward.1']
    #allocation5 [shape = 'u8[98304]{0}', space=vmem, size = 0x18000, scoped, tag = 'input window, operand 6, single buffered']
    #allocation6 [shape = 's32[1]{0}', space=sflag, size = 0x4, scoped, tag = 'scoped memory for _dialog_gru_forward.1']
    #allocation7 [shape = 'u8[98304]{0}', space=vmem, size = 0x18000, scoped, tag = 'input window, operand 7, single buffered']
    %15 = vsyncpa [#allocation4], 0
    %16 = vsyncpa [#allocation6], 0
    // Predicated region
    $region2: #{_dialog_gru_forward.1} parent=1 // pred_check
      _
    $region3: #{_dialog_gru_forward.1} parent=1 // pred_check_branch
      %18 = sbr.rel (0) target = $region5
    $region4: #{_dialog_gru_forward.1} parent=1 // pred_region
      _
    $region5: #{_dialog_gru_forward.1} parent=1 // pred_fallthru
      _
    // Predicated region
    $region6: #{_dialog_gru_forward.1} parent=1 // pred_check
      _
    $region7: #{_dialog_gru_forward.1} parent=1 // pred_check_branch
      %20 = sbr.rel (0) target = $region9
    $region8: #{_dialog_gru_forward.1} parent=1 // pred_region
      _
    $region9: #{_dialog_gru_forward.1} parent=1 // pred_fallthru
      _
    // Predicated region
    $region10: #{_dialog_gru_forward.1} parent=1 // pred_check
      _
    $region11: #{_dialog_gru_forward.1} parent=1 // pred_check_branch
      %22 = sbr.rel (0) target = $region13
    $region12: #{_dialog_gru_forward.1} parent=1 // pred_region
      _
    $region13: #{_dialog_gru_forward.1} parent=1 // pred_fallthru
      _
    // Predicated region
    $region14: #{_dialog_gru_forward.1} parent=1 // pred_check
      _
    $region15: #{_dialog_gru_forward.1} parent=1 // pred_check_branch
      %24 = sbr.rel (0) target = $region17
    $region16: #{_dialog_gru_forward.1} parent=1 // pred_region
      %s26 = ssub.s32 3072, 3072
      %27 = vsyncadd [#allocation4], %s26
      %s28 = sshll.u32 [#allocation3], 4
      %s29 = int_to_ptr.vmem [resolvable:$true] %s28
      %34 = dma.hbm_to_vmem [thread:$0]  %s3, 3072, %s29, [#allocation4], 192, 192, 12
    $region17: #{_dialog_gru_forward.1} parent=1 // pred_fallthru
      _
    // Predicated region
    $region18: #{_dialog_gru_forward.1} parent=1 // pred_check
      _
    $region19: #{_dialog_gru_forward.1} parent=1 // pred_check_branch
      %36 = sbr.rel (0) target = $region21
    $region20: #{_dialog_gru_forward.1} parent=1 // pred_region
      _
    $region21: #{_dialog_gru_forward.1} parent=1 // pred_fallthru
      _
    // Predicated region
    $region22: #{_dialog_gru_forward.1} parent=1 // pred_check
      _
    $region23: #{_dialog_gru_forward.1} parent=1 // pred_check_branch
      %38 = sbr.rel (0) target = $region25
    $region24: #{_dialog_gru_forward.1} parent=1 // pred_region
      _
    $region25: #{_dialog_gru_forward.1} parent=1 // pred_fallthru
      _
    // Predicated region
    $region26: #{_dialog_gru_forward.1} parent=1 // pred_check
      _
    $region27: #{_dialog_gru_forward.1} parent=1 // pred_check_branch
      %40 = sbr.rel (0) target = $region29
    $region28: #{_dialog_gru_forward.1} parent=1 // pred_region
      %s42 = ssub.s32 3072, 3072
      %43 = vsyncadd [#allocation6], %s42
      %s44 = sshll.u32 [#allocation5], 4
      %s45 = int_to_ptr.vmem [resolvable:$true] %s44
      %50 = dma.hbm_to_vmem [thread:$0]  %s6, 3072, %s45, [#allocation6], 192, 192, 12
    $region29: #{_dialog_gru_forward.1} parent=1 // pred_fallthru
      _
    // Predicated region
    $region30: #{_dialog_gru_forward.1} parent=1 // pred_check
      _
    $region31: #{_dialog_gru_forward.1} parent=1 // pred_check_branch
      %52 = sbr.rel (0) target = $region33
    $region32: #{_dialog_gru_forward.1} parent=1 // pred_region
      %s54 = ssub.s32 3072, 3072
      %55 = vsyncadd [#allocation6], %s54
      %s56 = sshll.u32 [#allocation7], 4
      %s57 = int_to_ptr.vmem [resolvable:$true] %s56
      %62 = dma.hbm_to_vmem [thread:$0]  %s7, 3072, %s57, [#allocation6], 192, 192, 12
    $region33: #{_dialog_gru_forward.1} parent=1 // pred_fallthru
      _
    // Predicated region
    $region34: #{_dialog_gru_forward.1} parent=1 // pred_check
      _
    $region35: #{_dialog_gru_forward.1} parent=1 // pred_check_branch
      %64 = sbr.rel (0) target = $region37
    $region36: #{_dialog_gru_forward.1} parent=1 // pred_region
      _
    $region37: #{_dialog_gru_forward.1} parent=1 // pred_fallthru
      _
    // Predicated region
    $region38: #{_dialog_gru_forward.1} parent=1 // pred_check
      _
    $region39: #{_dialog_gru_forward.1} parent=1 // pred_check_branch
      %66 = sbr.rel (0) target = $region41
    $region40: #{_dialog_gru_forward.1} parent=1 // pred_region
      _
    $region41: #{_dialog_gru_forward.1} parent=1 // pred_fallthru
      _
    // Predicated region
    $region42: #{_dialog_gru_forward.1} parent=1 // pred_check
      _
    $region43: #{_dialog_gru_forward.1} parent=1 // pred_check_branch
      %68 = sbr.rel (0) target = $region45
    $region44: #{_dialog_gru_forward.1} parent=1 // pred_region
      %69 = dma.done [#allocation4], 3072
    $region45: #{_dialog_gru_forward.1} parent=1 // pred_fallthru
      _
    // Predicated region
    $region46: #{_dialog_gru_forward.1} parent=1 // pred_check
      _
    $region47: #{_dialog_gru_forward.1} parent=1 // pred_check_branch
      %71 = sbr.rel (0) target = $region49
    $region48: #{_dialog_gru_forward.1} parent=1 // pred_region
      %72 = dma.done [#allocation6], 3072
    $region49: #{_dialog_gru_forward.1} parent=1 // pred_fallthru
      _
    // Predicated region
    $region50: #{_dialog_gru_forward.1} parent=1 // pred_check
      _
    $region51: #{_dialog_gru_forward.1} parent=1 // pred_check_branch
      %74 = sbr.rel (0) target = $region53
    $region52: #{_dialog_gru_forward.1} parent=1 // pred_region
      %75 = dma.done [#allocation6], 3072
    $region53: #{_dialog_gru_forward.1} parent=1 // pred_fallthru
      _
    %v77 = vld [vmem:[%s0] sm:$0xff]
    %v78 = vld [vmem:[%s0 + $0x8] sm:$0xff]
    %v79 = vld [vmem:[%s0 + $0x10] sm:$0xff]
    %v80 = vld [vmem:[%s0 + $0x18] sm:$0xff]
    %v81 = vld [vmem:[%s0 + $0x20] sm:$0xff]
    %v82 = vld [vmem:[%s0 + $0x28] sm:$0xff]
    %v83 = vld [vmem:[%s0 + $0x30] sm:$0xff]
    %v84 = vld [vmem:[%s0 + $0x38] sm:$0xff]
    %v85 = vld [vmem:[%s0 + $0x40] sm:$0xff]
    %v86 = vld [vmem:[%s0 + $0x48] sm:$0xff]
    %v87 = vld [vmem:[%s0 + $0x50] sm:$0xff]
    %v88 = vld [vmem:[%s0 + $0x58] sm:$0xff]
    %v89 = vld [vmem:[%s0 + $0x60] sm:$0xff]
    %v90 = vld [vmem:[%s0 + $0x68] sm:$0xff]
    %v91 = vld [vmem:[%s0 + $0x70] sm:$0xff]
    %v92 = vld [vmem:[%s0 + $0x78] sm:$0xff]
    %v93 = vpack.c.bf16 %v78, %v77
    %v94 = vpack.c.bf16 %v80, %v79
    %v95 = vpack.c.bf16 %v82, %v81
    %v96 = vpack.c.bf16 %v84, %v83
    %v97 = vpack.c.bf16 %v86, %v85
    %v98 = vpack.c.bf16 %v88, %v87
    %v99 = vpack.c.bf16 %v90, %v89
    %v100 = vpack.c.bf16 %v92, %v91
    %v101 = vld [vmem:[%s2] sm:$0xff]
    %v102 = vld [vmem:[%s2 + $0x8] sm:$0xf]
    %v103 = vld [vmem:[%s2 + $0xc] sm:$0xff]
    %v104 = vld [vmem:[%s2 + $0x14] sm:$0xf]
    %v105 = vld [vmem:[%s2 + $0x18] sm:$0xff]
    %v106 = vld [vmem:[%s2 + $0x20] sm:$0xf]
    %v107 = vld [vmem:[%s2 + $0x24] sm:$0xff]
    %v108 = vld [vmem:[%s2 + $0x2c] sm:$0xf]
    %v109 = vld [vmem:[%s2 + $0x30] sm:$0xff]
    %v110 = vld [vmem:[%s2 + $0x38] sm:$0xf]
    %v111 = vld [vmem:[%s2 + $0x3c] sm:$0xff]
    %v112 = vld [vmem:[%s2 + $0x44] sm:$0xf]
    %v113 = vld [vmem:[%s2 + $0x48] sm:$0xff]
    %v114 = vld [vmem:[%s2 + $0x50] sm:$0xf]
    %v115 = vld [vmem:[%s2 + $0x54] sm:$0xff]
    %v116 = vld [vmem:[%s2 + $0x5c] sm:$0xf]
    %v117 = vld [vmem:[%s2 + $0x60] sm:$0xff]
    %v118 = vld [vmem:[%s2 + $0x68] sm:$0xf]
    %v119 = vld [vmem:[%s2 + $0x6c] sm:$0xff]
    %v120 = vld [vmem:[%s2 + $0x74] sm:$0xf]
    %v121 = vld [vmem:[%s2 + $0x78] sm:$0xff]
    %v122 = vld [vmem:[%s2 + $0x80] sm:$0xf]
    %v123 = vld [vmem:[%s2 + $0x84] sm:$0xff]
    %v124 = vld [vmem:[%s2 + $0x8c] sm:$0xf]
    %v125 = vld [vmem:[%s2 + $0x90] sm:$0xff]
    %v126 = vld [vmem:[%s2 + $0x98] sm:$0xf]
    %v127 = vld [vmem:[%s2 + $0x9c] sm:$0xff]
    %v128 = vld [vmem:[%s2 + $0xa4] sm:$0xf]
    %v129 = vld [vmem:[%s2 + $0xa8] sm:$0xff]
    %v130 = vld [vmem:[%s2 + $0xb0] sm:$0xf]
    %v131 = vld [vmem:[%s2 + $0xb4] sm:$0xff]
    %v132 = vld [vmem:[%s2 + $0xbc] sm:$0xf]
    %v133 = vld [vmem:[%s4] sm:$0x7]
    %v135 = vlaneseq
    %v136 = vshrl.u32 %v135, 7
    %v137 = vsub.s32 0, %v136
    %v138 = vrot.slane %v133, %v137
    %v139 = vlaneseq
    %v140 = vshrl.u32 %v139, 7
    %v141 = vsub.s32 1, %v140
    %v142 = vrot.slane %v133, %v141
    %v143 = vlaneseq
    %v144 = vshrl.u32 %v143, 7
    %v145 = vsub.s32 2, %v144
    %v146 = vrot.slane %v133, %v145
    %v182 = vunpack.c.l.b16 %v101
    %v183 = vunpack.c.h.b16 %v101
    %v184 = vunpack.c.l.b16 %v102
    %v185 = vunpack.c.l.b16 %v103
    %v186 = vunpack.c.h.b16 %v103
    %v187 = vunpack.c.l.b16 %v104
    %v188 = vunpack.c.l.b16 %v105
    %v189 = vunpack.c.h.b16 %v105
    %v190 = vunpack.c.l.b16 %v106
    %v191 = vunpack.c.l.b16 %v107
    %v192 = vunpack.c.h.b16 %v107
    %v193 = vunpack.c.l.b16 %v108
    %v194 = vunpack.c.l.b16 %v109
    %v195 = vunpack.c.h.b16 %v109
    %v196 = vunpack.c.l.b16 %v110
    %v197 = vunpack.c.l.b16 %v111
    %v198 = vunpack.c.h.b16 %v111
    %v199 = vunpack.c.l.b16 %v112
    %v200 = vunpack.c.l.b16 %v113
    %v201 = vunpack.c.h.b16 %v113
    %v202 = vunpack.c.l.b16 %v114
    %v203 = vunpack.c.l.b16 %v115
    %v204 = vunpack.c.h.b16 %v115
    %v205 = vunpack.c.l.b16 %v116
    %v206 = vunpack.c.l.b16 %v117
    %v207 = vunpack.c.h.b16 %v117
    %v208 = vunpack.c.l.b16 %v118
    %v209 = vunpack.c.l.b16 %v119
    %v210 = vunpack.c.h.b16 %v119
    %v211 = vunpack.c.l.b16 %v120
    %v212 = vunpack.c.l.b16 %v121
    %v213 = vunpack.c.h.b16 %v121
    %v214 = vunpack.c.l.b16 %v122
    %v215 = vunpack.c.l.b16 %v123
    %v216 = vunpack.c.h.b16 %v123
    %v217 = vunpack.c.l.b16 %v124
    %v218 = vunpack.c.l.b16 %v125
    %v219 = vunpack.c.h.b16 %v125
    %v220 = vunpack.c.l.b16 %v126
    %v221 = vunpack.c.l.b16 %v127
    %v222 = vunpack.c.h.b16 %v127
    %v223 = vunpack.c.l.b16 %v128
    %v224 = vunpack.c.l.b16 %v129
    %v225 = vunpack.c.h.b16 %v129
    %v226 = vunpack.c.l.b16 %v130
    %v227 = vunpack.c.l.b16 %v131
    %v228 = vunpack.c.h.b16 %v131
    %v229 = vunpack.c.l.b16 %v132
    %v230 = vpack.c.b16 %v185, %v182
    %v231 = vpack.c.b16 %v186, %v183
    %v232 = vpack.c.b16 %v187, %v184
    %v233 = vpack.c.b16 %v191, %v188
    %v234 = vpack.c.b16 %v192, %v189
    %v235 = vpack.c.b16 %v193, %v190
    %v236 = vpack.c.b16 %v197, %v194
    %v237 = vpack.c.b16 %v198, %v195
    %v238 = vpack.c.b16 %v199, %v196
    %v239 = vpack.c.b16 %v203, %v200
    %v240 = vpack.c.b16 %v204, %v201
    %v241 = vpack.c.b16 %v205, %v202
    %v242 = vpack.c.b16 %v209, %v206
    %v243 = vpack.c.b16 %v210, %v207
    %v244 = vpack.c.b16 %v211, %v208
    %v245 = vpack.c.b16 %v215, %v212
    %v246 = vpack.c.b16 %v216, %v213
    %v247 = vpack.c.b16 %v217, %v214
    %v248 = vpack.c.b16 %v221, %v218
    %v249 = vpack.c.b16 %v222, %v219
    %v250 = vpack.c.b16 %v223, %v220
    %v251 = vpack.c.b16 %v227, %v224
    %v252 = vpack.c.b16 %v228, %v225
    %v253 = vpack.c.b16 %v229, %v226
    %278 = vmatprep.subr.bf16.mxu0 %v231
    %279 = vmatpush1.bf16.msra.mxu0 %v230
    %280 = vmatprep.subr.bf16.mxu0 %v234
    %281 = vmatpush1.bf16.msra.mxu0 %v233
    %282 = vmatprep.subr.bf16.mxu0 %v237
    %283 = vmatpush1.bf16.msra.mxu0 %v236
    %284 = vmatprep.subr.bf16.mxu0 %v240
    %285 = vmatpush1.bf16.msra.mxu0 %v239
    %286 = vmatprep.subr.bf16.mxu0 %v243
    %287 = vmatpush1.bf16.msra.mxu0 %v242
    %288 = vmatprep.subr.bf16.mxu0 %v246
    %289 = vmatpush1.bf16.msra.mxu0 %v245
    %290 = vmatprep.subr.bf16.mxu0 %v249
    %291 = vmatpush1.bf16.msra.mxu0 %v248
    %292 = vmatprep.subr.bf16.mxu0 %v252
    %293 = vmatpush1.bf16.msra.mxu0 %v251
    %294 = vmatprep.subr.bf16.mxu0 0
    %295 = vmatpush1.bf16.msra.mxu0 0
    %296 = vmatprep.subr.bf16.mxu0 0
    %297 = vmatpush1.bf16.msra.mxu0 0
    %298 = vmatprep.subr.bf16.mxu0 0
    %299 = vmatpush1.bf16.msra.mxu0 0
    %300 = vmatprep.subr.bf16.mxu0 0
    %301 = vmatpush1.bf16.msra.mxu0 0
    %302 = vmatprep.subr.bf16.mxu0 0
    %303 = vmatpush1.bf16.msra.mxu0 0
    %304 = vmatprep.subr.bf16.mxu0 0
    %305 = vmatpush1.bf16.msra.mxu0 0
    %306 = vmatprep.subr.bf16.mxu0 0
    %307 = vmatpush1.bf16.msra.mxu0 0
    %308 = vmatprep.subr.bf16.mxu0 0
    %309 = vmatpush1.bf16.msra.mxu0 0
    %310 = vmatprep.mubr.bf16.mxu0 0
    %311 = vmatmul.mubr.bf16.gmra.mrb[0].mxu0 %v93
    %v312 = vpop.f32.mrb[0].mxu0
    %v313 = vadd.f32 %v138, %v312
    %v314 = vpop.f32.mrb[0].mxu0
    %v315 = vadd.f32 %v142, %v314
    %v316 = vpop.f32.mrb[0].mxu0
    %v317 = vadd.f32 %v138, %v316
    %v318 = vpop.f32.mrb[0].mxu0
    %v319 = vadd.f32 %v142, %v318
    %320 = vmatprep.mubr.bf16.mxu0 0
    %321 = vmatmul.mubr.bf16.gmra.mrb[0].mxu0 %v94
    %v322 = vpop.f32.mrb[0].mxu0
    %v323 = vadd.f32 %v138, %v322
    %v324 = vpop.f32.mrb[0].mxu0
    %v325 = vadd.f32 %v142, %v324
    %v326 = vpop.f32.mrb[0].mxu0
    %v327 = vadd.f32 %v138, %v326
    %v328 = vpop.f32.mrb[0].mxu0
    %v329 = vadd.f32 %v142, %v328
    %330 = vmatprep.mubr.bf16.mxu0 0
    %331 = vmatmul.mubr.bf16.gmra.mrb[0].mxu0 %v95
    %v332 = vpop.f32.mrb[0].mxu0
    %v333 = vadd.f32 %v138, %v332
    %v334 = vpop.f32.mrb[0].mxu0
    %v335 = vadd.f32 %v142, %v334
    %v336 = vpop.f32.mrb[0].mxu0
    %v337 = vadd.f32 %v138, %v336
    %v338 = vpop.f32.mrb[0].mxu0
    %v339 = vadd.f32 %v142, %v338
    %340 = vmatprep.mubr.bf16.mxu0 0
    %341 = vmatmul.mubr.bf16.gmra.mrb[0].mxu0 %v96
    %v342 = vpop.f32.mrb[0].mxu0
    %v343 = vadd.f32 %v138, %v342
    %v344 = vpop.f32.mrb[0].mxu0
    %v345 = vadd.f32 %v142, %v344
    %v346 = vpop.f32.mrb[0].mxu0
    %v347 = vadd.f32 %v138, %v346
    %v348 = vpop.f32.mrb[0].mxu0
    %v349 = vadd.f32 %v142, %v348
    %350 = vmatprep.mubr.bf16.mxu0 0
    %351 = vmatmul.mubr.bf16.gmra.mrb[0].mxu0 %v97
    %v352 = vpop.f32.mrb[0].mxu0
    %v353 = vadd.f32 %v138, %v352
    %v354 = vpop.f32.mrb[0].mxu0
    %v355 = vadd.f32 %v142, %v354
    %v356 = vpop.f32.mrb[0].mxu0
    %v357 = vadd.f32 %v138, %v356
    %v358 = vpop.f32.mrb[0].mxu0
    %v359 = vadd.f32 %v142, %v358
    %360 = vmatprep.mubr.bf16.mxu0 0
    %361 = vmatmul.mubr.bf16.gmra.mrb[0].mxu0 %v98
    %v362 = vpop.f32.mrb[0].mxu0
    %v363 = vadd.f32 %v138, %v362
    %v364 = vpop.f32.mrb[0].mxu0
    %v365 = vadd.f32 %v142, %v364
    %v366 = vpop.f32.mrb[0].mxu0
    %v367 = vadd.f32 %v138, %v366
    %v368 = vpop.f32.mrb[0].mxu0
    %v369 = vadd.f32 %v142, %v368
    %370 = vmatprep.mubr.bf16.mxu0 0
    %371 = vmatmul.mubr.bf16.gmra.mrb[0].mxu0 %v99
    %v372 = vpop.f32.mrb[0].mxu0
    %v373 = vadd.f32 %v138, %v372
    %v374 = vpop.f32.mrb[0].mxu0
    %v375 = vadd.f32 %v142, %v374
    %v376 = vpop.f32.mrb[0].mxu0
    %v377 = vadd.f32 %v138, %v376
    %v378 = vpop.f32.mrb[0].mxu0
    %v379 = vadd.f32 %v142, %v378
    %380 = vmatprep.mubr.bf16.mxu0 0
    %381 = vmatmul.mubr.bf16.gmra.mrb[0].mxu0 %v100
    %v382 = vpop.f32.mrb[0].mxu0
    %v383 = vadd.f32 %v138, %v382
    %v384 = vpop.f32.mrb[0].mxu0
    %v385 = vadd.f32 %v142, %v384
    %v386 = vpop.f32.mrb[0].mxu0
    %v387 = vadd.f32 %v138, %v386
    %v388 = vpop.f32.mrb[0].mxu0
    %v389 = vadd.f32 %v142, %v388
    %390 = vdwg.mxu0
    %391 = vmatprep.subr.bf16.mxu0 0
    %392 = vmatpush1.bf16.msra.mxu0 %v232
    %393 = vmatprep.subr.bf16.mxu0 0
    %394 = vmatpush1.bf16.msra.mxu0 %v235
    %395 = vmatprep.subr.bf16.mxu0 0
    %396 = vmatpush1.bf16.msra.mxu0 %v238
    %397 = vmatprep.subr.bf16.mxu0 0
    %398 = vmatpush1.bf16.msra.mxu0 %v241
    %399 = vmatprep.subr.bf16.mxu0 0
    %400 = vmatpush1.bf16.msra.mxu0 %v244
    %401 = vmatprep.subr.bf16.mxu0 0
    %402 = vmatpush1.bf16.msra.mxu0 %v247
    %403 = vmatprep.subr.bf16.mxu0 0
    %404 = vmatpush1.bf16.msra.mxu0 %v250
    %405 = vmatprep.subr.bf16.mxu0 0
    %406 = vmatpush1.bf16.msra.mxu0 %v253
    %407 = vmatprep.subr.bf16.mxu0 0
    %408 = vmatpush1.bf16.msra.mxu0 0
    %409 = vmatprep.subr.bf16.mxu0 0
    %410 = vmatpush1.bf16.msra.mxu0 0
    %411 = vmatprep.subr.bf16.mxu0 0
    %412 = vmatpush1.bf16.msra.mxu0 0
    %413 = vmatprep.subr.bf16.mxu0 0
    %414 = vmatpush1.bf16.msra.mxu0 0
    %415 = vmatprep.subr.bf16.mxu0 0
    %416 = vmatpush1.bf16.msra.mxu0 0
    %417 = vmatprep.subr.bf16.mxu0 0
    %418 = vmatpush1.bf16.msra.mxu0 0
    %419 = vmatprep.subr.bf16.mxu0 0
    %420 = vmatpush1.bf16.msra.mxu0 0
    %421 = vmatprep.subr.bf16.mxu0 0
    %422 = vmatpush1.bf16.msra.mxu0 0
    %423 = vmatprep.mubr.bf16.mxu0 0
    %424 = vmatmul.mubr.bf16.gmra.mrb[0].mxu0 %v93
    %v425 = vpop.f32.mrb[0].mxu0
    %v426 = vadd.f32 %v146, %v425
    %v427 = vpop.f32.mrb[0].mxu0
    %v428 = vpop.f32.mrb[0].mxu0
    %v429 = vadd.f32 %v146, %v428
    %v430 = vpop.f32.mrb[0].mxu0
    %431 = vmatprep.mubr.bf16.mxu0 0
    %432 = vmatmul.mubr.bf16.gmra.mrb[0].mxu0 %v94
    %v433 = vpop.f32.mrb[0].mxu0
    %v434 = vadd.f32 %v146, %v433
    %v435 = vpop.f32.mrb[0].mxu0
    %v436 = vpop.f32.mrb[0].mxu0
    %v437 = vadd.f32 %v146, %v436
    %v438 = vpop.f32.mrb[0].mxu0
    %439 = vmatprep.mubr.bf16.mxu0 0
    %440 = vmatmul.mubr.bf16.gmra.mrb[0].mxu0 %v95
    %v441 = vpop.f32.mrb[0].mxu0
    %v442 = vadd.f32 %v146, %v441
    %v443 = vpop.f32.mrb[0].mxu0
    %v444 = vpop.f32.mrb[0].mxu0
    %v445 = vadd.f32 %v146, %v444
    %v446 = vpop.f32.mrb[0].mxu0
    %447 = vmatprep.mubr.bf16.mxu0 0
    %448 = vmatmul.mubr.bf16.gmra.mrb[0].mxu0 %v96
    %v449 = vpop.f32.mrb[0].mxu0
    %v450 = vadd.f32 %v146, %v449
    %v451 = vpop.f32.mrb[0].mxu0
    %v452 = vpop.f32.mrb[0].mxu0
    %v453 = vadd.f32 %v146, %v452
    %v454 = vpop.f32.mrb[0].mxu0
    %455 = vmatprep.mubr.bf16.mxu0 0
    %456 = vmatmul.mubr.bf16.gmra.mrb[0].mxu0 %v97
    %v457 = vpop.f32.mrb[0].mxu0
    %v458 = vadd.f32 %v146, %v457
    %v459 = vpop.f32.mrb[0].mxu0
    %v460 = vpop.f32.mrb[0].mxu0
    %v461 = vadd.f32 %v146, %v460
    %v462 = vpop.f32.mrb[0].mxu0
    %463 = vmatprep.mubr.bf16.mxu0 0
    %464 = vmatmul.mubr.bf16.gmra.mrb[0].mxu0 %v98
    %v465 = vpop.f32.mrb[0].mxu0
    %v466 = vadd.f32 %v146, %v465
    %v467 = vpop.f32.mrb[0].mxu0
    %v468 = vpop.f32.mrb[0].mxu0
    %v469 = vadd.f32 %v146, %v468
    %v470 = vpop.f32.mrb[0].mxu0
    %471 = vmatprep.mubr.bf16.mxu0 0
    %472 = vmatmul.mubr.bf16.gmra.mrb[0].mxu0 %v99
    %v473 = vpop.f32.mrb[0].mxu0
    %v474 = vadd.f32 %v146, %v473
    %v475 = vpop.f32.mrb[0].mxu0
    %v476 = vpop.f32.mrb[0].mxu0
    %v477 = vadd.f32 %v146, %v476
    %v478 = vpop.f32.mrb[0].mxu0
    %479 = vmatprep.mubr.bf16.mxu0 0
    %480 = vmatmul.mubr.bf16.gmra.mrb[0].mxu0 %v100
    %v481 = vpop.f32.mrb[0].mxu0
    %v482 = vadd.f32 %v146, %v481
    %v483 = vpop.f32.mrb[0].mxu0
    %v484 = vpop.f32.mrb[0].mxu0
    %v485 = vadd.f32 %v146, %v484
    %v486 = vpop.f32.mrb[0].mxu0
    %487 = vdwg.mxu0
    %488 = vst [vmem:[#allocation2] sm:$0xff] %v313
    %489 = vst [vmem:[#allocation2 + $0x8] sm:$0xff] %v315
    %490 = vst [vmem:[#allocation2 + $0x10] sm:$0xff] %v426
    %491 = vst [vmem:[#allocation2 + $0x18] sm:$0xff] %v317
    %492 = vst [vmem:[#allocation2 + $0x20] sm:$0xff] %v319
    %493 = vst [vmem:[#allocation2 + $0x28] sm:$0xff] %v429
    %494 = vst [vmem:[#allocation2 + $0x30] sm:$0xff] %v323
    %495 = vst [vmem:[#allocation2 + $0x38] sm:$0xff] %v325
    %496 = vst [vmem:[#allocation2 + $0x40] sm:$0xff] %v434
    %497 = vst [vmem:[#allocation2 + $0x48] sm:$0xff] %v327
    %498 = vst [vmem:[#allocation2 + $0x50] sm:$0xff] %v329
    %499 = vst [vmem:[#allocation2 + $0x58] sm:$0xff] %v437
    %500 = vst [vmem:[#allocation2 + $0x60] sm:$0xff] %v333
    %501 = vst [vmem:[#allocation2 + $0x68] sm:$0xff] %v335
    %502 = vst [vmem:[#allocation2 + $0x70] sm:$0xff] %v442
    %503 = vst [vmem:[#allocation2 + $0x78] sm:$0xff] %v337
    %504 = vst [vmem:[#allocation2 + $0x80] sm:$0xff] %v339
    %505 = vst [vmem:[#allocation2 + $0x88] sm:$0xff] %v445
    %506 = vst [vmem:[#allocation2 + $0x90] sm:$0xff] %v343
    %507 = vst [vmem:[#allocation2 + $0x98] sm:$0xff] %v345
    %508 = vst [vmem:[#allocation2 + $0xa0] sm:$0xff] %v450
    %509 = vst [vmem:[#allocation2 + $0xa8] sm:$0xff] %v347
    %510 = vst [vmem:[#allocation2 + $0xb0] sm:$0xff] %v349
    %511 = vst [vmem:[#allocation2 + $0xb8] sm:$0xff] %v453
    %512 = vst [vmem:[#allocation2 + $0xc0] sm:$0xff] %v353
    %513 = vst [vmem:[#allocation2 + $0xc8] sm:$0xff] %v355
    %514 = vst [vmem:[#allocation2 + $0xd0] sm:$0xff] %v458
    %515 = vst [vmem:[#allocation2 + $0xd8] sm:$0xff] %v357
    %516 = vst [vmem:[#allocation2 + $0xe0] sm:$0xff] %v359
    %517 = vst [vmem:[#allocation2 + $0xe8] sm:$0xff] %v461
    %518 = vst [vmem:[#allocation2 + $0xf0] sm:$0xff] %v363
    %519 = vst [vmem:[#allocation2 + $0xf8] sm:$0xff] %v365
    %520 = vst [vmem:[#allocation2 + $0x100] sm:$0xff] %v466
    %521 = vst [vmem:[#allocation2 + $0x108] sm:$0xff] %v367
    %522 = vst [vmem:[#allocation2 + $0x110] sm:$0xff] %v369
    %523 = vst [vmem:[#allocation2 + $0x118] sm:$0xff] %v469
    %524 = vst [vmem:[#allocation2 + $0x120] sm:$0xff] %v373
    %525 = vst [vmem:[#allocation2 + $0x128] sm:$0xff] %v375
    %526 = vst [vmem:[#allocation2 + $0x130] sm:$0xff] %v474
    %527 = vst [vmem:[#allocation2 + $0x138] sm:$0xff] %v377
    %528 = vst [vmem:[#allocation2 + $0x140] sm:$0xff] %v379
    %529 = vst [vmem:[#allocation2 + $0x148] sm:$0xff] %v477
    %530 = vst [vmem:[#allocation2 + $0x150] sm:$0xff] %v383
    %531 = vst [vmem:[#allocation2 + $0x158] sm:$0xff] %v385
    %532 = vst [vmem:[#allocation2 + $0x160] sm:$0xff] %v482
    %533 = vst [vmem:[#allocation2 + $0x168] sm:$0xff] %v387
    %534 = vst [vmem:[#allocation2 + $0x170] sm:$0xff] %v389
    %535 = vst [vmem:[#allocation2 + $0x178] sm:$0xff] %v485
    %v536 = vld [vmem:[#allocation3] sm:$0xff]
    %v537 = vld [vmem:[#allocation3 + $0x8] sm:$0xf]
    %v538 = vld [vmem:[#allocation3 + $0xc] sm:$0xff]
    %v539 = vld [vmem:[#allocation3 + $0x14] sm:$0xf]
    %v540 = vld [vmem:[#allocation3 + $0x18] sm:$0xff]
    %v541 = vld [vmem:[#allocation3 + $0x20] sm:$0xf]
    %v542 = vld [vmem:[#allocation3 + $0x24] sm:$0xff]
    %v543 = vld [vmem:[#allocation3 + $0x2c] sm:$0xf]
    %v544 = vld [vmem:[#allocation3 + $0x30] sm:$0xff]
    %v545 = vld [vmem:[#allocation3 + $0x38] sm:$0xf]
    %v546 = vld [vmem:[#allocation3 + $0x3c] sm:$0xff]
    %v547 = vld [vmem:[#allocation3 + $0x44] sm:$0xf]
    %v548 = vld [vmem:[#allocation3 + $0x48] sm:$0xff]
    %v549 = vld [vmem:[#allocation3 + $0x50] sm:$0xf]
    %v550 = vld [vmem:[#allocation3 + $0x54] sm:$0xff]
    %v551 = vld [vmem:[#allocation3 + $0x5c] sm:$0xf]
    %v552 = vld [vmem:[#allocation3 + $0x60] sm:$0xff]
    %v553 = vld [vmem:[#allocation3 + $0x68] sm:$0xf]
    %v554 = vld [vmem:[#allocation3 + $0x6c] sm:$0xff]
    %v555 = vld [vmem:[#allocation3 + $0x74] sm:$0xf]
    %v556 = vld [vmem:[#allocation3 + $0x78] sm:$0xff]
    %v557 = vld [vmem:[#allocation3 + $0x80] sm:$0xf]
    %v558 = vld [vmem:[#allocation3 + $0x84] sm:$0xff]
    %v559 = vld [vmem:[#allocation3 + $0x8c] sm:$0xf]
    %v560 = vld [vmem:[#allocation3 + $0x90] sm:$0xff]
    %v561 = vld [vmem:[#allocation3 + $0x98] sm:$0xf]
    %v562 = vld [vmem:[#allocation3 + $0x9c] sm:$0xff]
    %v563 = vld [vmem:[#allocation3 + $0xa4] sm:$0xf]
    %v564 = vld [vmem:[#allocation3 + $0xa8] sm:$0xff]
    %v565 = vld [vmem:[#allocation3 + $0xb0] sm:$0xf]
    %v566 = vld [vmem:[#allocation3 + $0xb4] sm:$0xff]
    %v567 = vld [vmem:[#allocation3 + $0xbc] sm:$0xf]
    %v568 = vld [vmem:[#allocation7] sm:$0xff]
    %v569 = vld [vmem:[#allocation7 + $0x8] sm:$0xf]
    %v570 = vld [vmem:[#allocation7 + $0xc] sm:$0xff]
    %v571 = vld [vmem:[#allocation7 + $0x14] sm:$0xf]
    %v572 = vld [vmem:[#allocation7 + $0x18] sm:$0xff]
    %v573 = vld [vmem:[#allocation7 + $0x20] sm:$0xf]
    %v574 = vld [vmem:[#allocation7 + $0x24] sm:$0xff]
    %v575 = vld [vmem:[#allocation7 + $0x2c] sm:$0xf]
    %v576 = vld [vmem:[#allocation7 + $0x30] sm:$0xff]
    %v577 = vld [vmem:[#allocation7 + $0x38] sm:$0xf]
    %v578 = vld [vmem:[#allocation7 + $0x3c] sm:$0xff]
    %v579 = vld [vmem:[#allocation7 + $0x44] sm:$0xf]
    %v580 = vld [vmem:[#allocation7 + $0x48] sm:$0xff]
    %v581 = vld [vmem:[#allocation7 + $0x50] sm:$0xf]
    %v582 = vld [vmem:[#allocation7 + $0x54] sm:$0xff]
    %v583 = vld [vmem:[#allocation7 + $0x5c] sm:$0xf]
    %v584 = vld [vmem:[#allocation7 + $0x60] sm:$0xff]
    %v585 = vld [vmem:[#allocation7 + $0x68] sm:$0xf]
    %v586 = vld [vmem:[#allocation7 + $0x6c] sm:$0xff]
    %v587 = vld [vmem:[#allocation7 + $0x74] sm:$0xf]
    %v588 = vld [vmem:[#allocation7 + $0x78] sm:$0xff]
    %v589 = vld [vmem:[#allocation7 + $0x80] sm:$0xf]
    %v590 = vld [vmem:[#allocation7 + $0x84] sm:$0xff]
    %v591 = vld [vmem:[#allocation7 + $0x8c] sm:$0xf]
    %v592 = vld [vmem:[#allocation7 + $0x90] sm:$0xff]
    %v593 = vld [vmem:[#allocation7 + $0x98] sm:$0xf]
    %v594 = vld [vmem:[#allocation7 + $0x9c] sm:$0xff]
    %v595 = vld [vmem:[#allocation7 + $0xa4] sm:$0xf]
    %v596 = vld [vmem:[#allocation7 + $0xa8] sm:$0xff]
    %v597 = vld [vmem:[#allocation7 + $0xb0] sm:$0xf]
    %v598 = vld [vmem:[#allocation7 + $0xb4] sm:$0xff]
    %v599 = vld [vmem:[#allocation7 + $0xbc] sm:$0xf]
    %v600 = vld [vmem:[#allocation5] sm:$0xff]
    %v601 = vld [vmem:[#allocation5 + $0x8] sm:$0xf]
    %v602 = vld [vmem:[#allocation5 + $0xc] sm:$0xff]
    %v603 = vld [vmem:[#allocation5 + $0x14] sm:$0xf]
    %v604 = vld [vmem:[#allocation5 + $0x18] sm:$0xff]
    %v605 = vld [vmem:[#allocation5 + $0x20] sm:$0xf]
    %v606 = vld [vmem:[#allocation5 + $0x24] sm:$0xff]
    %v607 = vld [vmem:[#allocation5 + $0x2c] sm:$0xf]
    %v608 = vld [vmem:[#allocation5 + $0x30] sm:$0xff]
    %v609 = vld [vmem:[#allocation5 + $0x38] sm:$0xf]
    %v610 = vld [vmem:[#allocation5 + $0x3c] sm:$0xff]
    %v611 = vld [vmem:[#allocation5 + $0x44] sm:$0xf]
    %v612 = vld [vmem:[#allocation5 + $0x48] sm:$0xff]
    %v613 = vld [vmem:[#allocation5 + $0x50] sm:$0xf]
    %v614 = vld [vmem:[#allocation5 + $0x54] sm:$0xff]
    %v615 = vld [vmem:[#allocation5 + $0x5c] sm:$0xf]
    %v616 = vld [vmem:[#allocation5 + $0x60] sm:$0xff]
    %v617 = vld [vmem:[#allocation5 + $0x68] sm:$0xf]
    %v618 = vld [vmem:[#allocation5 + $0x6c] sm:$0xff]
    %v619 = vld [vmem:[#allocation5 + $0x74] sm:$0xf]
    %v620 = vld [vmem:[#allocation5 + $0x78] sm:$0xff]
    %v621 = vld [vmem:[#allocation5 + $0x80] sm:$0xf]
    %v622 = vld [vmem:[#allocation5 + $0x84] sm:$0xff]
    %v623 = vld [vmem:[#allocation5 + $0x8c] sm:$0xf]
    %v624 = vld [vmem:[#allocation5 + $0x90] sm:$0xff]
    %v625 = vld [vmem:[#allocation5 + $0x98] sm:$0xf]
    %v626 = vld [vmem:[#allocation5 + $0x9c] sm:$0xff]
    %v627 = vld [vmem:[#allocation5 + $0xa4] sm:$0xf]
    %v628 = vld [vmem:[#allocation5 + $0xa8] sm:$0xff]
    %v629 = vld [vmem:[#allocation5 + $0xb0] sm:$0xf]
    %v630 = vld [vmem:[#allocation5 + $0xb4] sm:$0xff]
    %v631 = vld [vmem:[#allocation5 + $0xbc] sm:$0xf]
    %v632 = vld [vmem:[%s5] sm:$0x1]
    %v633 = vld [vmem:[%s8] sm:$0x7]
    %v634 = vld [vmem:[%s9] sm:$0x1]
    %v635 = vld [vmem:[%s1] sm:$0xff]
    %s636 = scalar_lea.vmem %s1, 8
    %v637 = vld [vmem:[%s636] sm:$0xff]
    %v638 = vld [vmem:[#allocation2] sm:$0xff]
    %v639 = vld [vmem:[#allocation2 + $0x8] sm:$0xff]
    %v640 = vld [vmem:[#allocation2 + $0x10] sm:$0xff]
    %v641 = vpack.c.bf16 %v635, %v635
    %v674 = vunpack.c.l.b16 %v536
    %v675 = vunpack.c.h.b16 %v536
    %v676 = vunpack.c.l.b16 %v537
    %v677 = vunpack.c.l.b16 %v538
    %v678 = vunpack.c.h.b16 %v538
    %v679 = vunpack.c.l.b16 %v539
    %v680 = vunpack.c.l.b16 %v540
    %v681 = vunpack.c.h.b16 %v540
    %v682 = vunpack.c.l.b16 %v541
    %v683 = vunpack.c.l.b16 %v542
    %v684 = vunpack.c.h.b16 %v542
    %v685 = vunpack.c.l.b16 %v543
    %v686 = vunpack.c.l.b16 %v544
    %v687 = vunpack.c.h.b16 %v544
    %v688 = vunpack.c.l.b16 %v545
    %v689 = vunpack.c.l.b16 %v546
    %v690 = vunpack.c.h.b16 %v546
    %v691 = vunpack.c.l.b16 %v547
    %v692 = vunpack.c.l.b16 %v548
    %v693 = vunpack.c.h.b16 %v548
    %v694 = vunpack.c.l.b16 %v549
    %v695 = vunpack.c.l.b16 %v550
    %v696 = vunpack.c.h.b16 %v550
    %v697 = vunpack.c.l.b16 %v551
    %v698 = vunpack.c.l.b16 %v552
    %v699 = vunpack.c.h.b16 %v552
    %v700 = vunpack.c.l.b16 %v553
    %v701 = vunpack.c.l.b16 %v554
    %v702 = vunpack.c.h.b16 %v554
    %v703 = vunpack.c.l.b16 %v555
    %v704 = vunpack.c.l.b16 %v556
    %v705 = vunpack.c.h.b16 %v556
    %v706 = vunpack.c.l.b16 %v557
    %v707 = vunpack.c.l.b16 %v558
    %v708 = vunpack.c.h.b16 %v558
    %v709 = vunpack.c.l.b16 %v559
    %v710 = vunpack.c.l.b16 %v560
    %v711 = vunpack.c.h.b16 %v560
    %v712 = vunpack.c.l.b16 %v561
    %v713 = vunpack.c.l.b16 %v562
    %v714 = vunpack.c.h.b16 %v562
    %v715 = vunpack.c.l.b16 %v563
    %v716 = vunpack.c.l.b16 %v564
    %v717 = vunpack.c.h.b16 %v564
    %v718 = vunpack.c.l.b16 %v565
    %v719 = vunpack.c.l.b16 %v566
    %v720 = vunpack.c.h.b16 %v566
    %v721 = vunpack.c.l.b16 %v567
    %v722 = vpack.c.b16 %v677, %v674
    %v723 = vpack.c.b16 %v678, %v675
    %v724 = vpack.c.b16 %v679, %v676
    %v725 = vpack.c.b16 %v683, %v680
    %v726 = vpack.c.b16 %v684, %v681
    %v727 = vpack.c.b16 %v685, %v682
    %v728 = vpack.c.b16 %v689, %v686
    %v729 = vpack.c.b16 %v690, %v687
    %v730 = vpack.c.b16 %v691, %v688
    %v731 = vpack.c.b16 %v695, %v692
    %v732 = vpack.c.b16 %v696, %v693
    %v733 = vpack.c.b16 %v697, %v694
    %v734 = vpack.c.b16 %v701, %v698
    %v735 = vpack.c.b16 %v702, %v699
    %v736 = vpack.c.b16 %v703, %v700
    %v737 = vpack.c.b16 %v707, %v704
    %v738 = vpack.c.b16 %v708, %v705
    %v739 = vpack.c.b16 %v709, %v706
    %v740 = vpack.c.b16 %v713, %v710
    %v741 = vpack.c.b16 %v714, %v711
    %v742 = vpack.c.b16 %v715, %v712
    %v743 = vpack.c.b16 %v719, %v716
    %v744 = vpack.c.b16 %v720, %v717
    %v745 = vpack.c.b16 %v721, %v718
    %770 = vmatprep.subr.bf16.mxu0 %v723
    %771 = vmatpush1.bf16.msra.mxu0 %v722
    %772 = vmatprep.subr.bf16.mxu0 %v726
    %773 = vmatpush1.bf16.msra.mxu0 %v725
    %774 = vmatprep.subr.bf16.mxu0 %v729
    %775 = vmatpush1.bf16.msra.mxu0 %v728
    %776 = vmatprep.subr.bf16.mxu0 %v732
    %777 = vmatpush1.bf16.msra.mxu0 %v731
    %778 = vmatprep.subr.bf16.mxu0 %v735
    %779 = vmatpush1.bf16.msra.mxu0 %v734
    %780 = vmatprep.subr.bf16.mxu0 %v738
    %781 = vmatpush1.bf16.msra.mxu0 %v737
    %782 = vmatprep.subr.bf16.mxu0 %v741
    %783 = vmatpush1.bf16.msra.mxu0 %v740
    %784 = vmatprep.subr.bf16.mxu0 %v744
    %785 = vmatpush1.bf16.msra.mxu0 %v743
    %786 = vmatprep.subr.bf16.mxu0 0
    %787 = vmatpush1.bf16.msra.mxu0 0
    %788 = vmatprep.subr.bf16.mxu0 0
    %789 = vmatpush1.bf16.msra.mxu0 0
    %790 = vmatprep.subr.bf16.mxu0 0
    %791 = vmatpush1.bf16.msra.mxu0 0
    %792 = vmatprep.subr.bf16.mxu0 0
    %793 = vmatpush1.bf16.msra.mxu0 0
    %794 = vmatprep.subr.bf16.mxu0 0
    %795 = vmatpush1.bf16.msra.mxu0 0
    %796 = vmatprep.subr.bf16.mxu0 0
    %797 = vmatpush1.bf16.msra.mxu0 0
    %798 = vmatprep.subr.bf16.mxu0 0
    %799 = vmatpush1.bf16.msra.mxu0 0
    %800 = vmatprep.subr.bf16.mxu0 0
    %801 = vmatpush1.bf16.msra.mxu0 0
    %802 = vmatprep.mubr.bf16.mxu0 0
    %803 = vmatmul.mubr.bf16.gmra.mrb[0].mxu0 %v641
    %v804 = vpop.f32.mrb[0].mxu0
    %v805 = vadd.f32 0.0, %v804
    %v806 = vpop.f32.mrb[0].mxu0
    %v807 = vadd.f32 0.0, %v806
    %v808 = vpop.f32.mrb[0].mxu0
    %v809 = vpop.f32.mrb[0].mxu0
    %810 = vdwg.mxu0
    %811 = vmatprep.subr.bf16.mxu0 0
    %812 = vmatpush1.bf16.msra.mxu0 %v724
    %813 = vmatprep.subr.bf16.mxu0 0
    %814 = vmatpush1.bf16.msra.mxu0 %v727
    %815 = vmatprep.subr.bf16.mxu0 0
    %816 = vmatpush1.bf16.msra.mxu0 %v730
    %817 = vmatprep.subr.bf16.mxu0 0
    %818 = vmatpush1.bf16.msra.mxu0 %v733
    %819 = vmatprep.subr.bf16.mxu0 0
    %820 = vmatpush1.bf16.msra.mxu0 %v736
    %821 = vmatprep.subr.bf16.mxu0 0
    %822 = vmatpush1.bf16.msra.mxu0 %v739
    %823 = vmatprep.subr.bf16.mxu0 0
    %824 = vmatpush1.bf16.msra.mxu0 %v742
    %825 = vmatprep.subr.bf16.mxu0 0
    %826 = vmatpush1.bf16.msra.mxu0 %v745
    %827 = vmatprep.subr.bf16.mxu0 0
    %828 = vmatpush1.bf16.msra.mxu0 0
    %829 = vmatprep.subr.bf16.mxu0 0
    %830 = vmatpush1.bf16.msra.mxu0 0
    %831 = vmatprep.subr.bf16.mxu0 0
    %832 = vmatpush1.bf16.msra.mxu0 0
    %833 = vmatprep.subr.bf16.mxu0 0
    %834 = vmatpush1.bf16.msra.mxu0 0
    %835 = vmatprep.subr.bf16.mxu0 0
    %836 = vmatpush1.bf16.msra.mxu0 0
    %837 = vmatprep.subr.bf16.mxu0 0
    %838 = vmatpush1.bf16.msra.mxu0 0
    %839 = vmatprep.subr.bf16.mxu0 0
    %840 = vmatpush1.bf16.msra.mxu0 0
    %841 = vmatprep.subr.bf16.mxu0 0
    %842 = vmatpush1.bf16.msra.mxu0 0
    %843 = vmatprep.mubr.bf16.mxu0 0
    %844 = vmatmul.mubr.bf16.gmra.mrb[0].mxu0 %v641
    %v845 = vpop.f32.mrb[0].mxu0
    %v846 = vadd.f32 0.0, %v845
    %v847 = vpop.f32.mrb[0].mxu0
    %v848 = vpop.f32.mrb[0].mxu0
    %v849 = vpop.f32.mrb[0].mxu0
    %850 = vdwg.mxu0
    %v851 = vadd.f32 %v638, %v805
    %v852 = vadd.f32 %v639, %v807
    %v853 = vxor.u32 %v851, 2147483648
    %v854 = vxor.u32 %v852, 2147483648
    %v855 = vmul.f32 %v853, 1.442695
    %v856 = vpow.pop %v855
    %v857 = vmul.f32 %v854, 1.442695
    %v858 = vpow.pop %v857
    %v859 = vadd.f32 %v856, 1.0
    %v860 = vadd.f32 %v858, 1.0
    %v861 = vrcp.pop %v859
    %v862 = vmul.f32 1.0, %v861
    %v863 = vrcp.pop %v860
    %v864 = vmul.f32 1.0, %v863
    %v866 = vlaneseq
    %v867 = vshrl.u32 %v866, 7
    %v868 = vsub.s32 0, %v867
    %v869 = vrot.slane %v632, %v868
    %v871 = vadd.f32 %v846, %v869
    %v872 = vmul.f32 %v862, %v871
    %v873 = vadd.f32 %v640, %v872
    %v874 = vtanh.pop %v873
    %v875 = vsub.f32 %v635, %v874
    %v876 = vmul.f32 %v864, %v875
    %v877 = vadd.f32 %v874, %v876
    %v878 = vpack.c.bf16 %v877, %v877
    %v880 = vlaneseq
    %v881 = vshrl.u32 %v880, 7
    %v882 = vsub.s32 0, %v881
    %v883 = vrot.slane %v633, %v882
    %v884 = vlaneseq
    %v885 = vshrl.u32 %v884, 7
    %v886 = vsub.s32 1, %v885
    %v887 = vrot.slane %v633, %v886
    %v888 = vlaneseq
    %v889 = vshrl.u32 %v888, 7
    %v890 = vsub.s32 2, %v889
    %v891 = vrot.slane %v633, %v890
    %v927 = vunpack.c.l.b16 %v600
    %v928 = vunpack.c.h.b16 %v600
    %v929 = vunpack.c.l.b16 %v601
    %v930 = vunpack.c.l.b16 %v602
    %v931 = vunpack.c.h.b16 %v602
    %v932 = vunpack.c.l.b16 %v603
    %v933 = vunpack.c.l.b16 %v604
    %v934 = vunpack.c.h.b16 %v604
    %v935 = vunpack.c.l.b16 %v605
    %v936 = vunpack.c.l.b16 %v606
    %v937 = vunpack.c.h.b16 %v606
    %v938 = vunpack.c.l.b16 %v607
    %v939 = vunpack.c.l.b16 %v608
    %v940 = vunpack.c.h.b16 %v608
    %v941 = vunpack.c.l.b16 %v609
    %v942 = vunpack.c.l.b16 %v610
    %v943 = vunpack.c.h.b16 %v610
    %v944 = vunpack.c.l.b16 %v611
    %v945 = vunpack.c.l.b16 %v612
    %v946 = vunpack.c.h.b16 %v612
    %v947 = vunpack.c.l.b16 %v613
    %v948 = vunpack.c.l.b16 %v614
    %v949 = vunpack.c.h.b16 %v614
    %v950 = vunpack.c.l.b16 %v615
    %v951 = vunpack.c.l.b16 %v616
    %v952 = vunpack.c.h.b16 %v616
    %v953 = vunpack.c.l.b16 %v617
    %v954 = vunpack.c.l.b16 %v618
    %v955 = vunpack.c.h.b16 %v618
    %v956 = vunpack.c.l.b16 %v619
    %v957 = vunpack.c.l.b16 %v620
    %v958 = vunpack.c.h.b16 %v620
    %v959 = vunpack.c.l.b16 %v621
    %v960 = vunpack.c.l.b16 %v622
    %v961 = vunpack.c.h.b16 %v622
    %v962 = vunpack.c.l.b16 %v623
    %v963 = vunpack.c.l.b16 %v624
    %v964 = vunpack.c.h.b16 %v624
    %v965 = vunpack.c.l.b16 %v625
    %v966 = vunpack.c.l.b16 %v626
    %v967 = vunpack.c.h.b16 %v626
    %v968 = vunpack.c.l.b16 %v627
    %v969 = vunpack.c.l.b16 %v628
    %v970 = vunpack.c.h.b16 %v628
    %v971 = vunpack.c.l.b16 %v629
    %v972 = vunpack.c.l.b16 %v630
    %v973 = vunpack.c.h.b16 %v630
    %v974 = vunpack.c.l.b16 %v631
    %v975 = vpack.c.b16 %v930, %v927
    %v976 = vpack.c.b16 %v931, %v928
    %v977 = vpack.c.b16 %v932, %v929
    %v978 = vpack.c.b16 %v936, %v933
    %v979 = vpack.c.b16 %v937, %v934
    %v980 = vpack.c.b16 %v938, %v935
    %v981 = vpack.c.b16 %v942, %v939
    %v982 = vpack.c.b16 %v943, %v940
    %v983 = vpack.c.b16 %v944, %v941
    %v984 = vpack.c.b16 %v948, %v945
    %v985 = vpack.c.b16 %v949, %v946
    %v986 = vpack.c.b16 %v950, %v947
    %v987 = vpack.c.b16 %v954, %v951
    %v988 = vpack.c.b16 %v955, %v952
    %v989 = vpack.c.b16 %v956, %v953
    %v990 = vpack.c.b16 %v960, %v957
    %v991 = vpack.c.b16 %v961, %v958
    %v992 = vpack.c.b16 %v962, %v959
    %v993 = vpack.c.b16 %v966, %v963
    %v994 = vpack.c.b16 %v967, %v964
    %v995 = vpack.c.b16 %v968, %v965
    %v996 = vpack.c.b16 %v972, %v969
    %v997 = vpack.c.b16 %v973, %v970
    %v998 = vpack.c.b16 %v974, %v971
    %1023 = vmatprep.subr.bf16.mxu0 %v976
    %1024 = vmatpush1.bf16.msra.mxu0 %v975
    %1025 = vmatprep.subr.bf16.mxu0 %v979
    %1026 = vmatpush1.bf16.msra.mxu0 %v978
    %1027 = vmatprep.subr.bf16.mxu0 %v982
    %1028 = vmatpush1.bf16.msra.mxu0 %v981
    %1029 = vmatprep.subr.bf16.mxu0 %v985
    %1030 = vmatpush1.bf16.msra.mxu0 %v984
    %1031 = vmatprep.subr.bf16.mxu0 %v988
    %1032 = vmatpush1.bf16.msra.mxu0 %v987
    %1033 = vmatprep.subr.bf16.mxu0 %v991
    %1034 = vmatpush1.bf16.msra.mxu0 %v990
    %1035 = vmatprep.subr.bf16.mxu0 %v994
    %1036 = vmatpush1.bf16.msra.mxu0 %v993
    %1037 = vmatprep.subr.bf16.mxu0 %v997
    %1038 = vmatpush1.bf16.msra.mxu0 %v996
    %1039 = vmatprep.subr.bf16.mxu0 0
    %1040 = vmatpush1.bf16.msra.mxu0 0
    %1041 = vmatprep.subr.bf16.mxu0 0
    %1042 = vmatpush1.bf16.msra.mxu0 0
    %1043 = vmatprep.subr.bf16.mxu0 0
    %1044 = vmatpush1.bf16.msra.mxu0 0
    %1045 = vmatprep.subr.bf16.mxu0 0
    %1046 = vmatpush1.bf16.msra.mxu0 0
    %1047 = vmatprep.subr.bf16.mxu0 0
    %1048 = vmatpush1.bf16.msra.mxu0 0
    %1049 = vmatprep.subr.bf16.mxu0 0
    %1050 = vmatpush1.bf16.msra.mxu0 0
    %1051 = vmatprep.subr.bf16.mxu0 0
    %1052 = vmatpush1.bf16.msra.mxu0 0
    %1053 = vmatprep.subr.bf16.mxu0 0
    %1054 = vmatpush1.bf16.msra.mxu0 0
    %1055 = vmatprep.mubr.bf16.mxu0 0
    %1056 = vmatmul.mubr.bf16.gmra.mrb[0].mxu0 %v878
    %v1057 = vpop.f32.mrb[0].mxu0
    %v1058 = vadd.f32 %v883, %v1057
    %v1059 = vpop.f32.mrb[0].mxu0
    %v1060 = vadd.f32 %v887, %v1059
    %v1061 = vpop.f32.mrb[0].mxu0
    %v1062 = vpop.f32.mrb[0].mxu0
    %1063 = vdwg.mxu0
    %1064 = vmatprep.subr.bf16.mxu0 0
    %1065 = vmatpush1.bf16.msra.mxu0 %v977
    %1066 = vmatprep.subr.bf16.mxu0 0
    %1067 = vmatpush1.bf16.msra.mxu0 %v980
    %1068 = vmatprep.subr.bf16.mxu0 0
    %1069 = vmatpush1.bf16.msra.mxu0 %v983
    %1070 = vmatprep.subr.bf16.mxu0 0
    %1071 = vmatpush1.bf16.msra.mxu0 %v986
    %1072 = vmatprep.subr.bf16.mxu0 0
    %1073 = vmatpush1.bf16.msra.mxu0 %v989
    %1074 = vmatprep.subr.bf16.mxu0 0
    %1075 = vmatpush1.bf16.msra.mxu0 %v992
    %1076 = vmatprep.subr.bf16.mxu0 0
    %1077 = vmatpush1.bf16.msra.mxu0 %v995
    %1078 = vmatprep.subr.bf16.mxu0 0
    %1079 = vmatpush1.bf16.msra.mxu0 %v998
    %1080 = vmatprep.subr.bf16.mxu0 0
    %1081 = vmatpush1.bf16.msra.mxu0 0
    %1082 = vmatprep.subr.bf16.mxu0 0
    %1083 = vmatpush1.bf16.msra.mxu0 0
    %1084 = vmatprep.subr.bf16.mxu0 0
    %1085 = vmatpush1.bf16.msra.mxu0 0
    %1086 = vmatprep.subr.bf16.mxu0 0
    %1087 = vmatpush1.bf16.msra.mxu0 0
    %1088 = vmatprep.subr.bf16.mxu0 0
    %1089 = vmatpush1.bf16.msra.mxu0 0
    %1090 = vmatprep.subr.bf16.mxu0 0
    %1091 = vmatpush1.bf16.msra.mxu0 0
    %1092 = vmatprep.subr.bf16.mxu0 0
    %1093 = vmatpush1.bf16.msra.mxu0 0
    %1094 = vmatprep.subr.bf16.mxu0 0
    %1095 = vmatpush1.bf16.msra.mxu0 0
    %1096 = vmatprep.mubr.bf16.mxu0 0
    %1097 = vmatmul.mubr.bf16.gmra.mrb[0].mxu0 %v878
    %v1098 = vpop.f32.mrb[0].mxu0
    %v1099 = vadd.f32 %v891, %v1098
    %v1100 = vpop.f32.mrb[0].mxu0
    %v1101 = vpop.f32.mrb[0].mxu0
    %v1102 = vpop.f32.mrb[0].mxu0
    %1103 = vdwg.mxu0
    %v1104 = vpack.c.bf16 %v637, %v637
    %v1137 = vunpack.c.l.b16 %v568
    %v1138 = vunpack.c.h.b16 %v568
    %v1139 = vunpack.c.l.b16 %v569
    %v1140 = vunpack.c.l.b16 %v570
    %v1141 = vunpack.c.h.b16 %v570
    %v1142 = vunpack.c.l.b16 %v571
    %v1143 = vunpack.c.l.b16 %v572
    %v1144 = vunpack.c.h.b16 %v572
    %v1145 = vunpack.c.l.b16 %v573
    %v1146 = vunpack.c.l.b16 %v574
    %v1147 = vunpack.c.h.b16 %v574
    %v1148 = vunpack.c.l.b16 %v575
    %v1149 = vunpack.c.l.b16 %v576
    %v1150 = vunpack.c.h.b16 %v576
    %v1151 = vunpack.c.l.b16 %v577
    %v1152 = vunpack.c.l.b16 %v578
    %v1153 = vunpack.c.h.b16 %v578
    %v1154 = vunpack.c.l.b16 %v579
    %v1155 = vunpack.c.l.b16 %v580
    %v1156 = vunpack.c.h.b16 %v580
    %v1157 = vunpack.c.l.b16 %v581
    %v1158 = vunpack.c.l.b16 %v582
    %v1159 = vunpack.c.h.b16 %v582
    %v1160 = vunpack.c.l.b16 %v583
    %v1161 = vunpack.c.l.b16 %v584
    %v1162 = vunpack.c.h.b16 %v584
    %v1163 = vunpack.c.l.b16 %v585
    %v1164 = vunpack.c.l.b16 %v586
    %v1165 = vunpack.c.h.b16 %v586
    %v1166 = vunpack.c.l.b16 %v587
    %v1167 = vunpack.c.l.b16 %v588
    %v1168 = vunpack.c.h.b16 %v588
    %v1169 = vunpack.c.l.b16 %v589
    %v1170 = vunpack.c.l.b16 %v590
    %v1171 = vunpack.c.h.b16 %v590
    %v1172 = vunpack.c.l.b16 %v591
    %v1173 = vunpack.c.l.b16 %v592
    %v1174 = vunpack.c.h.b16 %v592
    %v1175 = vunpack.c.l.b16 %v593
    %v1176 = vunpack.c.l.b16 %v594
    %v1177 = vunpack.c.h.b16 %v594
    %v1178 = vunpack.c.l.b16 %v595
    %v1179 = vunpack.c.l.b16 %v596
    %v1180 = vunpack.c.h.b16 %v596
    %v1181 = vunpack.c.l.b16 %v597
    %v1182 = vunpack.c.l.b16 %v598
    %v1183 = vunpack.c.h.b16 %v598
    %v1184 = vunpack.c.l.b16 %v599
    %v1185 = vpack.c.b16 %v1140, %v1137
    %v1186 = vpack.c.b16 %v1141, %v1138
    %v1187 = vpack.c.b16 %v1142, %v1139
    %v1188 = vpack.c.b16 %v1146, %v1143
    %v1189 = vpack.c.b16 %v1147, %v1144
    %v1190 = vpack.c.b16 %v1148, %v1145
    %v1191 = vpack.c.b16 %v1152, %v1149
    %v1192 = vpack.c.b16 %v1153, %v1150
    %v1193 = vpack.c.b16 %v1154, %v1151
    %v1194 = vpack.c.b16 %v1158, %v1155
    %v1195 = vpack.c.b16 %v1159, %v1156
    %v1196 = vpack.c.b16 %v1160, %v1157
    %v1197 = vpack.c.b16 %v1164, %v1161
    %v1198 = vpack.c.b16 %v1165, %v1162
    %v1199 = vpack.c.b16 %v1166, %v1163
    %v1200 = vpack.c.b16 %v1170, %v1167
    %v1201 = vpack.c.b16 %v1171, %v1168
    %v1202 = vpack.c.b16 %v1172, %v1169
    %v1203 = vpack.c.b16 %v1176, %v1173
    %v1204 = vpack.c.b16 %v1177, %v1174
    %v1205 = vpack.c.b16 %v1178, %v1175
    %v1206 = vpack.c.b16 %v1182, %v1179
    %v1207 = vpack.c.b16 %v1183, %v1180
    %v1208 = vpack.c.b16 %v1184, %v1181
    %1233 = vmatprep.subr.bf16.mxu0 %v1186
    %1234 = vmatpush1.bf16.msra.mxu0 %v1185
    %1235 = vmatprep.subr.bf16.mxu0 %v1189
    %1236 = vmatpush1.bf16.msra.mxu0 %v1188
    %1237 = vmatprep.subr.bf16.mxu0 %v1192
    %1238 = vmatpush1.bf16.msra.mxu0 %v1191
    %1239 = vmatprep.subr.bf16.mxu0 %v1195
    %1240 = vmatpush1.bf16.msra.mxu0 %v1194
    %1241 = vmatprep.subr.bf16.mxu0 %v1198
    %1242 = vmatpush1.bf16.msra.mxu0 %v1197
    %1243 = vmatprep.subr.bf16.mxu0 %v1201
    %1244 = vmatpush1.bf16.msra.mxu0 %v1200
    %1245 = vmatprep.subr.bf16.mxu0 %v1204
    %1246 = vmatpush1.bf16.msra.mxu0 %v1203
    %1247 = vmatprep.subr.bf16.mxu0 %v1207
    %1248 = vmatpush1.bf16.msra.mxu0 %v1206
    %1249 = vmatprep.subr.bf16.mxu0 0
    %1250 = vmatpush1.bf16.msra.mxu0 0
    %1251 = vmatprep.subr.bf16.mxu0 0
    %1252 = vmatpush1.bf16.msra.mxu0 0
    %1253 = vmatprep.subr.bf16.mxu0 0
    %1254 = vmatpush1.bf16.msra.mxu0 0
    %1255 = vmatprep.subr.bf16.mxu0 0
    %1256 = vmatpush1.bf16.msra.mxu0 0
    %1257 = vmatprep.subr.bf16.mxu0 0
    %1258 = vmatpush1.bf16.msra.mxu0 0
    %1259 = vmatprep.subr.bf16.mxu0 0
    %1260 = vmatpush1.bf16.msra.mxu0 0
    %1261 = vmatprep.subr.bf16.mxu0 0
    %1262 = vmatpush1.bf16.msra.mxu0 0
    %1263 = vmatprep.subr.bf16.mxu0 0
    %1264 = vmatpush1.bf16.msra.mxu0 0
    %1265 = vmatprep.mubr.bf16.mxu0 0
    %1266 = vmatmul.mubr.bf16.gmra.mrb[0].mxu0 %v1104
    %v1267 = vpop.f32.mrb[0].mxu0
    %v1268 = vadd.f32 0.0, %v1267
    %v1269 = vpop.f32.mrb[0].mxu0
    %v1270 = vadd.f32 0.0, %v1269
    %v1271 = vpop.f32.mrb[0].mxu0
    %v1272 = vpop.f32.mrb[0].mxu0
    %1273 = vdwg.mxu0
    %1274 = vmatprep.subr.bf16.mxu0 0
    %1275 = vmatpush1.bf16.msra.mxu0 %v1187
    %1276 = vmatprep.subr.bf16.mxu0 0
    %1277 = vmatpush1.bf16.msra.mxu0 %v1190
    %1278 = vmatprep.subr.bf16.mxu0 0
    %1279 = vmatpush1.bf16.msra.mxu0 %v1193
    %1280 = vmatprep.subr.bf16.mxu0 0
    %1281 = vmatpush1.bf16.msra.mxu0 %v1196
    %1282 = vmatprep.subr.bf16.mxu0 0
    %1283 = vmatpush1.bf16.msra.mxu0 %v1199
    %1284 = vmatprep.subr.bf16.mxu0 0
    %1285 = vmatpush1.bf16.msra.mxu0 %v1202
    %1286 = vmatprep.subr.bf16.mxu0 0
    %1287 = vmatpush1.bf16.msra.mxu0 %v1205
    %1288 = vmatprep.subr.bf16.mxu0 0
    %1289 = vmatpush1.bf16.msra.mxu0 %v1208
    %1290 = vmatprep.subr.bf16.mxu0 0
    %1291 = vmatpush1.bf16.msra.mxu0 0
    %1292 = vmatprep.subr.bf16.mxu0 0
    %1293 = vmatpush1.bf16.msra.mxu0 0
    %1294 = vmatprep.subr.bf16.mxu0 0
    %1295 = vmatpush1.bf16.msra.mxu0 0
    %1296 = vmatprep.subr.bf16.mxu0 0
    %1297 = vmatpush1.bf16.msra.mxu0 0
    %1298 = vmatprep.subr.bf16.mxu0 0
    %1299 = vmatpush1.bf16.msra.mxu0 0
    %1300 = vmatprep.subr.bf16.mxu0 0
    %1301 = vmatpush1.bf16.msra.mxu0 0
    %1302 = vmatprep.subr.bf16.mxu0 0
    %1303 = vmatpush1.bf16.msra.mxu0 0
    %1304 = vmatprep.subr.bf16.mxu0 0
    %1305 = vmatpush1.bf16.msra.mxu0 0
    %1306 = vmatprep.mubr.bf16.mxu0 0
    %1307 = vmatmul.mubr.bf16.gmra.mrb[0].mxu0 %v1104
    %v1308 = vpop.f32.mrb[0].mxu0
    %v1309 = vadd.f32 0.0, %v1308
    %v1310 = vpop.f32.mrb[0].mxu0
    %v1311 = vpop.f32.mrb[0].mxu0
    %v1312 = vpop.f32.mrb[0].mxu0
    %1313 = vdwg.mxu0
    %v1314 = vadd.f32 %v1058, %v1268
    %v1315 = vadd.f32 %v1060, %v1270
    %v1316 = vxor.u32 %v1314, 2147483648
    %v1317 = vxor.u32 %v1315, 2147483648
    %v1318 = vmul.f32 %v1316, 1.442695
    %v1319 = vpow.pop %v1318
    %v1320 = vmul.f32 %v1317, 1.442695
    %v1321 = vpow.pop %v1320
    %v1322 = vadd.f32 %v1319, 1.0
    %v1323 = vadd.f32 %v1321, 1.0
    %v1324 = vrcp.pop %v1322
    %v1325 = vmul.f32 1.0, %v1324
    %v1326 = vrcp.pop %v1323
    %v1327 = vmul.f32 1.0, %v1326
    %v1329 = vlaneseq
    %v1330 = vshrl.u32 %v1329, 7
    %v1331 = vsub.s32 0, %v1330
    %v1332 = vrot.slane %v634, %v1331
    %v1334 = vadd.f32 %v1309, %v1332
    %v1335 = vmul.f32 %v1325, %v1334
    %v1336 = vadd.f32 %v1099, %v1335
    %v1337 = vtanh.pop %v1336
    %v1338 = vsub.f32 %v637, %v1337
    %v1339 = vmul.f32 %v1327, %v1338
    %v1340 = vadd.f32 %v1337, %v1339
    %v1341 = vld [vmem:[#allocation2 + $0x18] sm:$0xff]
    %v1342 = vld [vmem:[#allocation2 + $0x20] sm:$0xff]
    %v1343 = vld [vmem:[#allocation2 + $0x28] sm:$0xff]
    %1344 = vmatprep.subr.bf16.mxu0 %v723
    %1345 = vmatpush1.bf16.msra.mxu0 %v722
    %1346 = vmatprep.subr.bf16.mxu0 %v726
    %1347 = vmatpush1.bf16.msra.mxu0 %v725
    %1348 = vmatprep.subr.bf16.mxu0 %v729
    %1349 = vmatpush1.bf16.msra.mxu0 %v728
    %1350 = vmatprep.subr.bf16.mxu0 %v732
    %1351 = vmatpush1.bf16.msra.mxu0 %v731
    %1352 = vmatprep.subr.bf16.mxu0 %v735
    %1353 = vmatpush1.bf16.msra.mxu0 %v734
    %1354 = vmatprep.subr.bf16.mxu0 %v738
    %1355 = vmatpush1.bf16.msra.mxu0 %v737
    %1356 = vmatprep.subr.bf16.mxu0 %v741
    %1357 = vmatpush1.bf16.msra.mxu0 %v740
    %1358 = vmatprep.subr.bf16.mxu0 %v744
    %1359 = vmatpush1.bf16.msra.mxu0 %v743
    %1360 = vmatprep.subr.bf16.mxu0 0
    %1361 = vmatpush1.bf16.msra.mxu0 0
    %1362 = vmatprep.subr.bf16.mxu0 0
    %1363 = vmatpush1.bf16.msra.mxu0 0
    %1364 = vmatprep.subr.bf16.mxu0 0
    %1365 = vmatpush1.bf16.msra.mxu0 0
    %1366 = vmatprep.subr.bf16.mxu0 0
    %1367 = vmatpush1.bf16.msra.mxu0 0
    %1368 = vmatprep.subr.bf16.mxu0 0
    %1369 = vmatpush1.bf16.msra.mxu0 0
    %1370 = vmatprep.subr.bf16.mxu0 0
    %1371 = vmatpush1.bf16.msra.mxu0 0
    %1372 = vmatprep.subr.bf16.mxu0 0
    %1373 = vmatpush1.bf16.msra.mxu0 0
    %1374 = vmatprep.subr.bf16.mxu0 0
    %1375 = vmatpush1.bf16.msra.mxu0 0
    %1376 = vmatprep.mubr.bf16.mxu0 0
    %1377 = vmatmul.mubr.bf16.gmra.mrb[0].mxu0 %v878
    %v1378 = vpop.f32.mrb[0].mxu0
    %v1379 = vadd.f32 0.0, %v1378
    %v1380 = vpop.f32.mrb[0].mxu0
    %v1381 = vadd.f32 0.0, %v1380
    %v1382 = vpop.f32.mrb[0].mxu0
    %v1383 = vpop.f32.mrb[0].mxu0
    %1384 = vdwg.mxu0
    %1385 = vmatprep.subr.bf16.mxu0 0
    %1386 = vmatpush1.bf16.msra.mxu0 %v724
    %1387 = vmatprep.subr.bf16.mxu0 0
    %1388 = vmatpush1.bf16.msra.mxu0 %v727
    %1389 = vmatprep.subr.bf16.mxu0 0
    %1390 = vmatpush1.bf16.msra.mxu0 %v730
    %1391 = vmatprep.subr.bf16.mxu0 0
    %1392 = vmatpush1.bf16.msra.mxu0 %v733
    %1393 = vmatprep.subr.bf16.mxu0 0
    %1394 = vmatpush1.bf16.msra.mxu0 %v736
    %1395 = vmatprep.subr.bf16.mxu0 0
    %1396 = vmatpush1.bf16.msra.mxu0 %v739
    %1397 = vmatprep.subr.bf16.mxu0 0
    %1398 = vmatpush1.bf16.msra.mxu0 %v742
    %1399 = vmatprep.subr.bf16.mxu0 0
    %1400 = vmatpush1.bf16.msra.mxu0 %v745
    %1401 = vmatprep.subr.bf16.mxu0 0
    %1402 = vmatpush1.bf16.msra.mxu0 0
    %1403 = vmatprep.subr.bf16.mxu0 0
    %1404 = vmatpush1.bf16.msra.mxu0 0
    %1405 = vmatprep.subr.bf16.mxu0 0
    %1406 = vmatpush1.bf16.msra.mxu0 0
    %1407 = vmatprep.subr.bf16.mxu0 0
    %1408 = vmatpush1.bf16.msra.mxu0 0
    %1409 = vmatprep.subr.bf16.mxu0 0
    %1410 = vmatpush1.bf16.msra.mxu0 0
    %1411 = vmatprep.subr.bf16.mxu0 0
    %1412 = vmatpush1.bf16.msra.mxu0 0
    %1413 = vmatprep.subr.bf16.mxu0 0
    %1414 = vmatpush1.bf16.msra.mxu0 0
    %1415 = vmatprep.subr.bf16.mxu0 0
    %1416 = vmatpush1.bf16.msra.mxu0 0
    %1417 = vmatprep.mubr.bf16.mxu0 0
    %1418 = vmatmul.mubr.bf16.gmra.mrb[0].mxu0 %v878
    %v1419 = vpop.f32.mrb[0].mxu0
    %v1420 = vadd.f32 0.0, %v1419
    %v1421 = vpop.f32.mrb[0].mxu0
    %v1422 = vpop.f32.mrb[0].mxu0
    %v1423 = vpop.f32.mrb[0].mxu0
    %1424 = vdwg.mxu0
    %v1425 = vadd.f32 %v1341, %v1379
    %v1426 = vadd.f32 %v1342, %v1381
    %v1427 = vxor.u32 %v1425, 2147483648
    %v1428 = vxor.u32 %v1426, 2147483648
    %v1429 = vmul.f32 %v1427, 1.442695
    %v1430 = vpow.pop %v1429
    %v1431 = vmul.f32 %v1428, 1.442695
    %v1432 = vpow.pop %v1431
    %v1433 = vadd.f32 %v1430, 1.0
    %v1434 = vadd.f32 %v1432, 1.0
    %v1435 = vrcp.pop %v1433
    %v1436 = vmul.f32 1.0, %v1435
    %v1437 = vrcp.pop %v1434
    %v1438 = vmul.f32 1.0, %v1437
    %v1439 = vadd.f32 %v1420, %v869
    %v1440 = vmul.f32 %v1436, %v1439
    %v1441 = vadd.f32 %v1343, %v1440
    %v1442 = vtanh.pop %v1441
    %v1443 = vsub.f32 %v877, %v1442
    %v1444 = vmul.f32 %v1438, %v1443
    %v1445 = vadd.f32 %v1442, %v1444
    %v1446 = vpack.c.bf16 %v1445, %v1445
    %1447 = vmatprep.subr.bf16.mxu0 %v976
    %1448 = vmatpush1.bf16.msra.mxu0 %v975
    %1449 = vmatprep.subr.bf16.mxu0 %v979
    %1450 = vmatpush1.bf16.msra.mxu0 %v978
    %1451 = vmatprep.subr.bf16.mxu0 %v982
    %1452 = vmatpush1.bf16.msra.mxu0 %v981
    %1453 = vmatprep.subr.bf16.mxu0 %v985
    %1454 = vmatpush1.bf16.msra.mxu0 %v984
    %1455 = vmatprep.subr.bf16.mxu0 %v988
    %1456 = vmatpush1.bf16.msra.mxu0 %v987
    %1457 = vmatprep.subr.bf16.mxu0 %v991
    %1458 = vmatpush1.bf16.msra.mxu0 %v990
    %1459 = vmatprep.subr.bf16.mxu0 %v994
    %1460 = vmatpush1.bf16.msra.mxu0 %v993
    %1461 = vmatprep.subr.bf16.mxu0 %v997
    %1462 = vmatpush1.bf16.msra.mxu0 %v996
    %1463 = vmatprep.subr.bf16.mxu0 0
    %1464 = vmatpush1.bf16.msra.mxu0 0
    %1465 = vmatprep.subr.bf16.mxu0 0
    %1466 = vmatpush1.bf16.msra.mxu0 0
    %1467 = vmatprep.subr.bf16.mxu0 0
    %1468 = vmatpush1.bf16.msra.mxu0 0
    %1469 = vmatprep.subr.bf16.mxu0 0
    %1470 = vmatpush1.bf16.msra.mxu0 0
    %1471 = vmatprep.subr.bf16.mxu0 0
    %1472 = vmatpush1.bf16.msra.mxu0 0
    %1473 = vmatprep.subr.bf16.mxu0 0
    %1474 = vmatpush1.bf16.msra.mxu0 0
    %1475 = vmatprep.subr.bf16.mxu0 0
    %1476 = vmatpush1.bf16.msra.mxu0 0
    %1477 = vmatprep.subr.bf16.mxu0 0
    %1478 = vmatpush1.bf16.msra.mxu0 0
    %1479 = vmatprep.mubr.bf16.mxu0 0
    %1480 = vmatmul.mubr.bf16.gmra.mrb[0].mxu0 %v1446
    %v1481 = vpop.f32.mrb[0].mxu0
    %v1482 = vadd.f32 %v883, %v1481
    %v1483 = vpop.f32.mrb[0].mxu0
    %v1484 = vadd.f32 %v887, %v1483
    %v1485 = vpop.f32.mrb[0].mxu0
    %v1486 = vpop.f32.mrb[0].mxu0
    %1487 = vdwg.mxu0
    %1488 = vmatprep.subr.bf16.mxu0 0
    %1489 = vmatpush1.bf16.msra.mxu0 %v977
    %1490 = vmatprep.subr.bf16.mxu0 0
    %1491 = vmatpush1.bf16.msra.mxu0 %v980
    %1492 = vmatprep.subr.bf16.mxu0 0
    %1493 = vmatpush1.bf16.msra.mxu0 %v983
    %1494 = vmatprep.subr.bf16.mxu0 0
    %1495 = vmatpush1.bf16.msra.mxu0 %v986
    %1496 = vmatprep.subr.bf16.mxu0 0
    %1497 = vmatpush1.bf16.msra.mxu0 %v989
    %1498 = vmatprep.subr.bf16.mxu0 0
    %1499 = vmatpush1.bf16.msra.mxu0 %v992
    %1500 = vmatprep.subr.bf16.mxu0 0
    %1501 = vmatpush1.bf16.msra.mxu0 %v995
    %1502 = vmatprep.subr.bf16.mxu0 0
    %1503 = vmatpush1.bf16.msra.mxu0 %v998
    %1504 = vmatprep.subr.bf16.mxu0 0
    %1505 = vmatpush1.bf16.msra.mxu0 0
    %1506 = vmatprep.subr.bf16.mxu0 0
    %1507 = vmatpush1.bf16.msra.mxu0 0
    %1508 = vmatprep.subr.bf16.mxu0 0
    %1509 = vmatpush1.bf16.msra.mxu0 0
    %1510 = vmatprep.subr.bf16.mxu0 0
    %1511 = vmatpush1.bf16.msra.mxu0 0
    %1512 = vmatprep.subr.bf16.mxu0 0
    %1513 = vmatpush1.bf16.msra.mxu0 0
    %1514 = vmatprep.subr.bf16.mxu0 0
    %1515 = vmatpush1.bf16.msra.mxu0 0
    %1516 = vmatprep.subr.bf16.mxu0 0
    %1517 = vmatpush1.bf16.msra.mxu0 0
    %1518 = vmatprep.subr.bf16.mxu0 0
    %1519 = vmatpush1.bf16.msra.mxu0 0
    %1520 = vmatprep.mubr.bf16.mxu0 0
    %1521 = vmatmul.mubr.bf16.gmra.mrb[0].mxu0 %v1446
    %v1522 = vpop.f32.mrb[0].mxu0
    %v1523 = vadd.f32 %v891, %v1522
    %v1524 = vpop.f32.mrb[0].mxu0
    %v1525 = vpop.f32.mrb[0].mxu0
    %v1526 = vpop.f32.mrb[0].mxu0
    %1527 = vdwg.mxu0
    %v1528 = vpack.c.bf16 %v1340, %v1340
    %1529 = vmatprep.subr.bf16.mxu0 %v1186
    %1530 = vmatpush1.bf16.msra.mxu0 %v1185
    %1531 = vmatprep.subr.bf16.mxu0 %v1189
    %1532 = vmatpush1.bf16.msra.mxu0 %v1188
    %1533 = vmatprep.subr.bf16.mxu0 %v1192
    %1534 = vmatpush1.bf16.msra.mxu0 %v1191
    %1535 = vmatprep.subr.bf16.mxu0 %v1195
    %1536 = vmatpush1.bf16.msra.mxu0 %v1194
    %1537 = vmatprep.subr.bf16.mxu0 %v1198
    %1538 = vmatpush1.bf16.msra.mxu0 %v1197
    %1539 = vmatprep.subr.bf16.mxu0 %v1201
    %1540 = vmatpush1.bf16.msra.mxu0 %v1200
    %1541 = vmatprep.subr.bf16.mxu0 %v1204
    %1542 = vmatpush1.bf16.msra.mxu0 %v1203
    %1543 = vmatprep.subr.bf16.mxu0 %v1207
    %1544 = vmatpush1.bf16.msra.mxu0 %v1206
    %1545 = vmatprep.subr.bf16.mxu0 0
    %1546 = vmatpush1.bf16.msra.mxu0 0
    %1547 = vmatprep.subr.bf16.mxu0 0
    %1548 = vmatpush1.bf16.msra.mxu0 0
    %1549 = vmatprep.subr.bf16.mxu0 0
    %1550 = vmatpush1.bf16.msra.mxu0 0
    %1551 = vmatprep.subr.bf16.mxu0 0
    %1552 = vmatpush1.bf16.msra.mxu0 0
    %1553 = vmatprep.subr.bf16.mxu0 0
    %1554 = vmatpush1.bf16.msra.mxu0 0
    %1555 = vmatprep.subr.bf16.mxu0 0
    %1556 = vmatpush1.bf16.msra.mxu0 0
    %1557 = vmatprep.subr.bf16.mxu0 0
    %1558 = vmatpush1.bf16.msra.mxu0 0
    %1559 = vmatprep.subr.bf16.mxu0 0
    %1560 = vmatpush1.bf16.msra.mxu0 0
    %1561 = vmatprep.mubr.bf16.mxu0 0
    %1562 = vmatmul.mubr.bf16.gmra.mrb[0].mxu0 %v1528
    %v1563 = vpop.f32.mrb[0].mxu0
    %v1564 = vadd.f32 0.0, %v1563
    %v1565 = vpop.f32.mrb[0].mxu0
    %v1566 = vadd.f32 0.0, %v1565
    %v1567 = vpop.f32.mrb[0].mxu0
    %v1568 = vpop.f32.mrb[0].mxu0
    %1569 = vdwg.mxu0
    %1570 = vmatprep.subr.bf16.mxu0 0
    %1571 = vmatpush1.bf16.msra.mxu0 %v1187
    %1572 = vmatprep.subr.bf16.mxu0 0
    %1573 = vmatpush1.bf16.msra.mxu0 %v1190
    %1574 = vmatprep.subr.bf16.mxu0 0
    %1575 = vmatpush1.bf16.msra.mxu0 %v1193
    %1576 = vmatprep.subr.bf16.mxu0 0
    %1577 = vmatpush1.bf16.msra.mxu0 %v1196
    %1578 = vmatprep.subr.bf16.mxu0 0
    %1579 = vmatpush1.bf16.msra.mxu0 %v1199
    %1580 = vmatprep.subr.bf16.mxu0 0
    %1581 = vmatpush1.bf16.msra.mxu0 %v1202
    %1582 = vmatprep.subr.bf16.mxu0 0
    %1583 = vmatpush1.bf16.msra.mxu0 %v1205
    %1584 = vmatprep.subr.bf16.mxu0 0
    %1585 = vmatpush1.bf16.msra.mxu0 %v1208
    %1586 = vmatprep.subr.bf16.mxu0 0
    %1587 = vmatpush1.bf16.msra.mxu0 0
    %1588 = vmatprep.subr.bf16.mxu0 0
    %1589 = vmatpush1.bf16.msra.mxu0 0
    %1590 = vmatprep.subr.bf16.mxu0 0
    %1591 = vmatpush1.bf16.msra.mxu0 0
    %1592 = vmatprep.subr.bf16.mxu0 0
    %1593 = vmatpush1.bf16.msra.mxu0 0
    %1594 = vmatprep.subr.bf16.mxu0 0
    %1595 = vmatpush1.bf16.msra.mxu0 0
    %1596 = vmatprep.subr.bf16.mxu0 0
    %1597 = vmatpush1.bf16.msra.mxu0 0
    %1598 = vmatprep.subr.bf16.mxu0 0
    %1599 = vmatpush1.bf16.msra.mxu0 0
    %1600 = vmatprep.subr.bf16.mxu0 0
    %1601 = vmatpush1.bf16.msra.mxu0 0
    %1602 = vmatprep.mubr.bf16.mxu0 0
    %1603 = vmatmul.mubr.bf16.gmra.mrb[0].mxu0 %v1528
    %v1604 = vpop.f32.mrb[0].mxu0
    %v1605 = vadd.f32 0.0, %v1604
    %v1606 = vpop.f32.mrb[0].mxu0
    %v1607 = vpop.f32.mrb[0].mxu0
    %v1608 = vpop.f32.mrb[0].mxu0
    %1609 = vdwg.mxu0
    %v1610 = vadd.f32 %v1482, %v1564
    %v1611 = vadd.f32 %v1484, %v1566
    %v1612 = vxor.u32 %v1610, 2147483648
    %v1613 = vxor.u32 %v1611, 2147483648
    %v1614 = vmul.f32 %v1612, 1.442695
    %v1615 = vpow.pop %v1614
    %v1616 = vmul.f32 %v1613, 1.442695
    %v1617 = vpow.pop %v1616
    %v1618 = vadd.f32 %v1615, 1.0
    %v1619 = vadd.f32 %v1617, 1.0
    %v1620 = vrcp.pop %v1618
    %v1621 = vmul.f32 1.0, %v1620
    %v1622 = vrcp.pop %v1619
    %v1623 = vmul.f32 1.0, %v1622
    %v1624 = vadd.f32 %v1605, %v1332
    %v1625 = vmul.f32 %v1621, %v1624
    %v1626 = vadd.f32 %v1523, %v1625
    %v1627 = vtanh.pop %v1626
    %v1628 = vsub.f32 %v1340, %v1627
    %v1629 = vmul.f32 %v1623, %v1628
    %v1630 = vadd.f32 %v1627, %v1629
    %v1631 = vld [vmem:[#allocation2 + $0x30] sm:$0xff]
    %v1632 = vld [vmem:[#allocation2 + $0x38] sm:$0xff]
    %v1633 = vld [vmem:[#allocation2 + $0x40] sm:$0xff]
    %1634 = vmatprep.subr.bf16.mxu0 %v723
    %1635 = vmatpush1.bf16.msra.mxu0 %v722
    %1636 = vmatprep.subr.bf16.mxu0 %v726
    %1637 = vmatpush1.bf16.msra.mxu0 %v725
    %1638 = vmatprep.subr.bf16.mxu0 %v729
    %1639 = vmatpush1.bf16.msra.mxu0 %v728
    %1640 = vmatprep.subr.bf16.mxu0 %v732
    %1641 = vmatpush1.bf16.msra.mxu0 %v731
    %1642 = vmatprep.subr.bf16.mxu0 %v735
    %1643 = vmatpush1.bf16.msra.mxu0 %v734
    %1644 = vmatprep.subr.bf16.mxu0 %v738
    %1645 = vmatpush1.bf16.msra.mxu0 %v737
    %1646 = vmatprep.subr.bf16.mxu0 %v741
    %1647 = vmatpush1.bf16.msra.mxu0 %v740
    %1648 = vmatprep.subr.bf16.mxu0 %v744
    %1649 = vmatpush1.bf16.msra.mxu0 %v743
    %1650 = vmatprep.subr.bf16.mxu0 0
    %1651 = vmatpush1.bf16.msra.mxu0 0
    %1652 = vmatprep.subr.bf16.mxu0 0
    %1653 = vmatpush1.bf16.msra.mxu0 0
    %1654 = vmatprep.subr.bf16.mxu0 0
    %1655 = vmatpush1.bf16.msra.mxu0 0
    %1656 = vmatprep.subr.bf16.mxu0 0
    %1657 = vmatpush1.bf16.msra.mxu0 0
    %1658 = vmatprep.subr.bf16.mxu0 0
    %1659 = vmatpush1.bf16.msra.mxu0 0
    %1660 = vmatprep.subr.bf16.mxu0 0
    %1661 = vmatpush1.bf16.msra.mxu0 0
    %1662 = vmatprep.subr.bf16.mxu0 0
    %1663 = vmatpush1.bf16.msra.mxu0 0
    %1664 = vmatprep.subr.bf16.mxu0 0
    %1665 = vmatpush1.bf16.msra.mxu0 0
    %1666 = vmatprep.mubr.bf16.mxu0 0
    %1667 = vmatmul.mubr.bf16.gmra.mrb[0].mxu0 %v1446
    %v1668 = vpop.f32.mrb[0].mxu0
    %v1669 = vadd.f32 0.0, %v1668
    %v1670 = vpop.f32.mrb[0].mxu0
    %v1671 = vadd.f32 0.0, %v1670
    %v1672 = vpop.f32.mrb[0].mxu0
    %v1673 = vpop.f32.mrb[0].mxu0
    %1674 = vdwg.mxu0
    %1675 = vmatprep.subr.bf16.mxu0 0
    %1676 = vmatpush1.bf16.msra.mxu0 %v724
    %1677 = vmatprep.subr.bf16.mxu0 0
    %1678 = vmatpush1.bf16.msra.mxu0 %v727
    %1679 = vmatprep.subr.bf16.mxu0 0
    %1680 = vmatpush1.bf16.msra.mxu0 %v730
    %1681 = vmatprep.subr.bf16.mxu0 0
    %1682 = vmatpush1.bf16.msra.mxu0 %v733
    %1683 = vmatprep.subr.bf16.mxu0 0
    %1684 = vmatpush1.bf16.msra.mxu0 %v736
    %1685 = vmatprep.subr.bf16.mxu0 0
    %1686 = vmatpush1.bf16.msra.mxu0 %v739
    %1687 = vmatprep.subr.bf16.mxu0 0
    %1688 = vmatpush1.bf16.msra.mxu0 %v742
    %1689 = vmatprep.subr.bf16.mxu0 0
    %1690 = vmatpush1.bf16.msra.mxu0 %v745
    %1691 = vmatprep.subr.bf16.mxu0 0
    %1692 = vmatpush1.bf16.msra.mxu0 0
    %1693 = vmatprep.subr.bf16.mxu0 0
    %1694 = vmatpush1.bf16.msra.mxu0 0
    %1695 = vmatprep.subr.bf16.mxu0 0
    %1696 = vmatpush1.bf16.msra.mxu0 0
    %1697 = vmatprep.subr.bf16.mxu0 0
    %1698 = vmatpush1.bf16.msra.mxu0 0
    %1699 = vmatprep.subr.bf16.mxu0 0
    %1700 = vmatpush1.bf16.msra.mxu0 0
    %1701 = vmatprep.subr.bf16.mxu0 0
    %1702 = vmatpush1.bf16.msra.mxu0 0
    %1703 = vmatprep.subr.bf16.mxu0 0
    %1704 = vmatpush1.bf16.msra.mxu0 0
    %1705 = vmatprep.subr.bf16.mxu0 0
    %1706 = vmatpush1.bf16.msra.mxu0 0
    %1707 = vmatprep.mubr.bf16.mxu0 0
    %1708 = vmatmul.mubr.bf16.gmra.mrb[0].mxu0 %v1446
    %v1709 = vpop.f32.mrb[0].mxu0
    %v1710 = vadd.f32 0.0, %v1709
    %v1711 = vpop.f32.mrb[0].mxu0
    %v1712 = vpop.f32.mrb[0].mxu0
    %v1713 = vpop.f32.mrb[0].mxu0
    %1714 = vdwg.mxu0
    %v1715 = vadd.f32 %v1631, %v1669
    %v1716 = vadd.f32 %v1632, %v1671
    %v1717 = vxor.u32 %v1715, 2147483648
    %v1718 = vxor.u32 %v1716, 2147483648
    %v1719 = vmul.f32 %v1717, 1.442695
    %v1720 = vpow.pop %v1719
    %v1721 = vmul.f32 %v1718, 1.442695
    %v1722 = vpow.pop %v1721
    %v1723 = vadd.f32 %v1720, 1.0
    %v1724 = vadd.f32 %v1722, 1.0
    %v1725 = vrcp.pop %v1723
    %v1726 = vmul.f32 1.0, %v1725
    %v1727 = vrcp.pop %v1724
    %v1728 = vmul.f32 1.0, %v1727
    %v1729 = vadd.f32 %v1710, %v869
    %v1730 = vmul.f32 %v1726, %v1729
    %v1731 = vadd.f32 %v1633, %v1730
    %v1732 = vtanh.pop %v1731
    %v1733 = vsub.f32 %v1445, %v1732
    %v1734 = vmul.f32 %v1728, %v1733
    %v1735 = vadd.f32 %v1732, %v1734
    %v1736 = vpack.c.bf16 %v1735, %v1735
    %1737 = vmatprep.subr.bf16.mxu0 %v976
    %1738 = vmatpush1.bf16.msra.mxu0 %v975
    %1739 = vmatprep.subr.bf16.mxu0 %v979
    %1740 = vmatpush1.bf16.msra.mxu0 %v978
    %1741 = vmatprep.subr.bf16.mxu0 %v982
    %1742 = vmatpush1.bf16.msra.mxu0 %v981
    %1743 = vmatprep.subr.bf16.mxu0 %v985
    %1744 = vmatpush1.bf16.msra.mxu0 %v984
    %1745 = vmatprep.subr.bf16.mxu0 %v988
    %1746 = vmatpush1.bf16.msra.mxu0 %v987
    %1747 = vmatprep.subr.bf16.mxu0 %v991
    %1748 = vmatpush1.bf16.msra.mxu0 %v990
    %1749 = vmatprep.subr.bf16.mxu0 %v994
    %1750 = vmatpush1.bf16.msra.mxu0 %v993
    %1751 = vmatprep.subr.bf16.mxu0 %v997
    %1752 = vmatpush1.bf16.msra.mxu0 %v996
    %1753 = vmatprep.subr.bf16.mxu0 0
    %1754 = vmatpush1.bf16.msra.mxu0 0
    %1755 = vmatprep.subr.bf16.mxu0 0
    %1756 = vmatpush1.bf16.msra.mxu0 0
    %1757 = vmatprep.subr.bf16.mxu0 0
    %1758 = vmatpush1.bf16.msra.mxu0 0
    %1759 = vmatprep.subr.bf16.mxu0 0
    %1760 = vmatpush1.bf16.msra.mxu0 0
    %1761 = vmatprep.subr.bf16.mxu0 0
    %1762 = vmatpush1.bf16.msra.mxu0 0
    %1763 = vmatprep.subr.bf16.mxu0 0
    %1764 = vmatpush1.bf16.msra.mxu0 0
    %1765 = vmatprep.subr.bf16.mxu0 0
    %1766 = vmatpush1.bf16.msra.mxu0 0
    %1767 = vmatprep.subr.bf16.mxu0 0
    %1768 = vmatpush1.bf16.msra.mxu0 0
    %1769 = vmatprep.mubr.bf16.mxu0 0
    %1770 = vmatmul.mubr.bf16.gmra.mrb[0].mxu0 %v1736
    %v1771 = vpop.f32.mrb[0].mxu0
    %v1772 = vadd.f32 %v883, %v1771
    %v1773 = vpop.f32.mrb[0].mxu0
    %v1774 = vadd.f32 %v887, %v1773
    %v1775 = vpop.f32.mrb[0].mxu0
    %v1776 = vpop.f32.mrb[0].mxu0
    %1777 = vdwg.mxu0
    %1778 = vmatprep.subr.bf16.mxu0 0
    %1779 = vmatpush1.bf16.msra.mxu0 %v977
    %1780 = vmatprep.subr.bf16.mxu0 0
    %1781 = vmatpush1.bf16.msra.mxu0 %v980
    %1782 = vmatprep.subr.bf16.mxu0 0
    %1783 = vmatpush1.bf16.msra.mxu0 %v983
    %1784 = vmatprep.subr.bf16.mxu0 0
    %1785 = vmatpush1.bf16.msra.mxu0 %v986
    %1786 = vmatprep.subr.bf16.mxu0 0
    %1787 = vmatpush1.bf16.msra.mxu0 %v989
    %1788 = vmatprep.subr.bf16.mxu0 0
    %1789 = vmatpush1.bf16.msra.mxu0 %v992
    %1790 = vmatprep.subr.bf16.mxu0 0
    %1791 = vmatpush1.bf16.msra.mxu0 %v995
    %1792 = vmatprep.subr.bf16.mxu0 0
    %1793 = vmatpush1.bf16.msra.mxu0 %v998
    %1794 = vmatprep.subr.bf16.mxu0 0
    %1795 = vmatpush1.bf16.msra.mxu0 0
    %1796 = vmatprep.subr.bf16.mxu0 0
    %1797 = vmatpush1.bf16.msra.mxu0 0
    %1798 = vmatprep.subr.bf16.mxu0 0
    %1799 = vmatpush1.bf16.msra.mxu0 0
    %1800 = vmatprep.subr.bf16.mxu0 0
    %1801 = vmatpush1.bf16.msra.mxu0 0
    %1802 = vmatprep.subr.bf16.mxu0 0
    %1803 = vmatpush1.bf16.msra.mxu0 0
    %1804 = vmatprep.subr.bf16.mxu0 0
    %1805 = vmatpush1.bf16.msra.mxu0 0
    %1806 = vmatprep.subr.bf16.mxu0 0
    %1807 = vmatpush1.bf16.msra.mxu0 0
    %1808 = vmatprep.subr.bf16.mxu0 0
    %1809 = vmatpush1.bf16.msra.mxu0 0
    %1810 = vmatprep.mubr.bf16.mxu0 0
    %1811 = vmatmul.mubr.bf16.gmra.mrb[0].mxu0 %v1736
    %v1812 = vpop.f32.mrb[0].mxu0
    %v1813 = vadd.f32 %v891, %v1812
    %v1814 = vpop.f32.mrb[0].mxu0
    %v1815 = vpop.f32.mrb[0].mxu0
    %v1816 = vpop.f32.mrb[0].mxu0
    %1817 = vdwg.mxu0
    %v1818 = vpack.c.bf16 %v1630, %v1630
    %1819 = vmatprep.subr.bf16.mxu0 %v1186
    %1820 = vmatpush1.bf16.msra.mxu0 %v1185
    %1821 = vmatprep.subr.bf16.mxu0 %v1189
    %1822 = vmatpush1.bf16.msra.mxu0 %v1188
    %1823 = vmatprep.subr.bf16.mxu0 %v1192
    %1824 = vmatpush1.bf16.msra.mxu0 %v1191
    %1825 = vmatprep.subr.bf16.mxu0 %v1195
    %1826 = vmatpush1.bf16.msra.mxu0 %v1194
    %1827 = vmatprep.subr.bf16.mxu0 %v1198
    %1828 = vmatpush1.bf16.msra.mxu0 %v1197
    %1829 = vmatprep.subr.bf16.mxu0 %v1201
    %1830 = vmatpush1.bf16.msra.mxu0 %v1200
    %1831 = vmatprep.subr.bf16.mxu0 %v1204
    %1832 = vmatpush1.bf16.msra.mxu0 %v1203
    %1833 = vmatprep.subr.bf16.mxu0 %v1207
    %1834 = vmatpush1.bf16.msra.mxu0 %v1206
    %1835 = vmatprep.subr.bf16.mxu0 0
    %1836 = vmatpush1.bf16.msra.mxu0 0
    %1837 = vmatprep.subr.bf16.mxu0 0
    %1838 = vmatpush1.bf16.msra.mxu0 0
    %1839 = vmatprep.subr.bf16.mxu0 0
    %1840 = vmatpush1.bf16.msra.mxu0 0
    %1841 = vmatprep.subr.bf16.mxu0 0
    %1842 = vmatpush1.bf16.msra.mxu0 0
    %1843 = vmatprep.subr.bf16.mxu0 0
    %1844 = vmatpush1.bf16.msra.mxu0 0
    %1845 = vmatprep.subr.bf16.mxu0 0
    %1846 = vmatpush1.bf16.msra.mxu0 0
    %1847 = vmatprep.subr.bf16.mxu0 0
    %1848 = vmatpush1.bf16.msra.mxu0 0
    %1849 = vmatprep.subr.bf16.mxu0 0
    %1850 = vmatpush1.bf16.msra.mxu0 0
    %1851 = vmatprep.mubr.bf16.mxu0 0
    %1852 = vmatmul.mubr.bf16.gmra.mrb[0].mxu0 %v1818
    %v1853 = vpop.f32.mrb[0].mxu0
    %v1854 = vadd.f32 0.0, %v1853
    %v1855 = vpop.f32.mrb[0].mxu0
    %v1856 = vadd.f32 0.0, %v1855
    %v1857 = vpop.f32.mrb[0].mxu0
    %v1858 = vpop.f32.mrb[0].mxu0
    %1859 = vdwg.mxu0
    %1860 = vmatprep.subr.bf16.mxu0 0
    %1861 = vmatpush1.bf16.msra.mxu0 %v1187
    %1862 = vmatprep.subr.bf16.mxu0 0
    %1863 = vmatpush1.bf16.msra.mxu0 %v1190
    %1864 = vmatprep.subr.bf16.mxu0 0
    %1865 = vmatpush1.bf16.msra.mxu0 %v1193
    %1866 = vmatprep.subr.bf16.mxu0 0
    %1867 = vmatpush1.bf16.msra.mxu0 %v1196
    %1868 = vmatprep.subr.bf16.mxu0 0
    %1869 = vmatpush1.bf16.msra.mxu0 %v1199
    %1870 = vmatprep.subr.bf16.mxu0 0
    %1871 = vmatpush1.bf16.msra.mxu0 %v1202
    %1872 = vmatprep.subr.bf16.mxu0 0
    %1873 = vmatpush1.bf16.msra.mxu0 %v1205
    %1874 = vmatprep.subr.bf16.mxu0 0
    %1875 = vmatpush1.bf16.msra.mxu0 %v1208
    %1876 = vmatprep.subr.bf16.mxu0 0
    %1877 = vmatpush1.bf16.msra.mxu0 0
    %1878 = vmatprep.subr.bf16.mxu0 0
    %1879 = vmatpush1.bf16.msra.mxu0 0
    %1880 = vmatprep.subr.bf16.mxu0 0
    %1881 = vmatpush1.bf16.msra.mxu0 0
    %1882 = vmatprep.subr.bf16.mxu0 0
    %1883 = vmatpush1.bf16.msra.mxu0 0
    %1884 = vmatprep.subr.bf16.mxu0 0
    %1885 = vmatpush1.bf16.msra.mxu0 0
    %1886 = vmatprep.subr.bf16.mxu0 0
    %1887 = vmatpush1.bf16.msra.mxu0 0
    %1888 = vmatprep.subr.bf16.mxu0 0
    %1889 = vmatpush1.bf16.msra.mxu0 0
    %1890 = vmatprep.subr.bf16.mxu0 0
    %1891 = vmatpush1.bf16.msra.mxu0 0
    %1892 = vmatprep.mubr.bf16.mxu0 0
    %1893 = vmatmul.mubr.bf16.gmra.mrb[0].mxu0 %v1818
    %v1894 = vpop.f32.mrb[0].mxu0
    %v1895 = vadd.f32 0.0, %v1894
    %v1896 = vpop.f32.mrb[0].mxu0
    %v1897 = vpop.f32.mrb[0].mxu0
    %v1898 = vpop.f32.mrb[0].mxu0
    %1899 = vdwg.mxu0
    %v1900 = vadd.f32 %v1772, %v1854
    %v1901 = vadd.f32 %v1774, %v1856
    %v1902 = vxor.u32 %v1900, 2147483648
    %v1903 = vxor.u32 %v1901, 2147483648
    %v1904 = vmul.f32 %v1902, 1.442695
    %v1905 = vpow.pop %v1904
    %v1906 = vmul.f32 %v1903, 1.442695
    %v1907 = vpow.pop %v1906
    %v1908 = vadd.f32 %v1905, 1.0
    %v1909 = vadd.f32 %v1907, 1.0
    %v1910 = vrcp.pop %v1908
    %v1911 = vmul.f32 1.0, %v1910
    %v1912 = vrcp.pop %v1909
    %v1913 = vmul.f32 1.0, %v1912
    %v1914 = vadd.f32 %v1895, %v1332
    %v1915 = vmul.f32 %v1911, %v1914
    %v1916 = vadd.f32 %v1813, %v1915
    %v1917 = vtanh.pop %v1916
    %v1918 = vsub.f32 %v1630, %v1917
    %v1919 = vmul.f32 %v1913, %v1918
    %v1920 = vadd.f32 %v1917, %v1919
    %v1921 = vld [vmem:[#allocation2 + $0x48] sm:$0xff]
    %v1922 = vld [vmem:[#allocation2 + $0x50] sm:$0xff]
    %v1923 = vld [vmem:[#allocation2 + $0x58] sm:$0xff]
    %1924 = vmatprep.subr.bf16.mxu0 %v723
    %1925 = vmatpush1.bf16.msra.mxu0 %v722
    %1926 = vmatprep.subr.bf16.mxu0 %v726
    %1927 = vmatpush1.bf16.msra.mxu0 %v725
    %1928 = vmatprep.subr.bf16.mxu0 %v729
    %1929 = vmatpush1.bf16.msra.mxu0 %v728
    %1930 = vmatprep.subr.bf16.mxu0 %v732
    %1931 = vmatpush1.bf16.msra.mxu0 %v731
    %1932 = vmatprep.subr.bf16.mxu0 %v735
    %1933 = vmatpush1.bf16.msra.mxu0 %v734
    %1934 = vmatprep.subr.bf16.mxu0 %v738
    %1935 = vmatpush1.bf16.msra.mxu0 %v737
    %1936 = vmatprep.subr.bf16.mxu0 %v741
    %1937 = vmatpush1.bf16.msra.mxu0 %v740
    %1938 = vmatprep.subr.bf16.mxu0 %v744
    %1939 = vmatpush1.bf16.msra.mxu0 %v743
    %1940 = vmatprep.subr.bf16.mxu0 0
    %1941 = vmatpush1.bf16.msra.mxu0 0
    %1942 = vmatprep.subr.bf16.mxu0 0
    %1943 = vmatpush1.bf16.msra.mxu0 0
    %1944 = vmatprep.subr.bf16.mxu0 0
    %1945 = vmatpush1.bf16.msra.mxu0 0
    %1946 = vmatprep.subr.bf16.mxu0 0
    %1947 = vmatpush1.bf16.msra.mxu0 0
    %1948 = vmatprep.subr.bf16.mxu0 0
    %1949 = vmatpush1.bf16.msra.mxu0 0
    %1950 = vmatprep.subr.bf16.mxu0 0
    %1951 = vmatpush1.bf16.msra.mxu0 0
    %1952 = vmatprep.subr.bf16.mxu0 0
    %1953 = vmatpush1.bf16.msra.mxu0 0
    %1954 = vmatprep.subr.bf16.mxu0 0
    %1955 = vmatpush1.bf16.msra.mxu0 0
    %1956 = vmatprep.mubr.bf16.mxu0 0
    %1957 = vmatmul.mubr.bf16.gmra.mrb[0].mxu0 %v1736
    %v1958 = vpop.f32.mrb[0].mxu0
    %v1959 = vadd.f32 0.0, %v1958
    %v1960 = vpop.f32.mrb[0].mxu0
    %v1961 = vadd.f32 0.0, %v1960
    %v1962 = vpop.f32.mrb[0].mxu0
    %v1963 = vpop.f32.mrb[0].mxu0
    %1964 = vdwg.mxu0
    %1965 = vmatprep.subr.bf16.mxu0 0
    %1966 = vmatpush1.bf16.msra.mxu0 %v724
    %1967 = vmatprep.subr.bf16.mxu0 0
    %1968 = vmatpush1.bf16.msra.mxu0 %v727
    %1969 = vmatprep.subr.bf16.mxu0 0
    %1970 = vmatpush1.bf16.msra.mxu0 %v730
    %1971 = vmatprep.subr.bf16.mxu0 0
    %1972 = vmatpush1.bf16.msra.mxu0 %v733
    %1973 = vmatprep.subr.bf16.mxu0 0
    %1974 = vmatpush1.bf16.msra.mxu0 %v736
    %1975 = vmatprep.subr.bf16.mxu0 0
    %1976 = vmatpush1.bf16.msra.mxu0 %v739
    %1977 = vmatprep.subr.bf16.mxu0 0
    %1978 = vmatpush1.bf16.msra.mxu0 %v742
    %1979 = vmatprep.subr.bf16.mxu0 0
    %1980 = vmatpush1.bf16.msra.mxu0 %v745
    %1981 = vmatprep.subr.bf16.mxu0 0
    %1982 = vmatpush1.bf16.msra.mxu0 0
    %1983 = vmatprep.subr.bf16.mxu0 0
    %1984 = vmatpush1.bf16.msra.mxu0 0
    %1985 = vmatprep.subr.bf16.mxu0 0
    %1986 = vmatpush1.bf16.msra.mxu0 0
    %1987 = vmatprep.subr.bf16.mxu0 0
    %1988 = vmatpush1.bf16.msra.mxu0 0
    %1989 = vmatprep.subr.bf16.mxu0 0
    %1990 = vmatpush1.bf16.msra.mxu0 0
    %1991 = vmatprep.subr.bf16.mxu0 0
    %1992 = vmatpush1.bf16.msra.mxu0 0
    %1993 = vmatprep.subr.bf16.mxu0 0
    %1994 = vmatpush1.bf16.msra.mxu0 0
    %1995 = vmatprep.subr.bf16.mxu0 0
    %1996 = vmatpush1.bf16.msra.mxu0 0
    %1997 = vmatprep.mubr.bf16.mxu0 0
    %1998 = vmatmul.mubr.bf16.gmra.mrb[0].mxu0 %v1736
    %v1999 = vpop.f32.mrb[0].mxu0
    %v2000 = vadd.f32 0.0, %v1999
    %v2001 = vpop.f32.mrb[0].mxu0
    %v2002 = vpop.f32.mrb[0].mxu0
    %v2003 = vpop.f32.mrb[0].mxu0
    %2004 = vdwg.mxu0
    %v2005 = vadd.f32 %v1921, %v1959
    %v2006 = vadd.f32 %v1922, %v1961
    %v2007 = vxor.u32 %v2005, 2147483648
    %v2008 = vxor.u32 %v2006, 2147483648
    %v2009 = vmul.f32 %v2007, 1.442695
    %v2010 = vpow.pop %v2009
    %v2011 = vmul.f32 %v2008, 1.442695
    %v2012 = vpow.pop %v2011
    %v2013 = vadd.f32 %v2010, 1.0
    %v2014 = vadd.f32 %v2012, 1.0
    %v2015 = vrcp.pop %v2013
    %v2016 = vmul.f32 1.0, %v2015
    %v2017 = vrcp.pop %v2014
    %v2018 = vmul.f32 1.0, %v2017
    %v2019 = vadd.f32 %v2000, %v869
    %v2020 = vmul.f32 %v2016, %v2019
    %v2021 = vadd.f32 %v1923, %v2020
    %v2022 = vtanh.pop %v2021
    %v2023 = vsub.f32 %v1735, %v2022
    %v2024 = vmul.f32 %v2018, %v2023
    %v2025 = vadd.f32 %v2022, %v2024
    %v2026 = vpack.c.bf16 %v2025, %v2025
    %2027 = vmatprep.subr.bf16.mxu0 %v976
    %2028 = vmatpush1.bf16.msra.mxu0 %v975
    %2029 = vmatprep.subr.bf16.mxu0 %v979
    %2030 = vmatpush1.bf16.msra.mxu0 %v978
    %2031 = vmatprep.subr.bf16.mxu0 %v982
    %2032 = vmatpush1.bf16.msra.mxu0 %v981
    %2033 = vmatprep.subr.bf16.mxu0 %v985
    %2034 = vmatpush1.bf16.msra.mxu0 %v984
    %2035 = vmatprep.subr.bf16.mxu0 %v988
    %2036 = vmatpush1.bf16.msra.mxu0 %v987
    %2037 = vmatprep.subr.bf16.mxu0 %v991
    %2038 = vmatpush1.bf16.msra.mxu0 %v990
    %2039 = vmatprep.subr.bf16.mxu0 %v994
    %2040 = vmatpush1.bf16.msra.mxu0 %v993
    %2041 = vmatprep.subr.bf16.mxu0 %v997
    %2042 = vmatpush1.bf16.msra.mxu0 %v996
    %2043 = vmatprep.subr.bf16.mxu0 0
    %2044 = vmatpush1.bf16.msra.mxu0 0
    %2045 = vmatprep.subr.bf16.mxu0 0
    %2046 = vmatpush1.bf16.msra.mxu0 0
    %2047 = vmatprep.subr.bf16.mxu0 0
    %2048 = vmatpush1.bf16.msra.mxu0 0
    %2049 = vmatprep.subr.bf16.mxu0 0
    %2050 = vmatpush1.bf16.msra.mxu0 0
    %2051 = vmatprep.subr.bf16.mxu0 0
    %2052 = vmatpush1.bf16.msra.mxu0 0
    %2053 = vmatprep.subr.bf16.mxu0 0
    %2054 = vmatpush1.bf16.msra.mxu0 0
    %2055 = vmatprep.subr.bf16.mxu0 0
    %2056 = vmatpush1.bf16.msra.mxu0 0
    %2057 = vmatprep.subr.bf16.mxu0 0
    %2058 = vmatpush1.bf16.msra.mxu0 0
    %2059 = vmatprep.mubr.bf16.mxu0 0
    %2060 = vmatmul.mubr.bf16.gmra.mrb[0].mxu0 %v2026
    %v2061 = vpop.f32.mrb[0].mxu0
    %v2062 = vadd.f32 %v883, %v2061
    %v2063 = vpop.f32.mrb[0].mxu0
    %v2064 = vadd.f32 %v887, %v2063
    %v2065 = vpop.f32.mrb[0].mxu0
    %v2066 = vpop.f32.mrb[0].mxu0
    %2067 = vdwg.mxu0
    %2068 = vmatprep.subr.bf16.mxu0 0
    %2069 = vmatpush1.bf16.msra.mxu0 %v977
    %2070 = vmatprep.subr.bf16.mxu0 0
    %2071 = vmatpush1.bf16.msra.mxu0 %v980
    %2072 = vmatprep.subr.bf16.mxu0 0
    %2073 = vmatpush1.bf16.msra.mxu0 %v983
    %2074 = vmatprep.subr.bf16.mxu0 0
    %2075 = vmatpush1.bf16.msra.mxu0 %v986
    %2076 = vmatprep.subr.bf16.mxu0 0
    %2077 = vmatpush1.bf16.msra.mxu0 %v989
    %2078 = vmatprep.subr.bf16.mxu0 0
    %2079 = vmatpush1.bf16.msra.mxu0 %v992
    %2080 = vmatprep.subr.bf16.mxu0 0
    %2081 = vmatpush1.bf16.msra.mxu0 %v995
    %2082 = vmatprep.subr.bf16.mxu0 0
    %2083 = vmatpush1.bf16.msra.mxu0 %v998
    %2084 = vmatprep.subr.bf16.mxu0 0
    %2085 = vmatpush1.bf16.msra.mxu0 0
    %2086 = vmatprep.subr.bf16.mxu0 0
    %2087 = vmatpush1.bf16.msra.mxu0 0
    %2088 = vmatprep.subr.bf16.mxu0 0
    %2089 = vmatpush1.bf16.msra.mxu0 0
    %2090 = vmatprep.subr.bf16.mxu0 0
    %2091 = vmatpush1.bf16.msra.mxu0 0
    %2092 = vmatprep.subr.bf16.mxu0 0
    %2093 = vmatpush1.bf16.msra.mxu0 0
    %2094 = vmatprep.subr.bf16.mxu0 0
    %2095 = vmatpush1.bf16.msra.mxu0 0
    %2096 = vmatprep.subr.bf16.mxu0 0
    %2097 = vmatpush1.bf16.msra.mxu0 0
    %2098 = vmatprep.subr.bf16.mxu0 0
    %2099 = vmatpush1.bf16.msra.mxu0 0
    %2100 = vmatprep.mubr.bf16.mxu0 0
    %2101 = vmatmul.mubr.bf16.gmra.mrb[0].mxu0 %v2026
    %v2102 = vpop.f32.mrb[0].mxu0
    %v2103 = vadd.f32 %v891, %v2102
    %v2104 = vpop.f32.mrb[0].mxu0
    %v2105 = vpop.f32.mrb[0].mxu0
    %v2106 = vpop.f32.mrb[0].mxu0
    %2107 = vdwg.mxu0
    %v2108 = vpack.c.bf16 %v1920, %v1920
    %2109 = vmatprep.subr.bf16.mxu0 %v1186
    %2110 = vmatpush1.bf16.msra.mxu0 %v1185
    %2111 = vmatprep.subr.bf16.mxu0 %v1189
    %2112 = vmatpush1.bf16.msra.mxu0 %v1188
    %2113 = vmatprep.subr.bf16.mxu0 %v1192
    %2114 = vmatpush1.bf16.msra.mxu0 %v1191
    %2115 = vmatprep.subr.bf16.mxu0 %v1195
    %2116 = vmatpush1.bf16.msra.mxu0 %v1194
    %2117 = vmatprep.subr.bf16.mxu0 %v1198
    %2118 = vmatpush1.bf16.msra.mxu0 %v1197
    %2119 = vmatprep.subr.bf16.mxu0 %v1201
    %2120 = vmatpush1.bf16.msra.mxu0 %v1200
    %2121 = vmatprep.subr.bf16.mxu0 %v1204
    %2122 = vmatpush1.bf16.msra.mxu0 %v1203
    %2123 = vmatprep.subr.bf16.mxu0 %v1207
    %2124 = vmatpush1.bf16.msra.mxu0 %v1206
    %2125 = vmatprep.subr.bf16.mxu0 0
    %2126 = vmatpush1.bf16.msra.mxu0 0
    %2127 = vmatprep.subr.bf16.mxu0 0
    %2128 = vmatpush1.bf16.msra.mxu0 0
    %2129 = vmatprep.subr.bf16.mxu0 0
    %2130 = vmatpush1.bf16.msra.mxu0 0
    %2131 = vmatprep.subr.bf16.mxu0 0
    %2132 = vmatpush1.bf16.msra.mxu0 0
    %2133 = vmatprep.subr.bf16.mxu0 0
    %2134 = vmatpush1.bf16.msra.mxu0 0
    %2135 = vmatprep.subr.bf16.mxu0 0
    %2136 = vmatpush1.bf16.msra.mxu0 0
    %2137 = vmatprep.subr.bf16.mxu0 0
    %2138 = vmatpush1.bf16.msra.mxu0 0
    %2139 = vmatprep.subr.bf16.mxu0 0
    %2140 = vmatpush1.bf16.msra.mxu0 0
    %2141 = vmatprep.mubr.bf16.mxu0 0
    %2142 = vmatmul.mubr.bf16.gmra.mrb[0].mxu0 %v2108
    %v2143 = vpop.f32.mrb[0].mxu0
    %v2144 = vadd.f32 0.0, %v2143
    %v2145 = vpop.f32.mrb[0].mxu0
    %v2146 = vadd.f32 0.0, %v2145
    %v2147 = vpop.f32.mrb[0].mxu0
    %v2148 = vpop.f32.mrb[0].mxu0
    %2149 = vdwg.mxu0
    %2150 = vmatprep.subr.bf16.mxu0 0
    %2151 = vmatpush1.bf16.msra.mxu0 %v1187
    %2152 = vmatprep.subr.bf16.mxu0 0
    %2153 = vmatpush1.bf16.msra.mxu0 %v1190
    %2154 = vmatprep.subr.bf16.mxu0 0
    %2155 = vmatpush1.bf16.msra.mxu0 %v1193
    %2156 = vmatprep.subr.bf16.mxu0 0
    %2157 = vmatpush1.bf16.msra.mxu0 %v1196
    %2158 = vmatprep.subr.bf16.mxu0 0
    %2159 = vmatpush1.bf16.msra.mxu0 %v1199
    %2160 = vmatprep.subr.bf16.mxu0 0
    %2161 = vmatpush1.bf16.msra.mxu0 %v1202
    %2162 = vmatprep.subr.bf16.mxu0 0
    %2163 = vmatpush1.bf16.msra.mxu0 %v1205
    %2164 = vmatprep.subr.bf16.mxu0 0
    %2165 = vmatpush1.bf16.msra.mxu0 %v1208
    %2166 = vmatprep.subr.bf16.mxu0 0
    %2167 = vmatpush1.bf16.msra.mxu0 0
    %2168 = vmatprep.subr.bf16.mxu0 0
    %2169 = vmatpush1.bf16.msra.mxu0 0
    %2170 = vmatprep.subr.bf16.mxu0 0
    %2171 = vmatpush1.bf16.msra.mxu0 0
    %2172 = vmatprep.subr.bf16.mxu0 0
    %2173 = vmatpush1.bf16.msra.mxu0 0
    %2174 = vmatprep.subr.bf16.mxu0 0
    %2175 = vmatpush1.bf16.msra.mxu0 0
    %2176 = vmatprep.subr.bf16.mxu0 0
    %2177 = vmatpush1.bf16.msra.mxu0 0
    %2178 = vmatprep.subr.bf16.mxu0 0
    %2179 = vmatpush1.bf16.msra.mxu0 0
    %2180 = vmatprep.subr.bf16.mxu0 0
    %2181 = vmatpush1.bf16.msra.mxu0 0
    %2182 = vmatprep.mubr.bf16.mxu0 0
    %2183 = vmatmul.mubr.bf16.gmra.mrb[0].mxu0 %v2108
    %v2184 = vpop.f32.mrb[0].mxu0
    %v2185 = vadd.f32 0.0, %v2184
    %v2186 = vpop.f32.mrb[0].mxu0
    %v2187 = vpop.f32.mrb[0].mxu0
    %v2188 = vpop.f32.mrb[0].mxu0
    %2189 = vdwg.mxu0
    %v2190 = vadd.f32 %v2062, %v2144
    %v2191 = vadd.f32 %v2064, %v2146
    %v2192 = vxor.u32 %v2190, 2147483648
    %v2193 = vxor.u32 %v2191, 2147483648
    %v2194 = vmul.f32 %v2192, 1.442695
    %v2195 = vpow.pop %v2194
    %v2196 = vmul.f32 %v2193, 1.442695
    %v2197 = vpow.pop %v2196
    %v2198 = vadd.f32 %v2195, 1.0
    %v2199 = vadd.f32 %v2197, 1.0
    %v2200 = vrcp.pop %v2198
    %v2201 = vmul.f32 1.0, %v2200
    %v2202 = vrcp.pop %v2199
    %v2203 = vmul.f32 1.0, %v2202
    %v2204 = vadd.f32 %v2185, %v1332
    %v2205 = vmul.f32 %v2201, %v2204
    %v2206 = vadd.f32 %v2103, %v2205
    %v2207 = vtanh.pop %v2206
    %v2208 = vsub.f32 %v1920, %v2207
    %v2209 = vmul.f32 %v2203, %v2208
    %v2210 = vadd.f32 %v2207, %v2209
    %v2211 = vld [vmem:[#allocation2 + $0x60] sm:$0xff]
    %v2212 = vld [vmem:[#allocation2 + $0x68] sm:$0xff]
    %v2213 = vld [vmem:[#allocation2 + $0x70] sm:$0xff]
    %2214 = vmatprep.subr.bf16.mxu0 %v723
    %2215 = vmatpush1.bf16.msra.mxu0 %v722
    %2216 = vmatprep.subr.bf16.mxu0 %v726
    %2217 = vmatpush1.bf16.msra.mxu0 %v725
    %2218 = vmatprep.subr.bf16.mxu0 %v729
    %2219 = vmatpush1.bf16.msra.mxu0 %v728
    %2220 = vmatprep.subr.bf16.mxu0 %v732
    %2221 = vmatpush1.bf16.msra.mxu0 %v731
    %2222 = vmatprep.subr.bf16.mxu0 %v735
    %2223 = vmatpush1.bf16.msra.mxu0 %v734
    %2224 = vmatprep.subr.bf16.mxu0 %v738
    %2225 = vmatpush1.bf16.msra.mxu0 %v737
    %2226 = vmatprep.subr.bf16.mxu0 %v741
    %2227 = vmatpush1.bf16.msra.mxu0 %v740
    %2228 = vmatprep.subr.bf16.mxu0 %v744
    %2229 = vmatpush1.bf16.msra.mxu0 %v743
    %2230 = vmatprep.subr.bf16.mxu0 0
    %2231 = vmatpush1.bf16.msra.mxu0 0
    %2232 = vmatprep.subr.bf16.mxu0 0
    %2233 = vmatpush1.bf16.msra.mxu0 0
    %2234 = vmatprep.subr.bf16.mxu0 0
    %2235 = vmatpush1.bf16.msra.mxu0 0
    %2236 = vmatprep.subr.bf16.mxu0 0
    %2237 = vmatpush1.bf16.msra.mxu0 0
    %2238 = vmatprep.subr.bf16.mxu0 0
    %2239 = vmatpush1.bf16.msra.mxu0 0
    %2240 = vmatprep.subr.bf16.mxu0 0
    %2241 = vmatpush1.bf16.msra.mxu0 0
    %2242 = vmatprep.subr.bf16.mxu0 0
    %2243 = vmatpush1.bf16.msra.mxu0 0
    %2244 = vmatprep.subr.bf16.mxu0 0
    %2245 = vmatpush1.bf16.msra.mxu0 0
    %2246 = vmatprep.mubr.bf16.mxu0 0
    %2247 = vmatmul.mubr.bf16.gmra.mrb[0].mxu0 %v2026
    %v2248 = vpop.f32.mrb[0].mxu0
    %v2249 = vadd.f32 0.0, %v2248
    %v2250 = vpop.f32.mrb[0].mxu0
    %v2251 = vadd.f32 0.0, %v2250
    %v2252 = vpop.f32.mrb[0].mxu0
    %v2253 = vpop.f32.mrb[0].mxu0
    %2254 = vdwg.mxu0
    %2255 = vmatprep.subr.bf16.mxu0 0
    %2256 = vmatpush1.bf16.msra.mxu0 %v724
    %2257 = vmatprep.subr.bf16.mxu0 0
    %2258 = vmatpush1.bf16.msra.mxu0 %v727
    %2259 = vmatprep.subr.bf16.mxu0 0
    %2260 = vmatpush1.bf16.msra.mxu0 %v730
    %2261 = vmatprep.subr.bf16.mxu0 0
    %2262 = vmatpush1.bf16.msra.mxu0 %v733
    %2263 = vmatprep.subr.bf16.mxu0 0
    %2264 = vmatpush1.bf16.msra.mxu0 %v736
    %2265 = vmatprep.subr.bf16.mxu0 0
    %2266 = vmatpush1.bf16.msra.mxu0 %v739
    %2267 = vmatprep.subr.bf16.mxu0 0
    %2268 = vmatpush1.bf16.msra.mxu0 %v742
    %2269 = vmatprep.subr.bf16.mxu0 0
    %2270 = vmatpush1.bf16.msra.mxu0 %v745
    %2271 = vmatprep.subr.bf16.mxu0 0
    %2272 = vmatpush1.bf16.msra.mxu0 0
    %2273 = vmatprep.subr.bf16.mxu0 0
    %2274 = vmatpush1.bf16.msra.mxu0 0
    %2275 = vmatprep.subr.bf16.mxu0 0
    %2276 = vmatpush1.bf16.msra.mxu0 0
    %2277 = vmatprep.subr.bf16.mxu0 0
    %2278 = vmatpush1.bf16.msra.mxu0 0
    %2279 = vmatprep.subr.bf16.mxu0 0
    %2280 = vmatpush1.bf16.msra.mxu0 0
    %2281 = vmatprep.subr.bf16.mxu0 0
    %2282 = vmatpush1.bf16.msra.mxu0 0
    %2283 = vmatprep.subr.bf16.mxu0 0
    %2284 = vmatpush1.bf16.msra.mxu0 0
    %2285 = vmatprep.subr.bf16.mxu0 0
    %2286 = vmatpush1.bf16.msra.mxu0 0
    %2287 = vmatprep.mubr.bf16.mxu0 0
    %2288 = vmatmul.mubr.bf16.gmra.mrb[0].mxu0 %v2026
    %v2289 = vpop.f32.mrb[0].mxu0
    %v2290 = vadd.f32 0.0, %v2289
    %v2291 = vpop.f32.mrb[0].mxu0
    %v2292 = vpop.f32.mrb[0].mxu0
    %v2293 = vpop.f32.mrb[0].mxu0
    %2294 = vdwg.mxu0
    %v2295 = vadd.f32 %v2211, %v2249
    %v2296 = vadd.f32 %v2212, %v2251
    %v2297 = vxor.u32 %v2295, 2147483648
    %v2298 = vxor.u32 %v2296, 2147483648
    %v2299 = vmul.f32 %v2297, 1.442695
    %v2300 = vpow.pop %v2299
    %v2301 = vmul.f32 %v2298, 1.442695
    %v2302 = vpow.pop %v2301
    %v2303 = vadd.f32 %v2300, 1.0
    %v2304 = vadd.f32 %v2302, 1.0
    %v2305 = vrcp.pop %v2303
    %v2306 = vmul.f32 1.0, %v2305
    %v2307 = vrcp.pop %v2304
    %v2308 = vmul.f32 1.0, %v2307
    %v2309 = vadd.f32 %v2290, %v869
    %v2310 = vmul.f32 %v2306, %v2309
    %v2311 = vadd.f32 %v2213, %v2310
    %v2312 = vtanh.pop %v2311
    %v2313 = vsub.f32 %v2025, %v2312
    %v2314 = vmul.f32 %v2308, %v2313
    %v2315 = vadd.f32 %v2312, %v2314
    %v2316 = vpack.c.bf16 %v2315, %v2315
    %2317 = vmatprep.subr.bf16.mxu0 %v976
    %2318 = vmatpush1.bf16.msra.mxu0 %v975
    %2319 = vmatprep.subr.bf16.mxu0 %v979
    %2320 = vmatpush1.bf16.msra.mxu0 %v978
    %2321 = vmatprep.subr.bf16.mxu0 %v982
    %2322 = vmatpush1.bf16.msra.mxu0 %v981
    %2323 = vmatprep.subr.bf16.mxu0 %v985
    %2324 = vmatpush1.bf16.msra.mxu0 %v984
    %2325 = vmatprep.subr.bf16.mxu0 %v988
    %2326 = vmatpush1.bf16.msra.mxu0 %v987
    %2327 = vmatprep.subr.bf16.mxu0 %v991
    %2328 = vmatpush1.bf16.msra.mxu0 %v990
    %2329 = vmatprep.subr.bf16.mxu0 %v994
    %2330 = vmatpush1.bf16.msra.mxu0 %v993
    %2331 = vmatprep.subr.bf16.mxu0 %v997
    %2332 = vmatpush1.bf16.msra.mxu0 %v996
    %2333 = vmatprep.subr.bf16.mxu0 0
    %2334 = vmatpush1.bf16.msra.mxu0 0
    %2335 = vmatprep.subr.bf16.mxu0 0
    %2336 = vmatpush1.bf16.msra.mxu0 0
    %2337 = vmatprep.subr.bf16.mxu0 0
    %2338 = vmatpush1.bf16.msra.mxu0 0
    %2339 = vmatprep.subr.bf16.mxu0 0
    %2340 = vmatpush1.bf16.msra.mxu0 0
    %2341 = vmatprep.subr.bf16.mxu0 0
    %2342 = vmatpush1.bf16.msra.mxu0 0
    %2343 = vmatprep.subr.bf16.mxu0 0
    %2344 = vmatpush1.bf16.msra.mxu0 0
    %2345 = vmatprep.subr.bf16.mxu0 0
    %2346 = vmatpush1.bf16.msra.mxu0 0
    %2347 = vmatprep.subr.bf16.mxu0 0
    %2348 = vmatpush1.bf16.msra.mxu0 0
    %2349 = vmatprep.mubr.bf16.mxu0 0
    %2350 = vmatmul.mubr.bf16.gmra.mrb[0].mxu0 %v2316
    %v2351 = vpop.f32.mrb[0].mxu0
    %v2352 = vadd.f32 %v883, %v2351
    %v2353 = vpop.f32.mrb[0].mxu0
    %v2354 = vadd.f32 %v887, %v2353
    %v2355 = vpop.f32.mrb[0].mxu0
    %v2356 = vpop.f32.mrb[0].mxu0
    %2357 = vdwg.mxu0
    %2358 = vmatprep.subr.bf16.mxu0 0
    %2359 = vmatpush1.bf16.msra.mxu0 %v977
    %2360 = vmatprep.subr.bf16.mxu0 0
    %2361 = vmatpush1.bf16.msra.mxu0 %v980
    %2362 = vmatprep.subr.bf16.mxu0 0
    %2363 = vmatpush1.bf16.msra.mxu0 %v983
    %2364 = vmatprep.subr.bf16.mxu0 0
    %2365 = vmatpush1.bf16.msra.mxu0 %v986
    %2366 = vmatprep.subr.bf16.mxu0 0
    %2367 = vmatpush1.bf16.msra.mxu0 %v989
    %2368 = vmatprep.subr.bf16.mxu0 0
    %2369 = vmatpush1.bf16.msra.mxu0 %v992
    %2370 = vmatprep.subr.bf16.mxu0 0
    %2371 = vmatpush1.bf16.msra.mxu0 %v995
    %2372 = vmatprep.subr.bf16.mxu0 0
    %2373 = vmatpush1.bf16.msra.mxu0 %v998
    %2374 = vmatprep.subr.bf16.mxu0 0
    %2375 = vmatpush1.bf16.msra.mxu0 0
    %2376 = vmatprep.subr.bf16.mxu0 0
    %2377 = vmatpush1.bf16.msra.mxu0 0
    %2378 = vmatprep.subr.bf16.mxu0 0
    %2379 = vmatpush1.bf16.msra.mxu0 0
    %2380 = vmatprep.subr.bf16.mxu0 0
    %2381 = vmatpush1.bf16.msra.mxu0 0
    %2382 = vmatprep.subr.bf16.mxu0 0
    %2383 = vmatpush1.bf16.msra.mxu0 0
    %2384 = vmatprep.subr.bf16.mxu0 0
    %2385 = vmatpush1.bf16.msra.mxu0 0
    %2386 = vmatprep.subr.bf16.mxu0 0
    %2387 = vmatpush1.bf16.msra.mxu0 0
    %2388 = vmatprep.subr.bf16.mxu0 0
    %2389 = vmatpush1.bf16.msra.mxu0 0
    %2390 = vmatprep.mubr.bf16.mxu0 0
    %2391 = vmatmul.mubr.bf16.gmra.mrb[0].mxu0 %v2316
    %v2392 = vpop.f32.mrb[0].mxu0
    %v2393 = vadd.f32 %v891, %v2392
    %v2394 = vpop.f32.mrb[0].mxu0
    %v2395 = vpop.f32.mrb[0].mxu0
    %v2396 = vpop.f32.mrb[0].mxu0
    %2397 = vdwg.mxu0
    %v2398 = vpack.c.bf16 %v2210, %v2210
    %2399 = vmatprep.subr.bf16.mxu0 %v1186
    %2400 = vmatpush1.bf16.msra.mxu0 %v1185
    %2401 = vmatprep.subr.bf16.mxu0 %v1189
    %2402 = vmatpush1.bf16.msra.mxu0 %v1188
    %2403 = vmatprep.subr.bf16.mxu0 %v1192
    %2404 = vmatpush1.bf16.msra.mxu0 %v1191
    %2405 = vmatprep.subr.bf16.mxu0 %v1195
    %2406 = vmatpush1.bf16.msra.mxu0 %v1194
    %2407 = vmatprep.subr.bf16.mxu0 %v1198
    %2408 = vmatpush1.bf16.msra.mxu0 %v1197
    %2409 = vmatprep.subr.bf16.mxu0 %v1201
    %2410 = vmatpush1.bf16.msra.mxu0 %v1200
    %2411 = vmatprep.subr.bf16.mxu0 %v1204
    %2412 = vmatpush1.bf16.msra.mxu0 %v1203
    %2413 = vmatprep.subr.bf16.mxu0 %v1207
    %2414 = vmatpush1.bf16.msra.mxu0 %v1206
    %2415 = vmatprep.subr.bf16.mxu0 0
    %2416 = vmatpush1.bf16.msra.mxu0 0
    %2417 = vmatprep.subr.bf16.mxu0 0
    %2418 = vmatpush1.bf16.msra.mxu0 0
    %2419 = vmatprep.subr.bf16.mxu0 0
    %2420 = vmatpush1.bf16.msra.mxu0 0
    %2421 = vmatprep.subr.bf16.mxu0 0
    %2422 = vmatpush1.bf16.msra.mxu0 0
    %2423 = vmatprep.subr.bf16.mxu0 0
    %2424 = vmatpush1.bf16.msra.mxu0 0
    %2425 = vmatprep.subr.bf16.mxu0 0
    %2426 = vmatpush1.bf16.msra.mxu0 0
    %2427 = vmatprep.subr.bf16.mxu0 0
    %2428 = vmatpush1.bf16.msra.mxu0 0
    %2429 = vmatprep.subr.bf16.mxu0 0
    %2430 = vmatpush1.bf16.msra.mxu0 0
    %2431 = vmatprep.mubr.bf16.mxu0 0
    %2432 = vmatmul.mubr.bf16.gmra.mrb[0].mxu0 %v2398
    %v2433 = vpop.f32.mrb[0].mxu0
    %v2434 = vadd.f32 0.0, %v2433
    %v2435 = vpop.f32.mrb[0].mxu0
    %v2436 = vadd.f32 0.0, %v2435
    %v2437 = vpop.f32.mrb[0].mxu0
    %v2438 = vpop.f32.mrb[0].mxu0
    %2439 = vdwg.mxu0
    %2440 = vmatprep.subr.bf16.mxu0 0
    %2441 = vmatpush1.bf16.msra.mxu0 %v1187
    %2442 = vmatprep.subr.bf16.mxu0 0
    %2443 = vmatpush1.bf16.msra.mxu0 %v1190
    %2444 = vmatprep.subr.bf16.mxu0 0
    %2445 = vmatpush1.bf16.msra.mxu0 %v1193
    %2446 = vmatprep.subr.bf16.mxu0 0
    %2447 = vmatpush1.bf16.msra.mxu0 %v1196
    %2448 = vmatprep.subr.bf16.mxu0 0
    %2449 = vmatpush1.bf16.msra.mxu0 %v1199
    %2450 = vmatprep.subr.bf16.mxu0 0
    %2451 = vmatpush1.bf16.msra.mxu0 %v1202
    %2452 = vmatprep.subr.bf16.mxu0 0
    %2453 = vmatpush1.bf16.msra.mxu0 %v1205
    %2454 = vmatprep.subr.bf16.mxu0 0
    %2455 = vmatpush1.bf16.msra.mxu0 %v1208
    %2456 = vmatprep.subr.bf16.mxu0 0
    %2457 = vmatpush1.bf16.msra.mxu0 0
    %2458 = vmatprep.subr.bf16.mxu0 0
    %2459 = vmatpush1.bf16.msra.mxu0 0
    %2460 = vmatprep.subr.bf16.mxu0 0
    %2461 = vmatpush1.bf16.msra.mxu0 0
    %2462 = vmatprep.subr.bf16.mxu0 0
    %2463 = vmatpush1.bf16.msra.mxu0 0
    %2464 = vmatprep.subr.bf16.mxu0 0
    %2465 = vmatpush1.bf16.msra.mxu0 0
    %2466 = vmatprep.subr.bf16.mxu0 0
    %2467 = vmatpush1.bf16.msra.mxu0 0
    %2468 = vmatprep.subr.bf16.mxu0 0
    %2469 = vmatpush1.bf16.msra.mxu0 0
    %2470 = vmatprep.subr.bf16.mxu0 0
    %2471 = vmatpush1.bf16.msra.mxu0 0
    %2472 = vmatprep.mubr.bf16.mxu0 0
    %2473 = vmatmul.mubr.bf16.gmra.mrb[0].mxu0 %v2398
    %v2474 = vpop.f32.mrb[0].mxu0
    %v2475 = vadd.f32 0.0, %v2474
    %v2476 = vpop.f32.mrb[0].mxu0
    %v2477 = vpop.f32.mrb[0].mxu0
    %v2478 = vpop.f32.mrb[0].mxu0
    %2479 = vdwg.mxu0
    %v2480 = vadd.f32 %v2352, %v2434
    %v2481 = vadd.f32 %v2354, %v2436
    %v2482 = vxor.u32 %v2480, 2147483648
    %v2483 = vxor.u32 %v2481, 2147483648
    %v2484 = vmul.f32 %v2482, 1.442695
    %v2485 = vpow.pop %v2484
    %v2486 = vmul.f32 %v2483, 1.442695
    %v2487 = vpow.pop %v2486
    %v2488 = vadd.f32 %v2485, 1.0
    %v2489 = vadd.f32 %v2487, 1.0
    %v2490 = vrcp.pop %v2488
    %v2491 = vmul.f32 1.0, %v2490
    %v2492 = vrcp.pop %v2489
    %v2493 = vmul.f32 1.0, %v2492
    %v2494 = vadd.f32 %v2475, %v1332
    %v2495 = vmul.f32 %v2491, %v2494
    %v2496 = vadd.f32 %v2393, %v2495
    %v2497 = vtanh.pop %v2496
    %v2498 = vsub.f32 %v2210, %v2497
    %v2499 = vmul.f32 %v2493, %v2498
    %v2500 = vadd.f32 %v2497, %v2499
    %v2501 = vld [vmem:[#allocation2 + $0x78] sm:$0xff]
    %v2502 = vld [vmem:[#allocation2 + $0x80] sm:$0xff]
    %v2503 = vld [vmem:[#allocation2 + $0x88] sm:$0xff]
    %2504 = vmatprep.subr.bf16.mxu0 %v723
    %2505 = vmatpush1.bf16.msra.mxu0 %v722
    %2506 = vmatprep.subr.bf16.mxu0 %v726
    %2507 = vmatpush1.bf16.msra.mxu0 %v725
    %2508 = vmatprep.subr.bf16.mxu0 %v729
    %2509 = vmatpush1.bf16.msra.mxu0 %v728
    %2510 = vmatprep.subr.bf16.mxu0 %v732
    %2511 = vmatpush1.bf16.msra.mxu0 %v731
    %2512 = vmatprep.subr.bf16.mxu0 %v735
    %2513 = vmatpush1.bf16.msra.mxu0 %v734
    %2514 = vmatprep.subr.bf16.mxu0 %v738
    %2515 = vmatpush1.bf16.msra.mxu0 %v737
    %2516 = vmatprep.subr.bf16.mxu0 %v741
    %2517 = vmatpush1.bf16.msra.mxu0 %v740
    %2518 = vmatprep.subr.bf16.mxu0 %v744
    %2519 = vmatpush1.bf16.msra.mxu0 %v743
    %2520 = vmatprep.subr.bf16.mxu0 0
    %2521 = vmatpush1.bf16.msra.mxu0 0
    %2522 = vmatprep.subr.bf16.mxu0 0
    %2523 = vmatpush1.bf16.msra.mxu0 0
    %2524 = vmatprep.subr.bf16.mxu0 0
    %2525 = vmatpush1.bf16.msra.mxu0 0
    %2526 = vmatprep.subr.bf16.mxu0 0
    %2527 = vmatpush1.bf16.msra.mxu0 0
    %2528 = vmatprep.subr.bf16.mxu0 0
    %2529 = vmatpush1.bf16.msra.mxu0 0
    %2530 = vmatprep.subr.bf16.mxu0 0
    %2531 = vmatpush1.bf16.msra.mxu0 0
    %2532 = vmatprep.subr.bf16.mxu0 0
    %2533 = vmatpush1.bf16.msra.mxu0 0
    %2534 = vmatprep.subr.bf16.mxu0 0
    %2535 = vmatpush1.bf16.msra.mxu0 0
    %2536 = vmatprep.mubr.bf16.mxu0 0
    %2537 = vmatmul.mubr.bf16.gmra.mrb[0].mxu0 %v2316
    %v2538 = vpop.f32.mrb[0].mxu0
    %v2539 = vadd.f32 0.0, %v2538
    %v2540 = vpop.f32.mrb[0].mxu0
    %v2541 = vadd.f32 0.0, %v2540
    %v2542 = vpop.f32.mrb[0].mxu0
    %v2543 = vpop.f32.mrb[0].mxu0
    %2544 = vdwg.mxu0
    %2545 = vmatprep.subr.bf16.mxu0 0
    %2546 = vmatpush1.bf16.msra.mxu0 %v724
    %2547 = vmatprep.subr.bf16.mxu0 0
    %2548 = vmatpush1.bf16.msra.mxu0 %v727
    %2549 = vmatprep.subr.bf16.mxu0 0
    %2550 = vmatpush1.bf16.msra.mxu0 %v730
    %2551 = vmatprep.subr.bf16.mxu0 0
    %2552 = vmatpush1.bf16.msra.mxu0 %v733
    %2553 = vmatprep.subr.bf16.mxu0 0
    %2554 = vmatpush1.bf16.msra.mxu0 %v736
    %2555 = vmatprep.subr.bf16.mxu0 0
    %2556 = vmatpush1.bf16.msra.mxu0 %v739
    %2557 = vmatprep.subr.bf16.mxu0 0
    %2558 = vmatpush1.bf16.msra.mxu0 %v742
    %2559 = vmatprep.subr.bf16.mxu0 0
    %2560 = vmatpush1.bf16.msra.mxu0 %v745
    %2561 = vmatprep.subr.bf16.mxu0 0
    %2562 = vmatpush1.bf16.msra.mxu0 0
    %2563 = vmatprep.subr.bf16.mxu0 0
    %2564 = vmatpush1.bf16.msra.mxu0 0
    %2565 = vmatprep.subr.bf16.mxu0 0
    %2566 = vmatpush1.bf16.msra.mxu0 0
    %2567 = vmatprep.subr.bf16.mxu0 0
    %2568 = vmatpush1.bf16.msra.mxu0 0
    %2569 = vmatprep.subr.bf16.mxu0 0
    %2570 = vmatpush1.bf16.msra.mxu0 0
    %2571 = vmatprep.subr.bf16.mxu0 0
    %2572 = vmatpush1.bf16.msra.mxu0 0
    %2573 = vmatprep.subr.bf16.mxu0 0
    %2574 = vmatpush1.bf16.msra.mxu0 0
    %2575 = vmatprep.subr.bf16.mxu0 0
    %2576 = vmatpush1.bf16.msra.mxu0 0
    %2577 = vmatprep.mubr.bf16.mxu0 0
    %2578 = vmatmul.mubr.bf16.gmra.mrb[0].mxu0 %v2316
    %v2579 = vpop.f32.mrb[0].mxu0
    %v2580 = vadd.f32 0.0, %v2579
    %v2581 = vpop.f32.mrb[0].mxu0
    %v2582 = vpop.f32.mrb[0].mxu0
    %v2583 = vpop.f32.mrb[0].mxu0
    %2584 = vdwg.mxu0
    %v2585 = vadd.f32 %v2501, %v2539
    %v2586 = vadd.f32 %v2502, %v2541
    %v2587 = vxor.u32 %v2585, 2147483648
    %v2588 = vxor.u32 %v2586, 2147483648
    %v2589 = vmul.f32 %v2587, 1.442695
    %v2590 = vpow.pop %v2589
    %v2591 = vmul.f32 %v2588, 1.442695
    %v2592 = vpow.pop %v2591
    %v2593 = vadd.f32 %v2590, 1.0
    %v2594 = vadd.f32 %v2592, 1.0
    %v2595 = vrcp.pop %v2593
    %v2596 = vmul.f32 1.0, %v2595
    %v2597 = vrcp.pop %v2594
    %v2598 = vmul.f32 1.0, %v2597
    %v2599 = vadd.f32 %v2580, %v869
    %v2600 = vmul.f32 %v2596, %v2599
    %v2601 = vadd.f32 %v2503, %v2600
    %v2602 = vtanh.pop %v2601
    %v2603 = vsub.f32 %v2315, %v2602
    %v2604 = vmul.f32 %v2598, %v2603
    %v2605 = vadd.f32 %v2602, %v2604
    %v2606 = vpack.c.bf16 %v2605, %v2605
    %2607 = vmatprep.subr.bf16.mxu0 %v976
    %2608 = vmatpush1.bf16.msra.mxu0 %v975
    %2609 = vmatprep.subr.bf16.mxu0 %v979
    %2610 = vmatpush1.bf16.msra.mxu0 %v978
    %2611 = vmatprep.subr.bf16.mxu0 %v982
    %2612 = vmatpush1.bf16.msra.mxu0 %v981
    %2613 = vmatprep.subr.bf16.mxu0 %v985
    %2614 = vmatpush1.bf16.msra.mxu0 %v984
    %2615 = vmatprep.subr.bf16.mxu0 %v988
    %2616 = vmatpush1.bf16.msra.mxu0 %v987
    %2617 = vmatprep.subr.bf16.mxu0 %v991
    %2618 = vmatpush1.bf16.msra.mxu0 %v990
    %2619 = vmatprep.subr.bf16.mxu0 %v994
    %2620 = vmatpush1.bf16.msra.mxu0 %v993
    %2621 = vmatprep.subr.bf16.mxu0 %v997
    %2622 = vmatpush1.bf16.msra.mxu0 %v996
    %2623 = vmatprep.subr.bf16.mxu0 0
    %2624 = vmatpush1.bf16.msra.mxu0 0
    %2625 = vmatprep.subr.bf16.mxu0 0
    %2626 = vmatpush1.bf16.msra.mxu0 0
    %2627 = vmatprep.subr.bf16.mxu0 0
    %2628 = vmatpush1.bf16.msra.mxu0 0
    %2629 = vmatprep.subr.bf16.mxu0 0
    %2630 = vmatpush1.bf16.msra.mxu0 0
    %2631 = vmatprep.subr.bf16.mxu0 0
    %2632 = vmatpush1.bf16.msra.mxu0 0
    %2633 = vmatprep.subr.bf16.mxu0 0
    %2634 = vmatpush1.bf16.msra.mxu0 0
    %2635 = vmatprep.subr.bf16.mxu0 0
    %2636 = vmatpush1.bf16.msra.mxu0 0
    %2637 = vmatprep.subr.bf16.mxu0 0
    %2638 = vmatpush1.bf16.msra.mxu0 0
    %2639 = vmatprep.mubr.bf16.mxu0 0
    %2640 = vmatmul.mubr.bf16.gmra.mrb[0].mxu0 %v2606
    %v2641 = vpop.f32.mrb[0].mxu0
    %v2642 = vadd.f32 %v883, %v2641
    %v2643 = vpop.f32.mrb[0].mxu0
    %v2644 = vadd.f32 %v887, %v2643
    %v2645 = vpop.f32.mrb[0].mxu0
    %v2646 = vpop.f32.mrb[0].mxu0
    %2647 = vdwg.mxu0
    %2648 = vmatprep.subr.bf16.mxu0 0
    %2649 = vmatpush1.bf16.msra.mxu0 %v977
    %2650 = vmatprep.subr.bf16.mxu0 0
    %2651 = vmatpush1.bf16.msra.mxu0 %v980
    %2652 = vmatprep.subr.bf16.mxu0 0
    %2653 = vmatpush1.bf16.msra.mxu0 %v983
    %2654 = vmatprep.subr.bf16.mxu0 0
    %2655 = vmatpush1.bf16.msra.mxu0 %v986
    %2656 = vmatprep.subr.bf16.mxu0 0
    %2657 = vmatpush1.bf16.msra.mxu0 %v989
    %2658 = vmatprep.subr.bf16.mxu0 0
    %2659 = vmatpush1.bf16.msra.mxu0 %v992
    %2660 = vmatprep.subr.bf16.mxu0 0
    %2661 = vmatpush1.bf16.msra.mxu0 %v995
    %2662 = vmatprep.subr.bf16.mxu0 0
    %2663 = vmatpush1.bf16.msra.mxu0 %v998
    %2664 = vmatprep.subr.bf16.mxu0 0
    %2665 = vmatpush1.bf16.msra.mxu0 0
    %2666 = vmatprep.subr.bf16.mxu0 0
    %2667 = vmatpush1.bf16.msra.mxu0 0
    %2668 = vmatprep.subr.bf16.mxu0 0
    %2669 = vmatpush1.bf16.msra.mxu0 0
    %2670 = vmatprep.subr.bf16.mxu0 0
    %2671 = vmatpush1.bf16.msra.mxu0 0
    %2672 = vmatprep.subr.bf16.mxu0 0
    %2673 = vmatpush1.bf16.msra.mxu0 0
    %2674 = vmatprep.subr.bf16.mxu0 0
    %2675 = vmatpush1.bf16.msra.mxu0 0
    %2676 = vmatprep.subr.bf16.mxu0 0
    %2677 = vmatpush1.bf16.msra.mxu0 0
    %2678 = vmatprep.subr.bf16.mxu0 0
    %2679 = vmatpush1.bf16.msra.mxu0 0
    %2680 = vmatprep.mubr.bf16.mxu0 0
    %2681 = vmatmul.mubr.bf16.gmra.mrb[0].mxu0 %v2606
    %v2682 = vpop.f32.mrb[0].mxu0
    %v2683 = vadd.f32 %v891, %v2682
    %v2684 = vpop.f32.mrb[0].mxu0
    %v2685 = vpop.f32.mrb[0].mxu0
    %v2686 = vpop.f32.mrb[0].mxu0
    %2687 = vdwg.mxu0
    %v2688 = vpack.c.bf16 %v2500, %v2500
    %2689 = vmatprep.subr.bf16.mxu0 %v1186
    %2690 = vmatpush1.bf16.msra.mxu0 %v1185
    %2691 = vmatprep.subr.bf16.mxu0 %v1189
    %2692 = vmatpush1.bf16.msra.mxu0 %v1188
    %2693 = vmatprep.subr.bf16.mxu0 %v1192
    %2694 = vmatpush1.bf16.msra.mxu0 %v1191
    %2695 = vmatprep.subr.bf16.mxu0 %v1195
    %2696 = vmatpush1.bf16.msra.mxu0 %v1194
    %2697 = vmatprep.subr.bf16.mxu0 %v1198
    %2698 = vmatpush1.bf16.msra.mxu0 %v1197
    %2699 = vmatprep.subr.bf16.mxu0 %v1201
    %2700 = vmatpush1.bf16.msra.mxu0 %v1200
    %2701 = vmatprep.subr.bf16.mxu0 %v1204
    %2702 = vmatpush1.bf16.msra.mxu0 %v1203
    %2703 = vmatprep.subr.bf16.mxu0 %v1207
    %2704 = vmatpush1.bf16.msra.mxu0 %v1206
    %2705 = vmatprep.subr.bf16.mxu0 0
    %2706 = vmatpush1.bf16.msra.mxu0 0
    %2707 = vmatprep.subr.bf16.mxu0 0
    %2708 = vmatpush1.bf16.msra.mxu0 0
    %2709 = vmatprep.subr.bf16.mxu0 0
    %2710 = vmatpush1.bf16.msra.mxu0 0
    %2711 = vmatprep.subr.bf16.mxu0 0
    %2712 = vmatpush1.bf16.msra.mxu0 0
    %2713 = vmatprep.subr.bf16.mxu0 0
    %2714 = vmatpush1.bf16.msra.mxu0 0
    %2715 = vmatprep.subr.bf16.mxu0 0
    %2716 = vmatpush1.bf16.msra.mxu0 0
    %2717 = vmatprep.subr.bf16.mxu0 0
    %2718 = vmatpush1.bf16.msra.mxu0 0
    %2719 = vmatprep.subr.bf16.mxu0 0
    %2720 = vmatpush1.bf16.msra.mxu0 0
    %2721 = vmatprep.mubr.bf16.mxu0 0
    %2722 = vmatmul.mubr.bf16.gmra.mrb[0].mxu0 %v2688
    %v2723 = vpop.f32.mrb[0].mxu0
    %v2724 = vadd.f32 0.0, %v2723
    %v2725 = vpop.f32.mrb[0].mxu0
    %v2726 = vadd.f32 0.0, %v2725
    %v2727 = vpop.f32.mrb[0].mxu0
    %v2728 = vpop.f32.mrb[0].mxu0
    %2729 = vdwg.mxu0
    %2730 = vmatprep.subr.bf16.mxu0 0
    %2731 = vmatpush1.bf16.msra.mxu0 %v1187
    %2732 = vmatprep.subr.bf16.mxu0 0
    %2733 = vmatpush1.bf16.msra.mxu0 %v1190
    %2734 = vmatprep.subr.bf16.mxu0 0
    %2735 = vmatpush1.bf16.msra.mxu0 %v1193
    %2736 = vmatprep.subr.bf16.mxu0 0
    %2737 = vmatpush1.bf16.msra.mxu0 %v1196
    %2738 = vmatprep.subr.bf16.mxu0 0
    %2739 = vmatpush1.bf16.msra.mxu0 %v1199
    %2740 = vmatprep.subr.bf16.mxu0 0
    %2741 = vmatpush1.bf16.msra.mxu0 %v1202
    %2742 = vmatprep.subr.bf16.mxu0 0
    %2743 = vmatpush1.bf16.msra.mxu0 %v1205
    %2744 = vmatprep.subr.bf16.mxu0 0
    %2745 = vmatpush1.bf16.msra.mxu0 %v1208
    %2746 = vmatprep.subr.bf16.mxu0 0
    %2747 = vmatpush1.bf16.msra.mxu0 0
    %2748 = vmatprep.subr.bf16.mxu0 0
    %2749 = vmatpush1.bf16.msra.mxu0 0
    %2750 = vmatprep.subr.bf16.mxu0 0
    %2751 = vmatpush1.bf16.msra.mxu0 0
    %2752 = vmatprep.subr.bf16.mxu0 0
    %2753 = vmatpush1.bf16.msra.mxu0 0
    %2754 = vmatprep.subr.bf16.mxu0 0
    %2755 = vmatpush1.bf16.msra.mxu0 0
    %2756 = vmatprep.subr.bf16.mxu0 0
    %2757 = vmatpush1.bf16.msra.mxu0 0
    %2758 = vmatprep.subr.bf16.mxu0 0
    %2759 = vmatpush1.bf16.msra.mxu0 0
    %2760 = vmatprep.subr.bf16.mxu0 0
    %2761 = vmatpush1.bf16.msra.mxu0 0
    %2762 = vmatprep.mubr.bf16.mxu0 0
    %2763 = vmatmul.mubr.bf16.gmra.mrb[0].mxu0 %v2688
    %v2764 = vpop.f32.mrb[0].mxu0
    %v2765 = vadd.f32 0.0, %v2764
    %v2766 = vpop.f32.mrb[0].mxu0
    %v2767 = vpop.f32.mrb[0].mxu0
    %v2768 = vpop.f32.mrb[0].mxu0
    %2769 = vdwg.mxu0
    %v2770 = vadd.f32 %v2642, %v2724
    %v2771 = vadd.f32 %v2644, %v2726
    %v2772 = vxor.u32 %v2770, 2147483648
    %v2773 = vxor.u32 %v2771, 2147483648
    %v2774 = vmul.f32 %v2772, 1.442695
    %v2775 = vpow.pop %v2774
    %v2776 = vmul.f32 %v2773, 1.442695
    %v2777 = vpow.pop %v2776
    %v2778 = vadd.f32 %v2775, 1.0
    %v2779 = vadd.f32 %v2777, 1.0
    %v2780 = vrcp.pop %v2778
    %v2781 = vmul.f32 1.0, %v2780
    %v2782 = vrcp.pop %v2779
    %v2783 = vmul.f32 1.0, %v2782
    %v2784 = vadd.f32 %v2765, %v1332
    %v2785 = vmul.f32 %v2781, %v2784
    %v2786 = vadd.f32 %v2683, %v2785
    %v2787 = vtanh.pop %v2786
    %v2788 = vsub.f32 %v2500, %v2787
    %v2789 = vmul.f32 %v2783, %v2788
    %v2790 = vadd.f32 %v2787, %v2789
    %v2791 = vld [vmem:[#allocation2 + $0x90] sm:$0xff]
    %v2792 = vld [vmem:[#allocation2 + $0x98] sm:$0xff]
    %v2793 = vld [vmem:[#allocation2 + $0xa0] sm:$0xff]
    %2794 = vmatprep.subr.bf16.mxu0 %v723
    %2795 = vmatpush1.bf16.msra.mxu0 %v722
    %2796 = vmatprep.subr.bf16.mxu0 %v726
    %2797 = vmatpush1.bf16.msra.mxu0 %v725
    %2798 = vmatprep.subr.bf16.mxu0 %v729
    %2799 = vmatpush1.bf16.msra.mxu0 %v728
    %2800 = vmatprep.subr.bf16.mxu0 %v732
    %2801 = vmatpush1.bf16.msra.mxu0 %v731
    %2802 = vmatprep.subr.bf16.mxu0 %v735
    %2803 = vmatpush1.bf16.msra.mxu0 %v734
    %2804 = vmatprep.subr.bf16.mxu0 %v738
    %2805 = vmatpush1.bf16.msra.mxu0 %v737
    %2806 = vmatprep.subr.bf16.mxu0 %v741
    %2807 = vmatpush1.bf16.msra.mxu0 %v740
    %2808 = vmatprep.subr.bf16.mxu0 %v744
    %2809 = vmatpush1.bf16.msra.mxu0 %v743
    %2810 = vmatprep.subr.bf16.mxu0 0
    %2811 = vmatpush1.bf16.msra.mxu0 0
    %2812 = vmatprep.subr.bf16.mxu0 0
    %2813 = vmatpush1.bf16.msra.mxu0 0
    %2814 = vmatprep.subr.bf16.mxu0 0
    %2815 = vmatpush1.bf16.msra.mxu0 0
    %2816 = vmatprep.subr.bf16.mxu0 0
    %2817 = vmatpush1.bf16.msra.mxu0 0
    %2818 = vmatprep.subr.bf16.mxu0 0
    %2819 = vmatpush1.bf16.msra.mxu0 0
    %2820 = vmatprep.subr.bf16.mxu0 0
    %2821 = vmatpush1.bf16.msra.mxu0 0
    %2822 = vmatprep.subr.bf16.mxu0 0
    %2823 = vmatpush1.bf16.msra.mxu0 0
    %2824 = vmatprep.subr.bf16.mxu0 0
    %2825 = vmatpush1.bf16.msra.mxu0 0
    %2826 = vmatprep.mubr.bf16.mxu0 0
    %2827 = vmatmul.mubr.bf16.gmra.mrb[0].mxu0 %v2606
    %v2828 = vpop.f32.mrb[0].mxu0
    %v2829 = vadd.f32 0.0, %v2828
    %v2830 = vpop.f32.mrb[0].mxu0
    %v2831 = vadd.f32 0.0, %v2830
    %v2832 = vpop.f32.mrb[0].mxu0
    %v2833 = vpop.f32.mrb[0].mxu0
    %2834 = vdwg.mxu0
    %2835 = vmatprep.subr.bf16.mxu0 0
    %2836 = vmatpush1.bf16.msra.mxu0 %v724
    %2837 = vmatprep.subr.bf16.mxu0 0
    %2838 = vmatpush1.bf16.msra.mxu0 %v727
    %2839 = vmatprep.subr.bf16.mxu0 0
    %2840 = vmatpush1.bf16.msra.mxu0 %v730
    %2841 = vmatprep.subr.bf16.mxu0 0
    %2842 = vmatpush1.bf16.msra.mxu0 %v733
    %2843 = vmatprep.subr.bf16.mxu0 0
    %2844 = vmatpush1.bf16.msra.mxu0 %v736
    %2845 = vmatprep.subr.bf16.mxu0 0
    %2846 = vmatpush1.bf16.msra.mxu0 %v739
    %2847 = vmatprep.subr.bf16.mxu0 0
    %2848 = vmatpush1.bf16.msra.mxu0 %v742
    %2849 = vmatprep.subr.bf16.mxu0 0
    %2850 = vmatpush1.bf16.msra.mxu0 %v745
    %2851 = vmatprep.subr.bf16.mxu0 0
    %2852 = vmatpush1.bf16.msra.mxu0 0
    %2853 = vmatprep.subr.bf16.mxu0 0
    %2854 = vmatpush1.bf16.msra.mxu0 0
    %2855 = vmatprep.subr.bf16.mxu0 0
    %2856 = vmatpush1.bf16.msra.mxu0 0
    %2857 = vmatprep.subr.bf16.mxu0 0
    %2858 = vmatpush1.bf16.msra.mxu0 0
    %2859 = vmatprep.subr.bf16.mxu0 0
    %2860 = vmatpush1.bf16.msra.mxu0 0
    %2861 = vmatprep.subr.bf16.mxu0 0
    %2862 = vmatpush1.bf16.msra.mxu0 0
    %2863 = vmatprep.subr.bf16.mxu0 0
    %2864 = vmatpush1.bf16.msra.mxu0 0
    %2865 = vmatprep.subr.bf16.mxu0 0
    %2866 = vmatpush1.bf16.msra.mxu0 0
    %2867 = vmatprep.mubr.bf16.mxu0 0
    %2868 = vmatmul.mubr.bf16.gmra.mrb[0].mxu0 %v2606
    %v2869 = vpop.f32.mrb[0].mxu0
    %v2870 = vadd.f32 0.0, %v2869
    %v2871 = vpop.f32.mrb[0].mxu0
    %v2872 = vpop.f32.mrb[0].mxu0
    %v2873 = vpop.f32.mrb[0].mxu0
    %2874 = vdwg.mxu0
    %v2875 = vadd.f32 %v2791, %v2829
    %v2876 = vadd.f32 %v2792, %v2831
    %v2877 = vxor.u32 %v2875, 2147483648
    %v2878 = vxor.u32 %v2876, 2147483648
    %v2879 = vmul.f32 %v2877, 1.442695
    %v2880 = vpow.pop %v2879
    %v2881 = vmul.f32 %v2878, 1.442695
    %v2882 = vpow.pop %v2881
    %v2883 = vadd.f32 %v2880, 1.0
    %v2884 = vadd.f32 %v2882, 1.0
    %v2885 = vrcp.pop %v2883
    %v2886 = vmul.f32 1.0, %v2885
    %v2887 = vrcp.pop %v2884
    %v2888 = vmul.f32 1.0, %v2887
    %v2889 = vadd.f32 %v2870, %v869
    %v2890 = vmul.f32 %v2886, %v2889
    %v2891 = vadd.f32 %v2793, %v2890
    %v2892 = vtanh.pop %v2891
    %v2893 = vsub.f32 %v2605, %v2892
    %v2894 = vmul.f32 %v2888, %v2893
    %v2895 = vadd.f32 %v2892, %v2894
    %v2896 = vpack.c.bf16 %v2895, %v2895
    %2897 = vmatprep.subr.bf16.mxu0 %v976
    %2898 = vmatpush1.bf16.msra.mxu0 %v975
    %2899 = vmatprep.subr.bf16.mxu0 %v979
    %2900 = vmatpush1.bf16.msra.mxu0 %v978
    %2901 = vmatprep.subr.bf16.mxu0 %v982
    %2902 = vmatpush1.bf16.msra.mxu0 %v981
    %2903 = vmatprep.subr.bf16.mxu0 %v985
    %2904 = vmatpush1.bf16.msra.mxu0 %v984
    %2905 = vmatprep.subr.bf16.mxu0 %v988
    %2906 = vmatpush1.bf16.msra.mxu0 %v987
    %2907 = vmatprep.subr.bf16.mxu0 %v991
    %2908 = vmatpush1.bf16.msra.mxu0 %v990
    %2909 = vmatprep.subr.bf16.mxu0 %v994
    %2910 = vmatpush1.bf16.msra.mxu0 %v993
    %2911 = vmatprep.subr.bf16.mxu0 %v997
    %2912 = vmatpush1.bf16.msra.mxu0 %v996
    %2913 = vmatprep.subr.bf16.mxu0 0
    %2914 = vmatpush1.bf16.msra.mxu0 0
    %2915 = vmatprep.subr.bf16.mxu0 0
    %2916 = vmatpush1.bf16.msra.mxu0 0
    %2917 = vmatprep.subr.bf16.mxu0 0
    %2918 = vmatpush1.bf16.msra.mxu0 0
    %2919 = vmatprep.subr.bf16.mxu0 0
    %2920 = vmatpush1.bf16.msra.mxu0 0
    %2921 = vmatprep.subr.bf16.mxu0 0
    %2922 = vmatpush1.bf16.msra.mxu0 0
    %2923 = vmatprep.subr.bf16.mxu0 0
    %2924 = vmatpush1.bf16.msra.mxu0 0
    %2925 = vmatprep.subr.bf16.mxu0 0
    %2926 = vmatpush1.bf16.msra.mxu0 0
    %2927 = vmatprep.subr.bf16.mxu0 0
    %2928 = vmatpush1.bf16.msra.mxu0 0
    %2929 = vmatprep.mubr.bf16.mxu0 0
    %2930 = vmatmul.mubr.bf16.gmra.mrb[0].mxu0 %v2896
    %v2931 = vpop.f32.mrb[0].mxu0
    %v2932 = vadd.f32 %v883, %v2931
    %v2933 = vpop.f32.mrb[0].mxu0
    %v2934 = vadd.f32 %v887, %v2933
    %v2935 = vpop.f32.mrb[0].mxu0
    %v2936 = vpop.f32.mrb[0].mxu0
    %2937 = vdwg.mxu0
    %2938 = vmatprep.subr.bf16.mxu0 0
    %2939 = vmatpush1.bf16.msra.mxu0 %v977
    %2940 = vmatprep.subr.bf16.mxu0 0
    %2941 = vmatpush1.bf16.msra.mxu0 %v980
    %2942 = vmatprep.subr.bf16.mxu0 0
    %2943 = vmatpush1.bf16.msra.mxu0 %v983
    %2944 = vmatprep.subr.bf16.mxu0 0
    %2945 = vmatpush1.bf16.msra.mxu0 %v986
    %2946 = vmatprep.subr.bf16.mxu0 0
    %2947 = vmatpush1.bf16.msra.mxu0 %v989
    %2948 = vmatprep.subr.bf16.mxu0 0
    %2949 = vmatpush1.bf16.msra.mxu0 %v992
    %2950 = vmatprep.subr.bf16.mxu0 0
    %2951 = vmatpush1.bf16.msra.mxu0 %v995
    %2952 = vmatprep.subr.bf16.mxu0 0
    %2953 = vmatpush1.bf16.msra.mxu0 %v998
    %2954 = vmatprep.subr.bf16.mxu0 0
    %2955 = vmatpush1.bf16.msra.mxu0 0
    %2956 = vmatprep.subr.bf16.mxu0 0
    %2957 = vmatpush1.bf16.msra.mxu0 0
    %2958 = vmatprep.subr.bf16.mxu0 0
    %2959 = vmatpush1.bf16.msra.mxu0 0
    %2960 = vmatprep.subr.bf16.mxu0 0
    %2961 = vmatpush1.bf16.msra.mxu0 0
    %2962 = vmatprep.subr.bf16.mxu0 0
    %2963 = vmatpush1.bf16.msra.mxu0 0
    %2964 = vmatprep.subr.bf16.mxu0 0
    %2965 = vmatpush1.bf16.msra.mxu0 0
    %2966 = vmatprep.subr.bf16.mxu0 0
    %2967 = vmatpush1.bf16.msra.mxu0 0
    %2968 = vmatprep.subr.bf16.mxu0 0
    %2969 = vmatpush1.bf16.msra.mxu0 0
    %2970 = vmatprep.mubr.bf16.mxu0 0
    %2971 = vmatmul.mubr.bf16.gmra.mrb[0].mxu0 %v2896
    %v2972 = vpop.f32.mrb[0].mxu0
    %v2973 = vadd.f32 %v891, %v2972
    %v2974 = vpop.f32.mrb[0].mxu0
    %v2975 = vpop.f32.mrb[0].mxu0
    %v2976 = vpop.f32.mrb[0].mxu0
    %2977 = vdwg.mxu0
    %v2978 = vpack.c.bf16 %v2790, %v2790
    %2979 = vmatprep.subr.bf16.mxu0 %v1186
    %2980 = vmatpush1.bf16.msra.mxu0 %v1185
    %2981 = vmatprep.subr.bf16.mxu0 %v1189
    %2982 = vmatpush1.bf16.msra.mxu0 %v1188
    %2983 = vmatprep.subr.bf16.mxu0 %v1192
    %2984 = vmatpush1.bf16.msra.mxu0 %v1191
    %2985 = vmatprep.subr.bf16.mxu0 %v1195
    %2986 = vmatpush1.bf16.msra.mxu0 %v1194
    %2987 = vmatprep.subr.bf16.mxu0 %v1198
    %2988 = vmatpush1.bf16.msra.mxu0 %v1197
    %2989 = vmatprep.subr.bf16.mxu0 %v1201
    %2990 = vmatpush1.bf16.msra.mxu0 %v1200
    %2991 = vmatprep.subr.bf16.mxu0 %v1204
    %2992 = vmatpush1.bf16.msra.mxu0 %v1203
    %2993 = vmatprep.subr.bf16.mxu0 %v1207
    %2994 = vmatpush1.bf16.msra.mxu0 %v1206
    %2995 = vmatprep.subr.bf16.mxu0 0
    %2996 = vmatpush1.bf16.msra.mxu0 0
    %2997 = vmatprep.subr.bf16.mxu0 0
    %2998 = vmatpush1.bf16.msra.mxu0 0
    %2999 = vmatprep.subr.bf16.mxu0 0
    %3000 = vmatpush1.bf16.msra.mxu0 0
    %3001 = vmatprep.subr.bf16.mxu0 0
    %3002 = vmatpush1.bf16.msra.mxu0 0
    %3003 = vmatprep.subr.bf16.mxu0 0
    %3004 = vmatpush1.bf16.msra.mxu0 0
    %3005 = vmatprep.subr.bf16.mxu0 0
    %3006 = vmatpush1.bf16.msra.mxu0 0
    %3007 = vmatprep.subr.bf16.mxu0 0
    %3008 = vmatpush1.bf16.msra.mxu0 0
    %3009 = vmatprep.subr.bf16.mxu0 0
    %3010 = vmatpush1.bf16.msra.mxu0 0
    %3011 = vmatprep.mubr.bf16.mxu0 0
    %3012 = vmatmul.mubr.bf16.gmra.mrb[0].mxu0 %v2978
    %v3013 = vpop.f32.mrb[0].mxu0
    %v3014 = vadd.f32 0.0, %v3013
    %v3015 = vpop.f32.mrb[0].mxu0
    %v3016 = vadd.f32 0.0, %v3015
    %v3017 = vpop.f32.mrb[0].mxu0
    %v3018 = vpop.f32.mrb[0].mxu0
    %3019 = vdwg.mxu0
    %3020 = vmatprep.subr.bf16.mxu0 0
    %3021 = vmatpush1.bf16.msra.mxu0 %v1187
    %3022 = vmatprep.subr.bf16.mxu0 0
    %3023 = vmatpush1.bf16.msra.mxu0 %v1190
    %3024 = vmatprep.subr.bf16.mxu0 0
    %3025 = vmatpush1.bf16.msra.mxu0 %v1193
    %3026 = vmatprep.subr.bf16.mxu0 0
    %3027 = vmatpush1.bf16.msra.mxu0 %v1196
    %3028 = vmatprep.subr.bf16.mxu0 0
    %3029 = vmatpush1.bf16.msra.mxu0 %v1199
    %3030 = vmatprep.subr.bf16.mxu0 0
    %3031 = vmatpush1.bf16.msra.mxu0 %v1202
    %3032 = vmatprep.subr.bf16.mxu0 0
    %3033 = vmatpush1.bf16.msra.mxu0 %v1205
    %3034 = vmatprep.subr.bf16.mxu0 0
    %3035 = vmatpush1.bf16.msra.mxu0 %v1208
    %3036 = vmatprep.subr.bf16.mxu0 0
    %3037 = vmatpush1.bf16.msra.mxu0 0
    %3038 = vmatprep.subr.bf16.mxu0 0
    %3039 = vmatpush1.bf16.msra.mxu0 0
    %3040 = vmatprep.subr.bf16.mxu0 0
    %3041 = vmatpush1.bf16.msra.mxu0 0
    %3042 = vmatprep.subr.bf16.mxu0 0
    %3043 = vmatpush1.bf16.msra.mxu0 0
    %3044 = vmatprep.subr.bf16.mxu0 0
    %3045 = vmatpush1.bf16.msra.mxu0 0
    %3046 = vmatprep.subr.bf16.mxu0 0
    %3047 = vmatpush1.bf16.msra.mxu0 0
    %3048 = vmatprep.subr.bf16.mxu0 0
    %3049 = vmatpush1.bf16.msra.mxu0 0
    %3050 = vmatprep.subr.bf16.mxu0 0
    %3051 = vmatpush1.bf16.msra.mxu0 0
    %3052 = vmatprep.mubr.bf16.mxu0 0
    %3053 = vmatmul.mubr.bf16.gmra.mrb[0].mxu0 %v2978
    %v3054 = vpop.f32.mrb[0].mxu0
    %v3055 = vadd.f32 0.0, %v3054
    %v3056 = vpop.f32.mrb[0].mxu0
    %v3057 = vpop.f32.mrb[0].mxu0
    %v3058 = vpop.f32.mrb[0].mxu0
    %3059 = vdwg.mxu0
    %v3060 = vadd.f32 %v2932, %v3014
    %v3061 = vadd.f32 %v2934, %v3016
    %v3062 = vxor.u32 %v3060, 2147483648
    %v3063 = vxor.u32 %v3061, 2147483648
    %v3064 = vmul.f32 %v3062, 1.442695
    %v3065 = vpow.pop %v3064
    %v3066 = vmul.f32 %v3063, 1.442695
    %v3067 = vpow.pop %v3066
    %v3068 = vadd.f32 %v3065, 1.0
    %v3069 = vadd.f32 %v3067, 1.0
    %v3070 = vrcp.pop %v3068
    %v3071 = vmul.f32 1.0, %v3070
    %v3072 = vrcp.pop %v3069
    %v3073 = vmul.f32 1.0, %v3072
    %v3074 = vadd.f32 %v3055, %v1332
    %v3075 = vmul.f32 %v3071, %v3074
    %v3076 = vadd.f32 %v2973, %v3075
    %v3077 = vtanh.pop %v3076
    %v3078 = vsub.f32 %v2790, %v3077
    %v3079 = vmul.f32 %v3073, %v3078
    %v3080 = vadd.f32 %v3077, %v3079
    %v3081 = vld [vmem:[#allocation2 + $0xa8] sm:$0xff]
    %v3082 = vld [vmem:[#allocation2 + $0xb0] sm:$0xff]
    %v3083 = vld [vmem:[#allocation2 + $0xb8] sm:$0xff]
    %3084 = vmatprep.subr.bf16.mxu0 %v723
    %3085 = vmatpush1.bf16.msra.mxu0 %v722
    %3086 = vmatprep.subr.bf16.mxu0 %v726
    %3087 = vmatpush1.bf16.msra.mxu0 %v725
    %3088 = vmatprep.subr.bf16.mxu0 %v729
    %3089 = vmatpush1.bf16.msra.mxu0 %v728
    %3090 = vmatprep.subr.bf16.mxu0 %v732
    %3091 = vmatpush1.bf16.msra.mxu0 %v731
    %3092 = vmatprep.subr.bf16.mxu0 %v735
    %3093 = vmatpush1.bf16.msra.mxu0 %v734
    %3094 = vmatprep.subr.bf16.mxu0 %v738
    %3095 = vmatpush1.bf16.msra.mxu0 %v737
    %3096 = vmatprep.subr.bf16.mxu0 %v741
    %3097 = vmatpush1.bf16.msra.mxu0 %v740
    %3098 = vmatprep.subr.bf16.mxu0 %v744
    %3099 = vmatpush1.bf16.msra.mxu0 %v743
    %3100 = vmatprep.subr.bf16.mxu0 0
    %3101 = vmatpush1.bf16.msra.mxu0 0
    %3102 = vmatprep.subr.bf16.mxu0 0
    %3103 = vmatpush1.bf16.msra.mxu0 0
    %3104 = vmatprep.subr.bf16.mxu0 0
    %3105 = vmatpush1.bf16.msra.mxu0 0
    %3106 = vmatprep.subr.bf16.mxu0 0
    %3107 = vmatpush1.bf16.msra.mxu0 0
    %3108 = vmatprep.subr.bf16.mxu0 0
    %3109 = vmatpush1.bf16.msra.mxu0 0
    %3110 = vmatprep.subr.bf16.mxu0 0
    %3111 = vmatpush1.bf16.msra.mxu0 0
    %3112 = vmatprep.subr.bf16.mxu0 0
    %3113 = vmatpush1.bf16.msra.mxu0 0
    %3114 = vmatprep.subr.bf16.mxu0 0
    %3115 = vmatpush1.bf16.msra.mxu0 0
    %3116 = vmatprep.mubr.bf16.mxu0 0
    %3117 = vmatmul.mubr.bf16.gmra.mrb[0].mxu0 %v2896
    %v3118 = vpop.f32.mrb[0].mxu0
    %v3119 = vadd.f32 0.0, %v3118
    %v3120 = vpop.f32.mrb[0].mxu0
    %v3121 = vadd.f32 0.0, %v3120
    %v3122 = vpop.f32.mrb[0].mxu0
    %v3123 = vpop.f32.mrb[0].mxu0
    %3124 = vdwg.mxu0
    %3125 = vmatprep.subr.bf16.mxu0 0
    %3126 = vmatpush1.bf16.msra.mxu0 %v724
    %3127 = vmatprep.subr.bf16.mxu0 0
    %3128 = vmatpush1.bf16.msra.mxu0 %v727
    %3129 = vmatprep.subr.bf16.mxu0 0
    %3130 = vmatpush1.bf16.msra.mxu0 %v730
    %3131 = vmatprep.subr.bf16.mxu0 0
    %3132 = vmatpush1.bf16.msra.mxu0 %v733
    %3133 = vmatprep.subr.bf16.mxu0 0
    %3134 = vmatpush1.bf16.msra.mxu0 %v736
    %3135 = vmatprep.subr.bf16.mxu0 0
    %3136 = vmatpush1.bf16.msra.mxu0 %v739
    %3137 = vmatprep.subr.bf16.mxu0 0
    %3138 = vmatpush1.bf16.msra.mxu0 %v742
    %3139 = vmatprep.subr.bf16.mxu0 0
    %3140 = vmatpush1.bf16.msra.mxu0 %v745
    %3141 = vmatprep.subr.bf16.mxu0 0
    %3142 = vmatpush1.bf16.msra.mxu0 0
    %3143 = vmatprep.subr.bf16.mxu0 0
    %3144 = vmatpush1.bf16.msra.mxu0 0
    %3145 = vmatprep.subr.bf16.mxu0 0
    %3146 = vmatpush1.bf16.msra.mxu0 0
    %3147 = vmatprep.subr.bf16.mxu0 0
    %3148 = vmatpush1.bf16.msra.mxu0 0
    %3149 = vmatprep.subr.bf16.mxu0 0
    %3150 = vmatpush1.bf16.msra.mxu0 0
    %3151 = vmatprep.subr.bf16.mxu0 0
    %3152 = vmatpush1.bf16.msra.mxu0 0
    %3153 = vmatprep.subr.bf16.mxu0 0
    %3154 = vmatpush1.bf16.msra.mxu0 0
    %3155 = vmatprep.subr.bf16.mxu0 0
    %3156 = vmatpush1.bf16.msra.mxu0 0
    %3157 = vmatprep.mubr.bf16.mxu0 0
    %3158 = vmatmul.mubr.bf16.gmra.mrb[0].mxu0 %v2896
    %v3159 = vpop.f32.mrb[0].mxu0
    %v3160 = vadd.f32 0.0, %v3159
    %v3161 = vpop.f32.mrb[0].mxu0
    %v3162 = vpop.f32.mrb[0].mxu0
    %v3163 = vpop.f32.mrb[0].mxu0
    %3164 = vdwg.mxu0
    %v3165 = vadd.f32 %v3081, %v3119
    %v3166 = vadd.f32 %v3082, %v3121
    %v3167 = vxor.u32 %v3165, 2147483648
    %v3168 = vxor.u32 %v3166, 2147483648
    %v3169 = vmul.f32 %v3167, 1.442695
    %v3170 = vpow.pop %v3169
    %v3171 = vmul.f32 %v3168, 1.442695
    %v3172 = vpow.pop %v3171
    %v3173 = vadd.f32 %v3170, 1.0
    %v3174 = vadd.f32 %v3172, 1.0
    %v3175 = vrcp.pop %v3173
    %v3176 = vmul.f32 1.0, %v3175
    %v3177 = vrcp.pop %v3174
    %v3178 = vmul.f32 1.0, %v3177
    %v3179 = vadd.f32 %v3160, %v869
    %v3180 = vmul.f32 %v3176, %v3179
    %v3181 = vadd.f32 %v3083, %v3180
    %v3182 = vtanh.pop %v3181
    %v3183 = vsub.f32 %v2895, %v3182
    %v3184 = vmul.f32 %v3178, %v3183
    %v3185 = vadd.f32 %v3182, %v3184
    %v3186 = vpack.c.bf16 %v3185, %v3185
    %3187 = vmatprep.subr.bf16.mxu0 %v976
    %3188 = vmatpush1.bf16.msra.mxu0 %v975
    %3189 = vmatprep.subr.bf16.mxu0 %v979
    %3190 = vmatpush1.bf16.msra.mxu0 %v978
    %3191 = vmatprep.subr.bf16.mxu0 %v982
    %3192 = vmatpush1.bf16.msra.mxu0 %v981
    %3193 = vmatprep.subr.bf16.mxu0 %v985
    %3194 = vmatpush1.bf16.msra.mxu0 %v984
    %3195 = vmatprep.subr.bf16.mxu0 %v988
    %3196 = vmatpush1.bf16.msra.mxu0 %v987
    %3197 = vmatprep.subr.bf16.mxu0 %v991
    %3198 = vmatpush1.bf16.msra.mxu0 %v990
    %3199 = vmatprep.subr.bf16.mxu0 %v994
    %3200 = vmatpush1.bf16.msra.mxu0 %v993
    %3201 = vmatprep.subr.bf16.mxu0 %v997
    %3202 = vmatpush1.bf16.msra.mxu0 %v996
    %3203 = vmatprep.subr.bf16.mxu0 0
    %3204 = vmatpush1.bf16.msra.mxu0 0
    %3205 = vmatprep.subr.bf16.mxu0 0
    %3206 = vmatpush1.bf16.msra.mxu0 0
    %3207 = vmatprep.subr.bf16.mxu0 0
    %3208 = vmatpush1.bf16.msra.mxu0 0
    %3209 = vmatprep.subr.bf16.mxu0 0
    %3210 = vmatpush1.bf16.msra.mxu0 0
    %3211 = vmatprep.subr.bf16.mxu0 0
    %3212 = vmatpush1.bf16.msra.mxu0 0
    %3213 = vmatprep.subr.bf16.mxu0 0
    %3214 = vmatpush1.bf16.msra.mxu0 0
    %3215 = vmatprep.subr.bf16.mxu0 0
    %3216 = vmatpush1.bf16.msra.mxu0 0
    %3217 = vmatprep.subr.bf16.mxu0 0
    %3218 = vmatpush1.bf16.msra.mxu0 0
    %3219 = vmatprep.mubr.bf16.mxu0 0
    %3220 = vmatmul.mubr.bf16.gmra.mrb[0].mxu0 %v3186
    %v3221 = vpop.f32.mrb[0].mxu0
    %v3222 = vadd.f32 %v883, %v3221
    %v3223 = vpop.f32.mrb[0].mxu0
    %v3224 = vadd.f32 %v887, %v3223
    %v3225 = vpop.f32.mrb[0].mxu0
    %v3226 = vpop.f32.mrb[0].mxu0
    %3227 = vdwg.mxu0
    %3228 = vmatprep.subr.bf16.mxu0 0
    %3229 = vmatpush1.bf16.msra.mxu0 %v977
    %3230 = vmatprep.subr.bf16.mxu0 0
    %3231 = vmatpush1.bf16.msra.mxu0 %v980
    %3232 = vmatprep.subr.bf16.mxu0 0
    %3233 = vmatpush1.bf16.msra.mxu0 %v983
    %3234 = vmatprep.subr.bf16.mxu0 0
    %3235 = vmatpush1.bf16.msra.mxu0 %v986
    %3236 = vmatprep.subr.bf16.mxu0 0
    %3237 = vmatpush1.bf16.msra.mxu0 %v989
    %3238 = vmatprep.subr.bf16.mxu0 0
    %3239 = vmatpush1.bf16.msra.mxu0 %v992
    %3240 = vmatprep.subr.bf16.mxu0 0
    %3241 = vmatpush1.bf16.msra.mxu0 %v995
    %3242 = vmatprep.subr.bf16.mxu0 0
    %3243 = vmatpush1.bf16.msra.mxu0 %v998
    %3244 = vmatprep.subr.bf16.mxu0 0
    %3245 = vmatpush1.bf16.msra.mxu0 0
    %3246 = vmatprep.subr.bf16.mxu0 0
    %3247 = vmatpush1.bf16.msra.mxu0 0
    %3248 = vmatprep.subr.bf16.mxu0 0
    %3249 = vmatpush1.bf16.msra.mxu0 0
    %3250 = vmatprep.subr.bf16.mxu0 0
    %3251 = vmatpush1.bf16.msra.mxu0 0
    %3252 = vmatprep.subr.bf16.mxu0 0
    %3253 = vmatpush1.bf16.msra.mxu0 0
    %3254 = vmatprep.subr.bf16.mxu0 0
    %3255 = vmatpush1.bf16.msra.mxu0 0
    %3256 = vmatprep.subr.bf16.mxu0 0
    %3257 = vmatpush1.bf16.msra.mxu0 0
    %3258 = vmatprep.subr.bf16.mxu0 0
    %3259 = vmatpush1.bf16.msra.mxu0 0
    %3260 = vmatprep.mubr.bf16.mxu0 0
    %3261 = vmatmul.mubr.bf16.gmra.mrb[0].mxu0 %v3186
    %v3262 = vpop.f32.mrb[0].mxu0
    %v3263 = vadd.f32 %v891, %v3262
    %v3264 = vpop.f32.mrb[0].mxu0
    %v3265 = vpop.f32.mrb[0].mxu0
    %v3266 = vpop.f32.mrb[0].mxu0
    %3267 = vdwg.mxu0
    %v3268 = vpack.c.bf16 %v3080, %v3080
    %3269 = vmatprep.subr.bf16.mxu0 %v1186
    %3270 = vmatpush1.bf16.msra.mxu0 %v1185
    %3271 = vmatprep.subr.bf16.mxu0 %v1189
    %3272 = vmatpush1.bf16.msra.mxu0 %v1188
    %3273 = vmatprep.subr.bf16.mxu0 %v1192
    %3274 = vmatpush1.bf16.msra.mxu0 %v1191
    %3275 = vmatprep.subr.bf16.mxu0 %v1195
    %3276 = vmatpush1.bf16.msra.mxu0 %v1194
    %3277 = vmatprep.subr.bf16.mxu0 %v1198
    %3278 = vmatpush1.bf16.msra.mxu0 %v1197
    %3279 = vmatprep.subr.bf16.mxu0 %v1201
    %3280 = vmatpush1.bf16.msra.mxu0 %v1200
    %3281 = vmatprep.subr.bf16.mxu0 %v1204
    %3282 = vmatpush1.bf16.msra.mxu0 %v1203
    %3283 = vmatprep.subr.bf16.mxu0 %v1207
    %3284 = vmatpush1.bf16.msra.mxu0 %v1206
    %3285 = vmatprep.subr.bf16.mxu0 0
    %3286 = vmatpush1.bf16.msra.mxu0 0
    %3287 = vmatprep.subr.bf16.mxu0 0
    %3288 = vmatpush1.bf16.msra.mxu0 0
    %3289 = vmatprep.subr.bf16.mxu0 0
    %3290 = vmatpush1.bf16.msra.mxu0 0
    %3291 = vmatprep.subr.bf16.mxu0 0
    %3292 = vmatpush1.bf16.msra.mxu0 0
    %3293 = vmatprep.subr.bf16.mxu0 0
    %3294 = vmatpush1.bf16.msra.mxu0 0
    %3295 = vmatprep.subr.bf16.mxu0 0
    %3296 = vmatpush1.bf16.msra.mxu0 0
    %3297 = vmatprep.subr.bf16.mxu0 0
    %3298 = vmatpush1.bf16.msra.mxu0 0
    %3299 = vmatprep.subr.bf16.mxu0 0
    %3300 = vmatpush1.bf16.msra.mxu0 0
    %3301 = vmatprep.mubr.bf16.mxu0 0
    %3302 = vmatmul.mubr.bf16.gmra.mrb[0].mxu0 %v3268
    %v3303 = vpop.f32.mrb[0].mxu0
    %v3304 = vadd.f32 0.0, %v3303
    %v3305 = vpop.f32.mrb[0].mxu0
    %v3306 = vadd.f32 0.0, %v3305
    %v3307 = vpop.f32.mrb[0].mxu0
    %v3308 = vpop.f32.mrb[0].mxu0
    %3309 = vdwg.mxu0
    %3310 = vmatprep.subr.bf16.mxu0 0
    %3311 = vmatpush1.bf16.msra.mxu0 %v1187
    %3312 = vmatprep.subr.bf16.mxu0 0
    %3313 = vmatpush1.bf16.msra.mxu0 %v1190
    %3314 = vmatprep.subr.bf16.mxu0 0
    %3315 = vmatpush1.bf16.msra.mxu0 %v1193
    %3316 = vmatprep.subr.bf16.mxu0 0
    %3317 = vmatpush1.bf16.msra.mxu0 %v1196
    %3318 = vmatprep.subr.bf16.mxu0 0
    %3319 = vmatpush1.bf16.msra.mxu0 %v1199
    %3320 = vmatprep.subr.bf16.mxu0 0
    %3321 = vmatpush1.bf16.msra.mxu0 %v1202
    %3322 = vmatprep.subr.bf16.mxu0 0
    %3323 = vmatpush1.bf16.msra.mxu0 %v1205
    %3324 = vmatprep.subr.bf16.mxu0 0
    %3325 = vmatpush1.bf16.msra.mxu0 %v1208
    %3326 = vmatprep.subr.bf16.mxu0 0
    %3327 = vmatpush1.bf16.msra.mxu0 0
    %3328 = vmatprep.subr.bf16.mxu0 0
    %3329 = vmatpush1.bf16.msra.mxu0 0
    %3330 = vmatprep.subr.bf16.mxu0 0
    %3331 = vmatpush1.bf16.msra.mxu0 0
    %3332 = vmatprep.subr.bf16.mxu0 0
    %3333 = vmatpush1.bf16.msra.mxu0 0
    %3334 = vmatprep.subr.bf16.mxu0 0
    %3335 = vmatpush1.bf16.msra.mxu0 0
    %3336 = vmatprep.subr.bf16.mxu0 0
    %3337 = vmatpush1.bf16.msra.mxu0 0
    %3338 = vmatprep.subr.bf16.mxu0 0
    %3339 = vmatpush1.bf16.msra.mxu0 0
    %3340 = vmatprep.subr.bf16.mxu0 0
    %3341 = vmatpush1.bf16.msra.mxu0 0
    %3342 = vmatprep.mubr.bf16.mxu0 0
    %3343 = vmatmul.mubr.bf16.gmra.mrb[0].mxu0 %v3268
    %v3344 = vpop.f32.mrb[0].mxu0
    %v3345 = vadd.f32 0.0, %v3344
    %v3346 = vpop.f32.mrb[0].mxu0
    %v3347 = vpop.f32.mrb[0].mxu0
    %v3348 = vpop.f32.mrb[0].mxu0
    %3349 = vdwg.mxu0
    %v3350 = vadd.f32 %v3222, %v3304
    %v3351 = vadd.f32 %v3224, %v3306
    %v3352 = vxor.u32 %v3350, 2147483648
    %v3353 = vxor.u32 %v3351, 2147483648
    %v3354 = vmul.f32 %v3352, 1.442695
    %v3355 = vpow.pop %v3354
    %v3356 = vmul.f32 %v3353, 1.442695
    %v3357 = vpow.pop %v3356
    %v3358 = vadd.f32 %v3355, 1.0
    %v3359 = vadd.f32 %v3357, 1.0
    %v3360 = vrcp.pop %v3358
    %v3361 = vmul.f32 1.0, %v3360
    %v3362 = vrcp.pop %v3359
    %v3363 = vmul.f32 1.0, %v3362
    %v3364 = vadd.f32 %v3345, %v1332
    %v3365 = vmul.f32 %v3361, %v3364
    %v3366 = vadd.f32 %v3263, %v3365
    %v3367 = vtanh.pop %v3366
    %v3368 = vsub.f32 %v3080, %v3367
    %v3369 = vmul.f32 %v3363, %v3368
    %v3370 = vadd.f32 %v3367, %v3369
    %v3371 = vld [vmem:[#allocation2 + $0xc0] sm:$0xff]
    %v3372 = vld [vmem:[#allocation2 + $0xc8] sm:$0xff]
    %v3373 = vld [vmem:[#allocation2 + $0xd0] sm:$0xff]
    %3374 = vmatprep.subr.bf16.mxu0 %v723
    %3375 = vmatpush1.bf16.msra.mxu0 %v722
    %3376 = vmatprep.subr.bf16.mxu0 %v726
    %3377 = vmatpush1.bf16.msra.mxu0 %v725
    %3378 = vmatprep.subr.bf16.mxu0 %v729
    %3379 = vmatpush1.bf16.msra.mxu0 %v728
    %3380 = vmatprep.subr.bf16.mxu0 %v732
    %3381 = vmatpush1.bf16.msra.mxu0 %v731
    %3382 = vmatprep.subr.bf16.mxu0 %v735
    %3383 = vmatpush1.bf16.msra.mxu0 %v734
    %3384 = vmatprep.subr.bf16.mxu0 %v738
    %3385 = vmatpush1.bf16.msra.mxu0 %v737
    %3386 = vmatprep.subr.bf16.mxu0 %v741
    %3387 = vmatpush1.bf16.msra.mxu0 %v740
    %3388 = vmatprep.subr.bf16.mxu0 %v744
    %3389 = vmatpush1.bf16.msra.mxu0 %v743
    %3390 = vmatprep.subr.bf16.mxu0 0
    %3391 = vmatpush1.bf16.msra.mxu0 0
    %3392 = vmatprep.subr.bf16.mxu0 0
    %3393 = vmatpush1.bf16.msra.mxu0 0
    %3394 = vmatprep.subr.bf16.mxu0 0
    %3395 = vmatpush1.bf16.msra.mxu0 0
    %3396 = vmatprep.subr.bf16.mxu0 0
    %3397 = vmatpush1.bf16.msra.mxu0 0
    %3398 = vmatprep.subr.bf16.mxu0 0
    %3399 = vmatpush1.bf16.msra.mxu0 0
    %3400 = vmatprep.subr.bf16.mxu0 0
    %3401 = vmatpush1.bf16.msra.mxu0 0
    %3402 = vmatprep.subr.bf16.mxu0 0
    %3403 = vmatpush1.bf16.msra.mxu0 0
    %3404 = vmatprep.subr.bf16.mxu0 0
    %3405 = vmatpush1.bf16.msra.mxu0 0
    %3406 = vmatprep.mubr.bf16.mxu0 0
    %3407 = vmatmul.mubr.bf16.gmra.mrb[0].mxu0 %v3186
    %v3408 = vpop.f32.mrb[0].mxu0
    %v3409 = vadd.f32 0.0, %v3408
    %v3410 = vpop.f32.mrb[0].mxu0
    %v3411 = vadd.f32 0.0, %v3410
    %v3412 = vpop.f32.mrb[0].mxu0
    %v3413 = vpop.f32.mrb[0].mxu0
    %3414 = vdwg.mxu0
    %3415 = vmatprep.subr.bf16.mxu0 0
    %3416 = vmatpush1.bf16.msra.mxu0 %v724
    %3417 = vmatprep.subr.bf16.mxu0 0
    %3418 = vmatpush1.bf16.msra.mxu0 %v727
    %3419 = vmatprep.subr.bf16.mxu0 0
    %3420 = vmatpush1.bf16.msra.mxu0 %v730
    %3421 = vmatprep.subr.bf16.mxu0 0
    %3422 = vmatpush1.bf16.msra.mxu0 %v733
    %3423 = vmatprep.subr.bf16.mxu0 0
    %3424 = vmatpush1.bf16.msra.mxu0 %v736
    %3425 = vmatprep.subr.bf16.mxu0 0
    %3426 = vmatpush1.bf16.msra.mxu0 %v739
    %3427 = vmatprep.subr.bf16.mxu0 0
    %3428 = vmatpush1.bf16.msra.mxu0 %v742
    %3429 = vmatprep.subr.bf16.mxu0 0
    %3430 = vmatpush1.bf16.msra.mxu0 %v745
    %3431 = vmatprep.subr.bf16.mxu0 0
    %3432 = vmatpush1.bf16.msra.mxu0 0
    %3433 = vmatprep.subr.bf16.mxu0 0
    %3434 = vmatpush1.bf16.msra.mxu0 0
    %3435 = vmatprep.subr.bf16.mxu0 0
    %3436 = vmatpush1.bf16.msra.mxu0 0
    %3437 = vmatprep.subr.bf16.mxu0 0
    %3438 = vmatpush1.bf16.msra.mxu0 0
    %3439 = vmatprep.subr.bf16.mxu0 0
    %3440 = vmatpush1.bf16.msra.mxu0 0
    %3441 = vmatprep.subr.bf16.mxu0 0
    %3442 = vmatpush1.bf16.msra.mxu0 0
    %3443 = vmatprep.subr.bf16.mxu0 0
    %3444 = vmatpush1.bf16.msra.mxu0 0
    %3445 = vmatprep.subr.bf16.mxu0 0
    %3446 = vmatpush1.bf16.msra.mxu0 0
    %3447 = vmatprep.mubr.bf16.mxu0 0
    %3448 = vmatmul.mubr.bf16.gmra.mrb[0].mxu0 %v3186
    %v3449 = vpop.f32.mrb[0].mxu0
    %v3450 = vadd.f32 0.0, %v3449
    %v3451 = vpop.f32.mrb[0].mxu0
    %v3452 = vpop.f32.mrb[0].mxu0
    %v3453 = vpop.f32.mrb[0].mxu0
    %3454 = vdwg.mxu0
    %v3455 = vadd.f32 %v3371, %v3409
    %v3456 = vadd.f32 %v3372, %v3411
    %v3457 = vxor.u32 %v3455, 2147483648
    %v3458 = vxor.u32 %v3456, 2147483648
    %v3459 = vmul.f32 %v3457, 1.442695
    %v3460 = vpow.pop %v3459
    %v3461 = vmul.f32 %v3458, 1.442695
    %v3462 = vpow.pop %v3461
    %v3463 = vadd.f32 %v3460, 1.0
    %v3464 = vadd.f32 %v3462, 1.0
    %v3465 = vrcp.pop %v3463
    %v3466 = vmul.f32 1.0, %v3465
    %v3467 = vrcp.pop %v3464
    %v3468 = vmul.f32 1.0, %v3467
    %v3469 = vadd.f32 %v3450, %v869
    %v3470 = vmul.f32 %v3466, %v3469
    %v3471 = vadd.f32 %v3373, %v3470
    %v3472 = vtanh.pop %v3471
    %v3473 = vsub.f32 %v3185, %v3472
    %v3474 = vmul.f32 %v3468, %v3473
    %v3475 = vadd.f32 %v3472, %v3474
    %v3476 = vpack.c.bf16 %v3475, %v3475
    %3477 = vmatprep.subr.bf16.mxu0 %v976
    %3478 = vmatpush1.bf16.msra.mxu0 %v975
    %3479 = vmatprep.subr.bf16.mxu0 %v979
    %3480 = vmatpush1.bf16.msra.mxu0 %v978
    %3481 = vmatprep.subr.bf16.mxu0 %v982
    %3482 = vmatpush1.bf16.msra.mxu0 %v981
    %3483 = vmatprep.subr.bf16.mxu0 %v985
    %3484 = vmatpush1.bf16.msra.mxu0 %v984
    %3485 = vmatprep.subr.bf16.mxu0 %v988
    %3486 = vmatpush1.bf16.msra.mxu0 %v987
    %3487 = vmatprep.subr.bf16.mxu0 %v991
    %3488 = vmatpush1.bf16.msra.mxu0 %v990
    %3489 = vmatprep.subr.bf16.mxu0 %v994
    %3490 = vmatpush1.bf16.msra.mxu0 %v993
    %3491 = vmatprep.subr.bf16.mxu0 %v997
    %3492 = vmatpush1.bf16.msra.mxu0 %v996
    %3493 = vmatprep.subr.bf16.mxu0 0
    %3494 = vmatpush1.bf16.msra.mxu0 0
    %3495 = vmatprep.subr.bf16.mxu0 0
    %3496 = vmatpush1.bf16.msra.mxu0 0
    %3497 = vmatprep.subr.bf16.mxu0 0
    %3498 = vmatpush1.bf16.msra.mxu0 0
    %3499 = vmatprep.subr.bf16.mxu0 0
    %3500 = vmatpush1.bf16.msra.mxu0 0
    %3501 = vmatprep.subr.bf16.mxu0 0
    %3502 = vmatpush1.bf16.msra.mxu0 0
    %3503 = vmatprep.subr.bf16.mxu0 0
    %3504 = vmatpush1.bf16.msra.mxu0 0
    %3505 = vmatprep.subr.bf16.mxu0 0
    %3506 = vmatpush1.bf16.msra.mxu0 0
    %3507 = vmatprep.subr.bf16.mxu0 0
    %3508 = vmatpush1.bf16.msra.mxu0 0
    %3509 = vmatprep.mubr.bf16.mxu0 0
    %3510 = vmatmul.mubr.bf16.gmra.mrb[0].mxu0 %v3476
    %v3511 = vpop.f32.mrb[0].mxu0
    %v3512 = vadd.f32 %v883, %v3511
    %v3513 = vpop.f32.mrb[0].mxu0
    %v3514 = vadd.f32 %v887, %v3513
    %v3515 = vpop.f32.mrb[0].mxu0
    %v3516 = vpop.f32.mrb[0].mxu0
    %3517 = vdwg.mxu0
    %3518 = vmatprep.subr.bf16.mxu0 0
    %3519 = vmatpush1.bf16.msra.mxu0 %v977
    %3520 = vmatprep.subr.bf16.mxu0 0
    %3521 = vmatpush1.bf16.msra.mxu0 %v980
    %3522 = vmatprep.subr.bf16.mxu0 0
    %3523 = vmatpush1.bf16.msra.mxu0 %v983
    %3524 = vmatprep.subr.bf16.mxu0 0
    %3525 = vmatpush1.bf16.msra.mxu0 %v986
    %3526 = vmatprep.subr.bf16.mxu0 0
    %3527 = vmatpush1.bf16.msra.mxu0 %v989
    %3528 = vmatprep.subr.bf16.mxu0 0
    %3529 = vmatpush1.bf16.msra.mxu0 %v992
    %3530 = vmatprep.subr.bf16.mxu0 0
    %3531 = vmatpush1.bf16.msra.mxu0 %v995
    %3532 = vmatprep.subr.bf16.mxu0 0
    %3533 = vmatpush1.bf16.msra.mxu0 %v998
    %3534 = vmatprep.subr.bf16.mxu0 0
    %3535 = vmatpush1.bf16.msra.mxu0 0
    %3536 = vmatprep.subr.bf16.mxu0 0
    %3537 = vmatpush1.bf16.msra.mxu0 0
    %3538 = vmatprep.subr.bf16.mxu0 0
    %3539 = vmatpush1.bf16.msra.mxu0 0
    %3540 = vmatprep.subr.bf16.mxu0 0
    %3541 = vmatpush1.bf16.msra.mxu0 0
    %3542 = vmatprep.subr.bf16.mxu0 0
    %3543 = vmatpush1.bf16.msra.mxu0 0
    %3544 = vmatprep.subr.bf16.mxu0 0
    %3545 = vmatpush1.bf16.msra.mxu0 0
    %3546 = vmatprep.subr.bf16.mxu0 0
    %3547 = vmatpush1.bf16.msra.mxu0 0
    %3548 = vmatprep.subr.bf16.mxu0 0
    %3549 = vmatpush1.bf16.msra.mxu0 0
    %3550 = vmatprep.mubr.bf16.mxu0 0
    %3551 = vmatmul.mubr.bf16.gmra.mrb[0].mxu0 %v3476
    %v3552 = vpop.f32.mrb[0].mxu0
    %v3553 = vadd.f32 %v891, %v3552
    %v3554 = vpop.f32.mrb[0].mxu0
    %v3555 = vpop.f32.mrb[0].mxu0
    %v3556 = vpop.f32.mrb[0].mxu0
    %3557 = vdwg.mxu0
    %v3558 = vpack.c.bf16 %v3370, %v3370
    %3559 = vmatprep.subr.bf16.mxu0 %v1186
    %3560 = vmatpush1.bf16.msra.mxu0 %v1185
    %3561 = vmatprep.subr.bf16.mxu0 %v1189
    %3562 = vmatpush1.bf16.msra.mxu0 %v1188
    %3563 = vmatprep.subr.bf16.mxu0 %v1192
    %3564 = vmatpush1.bf16.msra.mxu0 %v1191
    %3565 = vmatprep.subr.bf16.mxu0 %v1195
    %3566 = vmatpush1.bf16.msra.mxu0 %v1194
    %3567 = vmatprep.subr.bf16.mxu0 %v1198
    %3568 = vmatpush1.bf16.msra.mxu0 %v1197
    %3569 = vmatprep.subr.bf16.mxu0 %v1201
    %3570 = vmatpush1.bf16.msra.mxu0 %v1200
    %3571 = vmatprep.subr.bf16.mxu0 %v1204
    %3572 = vmatpush1.bf16.msra.mxu0 %v1203
    %3573 = vmatprep.subr.bf16.mxu0 %v1207
    %3574 = vmatpush1.bf16.msra.mxu0 %v1206
    %3575 = vmatprep.subr.bf16.mxu0 0
    %3576 = vmatpush1.bf16.msra.mxu0 0
    %3577 = vmatprep.subr.bf16.mxu0 0
    %3578 = vmatpush1.bf16.msra.mxu0 0
    %3579 = vmatprep.subr.bf16.mxu0 0
    %3580 = vmatpush1.bf16.msra.mxu0 0
    %3581 = vmatprep.subr.bf16.mxu0 0
    %3582 = vmatpush1.bf16.msra.mxu0 0
    %3583 = vmatprep.subr.bf16.mxu0 0
    %3584 = vmatpush1.bf16.msra.mxu0 0
    %3585 = vmatprep.subr.bf16.mxu0 0
    %3586 = vmatpush1.bf16.msra.mxu0 0
    %3587 = vmatprep.subr.bf16.mxu0 0
    %3588 = vmatpush1.bf16.msra.mxu0 0
    %3589 = vmatprep.subr.bf16.mxu0 0
    %3590 = vmatpush1.bf16.msra.mxu0 0
    %3591 = vmatprep.mubr.bf16.mxu0 0
    %3592 = vmatmul.mubr.bf16.gmra.mrb[0].mxu0 %v3558
    %v3593 = vpop.f32.mrb[0].mxu0
    %v3594 = vadd.f32 0.0, %v3593
    %v3595 = vpop.f32.mrb[0].mxu0
    %v3596 = vadd.f32 0.0, %v3595
    %v3597 = vpop.f32.mrb[0].mxu0
    %v3598 = vpop.f32.mrb[0].mxu0
    %3599 = vdwg.mxu0
    %3600 = vmatprep.subr.bf16.mxu0 0
    %3601 = vmatpush1.bf16.msra.mxu0 %v1187
    %3602 = vmatprep.subr.bf16.mxu0 0
    %3603 = vmatpush1.bf16.msra.mxu0 %v1190
    %3604 = vmatprep.subr.bf16.mxu0 0
    %3605 = vmatpush1.bf16.msra.mxu0 %v1193
    %3606 = vmatprep.subr.bf16.mxu0 0
    %3607 = vmatpush1.bf16.msra.mxu0 %v1196
    %3608 = vmatprep.subr.bf16.mxu0 0
    %3609 = vmatpush1.bf16.msra.mxu0 %v1199
    %3610 = vmatprep.subr.bf16.mxu0 0
    %3611 = vmatpush1.bf16.msra.mxu0 %v1202
    %3612 = vmatprep.subr.bf16.mxu0 0
    %3613 = vmatpush1.bf16.msra.mxu0 %v1205
    %3614 = vmatprep.subr.bf16.mxu0 0
    %3615 = vmatpush1.bf16.msra.mxu0 %v1208
    %3616 = vmatprep.subr.bf16.mxu0 0
    %3617 = vmatpush1.bf16.msra.mxu0 0
    %3618 = vmatprep.subr.bf16.mxu0 0
    %3619 = vmatpush1.bf16.msra.mxu0 0
    %3620 = vmatprep.subr.bf16.mxu0 0
    %3621 = vmatpush1.bf16.msra.mxu0 0
    %3622 = vmatprep.subr.bf16.mxu0 0
    %3623 = vmatpush1.bf16.msra.mxu0 0
    %3624 = vmatprep.subr.bf16.mxu0 0
    %3625 = vmatpush1.bf16.msra.mxu0 0
    %3626 = vmatprep.subr.bf16.mxu0 0
    %3627 = vmatpush1.bf16.msra.mxu0 0
    %3628 = vmatprep.subr.bf16.mxu0 0
    %3629 = vmatpush1.bf16.msra.mxu0 0
    %3630 = vmatprep.subr.bf16.mxu0 0
    %3631 = vmatpush1.bf16.msra.mxu0 0
    %3632 = vmatprep.mubr.bf16.mxu0 0
    %3633 = vmatmul.mubr.bf16.gmra.mrb[0].mxu0 %v3558
    %v3634 = vpop.f32.mrb[0].mxu0
    %v3635 = vadd.f32 0.0, %v3634
    %v3636 = vpop.f32.mrb[0].mxu0
    %v3637 = vpop.f32.mrb[0].mxu0
    %v3638 = vpop.f32.mrb[0].mxu0
    %3639 = vdwg.mxu0
    %v3640 = vadd.f32 %v3512, %v3594
    %v3641 = vadd.f32 %v3514, %v3596
    %v3642 = vxor.u32 %v3640, 2147483648
    %v3643 = vxor.u32 %v3641, 2147483648
    %v3644 = vmul.f32 %v3642, 1.442695
    %v3645 = vpow.pop %v3644
    %v3646 = vmul.f32 %v3643, 1.442695
    %v3647 = vpow.pop %v3646
    %v3648 = vadd.f32 %v3645, 1.0
    %v3649 = vadd.f32 %v3647, 1.0
    %v3650 = vrcp.pop %v3648
    %v3651 = vmul.f32 1.0, %v3650
    %v3652 = vrcp.pop %v3649
    %v3653 = vmul.f32 1.0, %v3652
    %v3654 = vadd.f32 %v3635, %v1332
    %v3655 = vmul.f32 %v3651, %v3654
    %v3656 = vadd.f32 %v3553, %v3655
    %v3657 = vtanh.pop %v3656
    %v3658 = vsub.f32 %v3370, %v3657
    %v3659 = vmul.f32 %v3653, %v3658
    %v3660 = vadd.f32 %v3657, %v3659
    %v3661 = vld [vmem:[#allocation2 + $0xd8] sm:$0xff]
    %v3662 = vld [vmem:[#allocation2 + $0xe0] sm:$0xff]
    %v3663 = vld [vmem:[#allocation2 + $0xe8] sm:$0xff]
    %3664 = vmatprep.subr.bf16.mxu0 %v723
    %3665 = vmatpush1.bf16.msra.mxu0 %v722
    %3666 = vmatprep.subr.bf16.mxu0 %v726
    %3667 = vmatpush1.bf16.msra.mxu0 %v725
    %3668 = vmatprep.subr.bf16.mxu0 %v729
    %3669 = vmatpush1.bf16.msra.mxu0 %v728
    %3670 = vmatprep.subr.bf16.mxu0 %v732
    %3671 = vmatpush1.bf16.msra.mxu0 %v731
    %3672 = vmatprep.subr.bf16.mxu0 %v735
    %3673 = vmatpush1.bf16.msra.mxu0 %v734
    %3674 = vmatprep.subr.bf16.mxu0 %v738
    %3675 = vmatpush1.bf16.msra.mxu0 %v737
    %3676 = vmatprep.subr.bf16.mxu0 %v741
    %3677 = vmatpush1.bf16.msra.mxu0 %v740
    %3678 = vmatprep.subr.bf16.mxu0 %v744
    %3679 = vmatpush1.bf16.msra.mxu0 %v743
    %3680 = vmatprep.subr.bf16.mxu0 0
    %3681 = vmatpush1.bf16.msra.mxu0 0
    %3682 = vmatprep.subr.bf16.mxu0 0
    %3683 = vmatpush1.bf16.msra.mxu0 0
    %3684 = vmatprep.subr.bf16.mxu0 0
    %3685 = vmatpush1.bf16.msra.mxu0 0
    %3686 = vmatprep.subr.bf16.mxu0 0
    %3687 = vmatpush1.bf16.msra.mxu0 0
    %3688 = vmatprep.subr.bf16.mxu0 0
    %3689 = vmatpush1.bf16.msra.mxu0 0
    %3690 = vmatprep.subr.bf16.mxu0 0
    %3691 = vmatpush1.bf16.msra.mxu0 0
    %3692 = vmatprep.subr.bf16.mxu0 0
    %3693 = vmatpush1.bf16.msra.mxu0 0
    %3694 = vmatprep.subr.bf16.mxu0 0
    %3695 = vmatpush1.bf16.msra.mxu0 0
    %3696 = vmatprep.mubr.bf16.mxu0 0
    %3697 = vmatmul.mubr.bf16.gmra.mrb[0].mxu0 %v3476
    %v3698 = vpop.f32.mrb[0].mxu0
    %v3699 = vadd.f32 0.0, %v3698
    %v3700 = vpop.f32.mrb[0].mxu0
    %v3701 = vadd.f32 0.0, %v3700
    %v3702 = vpop.f32.mrb[0].mxu0
    %v3703 = vpop.f32.mrb[0].mxu0
    %3704 = vdwg.mxu0
    %3705 = vmatprep.subr.bf16.mxu0 0
    %3706 = vmatpush1.bf16.msra.mxu0 %v724
    %3707 = vmatprep.subr.bf16.mxu0 0
    %3708 = vmatpush1.bf16.msra.mxu0 %v727
    %3709 = vmatprep.subr.bf16.mxu0 0
    %3710 = vmatpush1.bf16.msra.mxu0 %v730
    %3711 = vmatprep.subr.bf16.mxu0 0
    %3712 = vmatpush1.bf16.msra.mxu0 %v733
    %3713 = vmatprep.subr.bf16.mxu0 0
    %3714 = vmatpush1.bf16.msra.mxu0 %v736
    %3715 = vmatprep.subr.bf16.mxu0 0
    %3716 = vmatpush1.bf16.msra.mxu0 %v739
    %3717 = vmatprep.subr.bf16.mxu0 0
    %3718 = vmatpush1.bf16.msra.mxu0 %v742
    %3719 = vmatprep.subr.bf16.mxu0 0
    %3720 = vmatpush1.bf16.msra.mxu0 %v745
    %3721 = vmatprep.subr.bf16.mxu0 0
    %3722 = vmatpush1.bf16.msra.mxu0 0
    %3723 = vmatprep.subr.bf16.mxu0 0
    %3724 = vmatpush1.bf16.msra.mxu0 0
    %3725 = vmatprep.subr.bf16.mxu0 0
    %3726 = vmatpush1.bf16.msra.mxu0 0
    %3727 = vmatprep.subr.bf16.mxu0 0
    %3728 = vmatpush1.bf16.msra.mxu0 0
    %3729 = vmatprep.subr.bf16.mxu0 0
    %3730 = vmatpush1.bf16.msra.mxu0 0
    %3731 = vmatprep.subr.bf16.mxu0 0
    %3732 = vmatpush1.bf16.msra.mxu0 0
    %3733 = vmatprep.subr.bf16.mxu0 0
    %3734 = vmatpush1.bf16.msra.mxu0 0
    %3735 = vmatprep.subr.bf16.mxu0 0
    %3736 = vmatpush1.bf16.msra.mxu0 0
    %3737 = vmatprep.mubr.bf16.mxu0 0
    %3738 = vmatmul.mubr.bf16.gmra.mrb[0].mxu0 %v3476
    %v3739 = vpop.f32.mrb[0].mxu0
    %v3740 = vadd.f32 0.0, %v3739
    %v3741 = vpop.f32.mrb[0].mxu0
    %v3742 = vpop.f32.mrb[0].mxu0
    %v3743 = vpop.f32.mrb[0].mxu0
    %3744 = vdwg.mxu0
    %v3745 = vadd.f32 %v3661, %v3699
    %v3746 = vadd.f32 %v3662, %v3701
    %v3747 = vxor.u32 %v3745, 2147483648
    %v3748 = vxor.u32 %v3746, 2147483648
    %v3749 = vmul.f32 %v3747, 1.442695
    %v3750 = vpow.pop %v3749
    %v3751 = vmul.f32 %v3748, 1.442695
    %v3752 = vpow.pop %v3751
    %v3753 = vadd.f32 %v3750, 1.0
    %v3754 = vadd.f32 %v3752, 1.0
    %v3755 = vrcp.pop %v3753
    %v3756 = vmul.f32 1.0, %v3755
    %v3757 = vrcp.pop %v3754
    %v3758 = vmul.f32 1.0, %v3757
    %v3759 = vadd.f32 %v3740, %v869
    %v3760 = vmul.f32 %v3756, %v3759
    %v3761 = vadd.f32 %v3663, %v3760
    %v3762 = vtanh.pop %v3761
    %v3763 = vsub.f32 %v3475, %v3762
    %v3764 = vmul.f32 %v3758, %v3763
    %v3765 = vadd.f32 %v3762, %v3764
    %v3766 = vpack.c.bf16 %v3765, %v3765
    %3767 = vmatprep.subr.bf16.mxu0 %v976
    %3768 = vmatpush1.bf16.msra.mxu0 %v975
    %3769 = vmatprep.subr.bf16.mxu0 %v979
    %3770 = vmatpush1.bf16.msra.mxu0 %v978
    %3771 = vmatprep.subr.bf16.mxu0 %v982
    %3772 = vmatpush1.bf16.msra.mxu0 %v981
    %3773 = vmatprep.subr.bf16.mxu0 %v985
    %3774 = vmatpush1.bf16.msra.mxu0 %v984
    %3775 = vmatprep.subr.bf16.mxu0 %v988
    %3776 = vmatpush1.bf16.msra.mxu0 %v987
    %3777 = vmatprep.subr.bf16.mxu0 %v991
    %3778 = vmatpush1.bf16.msra.mxu0 %v990
    %3779 = vmatprep.subr.bf16.mxu0 %v994
    %3780 = vmatpush1.bf16.msra.mxu0 %v993
    %3781 = vmatprep.subr.bf16.mxu0 %v997
    %3782 = vmatpush1.bf16.msra.mxu0 %v996
    %3783 = vmatprep.subr.bf16.mxu0 0
    %3784 = vmatpush1.bf16.msra.mxu0 0
    %3785 = vmatprep.subr.bf16.mxu0 0
    %3786 = vmatpush1.bf16.msra.mxu0 0
    %3787 = vmatprep.subr.bf16.mxu0 0
    %3788 = vmatpush1.bf16.msra.mxu0 0
    %3789 = vmatprep.subr.bf16.mxu0 0
    %3790 = vmatpush1.bf16.msra.mxu0 0
    %3791 = vmatprep.subr.bf16.mxu0 0
    %3792 = vmatpush1.bf16.msra.mxu0 0
    %3793 = vmatprep.subr.bf16.mxu0 0
    %3794 = vmatpush1.bf16.msra.mxu0 0
    %3795 = vmatprep.subr.bf16.mxu0 0
    %3796 = vmatpush1.bf16.msra.mxu0 0
    %3797 = vmatprep.subr.bf16.mxu0 0
    %3798 = vmatpush1.bf16.msra.mxu0 0
    %3799 = vmatprep.mubr.bf16.mxu0 0
    %3800 = vmatmul.mubr.bf16.gmra.mrb[0].mxu0 %v3766
    %v3801 = vpop.f32.mrb[0].mxu0
    %v3802 = vadd.f32 %v883, %v3801
    %v3803 = vpop.f32.mrb[0].mxu0
    %v3804 = vadd.f32 %v887, %v3803
    %v3805 = vpop.f32.mrb[0].mxu0
    %v3806 = vpop.f32.mrb[0].mxu0
    %3807 = vdwg.mxu0
    %3808 = vmatprep.subr.bf16.mxu0 0
    %3809 = vmatpush1.bf16.msra.mxu0 %v977
    %3810 = vmatprep.subr.bf16.mxu0 0
    %3811 = vmatpush1.bf16.msra.mxu0 %v980
    %3812 = vmatprep.subr.bf16.mxu0 0
    %3813 = vmatpush1.bf16.msra.mxu0 %v983
    %3814 = vmatprep.subr.bf16.mxu0 0
    %3815 = vmatpush1.bf16.msra.mxu0 %v986
    %3816 = vmatprep.subr.bf16.mxu0 0
    %3817 = vmatpush1.bf16.msra.mxu0 %v989
    %3818 = vmatprep.subr.bf16.mxu0 0
    %3819 = vmatpush1.bf16.msra.mxu0 %v992
    %3820 = vmatprep.subr.bf16.mxu0 0
    %3821 = vmatpush1.bf16.msra.mxu0 %v995
    %3822 = vmatprep.subr.bf16.mxu0 0
    %3823 = vmatpush1.bf16.msra.mxu0 %v998
    %3824 = vmatprep.subr.bf16.mxu0 0
    %3825 = vmatpush1.bf16.msra.mxu0 0
    %3826 = vmatprep.subr.bf16.mxu0 0
    %3827 = vmatpush1.bf16.msra.mxu0 0
    %3828 = vmatprep.subr.bf16.mxu0 0
    %3829 = vmatpush1.bf16.msra.mxu0 0
    %3830 = vmatprep.subr.bf16.mxu0 0
    %3831 = vmatpush1.bf16.msra.mxu0 0
    %3832 = vmatprep.subr.bf16.mxu0 0
    %3833 = vmatpush1.bf16.msra.mxu0 0
    %3834 = vmatprep.subr.bf16.mxu0 0
    %3835 = vmatpush1.bf16.msra.mxu0 0
    %3836 = vmatprep.subr.bf16.mxu0 0
    %3837 = vmatpush1.bf16.msra.mxu0 0
    %3838 = vmatprep.subr.bf16.mxu0 0
    %3839 = vmatpush1.bf16.msra.mxu0 0
    %3840 = vmatprep.mubr.bf16.mxu0 0
    %3841 = vmatmul.mubr.bf16.gmra.mrb[0].mxu0 %v3766
    %v3842 = vpop.f32.mrb[0].mxu0
    %v3843 = vadd.f32 %v891, %v3842
    %v3844 = vpop.f32.mrb[0].mxu0
    %v3845 = vpop.f32.mrb[0].mxu0
    %v3846 = vpop.f32.mrb[0].mxu0
    %3847 = vdwg.mxu0
    %v3848 = vpack.c.bf16 %v3660, %v3660
    %3849 = vmatprep.subr.bf16.mxu0 %v1186
    %3850 = vmatpush1.bf16.msra.mxu0 %v1185
    %3851 = vmatprep.subr.bf16.mxu0 %v1189
    %3852 = vmatpush1.bf16.msra.mxu0 %v1188
    %3853 = vmatprep.subr.bf16.mxu0 %v1192
    %3854 = vmatpush1.bf16.msra.mxu0 %v1191
    %3855 = vmatprep.subr.bf16.mxu0 %v1195
    %3856 = vmatpush1.bf16.msra.mxu0 %v1194
    %3857 = vmatprep.subr.bf16.mxu0 %v1198
    %3858 = vmatpush1.bf16.msra.mxu0 %v1197
    %3859 = vmatprep.subr.bf16.mxu0 %v1201
    %3860 = vmatpush1.bf16.msra.mxu0 %v1200
    %3861 = vmatprep.subr.bf16.mxu0 %v1204
    %3862 = vmatpush1.bf16.msra.mxu0 %v1203
    %3863 = vmatprep.subr.bf16.mxu0 %v1207
    %3864 = vmatpush1.bf16.msra.mxu0 %v1206
    %3865 = vmatprep.subr.bf16.mxu0 0
    %3866 = vmatpush1.bf16.msra.mxu0 0
    %3867 = vmatprep.subr.bf16.mxu0 0
    %3868 = vmatpush1.bf16.msra.mxu0 0
    %3869 = vmatprep.subr.bf16.mxu0 0
    %3870 = vmatpush1.bf16.msra.mxu0 0
    %3871 = vmatprep.subr.bf16.mxu0 0
    %3872 = vmatpush1.bf16.msra.mxu0 0
    %3873 = vmatprep.subr.bf16.mxu0 0
    %3874 = vmatpush1.bf16.msra.mxu0 0
    %3875 = vmatprep.subr.bf16.mxu0 0
    %3876 = vmatpush1.bf16.msra.mxu0 0
    %3877 = vmatprep.subr.bf16.mxu0 0
    %3878 = vmatpush1.bf16.msra.mxu0 0
    %3879 = vmatprep.subr.bf16.mxu0 0
    %3880 = vmatpush1.bf16.msra.mxu0 0
    %3881 = vmatprep.mubr.bf16.mxu0 0
    %3882 = vmatmul.mubr.bf16.gmra.mrb[0].mxu0 %v3848
    %v3883 = vpop.f32.mrb[0].mxu0
    %v3884 = vadd.f32 0.0, %v3883
    %v3885 = vpop.f32.mrb[0].mxu0
    %v3886 = vadd.f32 0.0, %v3885
    %v3887 = vpop.f32.mrb[0].mxu0
    %v3888 = vpop.f32.mrb[0].mxu0
    %3889 = vdwg.mxu0
    %3890 = vmatprep.subr.bf16.mxu0 0
    %3891 = vmatpush1.bf16.msra.mxu0 %v1187
    %3892 = vmatprep.subr.bf16.mxu0 0
    %3893 = vmatpush1.bf16.msra.mxu0 %v1190
    %3894 = vmatprep.subr.bf16.mxu0 0
    %3895 = vmatpush1.bf16.msra.mxu0 %v1193
    %3896 = vmatprep.subr.bf16.mxu0 0
    %3897 = vmatpush1.bf16.msra.mxu0 %v1196
    %3898 = vmatprep.subr.bf16.mxu0 0
    %3899 = vmatpush1.bf16.msra.mxu0 %v1199
    %3900 = vmatprep.subr.bf16.mxu0 0
    %3901 = vmatpush1.bf16.msra.mxu0 %v1202
    %3902 = vmatprep.subr.bf16.mxu0 0
    %3903 = vmatpush1.bf16.msra.mxu0 %v1205
    %3904 = vmatprep.subr.bf16.mxu0 0
    %3905 = vmatpush1.bf16.msra.mxu0 %v1208
    %3906 = vmatprep.subr.bf16.mxu0 0
    %3907 = vmatpush1.bf16.msra.mxu0 0
    %3908 = vmatprep.subr.bf16.mxu0 0
    %3909 = vmatpush1.bf16.msra.mxu0 0
    %3910 = vmatprep.subr.bf16.mxu0 0
    %3911 = vmatpush1.bf16.msra.mxu0 0
    %3912 = vmatprep.subr.bf16.mxu0 0
    %3913 = vmatpush1.bf16.msra.mxu0 0
    %3914 = vmatprep.subr.bf16.mxu0 0
    %3915 = vmatpush1.bf16.msra.mxu0 0
    %3916 = vmatprep.subr.bf16.mxu0 0
    %3917 = vmatpush1.bf16.msra.mxu0 0
    %3918 = vmatprep.subr.bf16.mxu0 0
    %3919 = vmatpush1.bf16.msra.mxu0 0
    %3920 = vmatprep.subr.bf16.mxu0 0
    %3921 = vmatpush1.bf16.msra.mxu0 0
    %3922 = vmatprep.mubr.bf16.mxu0 0
    %3923 = vmatmul.mubr.bf16.gmra.mrb[0].mxu0 %v3848
    %v3924 = vpop.f32.mrb[0].mxu0
    %v3925 = vadd.f32 0.0, %v3924
    %v3926 = vpop.f32.mrb[0].mxu0
    %v3927 = vpop.f32.mrb[0].mxu0
    %v3928 = vpop.f32.mrb[0].mxu0
    %3929 = vdwg.mxu0
    %v3930 = vadd.f32 %v3802, %v3884
    %v3931 = vadd.f32 %v3804, %v3886
    %v3932 = vxor.u32 %v3930, 2147483648
    %v3933 = vxor.u32 %v3931, 2147483648
    %v3934 = vmul.f32 %v3932, 1.442695
    %v3935 = vpow.pop %v3934
    %v3936 = vmul.f32 %v3933, 1.442695
    %v3937 = vpow.pop %v3936
    %v3938 = vadd.f32 %v3935, 1.0
    %v3939 = vadd.f32 %v3937, 1.0
    %v3940 = vrcp.pop %v3938
    %v3941 = vmul.f32 1.0, %v3940
    %v3942 = vrcp.pop %v3939
    %v3943 = vmul.f32 1.0, %v3942
    %v3944 = vadd.f32 %v3925, %v1332
    %v3945 = vmul.f32 %v3941, %v3944
    %v3946 = vadd.f32 %v3843, %v3945
    %v3947 = vtanh.pop %v3946
    %v3948 = vsub.f32 %v3660, %v3947
    %v3949 = vmul.f32 %v3943, %v3948
    %v3950 = vadd.f32 %v3947, %v3949
    %v3951 = vld [vmem:[#allocation2 + $0xf0] sm:$0xff]
    %v3952 = vld [vmem:[#allocation2 + $0xf8] sm:$0xff]
    %v3953 = vld [vmem:[#allocation2 + $0x100] sm:$0xff]
    %3954 = vmatprep.subr.bf16.mxu0 %v723
    %3955 = vmatpush1.bf16.msra.mxu0 %v722
    %3956 = vmatprep.subr.bf16.mxu0 %v726
    %3957 = vmatpush1.bf16.msra.mxu0 %v725
    %3958 = vmatprep.subr.bf16.mxu0 %v729
    %3959 = vmatpush1.bf16.msra.mxu0 %v728
    %3960 = vmatprep.subr.bf16.mxu0 %v732
    %3961 = vmatpush1.bf16.msra.mxu0 %v731
    %3962 = vmatprep.subr.bf16.mxu0 %v735
    %3963 = vmatpush1.bf16.msra.mxu0 %v734
    %3964 = vmatprep.subr.bf16.mxu0 %v738
    %3965 = vmatpush1.bf16.msra.mxu0 %v737
    %3966 = vmatprep.subr.bf16.mxu0 %v741
    %3967 = vmatpush1.bf16.msra.mxu0 %v740
    %3968 = vmatprep.subr.bf16.mxu0 %v744
    %3969 = vmatpush1.bf16.msra.mxu0 %v743
    %3970 = vmatprep.subr.bf16.mxu0 0
    %3971 = vmatpush1.bf16.msra.mxu0 0
    %3972 = vmatprep.subr.bf16.mxu0 0
    %3973 = vmatpush1.bf16.msra.mxu0 0
    %3974 = vmatprep.subr.bf16.mxu0 0
    %3975 = vmatpush1.bf16.msra.mxu0 0
    %3976 = vmatprep.subr.bf16.mxu0 0
    %3977 = vmatpush1.bf16.msra.mxu0 0
    %3978 = vmatprep.subr.bf16.mxu0 0
    %3979 = vmatpush1.bf16.msra.mxu0 0
    %3980 = vmatprep.subr.bf16.mxu0 0
    %3981 = vmatpush1.bf16.msra.mxu0 0
    %3982 = vmatprep.subr.bf16.mxu0 0
    %3983 = vmatpush1.bf16.msra.mxu0 0
    %3984 = vmatprep.subr.bf16.mxu0 0
    %3985 = vmatpush1.bf16.msra.mxu0 0
    %3986 = vmatprep.mubr.bf16.mxu0 0
    %3987 = vmatmul.mubr.bf16.gmra.mrb[0].mxu0 %v3766
    %v3988 = vpop.f32.mrb[0].mxu0
    %v3989 = vadd.f32 0.0, %v3988
    %v3990 = vpop.f32.mrb[0].mxu0
    %v3991 = vadd.f32 0.0, %v3990
    %v3992 = vpop.f32.mrb[0].mxu0
    %v3993 = vpop.f32.mrb[0].mxu0
    %3994 = vdwg.mxu0
    %3995 = vmatprep.subr.bf16.mxu0 0
    %3996 = vmatpush1.bf16.msra.mxu0 %v724
    %3997 = vmatprep.subr.bf16.mxu0 0
    %3998 = vmatpush1.bf16.msra.mxu0 %v727
    %3999 = vmatprep.subr.bf16.mxu0 0
    %4000 = vmatpush1.bf16.msra.mxu0 %v730
    %4001 = vmatprep.subr.bf16.mxu0 0
    %4002 = vmatpush1.bf16.msra.mxu0 %v733
    %4003 = vmatprep.subr.bf16.mxu0 0
    %4004 = vmatpush1.bf16.msra.mxu0 %v736
    %4005 = vmatprep.subr.bf16.mxu0 0
    %4006 = vmatpush1.bf16.msra.mxu0 %v739
    %4007 = vmatprep.subr.bf16.mxu0 0
    %4008 = vmatpush1.bf16.msra.mxu0 %v742
    %4009 = vmatprep.subr.bf16.mxu0 0
    %4010 = vmatpush1.bf16.msra.mxu0 %v745
    %4011 = vmatprep.subr.bf16.mxu0 0
    %4012 = vmatpush1.bf16.msra.mxu0 0
    %4013 = vmatprep.subr.bf16.mxu0 0
    %4014 = vmatpush1.bf16.msra.mxu0 0
    %4015 = vmatprep.subr.bf16.mxu0 0
    %4016 = vmatpush1.bf16.msra.mxu0 0
    %4017 = vmatprep.subr.bf16.mxu0 0
    %4018 = vmatpush1.bf16.msra.mxu0 0
    %4019 = vmatprep.subr.bf16.mxu0 0
    %4020 = vmatpush1.bf16.msra.mxu0 0
    %4021 = vmatprep.subr.bf16.mxu0 0
    %4022 = vmatpush1.bf16.msra.mxu0 0
    %4023 = vmatprep.subr.bf16.mxu0 0
    %4024 = vmatpush1.bf16.msra.mxu0 0
    %4025 = vmatprep.subr.bf16.mxu0 0
    %4026 = vmatpush1.bf16.msra.mxu0 0
    %4027 = vmatprep.mubr.bf16.mxu0 0
    %4028 = vmatmul.mubr.bf16.gmra.mrb[0].mxu0 %v3766
    %v4029 = vpop.f32.mrb[0].mxu0
    %v4030 = vadd.f32 0.0, %v4029
    %v4031 = vpop.f32.mrb[0].mxu0
    %v4032 = vpop.f32.mrb[0].mxu0
    %v4033 = vpop.f32.mrb[0].mxu0
    %4034 = vdwg.mxu0
    %v4035 = vadd.f32 %v3951, %v3989
    %v4036 = vadd.f32 %v3952, %v3991
    %v4037 = vxor.u32 %v4035, 2147483648
    %v4038 = vxor.u32 %v4036, 2147483648
    %v4039 = vmul.f32 %v4037, 1.442695
    %v4040 = vpow.pop %v4039
    %v4041 = vmul.f32 %v4038, 1.442695
    %v4042 = vpow.pop %v4041
    %v4043 = vadd.f32 %v4040, 1.0
    %v4044 = vadd.f32 %v4042, 1.0
    %v4045 = vrcp.pop %v4043
    %v4046 = vmul.f32 1.0, %v4045
    %v4047 = vrcp.pop %v4044
    %v4048 = vmul.f32 1.0, %v4047
    %v4049 = vadd.f32 %v4030, %v869
    %v4050 = vmul.f32 %v4046, %v4049
    %v4051 = vadd.f32 %v3953, %v4050
    %v4052 = vtanh.pop %v4051
    %v4053 = vsub.f32 %v3765, %v4052
    %v4054 = vmul.f32 %v4048, %v4053
    %v4055 = vadd.f32 %v4052, %v4054
    %v4056 = vpack.c.bf16 %v4055, %v4055
    %4057 = vmatprep.subr.bf16.mxu0 %v976
    %4058 = vmatpush1.bf16.msra.mxu0 %v975
    %4059 = vmatprep.subr.bf16.mxu0 %v979
    %4060 = vmatpush1.bf16.msra.mxu0 %v978
    %4061 = vmatprep.subr.bf16.mxu0 %v982
    %4062 = vmatpush1.bf16.msra.mxu0 %v981
    %4063 = vmatprep.subr.bf16.mxu0 %v985
    %4064 = vmatpush1.bf16.msra.mxu0 %v984
    %4065 = vmatprep.subr.bf16.mxu0 %v988
    %4066 = vmatpush1.bf16.msra.mxu0 %v987
    %4067 = vmatprep.subr.bf16.mxu0 %v991
    %4068 = vmatpush1.bf16.msra.mxu0 %v990
    %4069 = vmatprep.subr.bf16.mxu0 %v994
    %4070 = vmatpush1.bf16.msra.mxu0 %v993
    %4071 = vmatprep.subr.bf16.mxu0 %v997
    %4072 = vmatpush1.bf16.msra.mxu0 %v996
    %4073 = vmatprep.subr.bf16.mxu0 0
    %4074 = vmatpush1.bf16.msra.mxu0 0
    %4075 = vmatprep.subr.bf16.mxu0 0
    %4076 = vmatpush1.bf16.msra.mxu0 0
    %4077 = vmatprep.subr.bf16.mxu0 0
    %4078 = vmatpush1.bf16.msra.mxu0 0
    %4079 = vmatprep.subr.bf16.mxu0 0
    %4080 = vmatpush1.bf16.msra.mxu0 0
    %4081 = vmatprep.subr.bf16.mxu0 0
    %4082 = vmatpush1.bf16.msra.mxu0 0
    %4083 = vmatprep.subr.bf16.mxu0 0
    %4084 = vmatpush1.bf16.msra.mxu0 0
    %4085 = vmatprep.subr.bf16.mxu0 0
    %4086 = vmatpush1.bf16.msra.mxu0 0
    %4087 = vmatprep.subr.bf16.mxu0 0
    %4088 = vmatpush1.bf16.msra.mxu0 0
    %4089 = vmatprep.mubr.bf16.mxu0 0
    %4090 = vmatmul.mubr.bf16.gmra.mrb[0].mxu0 %v4056
    %v4091 = vpop.f32.mrb[0].mxu0
    %v4092 = vadd.f32 %v883, %v4091
    %v4093 = vpop.f32.mrb[0].mxu0
    %v4094 = vadd.f32 %v887, %v4093
    %v4095 = vpop.f32.mrb[0].mxu0
    %v4096 = vpop.f32.mrb[0].mxu0
    %4097 = vdwg.mxu0
    %4098 = vmatprep.subr.bf16.mxu0 0
    %4099 = vmatpush1.bf16.msra.mxu0 %v977
    %4100 = vmatprep.subr.bf16.mxu0 0
    %4101 = vmatpush1.bf16.msra.mxu0 %v980
    %4102 = vmatprep.subr.bf16.mxu0 0
    %4103 = vmatpush1.bf16.msra.mxu0 %v983
    %4104 = vmatprep.subr.bf16.mxu0 0
    %4105 = vmatpush1.bf16.msra.mxu0 %v986
    %4106 = vmatprep.subr.bf16.mxu0 0
    %4107 = vmatpush1.bf16.msra.mxu0 %v989
    %4108 = vmatprep.subr.bf16.mxu0 0
    %4109 = vmatpush1.bf16.msra.mxu0 %v992
    %4110 = vmatprep.subr.bf16.mxu0 0
    %4111 = vmatpush1.bf16.msra.mxu0 %v995
    %4112 = vmatprep.subr.bf16.mxu0 0
    %4113 = vmatpush1.bf16.msra.mxu0 %v998
    %4114 = vmatprep.subr.bf16.mxu0 0
    %4115 = vmatpush1.bf16.msra.mxu0 0
    %4116 = vmatprep.subr.bf16.mxu0 0
    %4117 = vmatpush1.bf16.msra.mxu0 0
    %4118 = vmatprep.subr.bf16.mxu0 0
    %4119 = vmatpush1.bf16.msra.mxu0 0
    %4120 = vmatprep.subr.bf16.mxu0 0
    %4121 = vmatpush1.bf16.msra.mxu0 0
    %4122 = vmatprep.subr.bf16.mxu0 0
    %4123 = vmatpush1.bf16.msra.mxu0 0
    %4124 = vmatprep.subr.bf16.mxu0 0
    %4125 = vmatpush1.bf16.msra.mxu0 0
    %4126 = vmatprep.subr.bf16.mxu0 0
    %4127 = vmatpush1.bf16.msra.mxu0 0
    %4128 = vmatprep.subr.bf16.mxu0 0
    %4129 = vmatpush1.bf16.msra.mxu0 0
    %4130 = vmatprep.mubr.bf16.mxu0 0
    %4131 = vmatmul.mubr.bf16.gmra.mrb[0].mxu0 %v4056
    %v4132 = vpop.f32.mrb[0].mxu0
    %v4133 = vadd.f32 %v891, %v4132
    %v4134 = vpop.f32.mrb[0].mxu0
    %v4135 = vpop.f32.mrb[0].mxu0
    %v4136 = vpop.f32.mrb[0].mxu0
    %4137 = vdwg.mxu0
    %v4138 = vpack.c.bf16 %v3950, %v3950
    %4139 = vmatprep.subr.bf16.mxu0 %v1186
    %4140 = vmatpush1.bf16.msra.mxu0 %v1185
    %4141 = vmatprep.subr.bf16.mxu0 %v1189
    %4142 = vmatpush1.bf16.msra.mxu0 %v1188
    %4143 = vmatprep.subr.bf16.mxu0 %v1192
    %4144 = vmatpush1.bf16.msra.mxu0 %v1191
    %4145 = vmatprep.subr.bf16.mxu0 %v1195
    %4146 = vmatpush1.bf16.msra.mxu0 %v1194
    %4147 = vmatprep.subr.bf16.mxu0 %v1198
    %4148 = vmatpush1.bf16.msra.mxu0 %v1197
    %4149 = vmatprep.subr.bf16.mxu0 %v1201
    %4150 = vmatpush1.bf16.msra.mxu0 %v1200
    %4151 = vmatprep.subr.bf16.mxu0 %v1204
    %4152 = vmatpush1.bf16.msra.mxu0 %v1203
    %4153 = vmatprep.subr.bf16.mxu0 %v1207
    %4154 = vmatpush1.bf16.msra.mxu0 %v1206
    %4155 = vmatprep.subr.bf16.mxu0 0
    %4156 = vmatpush1.bf16.msra.mxu0 0
    %4157 = vmatprep.subr.bf16.mxu0 0
    %4158 = vmatpush1.bf16.msra.mxu0 0
    %4159 = vmatprep.subr.bf16.mxu0 0
    %4160 = vmatpush1.bf16.msra.mxu0 0
    %4161 = vmatprep.subr.bf16.mxu0 0
    %4162 = vmatpush1.bf16.msra.mxu0 0
    %4163 = vmatprep.subr.bf16.mxu0 0
    %4164 = vmatpush1.bf16.msra.mxu0 0
    %4165 = vmatprep.subr.bf16.mxu0 0
    %4166 = vmatpush1.bf16.msra.mxu0 0
    %4167 = vmatprep.subr.bf16.mxu0 0
    %4168 = vmatpush1.bf16.msra.mxu0 0
    %4169 = vmatprep.subr.bf16.mxu0 0
    %4170 = vmatpush1.bf16.msra.mxu0 0
    %4171 = vmatprep.mubr.bf16.mxu0 0
    %4172 = vmatmul.mubr.bf16.gmra.mrb[0].mxu0 %v4138
    %v4173 = vpop.f32.mrb[0].mxu0
    %v4174 = vadd.f32 0.0, %v4173
    %v4175 = vpop.f32.mrb[0].mxu0
    %v4176 = vadd.f32 0.0, %v4175
    %v4177 = vpop.f32.mrb[0].mxu0
    %v4178 = vpop.f32.mrb[0].mxu0
    %4179 = vdwg.mxu0
    %4180 = vmatprep.subr.bf16.mxu0 0
    %4181 = vmatpush1.bf16.msra.mxu0 %v1187
    %4182 = vmatprep.subr.bf16.mxu0 0
    %4183 = vmatpush1.bf16.msra.mxu0 %v1190
    %4184 = vmatprep.subr.bf16.mxu0 0
    %4185 = vmatpush1.bf16.msra.mxu0 %v1193
    %4186 = vmatprep.subr.bf16.mxu0 0
    %4187 = vmatpush1.bf16.msra.mxu0 %v1196
    %4188 = vmatprep.subr.bf16.mxu0 0
    %4189 = vmatpush1.bf16.msra.mxu0 %v1199
    %4190 = vmatprep.subr.bf16.mxu0 0
    %4191 = vmatpush1.bf16.msra.mxu0 %v1202
    %4192 = vmatprep.subr.bf16.mxu0 0
    %4193 = vmatpush1.bf16.msra.mxu0 %v1205
    %4194 = vmatprep.subr.bf16.mxu0 0
    %4195 = vmatpush1.bf16.msra.mxu0 %v1208
    %4196 = vmatprep.subr.bf16.mxu0 0
    %4197 = vmatpush1.bf16.msra.mxu0 0
    %4198 = vmatprep.subr.bf16.mxu0 0
    %4199 = vmatpush1.bf16.msra.mxu0 0
    %4200 = vmatprep.subr.bf16.mxu0 0
    %4201 = vmatpush1.bf16.msra.mxu0 0
    %4202 = vmatprep.subr.bf16.mxu0 0
    %4203 = vmatpush1.bf16.msra.mxu0 0
    %4204 = vmatprep.subr.bf16.mxu0 0
    %4205 = vmatpush1.bf16.msra.mxu0 0
    %4206 = vmatprep.subr.bf16.mxu0 0
    %4207 = vmatpush1.bf16.msra.mxu0 0
    %4208 = vmatprep.subr.bf16.mxu0 0
    %4209 = vmatpush1.bf16.msra.mxu0 0
    %4210 = vmatprep.subr.bf16.mxu0 0
    %4211 = vmatpush1.bf16.msra.mxu0 0
    %4212 = vmatprep.mubr.bf16.mxu0 0
    %4213 = vmatmul.mubr.bf16.gmra.mrb[0].mxu0 %v4138
    %v4214 = vpop.f32.mrb[0].mxu0
    %v4215 = vadd.f32 0.0, %v4214
    %v4216 = vpop.f32.mrb[0].mxu0
    %v4217 = vpop.f32.mrb[0].mxu0
    %v4218 = vpop.f32.mrb[0].mxu0
    %4219 = vdwg.mxu0
    %v4220 = vadd.f32 %v4092, %v4174
    %v4221 = vadd.f32 %v4094, %v4176
    %v4222 = vxor.u32 %v4220, 2147483648
    %v4223 = vxor.u32 %v4221, 2147483648
    %v4224 = vmul.f32 %v4222, 1.442695
    %v4225 = vpow.pop %v4224
    %v4226 = vmul.f32 %v4223, 1.442695
    %v4227 = vpow.pop %v4226
    %v4228 = vadd.f32 %v4225, 1.0
    %v4229 = vadd.f32 %v4227, 1.0
    %v4230 = vrcp.pop %v4228
    %v4231 = vmul.f32 1.0, %v4230
    %v4232 = vrcp.pop %v4229
    %v4233 = vmul.f32 1.0, %v4232
    %v4234 = vadd.f32 %v4215, %v1332
    %v4235 = vmul.f32 %v4231, %v4234
    %v4236 = vadd.f32 %v4133, %v4235
    %v4237 = vtanh.pop %v4236
    %v4238 = vsub.f32 %v3950, %v4237
    %v4239 = vmul.f32 %v4233, %v4238
    %v4240 = vadd.f32 %v4237, %v4239
    %v4241 = vld [vmem:[#allocation2 + $0x108] sm:$0xff]
    %v4242 = vld [vmem:[#allocation2 + $0x110] sm:$0xff]
    %v4243 = vld [vmem:[#allocation2 + $0x118] sm:$0xff]
    %4244 = vmatprep.subr.bf16.mxu0 %v723
    %4245 = vmatpush1.bf16.msra.mxu0 %v722
    %4246 = vmatprep.subr.bf16.mxu0 %v726
    %4247 = vmatpush1.bf16.msra.mxu0 %v725
    %4248 = vmatprep.subr.bf16.mxu0 %v729
    %4249 = vmatpush1.bf16.msra.mxu0 %v728
    %4250 = vmatprep.subr.bf16.mxu0 %v732
    %4251 = vmatpush1.bf16.msra.mxu0 %v731
    %4252 = vmatprep.subr.bf16.mxu0 %v735
    %4253 = vmatpush1.bf16.msra.mxu0 %v734
    %4254 = vmatprep.subr.bf16.mxu0 %v738
    %4255 = vmatpush1.bf16.msra.mxu0 %v737
    %4256 = vmatprep.subr.bf16.mxu0 %v741
    %4257 = vmatpush1.bf16.msra.mxu0 %v740
    %4258 = vmatprep.subr.bf16.mxu0 %v744
    %4259 = vmatpush1.bf16.msra.mxu0 %v743
    %4260 = vmatprep.subr.bf16.mxu0 0
    %4261 = vmatpush1.bf16.msra.mxu0 0
    %4262 = vmatprep.subr.bf16.mxu0 0
    %4263 = vmatpush1.bf16.msra.mxu0 0
    %4264 = vmatprep.subr.bf16.mxu0 0
    %4265 = vmatpush1.bf16.msra.mxu0 0
    %4266 = vmatprep.subr.bf16.mxu0 0
    %4267 = vmatpush1.bf16.msra.mxu0 0
    %4268 = vmatprep.subr.bf16.mxu0 0
    %4269 = vmatpush1.bf16.msra.mxu0 0
    %4270 = vmatprep.subr.bf16.mxu0 0
    %4271 = vmatpush1.bf16.msra.mxu0 0
    %4272 = vmatprep.subr.bf16.mxu0 0
    %4273 = vmatpush1.bf16.msra.mxu0 0
    %4274 = vmatprep.subr.bf16.mxu0 0
    %4275 = vmatpush1.bf16.msra.mxu0 0
    %4276 = vmatprep.mubr.bf16.mxu0 0
    %4277 = vmatmul.mubr.bf16.gmra.mrb[0].mxu0 %v4056
    %v4278 = vpop.f32.mrb[0].mxu0
    %v4279 = vadd.f32 0.0, %v4278
    %v4280 = vpop.f32.mrb[0].mxu0
    %v4281 = vadd.f32 0.0, %v4280
    %v4282 = vpop.f32.mrb[0].mxu0
    %v4283 = vpop.f32.mrb[0].mxu0
    %4284 = vdwg.mxu0
    %4285 = vmatprep.subr.bf16.mxu0 0
    %4286 = vmatpush1.bf16.msra.mxu0 %v724
    %4287 = vmatprep.subr.bf16.mxu0 0
    %4288 = vmatpush1.bf16.msra.mxu0 %v727
    %4289 = vmatprep.subr.bf16.mxu0 0
    %4290 = vmatpush1.bf16.msra.mxu0 %v730
    %4291 = vmatprep.subr.bf16.mxu0 0
    %4292 = vmatpush1.bf16.msra.mxu0 %v733
    %4293 = vmatprep.subr.bf16.mxu0 0
    %4294 = vmatpush1.bf16.msra.mxu0 %v736
    %4295 = vmatprep.subr.bf16.mxu0 0
    %4296 = vmatpush1.bf16.msra.mxu0 %v739
    %4297 = vmatprep.subr.bf16.mxu0 0
    %4298 = vmatpush1.bf16.msra.mxu0 %v742
    %4299 = vmatprep.subr.bf16.mxu0 0
    %4300 = vmatpush1.bf16.msra.mxu0 %v745
    %4301 = vmatprep.subr.bf16.mxu0 0
    %4302 = vmatpush1.bf16.msra.mxu0 0
    %4303 = vmatprep.subr.bf16.mxu0 0
    %4304 = vmatpush1.bf16.msra.mxu0 0
    %4305 = vmatprep.subr.bf16.mxu0 0
    %4306 = vmatpush1.bf16.msra.mxu0 0
    %4307 = vmatprep.subr.bf16.mxu0 0
    %4308 = vmatpush1.bf16.msra.mxu0 0
    %4309 = vmatprep.subr.bf16.mxu0 0
    %4310 = vmatpush1.bf16.msra.mxu0 0
    %4311 = vmatprep.subr.bf16.mxu0 0
    %4312 = vmatpush1.bf16.msra.mxu0 0
    %4313 = vmatprep.subr.bf16.mxu0 0
    %4314 = vmatpush1.bf16.msra.mxu0 0
    %4315 = vmatprep.subr.bf16.mxu0 0
    %4316 = vmatpush1.bf16.msra.mxu0 0
    %4317 = vmatprep.mubr.bf16.mxu0 0
    %4318 = vmatmul.mubr.bf16.gmra.mrb[0].mxu0 %v4056
    %v4319 = vpop.f32.mrb[0].mxu0
    %v4320 = vadd.f32 0.0, %v4319
    %v4321 = vpop.f32.mrb[0].mxu0
    %v4322 = vpop.f32.mrb[0].mxu0
    %v4323 = vpop.f32.mrb[0].mxu0
    %4324 = vdwg.mxu0
    %v4325 = vadd.f32 %v4241, %v4279
    %v4326 = vadd.f32 %v4242, %v4281
    %v4327 = vxor.u32 %v4325, 2147483648
    %v4328 = vxor.u32 %v4326, 2147483648
    %v4329 = vmul.f32 %v4327, 1.442695
    %v4330 = vpow.pop %v4329
    %v4331 = vmul.f32 %v4328, 1.442695
    %v4332 = vpow.pop %v4331
    %v4333 = vadd.f32 %v4330, 1.0
    %v4334 = vadd.f32 %v4332, 1.0
    %v4335 = vrcp.pop %v4333
    %v4336 = vmul.f32 1.0, %v4335
    %v4337 = vrcp.pop %v4334
    %v4338 = vmul.f32 1.0, %v4337
    %v4339 = vadd.f32 %v4320, %v869
    %v4340 = vmul.f32 %v4336, %v4339
    %v4341 = vadd.f32 %v4243, %v4340
    %v4342 = vtanh.pop %v4341
    %v4343 = vsub.f32 %v4055, %v4342
    %v4344 = vmul.f32 %v4338, %v4343
    %v4345 = vadd.f32 %v4342, %v4344
    %v4346 = vpack.c.bf16 %v4345, %v4345
    %4347 = vmatprep.subr.bf16.mxu0 %v976
    %4348 = vmatpush1.bf16.msra.mxu0 %v975
    %4349 = vmatprep.subr.bf16.mxu0 %v979
    %4350 = vmatpush1.bf16.msra.mxu0 %v978
    %4351 = vmatprep.subr.bf16.mxu0 %v982
    %4352 = vmatpush1.bf16.msra.mxu0 %v981
    %4353 = vmatprep.subr.bf16.mxu0 %v985
    %4354 = vmatpush1.bf16.msra.mxu0 %v984
    %4355 = vmatprep.subr.bf16.mxu0 %v988
    %4356 = vmatpush1.bf16.msra.mxu0 %v987
    %4357 = vmatprep.subr.bf16.mxu0 %v991
    %4358 = vmatpush1.bf16.msra.mxu0 %v990
    %4359 = vmatprep.subr.bf16.mxu0 %v994
    %4360 = vmatpush1.bf16.msra.mxu0 %v993
    %4361 = vmatprep.subr.bf16.mxu0 %v997
    %4362 = vmatpush1.bf16.msra.mxu0 %v996
    %4363 = vmatprep.subr.bf16.mxu0 0
    %4364 = vmatpush1.bf16.msra.mxu0 0
    %4365 = vmatprep.subr.bf16.mxu0 0
    %4366 = vmatpush1.bf16.msra.mxu0 0
    %4367 = vmatprep.subr.bf16.mxu0 0
    %4368 = vmatpush1.bf16.msra.mxu0 0
    %4369 = vmatprep.subr.bf16.mxu0 0
    %4370 = vmatpush1.bf16.msra.mxu0 0
    %4371 = vmatprep.subr.bf16.mxu0 0
    %4372 = vmatpush1.bf16.msra.mxu0 0
    %4373 = vmatprep.subr.bf16.mxu0 0
    %4374 = vmatpush1.bf16.msra.mxu0 0
    %4375 = vmatprep.subr.bf16.mxu0 0
    %4376 = vmatpush1.bf16.msra.mxu0 0
    %4377 = vmatprep.subr.bf16.mxu0 0
    %4378 = vmatpush1.bf16.msra.mxu0 0
    %4379 = vmatprep.mubr.bf16.mxu0 0
    %4380 = vmatmul.mubr.bf16.gmra.mrb[0].mxu0 %v4346
    %v4381 = vpop.f32.mrb[0].mxu0
    %v4382 = vadd.f32 %v883, %v4381
    %v4383 = vpop.f32.mrb[0].mxu0
    %v4384 = vadd.f32 %v887, %v4383
    %v4385 = vpop.f32.mrb[0].mxu0
    %v4386 = vpop.f32.mrb[0].mxu0
    %4387 = vdwg.mxu0
    %4388 = vmatprep.subr.bf16.mxu0 0
    %4389 = vmatpush1.bf16.msra.mxu0 %v977
    %4390 = vmatprep.subr.bf16.mxu0 0
    %4391 = vmatpush1.bf16.msra.mxu0 %v980
    %4392 = vmatprep.subr.bf16.mxu0 0
    %4393 = vmatpush1.bf16.msra.mxu0 %v983
    %4394 = vmatprep.subr.bf16.mxu0 0
    %4395 = vmatpush1.bf16.msra.mxu0 %v986
    %4396 = vmatprep.subr.bf16.mxu0 0
    %4397 = vmatpush1.bf16.msra.mxu0 %v989
    %4398 = vmatprep.subr.bf16.mxu0 0
    %4399 = vmatpush1.bf16.msra.mxu0 %v992
    %4400 = vmatprep.subr.bf16.mxu0 0
    %4401 = vmatpush1.bf16.msra.mxu0 %v995
    %4402 = vmatprep.subr.bf16.mxu0 0
    %4403 = vmatpush1.bf16.msra.mxu0 %v998
    %4404 = vmatprep.subr.bf16.mxu0 0
    %4405 = vmatpush1.bf16.msra.mxu0 0
    %4406 = vmatprep.subr.bf16.mxu0 0
    %4407 = vmatpush1.bf16.msra.mxu0 0
    %4408 = vmatprep.subr.bf16.mxu0 0
    %4409 = vmatpush1.bf16.msra.mxu0 0
    %4410 = vmatprep.subr.bf16.mxu0 0
    %4411 = vmatpush1.bf16.msra.mxu0 0
    %4412 = vmatprep.subr.bf16.mxu0 0
    %4413 = vmatpush1.bf16.msra.mxu0 0
    %4414 = vmatprep.subr.bf16.mxu0 0
    %4415 = vmatpush1.bf16.msra.mxu0 0
    %4416 = vmatprep.subr.bf16.mxu0 0
    %4417 = vmatpush1.bf16.msra.mxu0 0
    %4418 = vmatprep.subr.bf16.mxu0 0
    %4419 = vmatpush1.bf16.msra.mxu0 0
    %4420 = vmatprep.mubr.bf16.mxu0 0
    %4421 = vmatmul.mubr.bf16.gmra.mrb[0].mxu0 %v4346
    %v4422 = vpop.f32.mrb[0].mxu0
    %v4423 = vadd.f32 %v891, %v4422
    %v4424 = vpop.f32.mrb[0].mxu0
    %v4425 = vpop.f32.mrb[0].mxu0
    %v4426 = vpop.f32.mrb[0].mxu0
    %4427 = vdwg.mxu0
    %v4428 = vpack.c.bf16 %v4240, %v4240
    %4429 = vmatprep.subr.bf16.mxu0 %v1186
    %4430 = vmatpush1.bf16.msra.mxu0 %v1185
    %4431 = vmatprep.subr.bf16.mxu0 %v1189
    %4432 = vmatpush1.bf16.msra.mxu0 %v1188
    %4433 = vmatprep.subr.bf16.mxu0 %v1192
    %4434 = vmatpush1.bf16.msra.mxu0 %v1191
    %4435 = vmatprep.subr.bf16.mxu0 %v1195
    %4436 = vmatpush1.bf16.msra.mxu0 %v1194
    %4437 = vmatprep.subr.bf16.mxu0 %v1198
    %4438 = vmatpush1.bf16.msra.mxu0 %v1197
    %4439 = vmatprep.subr.bf16.mxu0 %v1201
    %4440 = vmatpush1.bf16.msra.mxu0 %v1200
    %4441 = vmatprep.subr.bf16.mxu0 %v1204
    %4442 = vmatpush1.bf16.msra.mxu0 %v1203
    %4443 = vmatprep.subr.bf16.mxu0 %v1207
    %4444 = vmatpush1.bf16.msra.mxu0 %v1206
    %4445 = vmatprep.subr.bf16.mxu0 0
    %4446 = vmatpush1.bf16.msra.mxu0 0
    %4447 = vmatprep.subr.bf16.mxu0 0
    %4448 = vmatpush1.bf16.msra.mxu0 0
    %4449 = vmatprep.subr.bf16.mxu0 0
    %4450 = vmatpush1.bf16.msra.mxu0 0
    %4451 = vmatprep.subr.bf16.mxu0 0
    %4452 = vmatpush1.bf16.msra.mxu0 0
    %4453 = vmatprep.subr.bf16.mxu0 0
    %4454 = vmatpush1.bf16.msra.mxu0 0
    %4455 = vmatprep.subr.bf16.mxu0 0
    %4456 = vmatpush1.bf16.msra.mxu0 0
    %4457 = vmatprep.subr.bf16.mxu0 0
    %4458 = vmatpush1.bf16.msra.mxu0 0
    %4459 = vmatprep.subr.bf16.mxu0 0
    %4460 = vmatpush1.bf16.msra.mxu0 0
    %4461 = vmatprep.mubr.bf16.mxu0 0
    %4462 = vmatmul.mubr.bf16.gmra.mrb[0].mxu0 %v4428
    %v4463 = vpop.f32.mrb[0].mxu0
    %v4464 = vadd.f32 0.0, %v4463
    %v4465 = vpop.f32.mrb[0].mxu0
    %v4466 = vadd.f32 0.0, %v4465
    %v4467 = vpop.f32.mrb[0].mxu0
    %v4468 = vpop.f32.mrb[0].mxu0
    %4469 = vdwg.mxu0
    %4470 = vmatprep.subr.bf16.mxu0 0
    %4471 = vmatpush1.bf16.msra.mxu0 %v1187
    %4472 = vmatprep.subr.bf16.mxu0 0
    %4473 = vmatpush1.bf16.msra.mxu0 %v1190
    %4474 = vmatprep.subr.bf16.mxu0 0
    %4475 = vmatpush1.bf16.msra.mxu0 %v1193
    %4476 = vmatprep.subr.bf16.mxu0 0
    %4477 = vmatpush1.bf16.msra.mxu0 %v1196
    %4478 = vmatprep.subr.bf16.mxu0 0
    %4479 = vmatpush1.bf16.msra.mxu0 %v1199
    %4480 = vmatprep.subr.bf16.mxu0 0
    %4481 = vmatpush1.bf16.msra.mxu0 %v1202
    %4482 = vmatprep.subr.bf16.mxu0 0
    %4483 = vmatpush1.bf16.msra.mxu0 %v1205
    %4484 = vmatprep.subr.bf16.mxu0 0
    %4485 = vmatpush1.bf16.msra.mxu0 %v1208
    %4486 = vmatprep.subr.bf16.mxu0 0
    %4487 = vmatpush1.bf16.msra.mxu0 0
    %4488 = vmatprep.subr.bf16.mxu0 0
    %4489 = vmatpush1.bf16.msra.mxu0 0
    %4490 = vmatprep.subr.bf16.mxu0 0
    %4491 = vmatpush1.bf16.msra.mxu0 0
    %4492 = vmatprep.subr.bf16.mxu0 0
    %4493 = vmatpush1.bf16.msra.mxu0 0
    %4494 = vmatprep.subr.bf16.mxu0 0
    %4495 = vmatpush1.bf16.msra.mxu0 0
    %4496 = vmatprep.subr.bf16.mxu0 0
    %4497 = vmatpush1.bf16.msra.mxu0 0
    %4498 = vmatprep.subr.bf16.mxu0 0
    %4499 = vmatpush1.bf16.msra.mxu0 0
    %4500 = vmatprep.subr.bf16.mxu0 0
    %4501 = vmatpush1.bf16.msra.mxu0 0
    %4502 = vmatprep.mubr.bf16.mxu0 0
    %4503 = vmatmul.mubr.bf16.gmra.mrb[0].mxu0 %v4428
    %v4504 = vpop.f32.mrb[0].mxu0
    %v4505 = vadd.f32 0.0, %v4504
    %v4506 = vpop.f32.mrb[0].mxu0
    %v4507 = vpop.f32.mrb[0].mxu0
    %v4508 = vpop.f32.mrb[0].mxu0
    %4509 = vdwg.mxu0
    %v4510 = vadd.f32 %v4382, %v4464
    %v4511 = vadd.f32 %v4384, %v4466
    %v4512 = vxor.u32 %v4510, 2147483648
    %v4513 = vxor.u32 %v4511, 2147483648
    %v4514 = vmul.f32 %v4512, 1.442695
    %v4515 = vpow.pop %v4514
    %v4516 = vmul.f32 %v4513, 1.442695
    %v4517 = vpow.pop %v4516
    %v4518 = vadd.f32 %v4515, 1.0
    %v4519 = vadd.f32 %v4517, 1.0
    %v4520 = vrcp.pop %v4518
    %v4521 = vmul.f32 1.0, %v4520
    %v4522 = vrcp.pop %v4519
    %v4523 = vmul.f32 1.0, %v4522
    %v4524 = vadd.f32 %v4505, %v1332
    %v4525 = vmul.f32 %v4521, %v4524
    %v4526 = vadd.f32 %v4423, %v4525
    %v4527 = vtanh.pop %v4526
    %v4528 = vsub.f32 %v4240, %v4527
    %v4529 = vmul.f32 %v4523, %v4528
    %v4530 = vadd.f32 %v4527, %v4529
    %v4531 = vld [vmem:[#allocation2 + $0x120] sm:$0xff]
    %v4532 = vld [vmem:[#allocation2 + $0x128] sm:$0xff]
    %v4533 = vld [vmem:[#allocation2 + $0x130] sm:$0xff]
    %4534 = vmatprep.subr.bf16.mxu0 %v723
    %4535 = vmatpush1.bf16.msra.mxu0 %v722
    %4536 = vmatprep.subr.bf16.mxu0 %v726
    %4537 = vmatpush1.bf16.msra.mxu0 %v725
    %4538 = vmatprep.subr.bf16.mxu0 %v729
    %4539 = vmatpush1.bf16.msra.mxu0 %v728
    %4540 = vmatprep.subr.bf16.mxu0 %v732
    %4541 = vmatpush1.bf16.msra.mxu0 %v731
    %4542 = vmatprep.subr.bf16.mxu0 %v735
    %4543 = vmatpush1.bf16.msra.mxu0 %v734
    %4544 = vmatprep.subr.bf16.mxu0 %v738
    %4545 = vmatpush1.bf16.msra.mxu0 %v737
    %4546 = vmatprep.subr.bf16.mxu0 %v741
    %4547 = vmatpush1.bf16.msra.mxu0 %v740
    %4548 = vmatprep.subr.bf16.mxu0 %v744
    %4549 = vmatpush1.bf16.msra.mxu0 %v743
    %4550 = vmatprep.subr.bf16.mxu0 0
    %4551 = vmatpush1.bf16.msra.mxu0 0
    %4552 = vmatprep.subr.bf16.mxu0 0
    %4553 = vmatpush1.bf16.msra.mxu0 0
    %4554 = vmatprep.subr.bf16.mxu0 0
    %4555 = vmatpush1.bf16.msra.mxu0 0
    %4556 = vmatprep.subr.bf16.mxu0 0
    %4557 = vmatpush1.bf16.msra.mxu0 0
    %4558 = vmatprep.subr.bf16.mxu0 0
    %4559 = vmatpush1.bf16.msra.mxu0 0
    %4560 = vmatprep.subr.bf16.mxu0 0
    %4561 = vmatpush1.bf16.msra.mxu0 0
    %4562 = vmatprep.subr.bf16.mxu0 0
    %4563 = vmatpush1.bf16.msra.mxu0 0
    %4564 = vmatprep.subr.bf16.mxu0 0
    %4565 = vmatpush1.bf16.msra.mxu0 0
    %4566 = vmatprep.mubr.bf16.mxu0 0
    %4567 = vmatmul.mubr.bf16.gmra.mrb[0].mxu0 %v4346
    %v4568 = vpop.f32.mrb[0].mxu0
    %v4569 = vadd.f32 0.0, %v4568
    %v4570 = vpop.f32.mrb[0].mxu0
    %v4571 = vadd.f32 0.0, %v4570
    %v4572 = vpop.f32.mrb[0].mxu0
    %v4573 = vpop.f32.mrb[0].mxu0
    %4574 = vdwg.mxu0
    %4575 = vmatprep.subr.bf16.mxu0 0
    %4576 = vmatpush1.bf16.msra.mxu0 %v724
    %4577 = vmatprep.subr.bf16.mxu0 0
    %4578 = vmatpush1.bf16.msra.mxu0 %v727
    %4579 = vmatprep.subr.bf16.mxu0 0
    %4580 = vmatpush1.bf16.msra.mxu0 %v730
    %4581 = vmatprep.subr.bf16.mxu0 0
    %4582 = vmatpush1.bf16.msra.mxu0 %v733
    %4583 = vmatprep.subr.bf16.mxu0 0
    %4584 = vmatpush1.bf16.msra.mxu0 %v736
    %4585 = vmatprep.subr.bf16.mxu0 0
    %4586 = vmatpush1.bf16.msra.mxu0 %v739
    %4587 = vmatprep.subr.bf16.mxu0 0
    %4588 = vmatpush1.bf16.msra.mxu0 %v742
    %4589 = vmatprep.subr.bf16.mxu0 0
    %4590 = vmatpush1.bf16.msra.mxu0 %v745
    %4591 = vmatprep.subr.bf16.mxu0 0
    %4592 = vmatpush1.bf16.msra.mxu0 0
    %4593 = vmatprep.subr.bf16.mxu0 0
    %4594 = vmatpush1.bf16.msra.mxu0 0
    %4595 = vmatprep.subr.bf16.mxu0 0
    %4596 = vmatpush1.bf16.msra.mxu0 0
    %4597 = vmatprep.subr.bf16.mxu0 0
    %4598 = vmatpush1.bf16.msra.mxu0 0
    %4599 = vmatprep.subr.bf16.mxu0 0
    %4600 = vmatpush1.bf16.msra.mxu0 0
    %4601 = vmatprep.subr.bf16.mxu0 0
    %4602 = vmatpush1.bf16.msra.mxu0 0
    %4603 = vmatprep.subr.bf16.mxu0 0
    %4604 = vmatpush1.bf16.msra.mxu0 0
    %4605 = vmatprep.subr.bf16.mxu0 0
    %4606 = vmatpush1.bf16.msra.mxu0 0
    %4607 = vmatprep.mubr.bf16.mxu0 0
    %4608 = vmatmul.mubr.bf16.gmra.mrb[0].mxu0 %v4346
    %v4609 = vpop.f32.mrb[0].mxu0
    %v4610 = vadd.f32 0.0, %v4609
    %v4611 = vpop.f32.mrb[0].mxu0
    %v4612 = vpop.f32.mrb[0].mxu0
    %v4613 = vpop.f32.mrb[0].mxu0
    %4614 = vdwg.mxu0
    %v4615 = vadd.f32 %v4531, %v4569
    %v4616 = vadd.f32 %v4532, %v4571
    %v4617 = vxor.u32 %v4615, 2147483648
    %v4618 = vxor.u32 %v4616, 2147483648
    %v4619 = vmul.f32 %v4617, 1.442695
    %v4620 = vpow.pop %v4619
    %v4621 = vmul.f32 %v4618, 1.442695
    %v4622 = vpow.pop %v4621
    %v4623 = vadd.f32 %v4620, 1.0
    %v4624 = vadd.f32 %v4622, 1.0
    %v4625 = vrcp.pop %v4623
    %v4626 = vmul.f32 1.0, %v4625
    %v4627 = vrcp.pop %v4624
    %v4628 = vmul.f32 1.0, %v4627
    %v4629 = vadd.f32 %v4610, %v869
    %v4630 = vmul.f32 %v4626, %v4629
    %v4631 = vadd.f32 %v4533, %v4630
    %v4632 = vtanh.pop %v4631
    %v4633 = vsub.f32 %v4345, %v4632
    %v4634 = vmul.f32 %v4628, %v4633
    %v4635 = vadd.f32 %v4632, %v4634
    %v4636 = vpack.c.bf16 %v4635, %v4635
    %4637 = vmatprep.subr.bf16.mxu0 %v976
    %4638 = vmatpush1.bf16.msra.mxu0 %v975
    %4639 = vmatprep.subr.bf16.mxu0 %v979
    %4640 = vmatpush1.bf16.msra.mxu0 %v978
    %4641 = vmatprep.subr.bf16.mxu0 %v982
    %4642 = vmatpush1.bf16.msra.mxu0 %v981
    %4643 = vmatprep.subr.bf16.mxu0 %v985
    %4644 = vmatpush1.bf16.msra.mxu0 %v984
    %4645 = vmatprep.subr.bf16.mxu0 %v988
    %4646 = vmatpush1.bf16.msra.mxu0 %v987
    %4647 = vmatprep.subr.bf16.mxu0 %v991
    %4648 = vmatpush1.bf16.msra.mxu0 %v990
    %4649 = vmatprep.subr.bf16.mxu0 %v994
    %4650 = vmatpush1.bf16.msra.mxu0 %v993
    %4651 = vmatprep.subr.bf16.mxu0 %v997
    %4652 = vmatpush1.bf16.msra.mxu0 %v996
    %4653 = vmatprep.subr.bf16.mxu0 0
    %4654 = vmatpush1.bf16.msra.mxu0 0
    %4655 = vmatprep.subr.bf16.mxu0 0
    %4656 = vmatpush1.bf16.msra.mxu0 0
    %4657 = vmatprep.subr.bf16.mxu0 0
    %4658 = vmatpush1.bf16.msra.mxu0 0
    %4659 = vmatprep.subr.bf16.mxu0 0
    %4660 = vmatpush1.bf16.msra.mxu0 0
    %4661 = vmatprep.subr.bf16.mxu0 0
    %4662 = vmatpush1.bf16.msra.mxu0 0
    %4663 = vmatprep.subr.bf16.mxu0 0
    %4664 = vmatpush1.bf16.msra.mxu0 0
    %4665 = vmatprep.subr.bf16.mxu0 0
    %4666 = vmatpush1.bf16.msra.mxu0 0
    %4667 = vmatprep.subr.bf16.mxu0 0
    %4668 = vmatpush1.bf16.msra.mxu0 0
    %4669 = vmatprep.mubr.bf16.mxu0 0
    %4670 = vmatmul.mubr.bf16.gmra.mrb[0].mxu0 %v4636
    %v4671 = vpop.f32.mrb[0].mxu0
    %v4672 = vadd.f32 %v883, %v4671
    %v4673 = vpop.f32.mrb[0].mxu0
    %v4674 = vadd.f32 %v887, %v4673
    %v4675 = vpop.f32.mrb[0].mxu0
    %v4676 = vpop.f32.mrb[0].mxu0
    %4677 = vdwg.mxu0
    %4678 = vmatprep.subr.bf16.mxu0 0
    %4679 = vmatpush1.bf16.msra.mxu0 %v977
    %4680 = vmatprep.subr.bf16.mxu0 0
    %4681 = vmatpush1.bf16.msra.mxu0 %v980
    %4682 = vmatprep.subr.bf16.mxu0 0
    %4683 = vmatpush1.bf16.msra.mxu0 %v983
    %4684 = vmatprep.subr.bf16.mxu0 0
    %4685 = vmatpush1.bf16.msra.mxu0 %v986
    %4686 = vmatprep.subr.bf16.mxu0 0
    %4687 = vmatpush1.bf16.msra.mxu0 %v989
    %4688 = vmatprep.subr.bf16.mxu0 0
    %4689 = vmatpush1.bf16.msra.mxu0 %v992
    %4690 = vmatprep.subr.bf16.mxu0 0
    %4691 = vmatpush1.bf16.msra.mxu0 %v995
    %4692 = vmatprep.subr.bf16.mxu0 0
    %4693 = vmatpush1.bf16.msra.mxu0 %v998
    %4694 = vmatprep.subr.bf16.mxu0 0
    %4695 = vmatpush1.bf16.msra.mxu0 0
    %4696 = vmatprep.subr.bf16.mxu0 0
    %4697 = vmatpush1.bf16.msra.mxu0 0
    %4698 = vmatprep.subr.bf16.mxu0 0
    %4699 = vmatpush1.bf16.msra.mxu0 0
    %4700 = vmatprep.subr.bf16.mxu0 0
    %4701 = vmatpush1.bf16.msra.mxu0 0
    %4702 = vmatprep.subr.bf16.mxu0 0
    %4703 = vmatpush1.bf16.msra.mxu0 0
    %4704 = vmatprep.subr.bf16.mxu0 0
    %4705 = vmatpush1.bf16.msra.mxu0 0
    %4706 = vmatprep.subr.bf16.mxu0 0
    %4707 = vmatpush1.bf16.msra.mxu0 0
    %4708 = vmatprep.subr.bf16.mxu0 0
    %4709 = vmatpush1.bf16.msra.mxu0 0
    %4710 = vmatprep.mubr.bf16.mxu0 0
    %4711 = vmatmul.mubr.bf16.gmra.mrb[0].mxu0 %v4636
    %v4712 = vpop.f32.mrb[0].mxu0
    %v4713 = vadd.f32 %v891, %v4712
    %v4714 = vpop.f32.mrb[0].mxu0
    %v4715 = vpop.f32.mrb[0].mxu0
    %v4716 = vpop.f32.mrb[0].mxu0
    %4717 = vdwg.mxu0
    %v4718 = vpack.c.bf16 %v4530, %v4530
    %4719 = vmatprep.subr.bf16.mxu0 %v1186
    %4720 = vmatpush1.bf16.msra.mxu0 %v1185
    %4721 = vmatprep.subr.bf16.mxu0 %v1189
    %4722 = vmatpush1.bf16.msra.mxu0 %v1188
    %4723 = vmatprep.subr.bf16.mxu0 %v1192
    %4724 = vmatpush1.bf16.msra.mxu0 %v1191
    %4725 = vmatprep.subr.bf16.mxu0 %v1195
    %4726 = vmatpush1.bf16.msra.mxu0 %v1194
    %4727 = vmatprep.subr.bf16.mxu0 %v1198
    %4728 = vmatpush1.bf16.msra.mxu0 %v1197
    %4729 = vmatprep.subr.bf16.mxu0 %v1201
    %4730 = vmatpush1.bf16.msra.mxu0 %v1200
    %4731 = vmatprep.subr.bf16.mxu0 %v1204
    %4732 = vmatpush1.bf16.msra.mxu0 %v1203
    %4733 = vmatprep.subr.bf16.mxu0 %v1207
    %4734 = vmatpush1.bf16.msra.mxu0 %v1206
    %4735 = vmatprep.subr.bf16.mxu0 0
    %4736 = vmatpush1.bf16.msra.mxu0 0
    %4737 = vmatprep.subr.bf16.mxu0 0
    %4738 = vmatpush1.bf16.msra.mxu0 0
    %4739 = vmatprep.subr.bf16.mxu0 0
    %4740 = vmatpush1.bf16.msra.mxu0 0
    %4741 = vmatprep.subr.bf16.mxu0 0
    %4742 = vmatpush1.bf16.msra.mxu0 0
    %4743 = vmatprep.subr.bf16.mxu0 0
    %4744 = vmatpush1.bf16.msra.mxu0 0
    %4745 = vmatprep.subr.bf16.mxu0 0
    %4746 = vmatpush1.bf16.msra.mxu0 0
    %4747 = vmatprep.subr.bf16.mxu0 0
    %4748 = vmatpush1.bf16.msra.mxu0 0
    %4749 = vmatprep.subr.bf16.mxu0 0
    %4750 = vmatpush1.bf16.msra.mxu0 0
    %4751 = vmatprep.mubr.bf16.mxu0 0
    %4752 = vmatmul.mubr.bf16.gmra.mrb[0].mxu0 %v4718
    %v4753 = vpop.f32.mrb[0].mxu0
    %v4754 = vadd.f32 0.0, %v4753
    %v4755 = vpop.f32.mrb[0].mxu0
    %v4756 = vadd.f32 0.0, %v4755
    %v4757 = vpop.f32.mrb[0].mxu0
    %v4758 = vpop.f32.mrb[0].mxu0
    %4759 = vdwg.mxu0
    %4760 = vmatprep.subr.bf16.mxu0 0
    %4761 = vmatpush1.bf16.msra.mxu0 %v1187
    %4762 = vmatprep.subr.bf16.mxu0 0
    %4763 = vmatpush1.bf16.msra.mxu0 %v1190
    %4764 = vmatprep.subr.bf16.mxu0 0
    %4765 = vmatpush1.bf16.msra.mxu0 %v1193
    %4766 = vmatprep.subr.bf16.mxu0 0
    %4767 = vmatpush1.bf16.msra.mxu0 %v1196
    %4768 = vmatprep.subr.bf16.mxu0 0
    %4769 = vmatpush1.bf16.msra.mxu0 %v1199
    %4770 = vmatprep.subr.bf16.mxu0 0
    %4771 = vmatpush1.bf16.msra.mxu0 %v1202
    %4772 = vmatprep.subr.bf16.mxu0 0
    %4773 = vmatpush1.bf16.msra.mxu0 %v1205
    %4774 = vmatprep.subr.bf16.mxu0 0
    %4775 = vmatpush1.bf16.msra.mxu0 %v1208
    %4776 = vmatprep.subr.bf16.mxu0 0
    %4777 = vmatpush1.bf16.msra.mxu0 0
    %4778 = vmatprep.subr.bf16.mxu0 0
    %4779 = vmatpush1.bf16.msra.mxu0 0
    %4780 = vmatprep.subr.bf16.mxu0 0
    %4781 = vmatpush1.bf16.msra.mxu0 0
    %4782 = vmatprep.subr.bf16.mxu0 0
    %4783 = vmatpush1.bf16.msra.mxu0 0
    %4784 = vmatprep.subr.bf16.mxu0 0
    %4785 = vmatpush1.bf16.msra.mxu0 0
    %4786 = vmatprep.subr.bf16.mxu0 0
    %4787 = vmatpush1.bf16.msra.mxu0 0
    %4788 = vmatprep.subr.bf16.mxu0 0
    %4789 = vmatpush1.bf16.msra.mxu0 0
    %4790 = vmatprep.subr.bf16.mxu0 0
    %4791 = vmatpush1.bf16.msra.mxu0 0
    %4792 = vmatprep.mubr.bf16.mxu0 0
    %4793 = vmatmul.mubr.bf16.gmra.mrb[0].mxu0 %v4718
    %v4794 = vpop.f32.mrb[0].mxu0
    %v4795 = vadd.f32 0.0, %v4794
    %v4796 = vpop.f32.mrb[0].mxu0
    %v4797 = vpop.f32.mrb[0].mxu0
    %v4798 = vpop.f32.mrb[0].mxu0
    %4799 = vdwg.mxu0
    %v4800 = vadd.f32 %v4672, %v4754
    %v4801 = vadd.f32 %v4674, %v4756
    %v4802 = vxor.u32 %v4800, 2147483648
    %v4803 = vxor.u32 %v4801, 2147483648
    %v4804 = vmul.f32 %v4802, 1.442695
    %v4805 = vpow.pop %v4804
    %v4806 = vmul.f32 %v4803, 1.442695
    %v4807 = vpow.pop %v4806
    %v4808 = vadd.f32 %v4805, 1.0
    %v4809 = vadd.f32 %v4807, 1.0
    %v4810 = vrcp.pop %v4808
    %v4811 = vmul.f32 1.0, %v4810
    %v4812 = vrcp.pop %v4809
    %v4813 = vmul.f32 1.0, %v4812
    %v4814 = vadd.f32 %v4795, %v1332
    %v4815 = vmul.f32 %v4811, %v4814
    %v4816 = vadd.f32 %v4713, %v4815
    %v4817 = vtanh.pop %v4816
    %v4818 = vsub.f32 %v4530, %v4817
    %v4819 = vmul.f32 %v4813, %v4818
    %v4820 = vadd.f32 %v4817, %v4819
    %v4821 = vld [vmem:[#allocation2 + $0x138] sm:$0xff]
    %v4822 = vld [vmem:[#allocation2 + $0x140] sm:$0xff]
    %v4823 = vld [vmem:[#allocation2 + $0x148] sm:$0xff]
    %4824 = vmatprep.subr.bf16.mxu0 %v723
    %4825 = vmatpush1.bf16.msra.mxu0 %v722
    %4826 = vmatprep.subr.bf16.mxu0 %v726
    %4827 = vmatpush1.bf16.msra.mxu0 %v725
    %4828 = vmatprep.subr.bf16.mxu0 %v729
    %4829 = vmatpush1.bf16.msra.mxu0 %v728
    %4830 = vmatprep.subr.bf16.mxu0 %v732
    %4831 = vmatpush1.bf16.msra.mxu0 %v731
    %4832 = vmatprep.subr.bf16.mxu0 %v735
    %4833 = vmatpush1.bf16.msra.mxu0 %v734
    %4834 = vmatprep.subr.bf16.mxu0 %v738
    %4835 = vmatpush1.bf16.msra.mxu0 %v737
    %4836 = vmatprep.subr.bf16.mxu0 %v741
    %4837 = vmatpush1.bf16.msra.mxu0 %v740
    %4838 = vmatprep.subr.bf16.mxu0 %v744
    %4839 = vmatpush1.bf16.msra.mxu0 %v743
    %4840 = vmatprep.subr.bf16.mxu0 0
    %4841 = vmatpush1.bf16.msra.mxu0 0
    %4842 = vmatprep.subr.bf16.mxu0 0
    %4843 = vmatpush1.bf16.msra.mxu0 0
    %4844 = vmatprep.subr.bf16.mxu0 0
    %4845 = vmatpush1.bf16.msra.mxu0 0
    %4846 = vmatprep.subr.bf16.mxu0 0
    %4847 = vmatpush1.bf16.msra.mxu0 0
    %4848 = vmatprep.subr.bf16.mxu0 0
    %4849 = vmatpush1.bf16.msra.mxu0 0
    %4850 = vmatprep.subr.bf16.mxu0 0
    %4851 = vmatpush1.bf16.msra.mxu0 0
    %4852 = vmatprep.subr.bf16.mxu0 0
    %4853 = vmatpush1.bf16.msra.mxu0 0
    %4854 = vmatprep.subr.bf16.mxu0 0
    %4855 = vmatpush1.bf16.msra.mxu0 0
    %4856 = vmatprep.mubr.bf16.mxu0 0
    %4857 = vmatmul.mubr.bf16.gmra.mrb[0].mxu0 %v4636
    %v4858 = vpop.f32.mrb[0].mxu0
    %v4859 = vadd.f32 0.0, %v4858
    %v4860 = vpop.f32.mrb[0].mxu0
    %v4861 = vadd.f32 0.0, %v4860
    %v4862 = vpop.f32.mrb[0].mxu0
    %v4863 = vpop.f32.mrb[0].mxu0
    %4864 = vdwg.mxu0
    %4865 = vmatprep.subr.bf16.mxu0 0
    %4866 = vmatpush1.bf16.msra.mxu0 %v724
    %4867 = vmatprep.subr.bf16.mxu0 0
    %4868 = vmatpush1.bf16.msra.mxu0 %v727
    %4869 = vmatprep.subr.bf16.mxu0 0
    %4870 = vmatpush1.bf16.msra.mxu0 %v730
    %4871 = vmatprep.subr.bf16.mxu0 0
    %4872 = vmatpush1.bf16.msra.mxu0 %v733
    %4873 = vmatprep.subr.bf16.mxu0 0
    %4874 = vmatpush1.bf16.msra.mxu0 %v736
    %4875 = vmatprep.subr.bf16.mxu0 0
    %4876 = vmatpush1.bf16.msra.mxu0 %v739
    %4877 = vmatprep.subr.bf16.mxu0 0
    %4878 = vmatpush1.bf16.msra.mxu0 %v742
    %4879 = vmatprep.subr.bf16.mxu0 0
    %4880 = vmatpush1.bf16.msra.mxu0 %v745
    %4881 = vmatprep.subr.bf16.mxu0 0
    %4882 = vmatpush1.bf16.msra.mxu0 0
    %4883 = vmatprep.subr.bf16.mxu0 0
    %4884 = vmatpush1.bf16.msra.mxu0 0
    %4885 = vmatprep.subr.bf16.mxu0 0
    %4886 = vmatpush1.bf16.msra.mxu0 0
    %4887 = vmatprep.subr.bf16.mxu0 0
    %4888 = vmatpush1.bf16.msra.mxu0 0
    %4889 = vmatprep.subr.bf16.mxu0 0
    %4890 = vmatpush1.bf16.msra.mxu0 0
    %4891 = vmatprep.subr.bf16.mxu0 0
    %4892 = vmatpush1.bf16.msra.mxu0 0
    %4893 = vmatprep.subr.bf16.mxu0 0
    %4894 = vmatpush1.bf16.msra.mxu0 0
    %4895 = vmatprep.subr.bf16.mxu0 0
    %4896 = vmatpush1.bf16.msra.mxu0 0
    %4897 = vmatprep.mubr.bf16.mxu0 0
    %4898 = vmatmul.mubr.bf16.gmra.mrb[0].mxu0 %v4636
    %v4899 = vpop.f32.mrb[0].mxu0
    %v4900 = vadd.f32 0.0, %v4899
    %v4901 = vpop.f32.mrb[0].mxu0
    %v4902 = vpop.f32.mrb[0].mxu0
    %v4903 = vpop.f32.mrb[0].mxu0
    %4904 = vdwg.mxu0
    %v4905 = vadd.f32 %v4821, %v4859
    %v4906 = vadd.f32 %v4822, %v4861
    %v4907 = vxor.u32 %v4905, 2147483648
    %v4908 = vxor.u32 %v4906, 2147483648
    %v4909 = vmul.f32 %v4907, 1.442695
    %v4910 = vpow.pop %v4909
    %v4911 = vmul.f32 %v4908, 1.442695
    %v4912 = vpow.pop %v4911
    %v4913 = vadd.f32 %v4910, 1.0
    %v4914 = vadd.f32 %v4912, 1.0
    %v4915 = vrcp.pop %v4913
    %v4916 = vmul.f32 1.0, %v4915
    %v4917 = vrcp.pop %v4914
    %v4918 = vmul.f32 1.0, %v4917
    %v4919 = vadd.f32 %v4900, %v869
    %v4920 = vmul.f32 %v4916, %v4919
    %v4921 = vadd.f32 %v4823, %v4920
    %v4922 = vtanh.pop %v4921
    %v4923 = vsub.f32 %v4635, %v4922
    %v4924 = vmul.f32 %v4918, %v4923
    %v4925 = vadd.f32 %v4922, %v4924
    %v4926 = vpack.c.bf16 %v4925, %v4925
    %4927 = vmatprep.subr.bf16.mxu0 %v976
    %4928 = vmatpush1.bf16.msra.mxu0 %v975
    %4929 = vmatprep.subr.bf16.mxu0 %v979
    %4930 = vmatpush1.bf16.msra.mxu0 %v978
    %4931 = vmatprep.subr.bf16.mxu0 %v982
    %4932 = vmatpush1.bf16.msra.mxu0 %v981
    %4933 = vmatprep.subr.bf16.mxu0 %v985
    %4934 = vmatpush1.bf16.msra.mxu0 %v984
    %4935 = vmatprep.subr.bf16.mxu0 %v988
    %4936 = vmatpush1.bf16.msra.mxu0 %v987
    %4937 = vmatprep.subr.bf16.mxu0 %v991
    %4938 = vmatpush1.bf16.msra.mxu0 %v990
    %4939 = vmatprep.subr.bf16.mxu0 %v994
    %4940 = vmatpush1.bf16.msra.mxu0 %v993
    %4941 = vmatprep.subr.bf16.mxu0 %v997
    %4942 = vmatpush1.bf16.msra.mxu0 %v996
    %4943 = vmatprep.subr.bf16.mxu0 0
    %4944 = vmatpush1.bf16.msra.mxu0 0
    %4945 = vmatprep.subr.bf16.mxu0 0
    %4946 = vmatpush1.bf16.msra.mxu0 0
    %4947 = vmatprep.subr.bf16.mxu0 0
    %4948 = vmatpush1.bf16.msra.mxu0 0
    %4949 = vmatprep.subr.bf16.mxu0 0
    %4950 = vmatpush1.bf16.msra.mxu0 0
    %4951 = vmatprep.subr.bf16.mxu0 0
    %4952 = vmatpush1.bf16.msra.mxu0 0
    %4953 = vmatprep.subr.bf16.mxu0 0
    %4954 = vmatpush1.bf16.msra.mxu0 0
    %4955 = vmatprep.subr.bf16.mxu0 0
    %4956 = vmatpush1.bf16.msra.mxu0 0
    %4957 = vmatprep.subr.bf16.mxu0 0
    %4958 = vmatpush1.bf16.msra.mxu0 0
    %4959 = vmatprep.mubr.bf16.mxu0 0
    %4960 = vmatmul.mubr.bf16.gmra.mrb[0].mxu0 %v4926
    %v4961 = vpop.f32.mrb[0].mxu0
    %v4962 = vadd.f32 %v883, %v4961
    %v4963 = vpop.f32.mrb[0].mxu0
    %v4964 = vadd.f32 %v887, %v4963
    %v4965 = vpop.f32.mrb[0].mxu0
    %v4966 = vpop.f32.mrb[0].mxu0
    %4967 = vdwg.mxu0
    %4968 = vmatprep.subr.bf16.mxu0 0
    %4969 = vmatpush1.bf16.msra.mxu0 %v977
    %4970 = vmatprep.subr.bf16.mxu0 0
    %4971 = vmatpush1.bf16.msra.mxu0 %v980
    %4972 = vmatprep.subr.bf16.mxu0 0
    %4973 = vmatpush1.bf16.msra.mxu0 %v983
    %4974 = vmatprep.subr.bf16.mxu0 0
    %4975 = vmatpush1.bf16.msra.mxu0 %v986
    %4976 = vmatprep.subr.bf16.mxu0 0
    %4977 = vmatpush1.bf16.msra.mxu0 %v989
    %4978 = vmatprep.subr.bf16.mxu0 0
    %4979 = vmatpush1.bf16.msra.mxu0 %v992
    %4980 = vmatprep.subr.bf16.mxu0 0
    %4981 = vmatpush1.bf16.msra.mxu0 %v995
    %4982 = vmatprep.subr.bf16.mxu0 0
    %4983 = vmatpush1.bf16.msra.mxu0 %v998
    %4984 = vmatprep.subr.bf16.mxu0 0
    %4985 = vmatpush1.bf16.msra.mxu0 0
    %4986 = vmatprep.subr.bf16.mxu0 0
    %4987 = vmatpush1.bf16.msra.mxu0 0
    %4988 = vmatprep.subr.bf16.mxu0 0
    %4989 = vmatpush1.bf16.msra.mxu0 0
    %4990 = vmatprep.subr.bf16.mxu0 0
    %4991 = vmatpush1.bf16.msra.mxu0 0
    %4992 = vmatprep.subr.bf16.mxu0 0
    %4993 = vmatpush1.bf16.msra.mxu0 0
    %4994 = vmatprep.subr.bf16.mxu0 0
    %4995 = vmatpush1.bf16.msra.mxu0 0
    %4996 = vmatprep.subr.bf16.mxu0 0
    %4997 = vmatpush1.bf16.msra.mxu0 0
    %4998 = vmatprep.subr.bf16.mxu0 0
    %4999 = vmatpush1.bf16.msra.mxu0 0
    %5000 = vmatprep.mubr.bf16.mxu0 0
    %5001 = vmatmul.mubr.bf16.gmra.mrb[0].mxu0 %v4926
    %v5002 = vpop.f32.mrb[0].mxu0
    %v5003 = vadd.f32 %v891, %v5002
    %v5004 = vpop.f32.mrb[0].mxu0
    %v5005 = vpop.f32.mrb[0].mxu0
    %v5006 = vpop.f32.mrb[0].mxu0
    %5007 = vdwg.mxu0
    %v5008 = vpack.c.bf16 %v4820, %v4820
    %5009 = vmatprep.subr.bf16.mxu0 %v1186
    %5010 = vmatpush1.bf16.msra.mxu0 %v1185
    %5011 = vmatprep.subr.bf16.mxu0 %v1189
    %5012 = vmatpush1.bf16.msra.mxu0 %v1188
    %5013 = vmatprep.subr.bf16.mxu0 %v1192
    %5014 = vmatpush1.bf16.msra.mxu0 %v1191
    %5015 = vmatprep.subr.bf16.mxu0 %v1195
    %5016 = vmatpush1.bf16.msra.mxu0 %v1194
    %5017 = vmatprep.subr.bf16.mxu0 %v1198
    %5018 = vmatpush1.bf16.msra.mxu0 %v1197
    %5019 = vmatprep.subr.bf16.mxu0 %v1201
    %5020 = vmatpush1.bf16.msra.mxu0 %v1200
    %5021 = vmatprep.subr.bf16.mxu0 %v1204
    %5022 = vmatpush1.bf16.msra.mxu0 %v1203
    %5023 = vmatprep.subr.bf16.mxu0 %v1207
    %5024 = vmatpush1.bf16.msra.mxu0 %v1206
    %5025 = vmatprep.subr.bf16.mxu0 0
    %5026 = vmatpush1.bf16.msra.mxu0 0
    %5027 = vmatprep.subr.bf16.mxu0 0
    %5028 = vmatpush1.bf16.msra.mxu0 0
    %5029 = vmatprep.subr.bf16.mxu0 0
    %5030 = vmatpush1.bf16.msra.mxu0 0
    %5031 = vmatprep.subr.bf16.mxu0 0
    %5032 = vmatpush1.bf16.msra.mxu0 0
    %5033 = vmatprep.subr.bf16.mxu0 0
    %5034 = vmatpush1.bf16.msra.mxu0 0
    %5035 = vmatprep.subr.bf16.mxu0 0
    %5036 = vmatpush1.bf16.msra.mxu0 0
    %5037 = vmatprep.subr.bf16.mxu0 0
    %5038 = vmatpush1.bf16.msra.mxu0 0
    %5039 = vmatprep.subr.bf16.mxu0 0
    %5040 = vmatpush1.bf16.msra.mxu0 0
    %5041 = vmatprep.mubr.bf16.mxu0 0
    %5042 = vmatmul.mubr.bf16.gmra.mrb[0].mxu0 %v5008
    %v5043 = vpop.f32.mrb[0].mxu0
    %v5044 = vadd.f32 0.0, %v5043
    %v5045 = vpop.f32.mrb[0].mxu0
    %v5046 = vadd.f32 0.0, %v5045
    %v5047 = vpop.f32.mrb[0].mxu0
    %v5048 = vpop.f32.mrb[0].mxu0
    %5049 = vdwg.mxu0
    %5050 = vmatprep.subr.bf16.mxu0 0
    %5051 = vmatpush1.bf16.msra.mxu0 %v1187
    %5052 = vmatprep.subr.bf16.mxu0 0
    %5053 = vmatpush1.bf16.msra.mxu0 %v1190
    %5054 = vmatprep.subr.bf16.mxu0 0
    %5055 = vmatpush1.bf16.msra.mxu0 %v1193
    %5056 = vmatprep.subr.bf16.mxu0 0
    %5057 = vmatpush1.bf16.msra.mxu0 %v1196
    %5058 = vmatprep.subr.bf16.mxu0 0
    %5059 = vmatpush1.bf16.msra.mxu0 %v1199
    %5060 = vmatprep.subr.bf16.mxu0 0
    %5061 = vmatpush1.bf16.msra.mxu0 %v1202
    %5062 = vmatprep.subr.bf16.mxu0 0
    %5063 = vmatpush1.bf16.msra.mxu0 %v1205
    %5064 = vmatprep.subr.bf16.mxu0 0
    %5065 = vmatpush1.bf16.msra.mxu0 %v1208
    %5066 = vmatprep.subr.bf16.mxu0 0
    %5067 = vmatpush1.bf16.msra.mxu0 0
    %5068 = vmatprep.subr.bf16.mxu0 0
    %5069 = vmatpush1.bf16.msra.mxu0 0
    %5070 = vmatprep.subr.bf16.mxu0 0
    %5071 = vmatpush1.bf16.msra.mxu0 0
    %5072 = vmatprep.subr.bf16.mxu0 0
    %5073 = vmatpush1.bf16.msra.mxu0 0
    %5074 = vmatprep.subr.bf16.mxu0 0
    %5075 = vmatpush1.bf16.msra.mxu0 0
    %5076 = vmatprep.subr.bf16.mxu0 0
    %5077 = vmatpush1.bf16.msra.mxu0 0
    %5078 = vmatprep.subr.bf16.mxu0 0
    %5079 = vmatpush1.bf16.msra.mxu0 0
    %5080 = vmatprep.subr.bf16.mxu0 0
    %5081 = vmatpush1.bf16.msra.mxu0 0
    %5082 = vmatprep.mubr.bf16.mxu0 0
    %5083 = vmatmul.mubr.bf16.gmra.mrb[0].mxu0 %v5008
    %v5084 = vpop.f32.mrb[0].mxu0
    %v5085 = vadd.f32 0.0, %v5084
    %v5086 = vpop.f32.mrb[0].mxu0
    %v5087 = vpop.f32.mrb[0].mxu0
    %v5088 = vpop.f32.mrb[0].mxu0
    %5089 = vdwg.mxu0
    %v5090 = vadd.f32 %v4962, %v5044
    %v5091 = vadd.f32 %v4964, %v5046
    %v5092 = vxor.u32 %v5090, 2147483648
    %v5093 = vxor.u32 %v5091, 2147483648
    %v5094 = vmul.f32 %v5092, 1.442695
    %v5095 = vpow.pop %v5094
    %v5096 = vmul.f32 %v5093, 1.442695
    %v5097 = vpow.pop %v5096
    %v5098 = vadd.f32 %v5095, 1.0
    %v5099 = vadd.f32 %v5097, 1.0
    %v5100 = vrcp.pop %v5098
    %v5101 = vmul.f32 1.0, %v5100
    %v5102 = vrcp.pop %v5099
    %v5103 = vmul.f32 1.0, %v5102
    %v5104 = vadd.f32 %v5085, %v1332
    %v5105 = vmul.f32 %v5101, %v5104
    %v5106 = vadd.f32 %v5003, %v5105
    %v5107 = vtanh.pop %v5106
    %v5108 = vsub.f32 %v4820, %v5107
    %v5109 = vmul.f32 %v5103, %v5108
    %v5110 = vadd.f32 %v5107, %v5109
    %v5111 = vld [vmem:[#allocation2 + $0x150] sm:$0xff]
    %v5112 = vld [vmem:[#allocation2 + $0x158] sm:$0xff]
    %v5113 = vld [vmem:[#allocation2 + $0x160] sm:$0xff]
    %5114 = vmatprep.subr.bf16.mxu0 %v723
    %5115 = vmatpush1.bf16.msra.mxu0 %v722
    %5116 = vmatprep.subr.bf16.mxu0 %v726
    %5117 = vmatpush1.bf16.msra.mxu0 %v725
    %5118 = vmatprep.subr.bf16.mxu0 %v729
    %5119 = vmatpush1.bf16.msra.mxu0 %v728
    %5120 = vmatprep.subr.bf16.mxu0 %v732
    %5121 = vmatpush1.bf16.msra.mxu0 %v731
    %5122 = vmatprep.subr.bf16.mxu0 %v735
    %5123 = vmatpush1.bf16.msra.mxu0 %v734
    %5124 = vmatprep.subr.bf16.mxu0 %v738
    %5125 = vmatpush1.bf16.msra.mxu0 %v737
    %5126 = vmatprep.subr.bf16.mxu0 %v741
    %5127 = vmatpush1.bf16.msra.mxu0 %v740
    %5128 = vmatprep.subr.bf16.mxu0 %v744
    %5129 = vmatpush1.bf16.msra.mxu0 %v743
    %5130 = vmatprep.subr.bf16.mxu0 0
    %5131 = vmatpush1.bf16.msra.mxu0 0
    %5132 = vmatprep.subr.bf16.mxu0 0
    %5133 = vmatpush1.bf16.msra.mxu0 0
    %5134 = vmatprep.subr.bf16.mxu0 0
    %5135 = vmatpush1.bf16.msra.mxu0 0
    %5136 = vmatprep.subr.bf16.mxu0 0
    %5137 = vmatpush1.bf16.msra.mxu0 0
    %5138 = vmatprep.subr.bf16.mxu0 0
    %5139 = vmatpush1.bf16.msra.mxu0 0
    %5140 = vmatprep.subr.bf16.mxu0 0
    %5141 = vmatpush1.bf16.msra.mxu0 0
    %5142 = vmatprep.subr.bf16.mxu0 0
    %5143 = vmatpush1.bf16.msra.mxu0 0
    %5144 = vmatprep.subr.bf16.mxu0 0
    %5145 = vmatpush1.bf16.msra.mxu0 0
    %5146 = vmatprep.mubr.bf16.mxu0 0
    %5147 = vmatmul.mubr.bf16.gmra.mrb[0].mxu0 %v4926
    %v5148 = vpop.f32.mrb[0].mxu0
    %v5149 = vadd.f32 0.0, %v5148
    %v5150 = vpop.f32.mrb[0].mxu0
    %v5151 = vadd.f32 0.0, %v5150
    %v5152 = vpop.f32.mrb[0].mxu0
    %v5153 = vpop.f32.mrb[0].mxu0
    %5154 = vdwg.mxu0
    %5155 = vmatprep.subr.bf16.mxu0 0
    %5156 = vmatpush1.bf16.msra.mxu0 %v724
    %5157 = vmatprep.subr.bf16.mxu0 0
    %5158 = vmatpush1.bf16.msra.mxu0 %v727
    %5159 = vmatprep.subr.bf16.mxu0 0
    %5160 = vmatpush1.bf16.msra.mxu0 %v730
    %5161 = vmatprep.subr.bf16.mxu0 0
    %5162 = vmatpush1.bf16.msra.mxu0 %v733
    %5163 = vmatprep.subr.bf16.mxu0 0
    %5164 = vmatpush1.bf16.msra.mxu0 %v736
    %5165 = vmatprep.subr.bf16.mxu0 0
    %5166 = vmatpush1.bf16.msra.mxu0 %v739
    %5167 = vmatprep.subr.bf16.mxu0 0
    %5168 = vmatpush1.bf16.msra.mxu0 %v742
    %5169 = vmatprep.subr.bf16.mxu0 0
    %5170 = vmatpush1.bf16.msra.mxu0 %v745
    %5171 = vmatprep.subr.bf16.mxu0 0
    %5172 = vmatpush1.bf16.msra.mxu0 0
    %5173 = vmatprep.subr.bf16.mxu0 0
    %5174 = vmatpush1.bf16.msra.mxu0 0
    %5175 = vmatprep.subr.bf16.mxu0 0
    %5176 = vmatpush1.bf16.msra.mxu0 0
    %5177 = vmatprep.subr.bf16.mxu0 0
    %5178 = vmatpush1.bf16.msra.mxu0 0
    %5179 = vmatprep.subr.bf16.mxu0 0
    %5180 = vmatpush1.bf16.msra.mxu0 0
    %5181 = vmatprep.subr.bf16.mxu0 0
    %5182 = vmatpush1.bf16.msra.mxu0 0
    %5183 = vmatprep.subr.bf16.mxu0 0
    %5184 = vmatpush1.bf16.msra.mxu0 0
    %5185 = vmatprep.subr.bf16.mxu0 0
    %5186 = vmatpush1.bf16.msra.mxu0 0
    %5187 = vmatprep.mubr.bf16.mxu0 0
    %5188 = vmatmul.mubr.bf16.gmra.mrb[0].mxu0 %v4926
    %v5189 = vpop.f32.mrb[0].mxu0
    %v5190 = vadd.f32 0.0, %v5189
    %v5191 = vpop.f32.mrb[0].mxu0
    %v5192 = vpop.f32.mrb[0].mxu0
    %v5193 = vpop.f32.mrb[0].mxu0
    %5194 = vdwg.mxu0
    %v5195 = vadd.f32 %v5111, %v5149
    %v5196 = vadd.f32 %v5112, %v5151
    %v5197 = vxor.u32 %v5195, 2147483648
    %v5198 = vxor.u32 %v5196, 2147483648
    %v5199 = vmul.f32 %v5197, 1.442695
    %v5200 = vpow.pop %v5199
    %v5201 = vmul.f32 %v5198, 1.442695
    %v5202 = vpow.pop %v5201
    %v5203 = vadd.f32 %v5200, 1.0
    %v5204 = vadd.f32 %v5202, 1.0
    %v5205 = vrcp.pop %v5203
    %v5206 = vmul.f32 1.0, %v5205
    %v5207 = vrcp.pop %v5204
    %v5208 = vmul.f32 1.0, %v5207
    %v5209 = vadd.f32 %v5190, %v869
    %v5210 = vmul.f32 %v5206, %v5209
    %v5211 = vadd.f32 %v5113, %v5210
    %v5212 = vtanh.pop %v5211
    %v5213 = vsub.f32 %v4925, %v5212
    %v5214 = vmul.f32 %v5208, %v5213
    %v5215 = vadd.f32 %v5212, %v5214
    %v5216 = vpack.c.bf16 %v5215, %v5215
    %5217 = vmatprep.subr.bf16.mxu0 %v976
    %5218 = vmatpush1.bf16.msra.mxu0 %v975
    %5219 = vmatprep.subr.bf16.mxu0 %v979
    %5220 = vmatpush1.bf16.msra.mxu0 %v978
    %5221 = vmatprep.subr.bf16.mxu0 %v982
    %5222 = vmatpush1.bf16.msra.mxu0 %v981
    %5223 = vmatprep.subr.bf16.mxu0 %v985
    %5224 = vmatpush1.bf16.msra.mxu0 %v984
    %5225 = vmatprep.subr.bf16.mxu0 %v988
    %5226 = vmatpush1.bf16.msra.mxu0 %v987
    %5227 = vmatprep.subr.bf16.mxu0 %v991
    %5228 = vmatpush1.bf16.msra.mxu0 %v990
    %5229 = vmatprep.subr.bf16.mxu0 %v994
    %5230 = vmatpush1.bf16.msra.mxu0 %v993
    %5231 = vmatprep.subr.bf16.mxu0 %v997
    %5232 = vmatpush1.bf16.msra.mxu0 %v996
    %5233 = vmatprep.subr.bf16.mxu0 0
    %5234 = vmatpush1.bf16.msra.mxu0 0
    %5235 = vmatprep.subr.bf16.mxu0 0
    %5236 = vmatpush1.bf16.msra.mxu0 0
    %5237 = vmatprep.subr.bf16.mxu0 0
    %5238 = vmatpush1.bf16.msra.mxu0 0
    %5239 = vmatprep.subr.bf16.mxu0 0
    %5240 = vmatpush1.bf16.msra.mxu0 0
    %5241 = vmatprep.subr.bf16.mxu0 0
    %5242 = vmatpush1.bf16.msra.mxu0 0
    %5243 = vmatprep.subr.bf16.mxu0 0
    %5244 = vmatpush1.bf16.msra.mxu0 0
    %5245 = vmatprep.subr.bf16.mxu0 0
    %5246 = vmatpush1.bf16.msra.mxu0 0
    %5247 = vmatprep.subr.bf16.mxu0 0
    %5248 = vmatpush1.bf16.msra.mxu0 0
    %5249 = vmatprep.mubr.bf16.mxu0 0
    %5250 = vmatmul.mubr.bf16.gmra.mrb[0].mxu0 %v5216
    %v5251 = vpop.f32.mrb[0].mxu0
    %v5252 = vadd.f32 %v883, %v5251
    %v5253 = vpop.f32.mrb[0].mxu0
    %v5254 = vadd.f32 %v887, %v5253
    %v5255 = vpop.f32.mrb[0].mxu0
    %v5256 = vpop.f32.mrb[0].mxu0
    %5257 = vdwg.mxu0
    %5258 = vmatprep.subr.bf16.mxu0 0
    %5259 = vmatpush1.bf16.msra.mxu0 %v977
    %5260 = vmatprep.subr.bf16.mxu0 0
    %5261 = vmatpush1.bf16.msra.mxu0 %v980
    %5262 = vmatprep.subr.bf16.mxu0 0
    %5263 = vmatpush1.bf16.msra.mxu0 %v983
    %5264 = vmatprep.subr.bf16.mxu0 0
    %5265 = vmatpush1.bf16.msra.mxu0 %v986
    %5266 = vmatprep.subr.bf16.mxu0 0
    %5267 = vmatpush1.bf16.msra.mxu0 %v989
    %5268 = vmatprep.subr.bf16.mxu0 0
    %5269 = vmatpush1.bf16.msra.mxu0 %v992
    %5270 = vmatprep.subr.bf16.mxu0 0
    %5271 = vmatpush1.bf16.msra.mxu0 %v995
    %5272 = vmatprep.subr.bf16.mxu0 0
    %5273 = vmatpush1.bf16.msra.mxu0 %v998
    %5274 = vmatprep.subr.bf16.mxu0 0
    %5275 = vmatpush1.bf16.msra.mxu0 0
    %5276 = vmatprep.subr.bf16.mxu0 0
    %5277 = vmatpush1.bf16.msra.mxu0 0
    %5278 = vmatprep.subr.bf16.mxu0 0
    %5279 = vmatpush1.bf16.msra.mxu0 0
    %5280 = vmatprep.subr.bf16.mxu0 0
    %5281 = vmatpush1.bf16.msra.mxu0 0
    %5282 = vmatprep.subr.bf16.mxu0 0
    %5283 = vmatpush1.bf16.msra.mxu0 0
    %5284 = vmatprep.subr.bf16.mxu0 0
    %5285 = vmatpush1.bf16.msra.mxu0 0
    %5286 = vmatprep.subr.bf16.mxu0 0
    %5287 = vmatpush1.bf16.msra.mxu0 0
    %5288 = vmatprep.subr.bf16.mxu0 0
    %5289 = vmatpush1.bf16.msra.mxu0 0
    %5290 = vmatprep.mubr.bf16.mxu0 0
    %5291 = vmatmul.mubr.bf16.gmra.mrb[0].mxu0 %v5216
    %v5292 = vpop.f32.mrb[0].mxu0
    %v5293 = vadd.f32 %v891, %v5292
    %v5294 = vpop.f32.mrb[0].mxu0
    %v5295 = vpop.f32.mrb[0].mxu0
    %v5296 = vpop.f32.mrb[0].mxu0
    %5297 = vdwg.mxu0
    %v5298 = vpack.c.bf16 %v5110, %v5110
    %5299 = vmatprep.subr.bf16.mxu0 %v1186
    %5300 = vmatpush1.bf16.msra.mxu0 %v1185
    %5301 = vmatprep.subr.bf16.mxu0 %v1189
    %5302 = vmatpush1.bf16.msra.mxu0 %v1188
    %5303 = vmatprep.subr.bf16.mxu0 %v1192
    %5304 = vmatpush1.bf16.msra.mxu0 %v1191
    %5305 = vmatprep.subr.bf16.mxu0 %v1195
    %5306 = vmatpush1.bf16.msra.mxu0 %v1194
    %5307 = vmatprep.subr.bf16.mxu0 %v1198
    %5308 = vmatpush1.bf16.msra.mxu0 %v1197
    %5309 = vmatprep.subr.bf16.mxu0 %v1201
    %5310 = vmatpush1.bf16.msra.mxu0 %v1200
    %5311 = vmatprep.subr.bf16.mxu0 %v1204
    %5312 = vmatpush1.bf16.msra.mxu0 %v1203
    %5313 = vmatprep.subr.bf16.mxu0 %v1207
    %5314 = vmatpush1.bf16.msra.mxu0 %v1206
    %5315 = vmatprep.subr.bf16.mxu0 0
    %5316 = vmatpush1.bf16.msra.mxu0 0
    %5317 = vmatprep.subr.bf16.mxu0 0
    %5318 = vmatpush1.bf16.msra.mxu0 0
    %5319 = vmatprep.subr.bf16.mxu0 0
    %5320 = vmatpush1.bf16.msra.mxu0 0
    %5321 = vmatprep.subr.bf16.mxu0 0
    %5322 = vmatpush1.bf16.msra.mxu0 0
    %5323 = vmatprep.subr.bf16.mxu0 0
    %5324 = vmatpush1.bf16.msra.mxu0 0
    %5325 = vmatprep.subr.bf16.mxu0 0
    %5326 = vmatpush1.bf16.msra.mxu0 0
    %5327 = vmatprep.subr.bf16.mxu0 0
    %5328 = vmatpush1.bf16.msra.mxu0 0
    %5329 = vmatprep.subr.bf16.mxu0 0
    %5330 = vmatpush1.bf16.msra.mxu0 0
    %5331 = vmatprep.mubr.bf16.mxu0 0
    %5332 = vmatmul.mubr.bf16.gmra.mrb[0].mxu0 %v5298
    %v5333 = vpop.f32.mrb[0].mxu0
    %v5334 = vadd.f32 0.0, %v5333
    %v5335 = vpop.f32.mrb[0].mxu0
    %v5336 = vadd.f32 0.0, %v5335
    %v5337 = vpop.f32.mrb[0].mxu0
    %v5338 = vpop.f32.mrb[0].mxu0
    %5339 = vdwg.mxu0
    %5340 = vmatprep.subr.bf16.mxu0 0
    %5341 = vmatpush1.bf16.msra.mxu0 %v1187
    %5342 = vmatprep.subr.bf16.mxu0 0
    %5343 = vmatpush1.bf16.msra.mxu0 %v1190
    %5344 = vmatprep.subr.bf16.mxu0 0
    %5345 = vmatpush1.bf16.msra.mxu0 %v1193
    %5346 = vmatprep.subr.bf16.mxu0 0
    %5347 = vmatpush1.bf16.msra.mxu0 %v1196
    %5348 = vmatprep.subr.bf16.mxu0 0
    %5349 = vmatpush1.bf16.msra.mxu0 %v1199
    %5350 = vmatprep.subr.bf16.mxu0 0
    %5351 = vmatpush1.bf16.msra.mxu0 %v1202
    %5352 = vmatprep.subr.bf16.mxu0 0
    %5353 = vmatpush1.bf16.msra.mxu0 %v1205
    %5354 = vmatprep.subr.bf16.mxu0 0
    %5355 = vmatpush1.bf16.msra.mxu0 %v1208
    %5356 = vmatprep.subr.bf16.mxu0 0
    %5357 = vmatpush1.bf16.msra.mxu0 0
    %5358 = vmatprep.subr.bf16.mxu0 0
    %5359 = vmatpush1.bf16.msra.mxu0 0
    %5360 = vmatprep.subr.bf16.mxu0 0
    %5361 = vmatpush1.bf16.msra.mxu0 0
    %5362 = vmatprep.subr.bf16.mxu0 0
    %5363 = vmatpush1.bf16.msra.mxu0 0
    %5364 = vmatprep.subr.bf16.mxu0 0
    %5365 = vmatpush1.bf16.msra.mxu0 0
    %5366 = vmatprep.subr.bf16.mxu0 0
    %5367 = vmatpush1.bf16.msra.mxu0 0
    %5368 = vmatprep.subr.bf16.mxu0 0
    %5369 = vmatpush1.bf16.msra.mxu0 0
    %5370 = vmatprep.subr.bf16.mxu0 0
    %5371 = vmatpush1.bf16.msra.mxu0 0
    %5372 = vmatprep.mubr.bf16.mxu0 0
    %5373 = vmatmul.mubr.bf16.gmra.mrb[0].mxu0 %v5298
    %v5374 = vpop.f32.mrb[0].mxu0
    %v5375 = vadd.f32 0.0, %v5374
    %v5376 = vpop.f32.mrb[0].mxu0
    %v5377 = vpop.f32.mrb[0].mxu0
    %v5378 = vpop.f32.mrb[0].mxu0
    %5379 = vdwg.mxu0
    %v5380 = vadd.f32 %v5252, %v5334
    %v5381 = vadd.f32 %v5254, %v5336
    %v5382 = vxor.u32 %v5380, 2147483648
    %v5383 = vxor.u32 %v5381, 2147483648
    %v5384 = vmul.f32 %v5382, 1.442695
    %v5385 = vpow.pop %v5384
    %v5386 = vmul.f32 %v5383, 1.442695
    %v5387 = vpow.pop %v5386
    %v5388 = vadd.f32 %v5385, 1.0
    %v5389 = vadd.f32 %v5387, 1.0
    %v5390 = vrcp.pop %v5388
    %v5391 = vmul.f32 1.0, %v5390
    %v5392 = vrcp.pop %v5389
    %v5393 = vmul.f32 1.0, %v5392
    %v5394 = vadd.f32 %v5375, %v1332
    %v5395 = vmul.f32 %v5391, %v5394
    %v5396 = vadd.f32 %v5293, %v5395
    %v5397 = vtanh.pop %v5396
    %v5398 = vsub.f32 %v5110, %v5397
    %v5399 = vmul.f32 %v5393, %v5398
    %v5400 = vadd.f32 %v5397, %v5399
    %v5401 = vld [vmem:[#allocation2 + $0x168] sm:$0xff]
    %v5402 = vld [vmem:[#allocation2 + $0x170] sm:$0xff]
    %v5403 = vld [vmem:[#allocation2 + $0x178] sm:$0xff]
    %5404 = vmatprep.subr.bf16.mxu0 %v723
    %5405 = vmatpush1.bf16.msra.mxu0 %v722
    %5406 = vmatprep.subr.bf16.mxu0 %v726
    %5407 = vmatpush1.bf16.msra.mxu0 %v725
    %5408 = vmatprep.subr.bf16.mxu0 %v729
    %5409 = vmatpush1.bf16.msra.mxu0 %v728
    %5410 = vmatprep.subr.bf16.mxu0 %v732
    %5411 = vmatpush1.bf16.msra.mxu0 %v731
    %5412 = vmatprep.subr.bf16.mxu0 %v735
    %5413 = vmatpush1.bf16.msra.mxu0 %v734
    %5414 = vmatprep.subr.bf16.mxu0 %v738
    %5415 = vmatpush1.bf16.msra.mxu0 %v737
    %5416 = vmatprep.subr.bf16.mxu0 %v741
    %5417 = vmatpush1.bf16.msra.mxu0 %v740
    %5418 = vmatprep.subr.bf16.mxu0 %v744
    %5419 = vmatpush1.bf16.msra.mxu0 %v743
    %5420 = vmatprep.subr.bf16.mxu0 0
    %5421 = vmatpush1.bf16.msra.mxu0 0
    %5422 = vmatprep.subr.bf16.mxu0 0
    %5423 = vmatpush1.bf16.msra.mxu0 0
    %5424 = vmatprep.subr.bf16.mxu0 0
    %5425 = vmatpush1.bf16.msra.mxu0 0
    %5426 = vmatprep.subr.bf16.mxu0 0
    %5427 = vmatpush1.bf16.msra.mxu0 0
    %5428 = vmatprep.subr.bf16.mxu0 0
    %5429 = vmatpush1.bf16.msra.mxu0 0
    %5430 = vmatprep.subr.bf16.mxu0 0
    %5431 = vmatpush1.bf16.msra.mxu0 0
    %5432 = vmatprep.subr.bf16.mxu0 0
    %5433 = vmatpush1.bf16.msra.mxu0 0
    %5434 = vmatprep.subr.bf16.mxu0 0
    %5435 = vmatpush1.bf16.msra.mxu0 0
    %5436 = vmatprep.mubr.bf16.mxu0 0
    %5437 = vmatmul.mubr.bf16.gmra.mrb[0].mxu0 %v5216
    %v5438 = vpop.f32.mrb[0].mxu0
    %v5439 = vadd.f32 0.0, %v5438
    %v5440 = vpop.f32.mrb[0].mxu0
    %v5441 = vadd.f32 0.0, %v5440
    %v5442 = vpop.f32.mrb[0].mxu0
    %v5443 = vpop.f32.mrb[0].mxu0
    %5444 = vdwg.mxu0
    %5445 = vmatprep.subr.bf16.mxu0 0
    %5446 = vmatpush1.bf16.msra.mxu0 %v724
    %5447 = vmatprep.subr.bf16.mxu0 0
    %5448 = vmatpush1.bf16.msra.mxu0 %v727
    %5449 = vmatprep.subr.bf16.mxu0 0
    %5450 = vmatpush1.bf16.msra.mxu0 %v730
    %5451 = vmatprep.subr.bf16.mxu0 0
    %5452 = vmatpush1.bf16.msra.mxu0 %v733
    %5453 = vmatprep.subr.bf16.mxu0 0
    %5454 = vmatpush1.bf16.msra.mxu0 %v736
    %5455 = vmatprep.subr.bf16.mxu0 0
    %5456 = vmatpush1.bf16.msra.mxu0 %v739
    %5457 = vmatprep.subr.bf16.mxu0 0
    %5458 = vmatpush1.bf16.msra.mxu0 %v742
    %5459 = vmatprep.subr.bf16.mxu0 0
    %5460 = vmatpush1.bf16.msra.mxu0 %v745
    %5461 = vmatprep.subr.bf16.mxu0 0
    %5462 = vmatpush1.bf16.msra.mxu0 0
    %5463 = vmatprep.subr.bf16.mxu0 0
    %5464 = vmatpush1.bf16.msra.mxu0 0
    %5465 = vmatprep.subr.bf16.mxu0 0
    %5466 = vmatpush1.bf16.msra.mxu0 0
    %5467 = vmatprep.subr.bf16.mxu0 0
    %5468 = vmatpush1.bf16.msra.mxu0 0
    %5469 = vmatprep.subr.bf16.mxu0 0
    %5470 = vmatpush1.bf16.msra.mxu0 0
    %5471 = vmatprep.subr.bf16.mxu0 0
    %5472 = vmatpush1.bf16.msra.mxu0 0
    %5473 = vmatprep.subr.bf16.mxu0 0
    %5474 = vmatpush1.bf16.msra.mxu0 0
    %5475 = vmatprep.subr.bf16.mxu0 0
    %5476 = vmatpush1.bf16.msra.mxu0 0
    %5477 = vmatprep.mubr.bf16.mxu0 0
    %5478 = vmatmul.mubr.bf16.gmra.mrb[0].mxu0 %v5216
    %v5479 = vpop.f32.mrb[0].mxu0
    %v5480 = vadd.f32 0.0, %v5479
    %v5481 = vpop.f32.mrb[0].mxu0
    %v5482 = vpop.f32.mrb[0].mxu0
    %v5483 = vpop.f32.mrb[0].mxu0
    %5484 = vdwg.mxu0
    %v5485 = vadd.f32 %v5401, %v5439
    %v5486 = vadd.f32 %v5402, %v5441
    %v5487 = vxor.u32 %v5485, 2147483648
    %v5488 = vxor.u32 %v5486, 2147483648
    %v5489 = vmul.f32 %v5487, 1.442695
    %v5490 = vpow.pop %v5489
    %v5491 = vmul.f32 %v5488, 1.442695
    %v5492 = vpow.pop %v5491
    %v5493 = vadd.f32 %v5490, 1.0
    %v5494 = vadd.f32 %v5492, 1.0
    %v5495 = vrcp.pop %v5493
    %v5496 = vmul.f32 1.0, %v5495
    %v5497 = vrcp.pop %v5494
    %v5498 = vmul.f32 1.0, %v5497
    %v5499 = vadd.f32 %v5480, %v869
    %v5500 = vmul.f32 %v5496, %v5499
    %v5501 = vadd.f32 %v5403, %v5500
    %v5502 = vtanh.pop %v5501
    %v5503 = vsub.f32 %v5215, %v5502
    %v5504 = vmul.f32 %v5498, %v5503
    %v5505 = vadd.f32 %v5502, %v5504
    %v5506 = vpack.c.bf16 %v5505, %v5505
    %5507 = vmatprep.subr.bf16.mxu0 %v976
    %5508 = vmatpush1.bf16.msra.mxu0 %v975
    %5509 = vmatprep.subr.bf16.mxu0 %v979
    %5510 = vmatpush1.bf16.msra.mxu0 %v978
    %5511 = vmatprep.subr.bf16.mxu0 %v982
    %5512 = vmatpush1.bf16.msra.mxu0 %v981
    %5513 = vmatprep.subr.bf16.mxu0 %v985
    %5514 = vmatpush1.bf16.msra.mxu0 %v984
    %5515 = vmatprep.subr.bf16.mxu0 %v988
    %5516 = vmatpush1.bf16.msra.mxu0 %v987
    %5517 = vmatprep.subr.bf16.mxu0 %v991
    %5518 = vmatpush1.bf16.msra.mxu0 %v990
    %5519 = vmatprep.subr.bf16.mxu0 %v994
    %5520 = vmatpush1.bf16.msra.mxu0 %v993
    %5521 = vmatprep.subr.bf16.mxu0 %v997
    %5522 = vmatpush1.bf16.msra.mxu0 %v996
    %5523 = vmatprep.subr.bf16.mxu0 0
    %5524 = vmatpush1.bf16.msra.mxu0 0
    %5525 = vmatprep.subr.bf16.mxu0 0
    %5526 = vmatpush1.bf16.msra.mxu0 0
    %5527 = vmatprep.subr.bf16.mxu0 0
    %5528 = vmatpush1.bf16.msra.mxu0 0
    %5529 = vmatprep.subr.bf16.mxu0 0
    %5530 = vmatpush1.bf16.msra.mxu0 0
    %5531 = vmatprep.subr.bf16.mxu0 0
    %5532 = vmatpush1.bf16.msra.mxu0 0
    %5533 = vmatprep.subr.bf16.mxu0 0
    %5534 = vmatpush1.bf16.msra.mxu0 0
    %5535 = vmatprep.subr.bf16.mxu0 0
    %5536 = vmatpush1.bf16.msra.mxu0 0
    %5537 = vmatprep.subr.bf16.mxu0 0
    %5538 = vmatpush1.bf16.msra.mxu0 0
    %5539 = vmatprep.mubr.bf16.mxu0 0
    %5540 = vmatmul.mubr.bf16.gmra.mrb[0].mxu0 %v5506
    %v5541 = vpop.f32.mrb[0].mxu0
    %v5542 = vadd.f32 %v883, %v5541
    %v5543 = vpop.f32.mrb[0].mxu0
    %v5544 = vadd.f32 %v887, %v5543
    %v5545 = vpop.f32.mrb[0].mxu0
    %v5546 = vpop.f32.mrb[0].mxu0
    %5547 = vdwg.mxu0
    %5548 = vmatprep.subr.bf16.mxu0 0
    %5549 = vmatpush1.bf16.msra.mxu0 %v977
    %5550 = vmatprep.subr.bf16.mxu0 0
    %5551 = vmatpush1.bf16.msra.mxu0 %v980
    %5552 = vmatprep.subr.bf16.mxu0 0
    %5553 = vmatpush1.bf16.msra.mxu0 %v983
    %5554 = vmatprep.subr.bf16.mxu0 0
    %5555 = vmatpush1.bf16.msra.mxu0 %v986
    %5556 = vmatprep.subr.bf16.mxu0 0
    %5557 = vmatpush1.bf16.msra.mxu0 %v989
    %5558 = vmatprep.subr.bf16.mxu0 0
    %5559 = vmatpush1.bf16.msra.mxu0 %v992
    %5560 = vmatprep.subr.bf16.mxu0 0
    %5561 = vmatpush1.bf16.msra.mxu0 %v995
    %5562 = vmatprep.subr.bf16.mxu0 0
    %5563 = vmatpush1.bf16.msra.mxu0 %v998
    %5564 = vmatprep.subr.bf16.mxu0 0
    %5565 = vmatpush1.bf16.msra.mxu0 0
    %5566 = vmatprep.subr.bf16.mxu0 0
    %5567 = vmatpush1.bf16.msra.mxu0 0
    %5568 = vmatprep.subr.bf16.mxu0 0
    %5569 = vmatpush1.bf16.msra.mxu0 0
    %5570 = vmatprep.subr.bf16.mxu0 0
    %5571 = vmatpush1.bf16.msra.mxu0 0
    %5572 = vmatprep.subr.bf16.mxu0 0
    %5573 = vmatpush1.bf16.msra.mxu0 0
    %5574 = vmatprep.subr.bf16.mxu0 0
    %5575 = vmatpush1.bf16.msra.mxu0 0
    %5576 = vmatprep.subr.bf16.mxu0 0
    %5577 = vmatpush1.bf16.msra.mxu0 0
    %5578 = vmatprep.subr.bf16.mxu0 0
    %5579 = vmatpush1.bf16.msra.mxu0 0
    %5580 = vmatprep.mubr.bf16.mxu0 0
    %5581 = vmatmul.mubr.bf16.gmra.mrb[0].mxu0 %v5506
    %v5582 = vpop.f32.mrb[0].mxu0
    %v5583 = vadd.f32 %v891, %v5582
    %v5584 = vpop.f32.mrb[0].mxu0
    %v5585 = vpop.f32.mrb[0].mxu0
    %v5586 = vpop.f32.mrb[0].mxu0
    %5587 = vdwg.mxu0
    %v5588 = vpack.c.bf16 %v5400, %v5400
    %5589 = vmatprep.subr.bf16.mxu0 %v1186
    %5590 = vmatpush1.bf16.msra.mxu0 %v1185
    %5591 = vmatprep.subr.bf16.mxu0 %v1189
    %5592 = vmatpush1.bf16.msra.mxu0 %v1188
    %5593 = vmatprep.subr.bf16.mxu0 %v1192
    %5594 = vmatpush1.bf16.msra.mxu0 %v1191
    %5595 = vmatprep.subr.bf16.mxu0 %v1195
    %5596 = vmatpush1.bf16.msra.mxu0 %v1194
    %5597 = vmatprep.subr.bf16.mxu0 %v1198
    %5598 = vmatpush1.bf16.msra.mxu0 %v1197
    %5599 = vmatprep.subr.bf16.mxu0 %v1201
    %5600 = vmatpush1.bf16.msra.mxu0 %v1200
    %5601 = vmatprep.subr.bf16.mxu0 %v1204
    %5602 = vmatpush1.bf16.msra.mxu0 %v1203
    %5603 = vmatprep.subr.bf16.mxu0 %v1207
    %5604 = vmatpush1.bf16.msra.mxu0 %v1206
    %5605 = vmatprep.subr.bf16.mxu0 0
    %5606 = vmatpush1.bf16.msra.mxu0 0
    %5607 = vmatprep.subr.bf16.mxu0 0
    %5608 = vmatpush1.bf16.msra.mxu0 0
    %5609 = vmatprep.subr.bf16.mxu0 0
    %5610 = vmatpush1.bf16.msra.mxu0 0
    %5611 = vmatprep.subr.bf16.mxu0 0
    %5612 = vmatpush1.bf16.msra.mxu0 0
    %5613 = vmatprep.subr.bf16.mxu0 0
    %5614 = vmatpush1.bf16.msra.mxu0 0
    %5615 = vmatprep.subr.bf16.mxu0 0
    %5616 = vmatpush1.bf16.msra.mxu0 0
    %5617 = vmatprep.subr.bf16.mxu0 0
    %5618 = vmatpush1.bf16.msra.mxu0 0
    %5619 = vmatprep.subr.bf16.mxu0 0
    %5620 = vmatpush1.bf16.msra.mxu0 0
    %5621 = vmatprep.mubr.bf16.mxu0 0
    %5622 = vmatmul.mubr.bf16.gmra.mrb[0].mxu0 %v5588
    %v5623 = vpop.f32.mrb[0].mxu0
    %v5624 = vadd.f32 0.0, %v5623
    %v5625 = vpop.f32.mrb[0].mxu0
    %v5626 = vadd.f32 0.0, %v5625
    %v5627 = vpop.f32.mrb[0].mxu0
    %v5628 = vpop.f32.mrb[0].mxu0
    %5629 = vdwg.mxu0
    %5630 = vmatprep.subr.bf16.mxu0 0
    %5631 = vmatpush1.bf16.msra.mxu0 %v1187
    %5632 = vmatprep.subr.bf16.mxu0 0
    %5633 = vmatpush1.bf16.msra.mxu0 %v1190
    %5634 = vmatprep.subr.bf16.mxu0 0
    %5635 = vmatpush1.bf16.msra.mxu0 %v1193
    %5636 = vmatprep.subr.bf16.mxu0 0
    %5637 = vmatpush1.bf16.msra.mxu0 %v1196
    %5638 = vmatprep.subr.bf16.mxu0 0
    %5639 = vmatpush1.bf16.msra.mxu0 %v1199
    %5640 = vmatprep.subr.bf16.mxu0 0
    %5641 = vmatpush1.bf16.msra.mxu0 %v1202
    %5642 = vmatprep.subr.bf16.mxu0 0
    %5643 = vmatpush1.bf16.msra.mxu0 %v1205
    %5644 = vmatprep.subr.bf16.mxu0 0
    %5645 = vmatpush1.bf16.msra.mxu0 %v1208
    %5646 = vmatprep.subr.bf16.mxu0 0
    %5647 = vmatpush1.bf16.msra.mxu0 0
    %5648 = vmatprep.subr.bf16.mxu0 0
    %5649 = vmatpush1.bf16.msra.mxu0 0
    %5650 = vmatprep.subr.bf16.mxu0 0
    %5651 = vmatpush1.bf16.msra.mxu0 0
    %5652 = vmatprep.subr.bf16.mxu0 0
    %5653 = vmatpush1.bf16.msra.mxu0 0
    %5654 = vmatprep.subr.bf16.mxu0 0
    %5655 = vmatpush1.bf16.msra.mxu0 0
    %5656 = vmatprep.subr.bf16.mxu0 0
    %5657 = vmatpush1.bf16.msra.mxu0 0
    %5658 = vmatprep.subr.bf16.mxu0 0
    %5659 = vmatpush1.bf16.msra.mxu0 0
    %5660 = vmatprep.subr.bf16.mxu0 0
    %5661 = vmatpush1.bf16.msra.mxu0 0
    %5662 = vmatprep.mubr.bf16.mxu0 0
    %5663 = vmatmul.mubr.bf16.gmra.mrb[0].mxu0 %v5588
    %v5664 = vpop.f32.mrb[0].mxu0
    %v5665 = vadd.f32 0.0, %v5664
    %v5666 = vpop.f32.mrb[0].mxu0
    %v5667 = vpop.f32.mrb[0].mxu0
    %v5668 = vpop.f32.mrb[0].mxu0
    %5669 = vdwg.mxu0
    %v5670 = vadd.f32 %v5542, %v5624
    %v5671 = vadd.f32 %v5544, %v5626
    %v5672 = vxor.u32 %v5670, 2147483648
    %v5673 = vxor.u32 %v5671, 2147483648
    %v5674 = vmul.f32 %v5672, 1.442695
    %v5675 = vpow.pop %v5674
    %v5676 = vmul.f32 %v5673, 1.442695
    %v5677 = vpow.pop %v5676
    %v5678 = vadd.f32 %v5675, 1.0
    %v5679 = vadd.f32 %v5677, 1.0
    %v5680 = vrcp.pop %v5678
    %v5681 = vmul.f32 1.0, %v5680
    %v5682 = vrcp.pop %v5679
    %v5683 = vmul.f32 1.0, %v5682
    %v5684 = vadd.f32 %v5665, %v1332
    %v5685 = vmul.f32 %v5681, %v5684
    %v5686 = vadd.f32 %v5583, %v5685
    %v5687 = vtanh.pop %v5686
    %v5688 = vsub.f32 %v5400, %v5687
    %v5689 = vmul.f32 %v5683, %v5688
    %v5690 = vadd.f32 %v5687, %v5689
    %5691 = vst [vmem:[%s10] sm:$0xff] %v5505
    %s5692 = scalar_lea.vmem %s10, 8
    %5693 = vst [vmem:[%s5692] sm:$0xff] %v5690
    // Predicated region
    $region54: #{_dialog_gru_forward.1} parent=1 // pred_check
      _
    $region55: #{_dialog_gru_forward.1} parent=1 // pred_check_branch
      %5695 = sbr.rel (0) target = $region57
    $region56: #{_dialog_gru_forward.1} parent=1 // pred_region
      _
    $region57: #{_dialog_gru_forward.1} parent=1 // pred_fallthru
      _
    // Predicated region
    $region58: #{_dialog_gru_forward.1} parent=1 // pred_check
      _
    $region59: #{_dialog_gru_forward.1} parent=1 // pred_check_branch
      %5697 = sbr.rel (0) target = $region61
    $region60: #{_dialog_gru_forward.1} parent=1 // pred_region
      _
    $region61: #{_dialog_gru_forward.1} parent=1 // pred_fallthru
      _
    %5698 = vsyncpa [#allocation4], 1
    %5699 = vsyncpa [#allocation6], 1

</llo_original>
